<compile_context>
chip_gen: v6e
topology: v6e:2x2x1
jax: 0.10.0
libtpu: 0.0.40
codegen_flags: <defaults>
</compile_context>

<pallas_src>
import functools
import math

import jax
import jax.numpy as jnp
from jax.experimental import pallas as pl
from jax.experimental.pallas import tpu as pltpu

NEG_SLOPE = 0.2          # GATv2Conv default negative_slope
NEG_INF = -1e30


def _has_bf16_valu():
    """bf16 elementwise is a win on v6e/v7x; v5e's VPU has no bf16 path."""
    try:
        kind = jax.devices()[0].device_kind.lower()
    except Exception:
        return True
    return not ("v5 lite" in kind or "v5e" in kind or "v5litepod" in kind)


def _gatv2_layer(x, wlr, bstack, att_p, mask_b, *, hc, apply_elu, ew_bf16):
    """One GATv2Conv layer, all heads fused and lane-dense.

    x      : [N, Fin]    node features (f32)
    wlr    : [Fin, 2*HC] bf16  [lin_l | lin_r] fused weights
    bstack : [3, HC]     f32   rows = (lin_l bias, lin_r bias, output bias)
    att_p  : [HC, HC]    bf16  replicated block-diag attention matrix:
                               att_p[h*C+c, h2*C+c2] = att[h, c] * (h == h2)
    mask_b : [N, N, 1]   f32   additive softmax bias (0 attend / -1e30 blocked)
    returns: [N, HC]     f32   per-head outputs in concat layout
    """
    n = x.shape[0]
    ew_dtype = jnp.bfloat16 if ew_bf16 else jnp.float32

    # Fused lin_l|lin_r projection: one 2*HC-wide MXU matmul (f32 accumulate).
    xlr = jnp.dot(x.astype(jnp.bfloat16), wlr, preferred_element_type=jnp.float32)
    xl = xlr[:, :hc] + bstack[0:1, :]          # source (lin_l) projection, f32
    xr = xlr[:, hc:] + bstack[1:2, :]          # target (lin_r) projection, f32

    xl_e = xl.astype(ew_dtype)
    xr_e = xr.astype(ew_dtype)

    # Pairwise sums over the full heads*C width (lane-dense):
    #   s[i, j, :] = xr_i + xl_j, then LeakyReLU as max(s, slope*s).
    s = xr_e[:, None, :] + xl_e[None, :, :]                  # [N, N, HC]
    s = jnp.maximum(s, s * NEG_SLOPE)

    # One MXU matmul computes every head's score, replicated across that
    # head's channel block:  e[i*N+j, h*C+c] = a_h . leaky(xr_i + xl_j)  for all c.
    s2 = s.reshape(n * n, hc).astype(jnp.bfloat16)
    e = jnp.dot(s2, att_p, preferred_element_type=jnp.float32).reshape(n, n, hc)
    # Additive mask keeps the row max exact over the attended set (self-loop
    # always present), so the surviving exps never collectively underflow.
    e = e + mask_b

    # Masked softmax over source nodes j (axis=1); statistics in f32.
    # Blocked entries exp to exactly 0 -> no further masking downstream.
    m = jnp.max(e, axis=1, keepdims=True)                    # [N, 1, HC]
    p = jnp.exp(e - m)                                       # [N, N, HC] f32
    denom = jnp.sum(p, axis=1)                               # [N, HC]   f32

    # Aggregate un-normalized source messages (lin_l projections), then
    # normalize once per (i, h*C+c).  alpha is never materialized.
    acc = jnp.sum(p.astype(ew_dtype) * xl_e[None, :, :], axis=1,
                  dtype=jnp.float32)                         # [N, HC] f32
    out = acc * pl.reciprocal(denom, approx=True) + bstack[2:3, :]

    if apply_elu:
        out = jnp.where(out > 0.0, out, jnp.exp(jnp.minimum(out, 0.0)) - 1.0)
    return out


def gat2_fused_kernel(x_ref, mask_ref,
                      wlr1_ref, b1_ref, p1_ref,
                      wlr2_ref, b2_ref, p2_ref,
                      out_ref, *, hc1, hc2, ew_bf16):
    """Both GATv2 layers (conv1 + ELU, conv2) fused in one kernel."""
    mask_b = mask_ref[...]                                   # [N, N, 1] f32

    h = _gatv2_layer(x_ref[...], wlr1_ref[...], b1_ref[...], p1_ref[...],
                     mask_b, hc=hc1, apply_elu=True, ew_bf16=ew_bf16)

    # conv2: heads=1, concat=False => mean over 1 head is identity.
    # Its score matmul is K=8/Nout=8 (poor MXU shape) but negligible here.
    o = _gatv2_layer(h, wlr2_ref[...], b2_ref[...], p2_ref[...],
                     mask_b, hc=hc2, apply_elu=False, ew_bf16=ew_bf16)
    out_ref[...] = o.astype(out_ref.dtype)


def _replicated_block_diag(att):
    """att [H, C] -> P [H*C, H*C] with P[h*C+c, h2*C+c2] = att[h, c]*(h==h2)."""
    h, c = att.shape
    eye = jnp.eye(h, dtype=att.dtype)
    blocks = att[:, :, None, None] * eye[:, None, :, None]   # [H, C, H, 1]
    blocks = jnp.broadcast_to(blocks, (h, c, h, c))
    return blocks.reshape(h * c, h * c)


def prepare_gat2(params, adj):
    """One-time parameter / graph preprocessing (kept out of the hot path)."""
    n = adj.shape[0]
    # target i attends source j iff adj[j, i] != 0; self-loops always on.
    attend = (adj.T != 0.0) | jnp.eye(n, dtype=bool)
    mask_b = jnp.where(attend, 0.0, NEG_INF).astype(jnp.float32)[:, :, None]

    pack_w = lambda wl, wr: jnp.concatenate([wl, wr], axis=1).astype(jnp.bfloat16)
    pack_b = lambda bl, br, b: jnp.concatenate([bl, br, b], axis=0).astype(jnp.float32)

    return dict(
        hc1=int(params["wl1"].shape[1]), hc2=int(params["wl2"].shape[1]),
        mask_b=mask_b,
        wlr1=pack_w(params["wl1"], params["wr1"]),
        b1=pack_b(params["bl1"], params["br1"], params["bias1"]),
        p1=_replicated_block_diag(params["att1"]).astype(jnp.bfloat16),
        wlr2=pack_w(params["wl2"], params["wr2"]),
        b2=pack_b(params["bl2"], params["br2"], params["bias2"]),
        p2=_replicated_block_diag(params["att2"]).astype(jnp.bfloat16),
    )


def gat2_forward(x, prep, *, ew_bf16=None):
    """Equivalent of GAT2.forward(x, adj) in eval mode (dropout = identity)."""
    n = x.shape[0]
    if ew_bf16 is None:
        ew_bf16 = _has_bf16_valu()
    kernel = functools.partial(gat2_fused_kernel,
                               hc1=prep["hc1"], hc2=prep["hc2"], ew_bf16=ew_bf16)
    vmem = pl.BlockSpec(memory_space=pltpu.MemorySpace.VMEM)
    args = (x.astype(jnp.float32), prep["mask_b"],
            prep["wlr1"], prep["b1"], prep["p1"],
            prep["wlr2"], prep["b2"], prep["p2"])
    return pl.pallas_call(
        kernel,
        out_shape=jax.ShapeDtypeStruct((n, prep["hc2"]), jnp.float32),
        in_specs=[vmem] * len(args),
        out_specs=vmem,
    )(*args)


def _glorot(key, shape):
    fan_in, fan_out = shape[-2], shape[-1]
    lim = math.sqrt(6.0 / (fan_in + fan_out))
    return jax.random.uniform(key, shape, jnp.float32, -lim, lim)


if __name__ == "__main__":
    key = jax.random.PRNGKey(0)
    N, n_feat, n_hid, n_classes, heads = 32, 16, 16, 8, 8

    ks = jax.random.split(key, 10)
    x = jax.random.normal(ks[0], (N, n_feat), jnp.float32)
    adj = (jax.random.uniform(ks[1], (N, N)) < 0.3).astype(jnp.float32)

    params = dict(
        # conv1: GATv2Conv(n_feat, n_hid, heads=8)
        wl1=_glorot(ks[2], (n_feat, heads * n_hid)),
        wr1=_glorot(ks[3], (n_feat, heads * n_hid)),
        bl1=jnp.zeros((1, heads * n_hid), jnp.float32),
        br1=jnp.zeros((1, heads * n_hid), jnp.float32),
        att1=_glorot(ks[4], (heads, n_hid)),
        bias1=jnp.zeros((1, heads * n_hid), jnp.float32),
        # conv2: GATv2Conv(n_hid*heads, n_classes, heads=1, concat=False)
        wl2=_glorot(ks[5], (heads * n_hid, n_classes)),
        wr2=_glorot(ks[6], (heads * n_hid, n_classes)),
        bl2=jnp.zeros((1, n_classes), jnp.float32),
        br2=jnp.zeros((1, n_classes), jnp.float32),
        att2=_glorot(ks[7], (1, n_classes)),
        bias2=jnp.zeros((1, n_classes), jnp.float32),
    )

    prep = prepare_gat2(params, adj)          # one-time graph/param packing
    out = gat2_forward(x, prep)
    jax.block_until_ready(out)
    assert out.shape == (N, n_classes)
    print("KERNEL_OK")
</pallas_src>

<mosaic_0001>
module attributes {stable_mosaic.version = 11 : i64} {
  func.func @gat2_fused_kernel(%arg0: memref<32x16xf32, #tpu.memory_space<vmem>>, %arg1: memref<32x32x1xf32, #tpu.memory_space<vmem>>, %arg2: memref<16x256xbf16, #tpu.memory_space<vmem>>, %arg3: memref<3x128xf32, #tpu.memory_space<vmem>>, %arg4: memref<128x128xbf16, #tpu.memory_space<vmem>>, %arg5: memref<128x16xbf16, #tpu.memory_space<vmem>>, %arg6: memref<3x8xf32, #tpu.memory_space<vmem>>, %arg7: memref<8x8xbf16, #tpu.memory_space<vmem>>, %arg8: memref<32x8xf32, #tpu.memory_space<vmem>>) attributes {dimension_semantics = [], scalar_prefetch = 0 : i64, scratch_operands = 0 : i64, tpu.core_type = #tpu.core_type<tc>} {
    %c0 = arith.constant 0 : index
    %c0_0 = arith.constant 0 : index
    %c0_1 = arith.constant 0 : index
    %0 = vector.load %arg1[%c0, %c0_0, %c0_1] : memref<32x32x1xf32, #tpu.memory_space<vmem>>, vector<32x32x1xf32>
    %c0_2 = arith.constant 0 : index
    %c0_3 = arith.constant 0 : index
    %1 = vector.load %arg0[%c0_2, %c0_3] : memref<32x16xf32, #tpu.memory_space<vmem>>, vector<32x16xf32>
    %c0_4 = arith.constant 0 : index
    %c0_5 = arith.constant 0 : index
    %2 = vector.load %arg2[%c0_4, %c0_5] : memref<16x256xbf16, #tpu.memory_space<vmem>>, vector<16x256xbf16>
    %c0_6 = arith.constant 0 : index
    %c0_7 = arith.constant 0 : index
    %3 = vector.load %arg3[%c0_6, %c0_7] : memref<3x128xf32, #tpu.memory_space<vmem>>, vector<3x128xf32>
    %c0_8 = arith.constant 0 : index
    %c0_9 = arith.constant 0 : index
    %4 = vector.load %arg4[%c0_8, %c0_9] : memref<128x128xbf16, #tpu.memory_space<vmem>>, vector<128x128xbf16>
    %5 = arith.truncf %1 : vector<32x16xf32> to vector<32x16xbf16>
    %cst = arith.constant dense<0.000000e+00> : vector<32x256xf32>
    %6 = tpu.matmul %5, %2, %cst {dimension_numbers = #tpu.dot_dimension_numbers<[1], [0], [0], [1], [0, 0, 1, 1], [], []>} : vector<32x16xbf16>, vector<16x256xbf16>, vector<32x256xf32> -> vector<32x256xf32>
    %7 = vector.extract_strided_slice %6 {offsets = [0, 0], sizes = [32, 128], strides = [1, 1]} : vector<32x256xf32> to vector<32x128xf32>
    %8 = vector.extract_strided_slice %3 {offsets = [0, 0], sizes = [1, 128], strides = [1, 1]} : vector<3x128xf32> to vector<1x128xf32>
    %9 = vector.broadcast %8 : vector<1x128xf32> to vector<32x128xf32>
    %10 = arith.addf %7, %9 : vector<32x128xf32>
    %11 = vector.extract_strided_slice %6 {offsets = [0, 128], sizes = [32, 128], strides = [1, 1]} : vector<32x256xf32> to vector<32x128xf32>
    %12 = vector.extract_strided_slice %3 {offsets = [1, 0], sizes = [1, 128], strides = [1, 1]} : vector<3x128xf32> to vector<1x128xf32>
    %13 = vector.broadcast %12 : vector<1x128xf32> to vector<32x128xf32>
    %14 = arith.addf %11, %13 : vector<32x128xf32>
    %15 = arith.truncf %10 : vector<32x128xf32> to vector<32x128xbf16>
    %16 = arith.truncf %14 : vector<32x128xf32> to vector<32x128xbf16>
    %17 = vector.shape_cast %16 : vector<32x128xbf16> to vector<32x1x128xbf16>
    %18 = vector.shape_cast %15 : vector<32x128xbf16> to vector<1x32x128xbf16>
    %19 = vector.broadcast %17 : vector<32x1x128xbf16> to vector<32x32x128xbf16>
    %20 = vector.broadcast %18 : vector<1x32x128xbf16> to vector<32x32x128xbf16>
    %21 = arith.addf %19, %20 : vector<32x32x128xbf16>
    %cst_10 = arith.constant 2.001950e-01 : bf16
    %22 = vector.broadcast %cst_10 : bf16 to vector<32x32x128xbf16>
    %23 = arith.mulf %21, %22 : vector<32x32x128xbf16>
    %24 = arith.maximumf %21, %23 : vector<32x32x128xbf16>
    %25 = vector.shape_cast %24 : vector<32x32x128xbf16> to vector<1024x128xbf16>
    %cst_11 = arith.constant dense<0.000000e+00> : vector<1024x128xf32>
    %26 = tpu.matmul %25, %4, %cst_11 {dimension_numbers = #tpu.dot_dimension_numbers<[1], [0], [0], [1], [0, 0, 1, 1], [], []>} : vector<1024x128xbf16>, vector<128x128xbf16>, vector<1024x128xf32> -> vector<1024x128xf32>
    %27 = vector.shape_cast %26 : vector<1024x128xf32> to vector<32x32x128xf32>
    %28 = vector.broadcast %0 : vector<32x32x1xf32> to vector<32x32x128xf32>
    %29 = arith.addf %27, %28 : vector<32x32x128xf32>
    %cst_12 = arith.constant dense<0xFF800000> : vector<32x128xf32>
    %30 = vector.multi_reduction <maximumf>, %29, %cst_12 [1] : vector<32x32x128xf32> to vector<32x128xf32>
    %31 = vector.shape_cast %30 : vector<32x128xf32> to vector<32x1x128xf32>
    %32 = vector.broadcast %31 : vector<32x1x128xf32> to vector<32x32x128xf32>
    %33 = arith.subf %29, %32 : vector<32x32x128xf32>
    %34 = math.exp %33 : vector<32x32x128xf32>
    %cst_13 = arith.constant dense<0.000000e+00> : vector<32x128xf32>
    %35 = vector.multi_reduction <add>, %34, %cst_13 [1] : vector<32x32x128xf32> to vector<32x128xf32>
    %36 = arith.truncf %34 : vector<32x32x128xf32> to vector<32x32x128xbf16>
    %37 = vector.shape_cast %15 : vector<32x128xbf16> to vector<1x32x128xbf16>
    %38 = vector.broadcast %37 : vector<1x32x128xbf16> to vector<32x32x128xbf16>
    %39 = arith.mulf %36, %38 : vector<32x32x128xbf16>
    %40 = arith.extf %39 : vector<32x32x128xbf16> to vector<32x32x128xf32>
    %cst_14 = arith.constant dense<0.000000e+00> : vector<32x128xf32>
    %41 = vector.multi_reduction <add>, %40, %cst_14 [1] : vector<32x32x128xf32> to vector<32x128xf32>
    %42 = tpu.reciprocal %35 {approx = true} : vector<32x128xf32> -> vector<32x128xf32>
    %43 = arith.mulf %41, %42 : vector<32x128xf32>
    %44 = vector.extract_strided_slice %3 {offsets = [2, 0], sizes = [1, 128], strides = [1, 1]} : vector<3x128xf32> to vector<1x128xf32>
    %45 = vector.broadcast %44 : vector<1x128xf32> to vector<32x128xf32>
    %46 = arith.addf %43, %45 : vector<32x128xf32>
    %cst_15 = arith.constant 0.000000e+00 : f32
    %47 = vector.broadcast %cst_15 : f32 to vector<32x128xf32>
    %48 = arith.cmpf ogt, %46, %47 : vector<32x128xf32>
    %cst_16 = arith.constant 0.000000e+00 : f32
    %49 = vector.broadcast %cst_16 : f32 to vector<32x128xf32>
    %50 = arith.minimumf %46, %49 : vector<32x128xf32>
    %51 = math.exp %50 : vector<32x128xf32>
    %cst_17 = arith.constant 1.000000e+00 : f32
    %52 = vector.broadcast %cst_17 : f32 to vector<32x128xf32>
    %53 = arith.subf %51, %52 : vector<32x128xf32>
    %54 = arith.select %48, %46, %53 : vector<32x128xi1>, vector<32x128xf32>
    %c0_18 = arith.constant 0 : index
    %c0_19 = arith.constant 0 : index
    %55 = vector.load %arg5[%c0_18, %c0_19] : memref<128x16xbf16, #tpu.memory_space<vmem>>, vector<128x16xbf16>
    %c0_20 = arith.constant 0 : index
    %c0_21 = arith.constant 0 : index
    %56 = vector.load %arg6[%c0_20, %c0_21] : memref<3x8xf32, #tpu.memory_space<vmem>>, vector<3x8xf32>
    %c0_22 = arith.constant 0 : index
    %c0_23 = arith.constant 0 : index
    %57 = vector.load %arg7[%c0_22, %c0_23] : memref<8x8xbf16, #tpu.memory_space<vmem>>, vector<8x8xbf16>
    %58 = arith.truncf %54 : vector<32x128xf32> to vector<32x128xbf16>
    %cst_24 = arith.constant dense<0.000000e+00> : vector<32x16xf32>
    %59 = tpu.matmul %58, %55, %cst_24 {dimension_numbers = #tpu.dot_dimension_numbers<[1], [0], [0], [1], [0, 0, 1, 1], [], []>} : vector<32x128xbf16>, vector<128x16xbf16>, vector<32x16xf32> -> vector<32x16xf32>
    %60 = vector.extract_strided_slice %59 {offsets = [0, 0], sizes = [32, 8], strides = [1, 1]} : vector<32x16xf32> to vector<32x8xf32>
    %61 = vector.extract_strided_slice %56 {offsets = [0, 0], sizes = [1, 8], strides = [1, 1]} : vector<3x8xf32> to vector<1x8xf32>
    %62 = vector.broadcast %61 : vector<1x8xf32> to vector<32x8xf32>
    %63 = arith.addf %60, %62 : vector<32x8xf32>
    %64 = vector.extract_strided_slice %59 {offsets = [0, 8], sizes = [32, 8], strides = [1, 1]} : vector<32x16xf32> to vector<32x8xf32>
    %65 = vector.extract_strided_slice %56 {offsets = [1, 0], sizes = [1, 8], strides = [1, 1]} : vector<3x8xf32> to vector<1x8xf32>
    %66 = vector.broadcast %65 : vector<1x8xf32> to vector<32x8xf32>
    %67 = arith.addf %64, %66 : vector<32x8xf32>
    %68 = arith.truncf %63 : vector<32x8xf32> to vector<32x8xbf16>
    %69 = arith.truncf %67 : vector<32x8xf32> to vector<32x8xbf16>
    %70 = vector.shape_cast %69 : vector<32x8xbf16> to vector<32x1x8xbf16>
    %71 = vector.shape_cast %68 : vector<32x8xbf16> to vector<1x32x8xbf16>
    %72 = vector.broadcast %70 : vector<32x1x8xbf16> to vector<32x32x8xbf16>
    %73 = vector.broadcast %71 : vector<1x32x8xbf16> to vector<32x32x8xbf16>
    %74 = arith.addf %72, %73 : vector<32x32x8xbf16>
    %cst_25 = arith.constant 2.001950e-01 : bf16
    %75 = vector.broadcast %cst_25 : bf16 to vector<32x32x8xbf16>
    %76 = arith.mulf %74, %75 : vector<32x32x8xbf16>
    %77 = arith.maximumf %74, %76 : vector<32x32x8xbf16>
    %78 = vector.shape_cast %77 : vector<32x32x8xbf16> to vector<1024x8xbf16>
    %cst_26 = arith.constant dense<0.000000e+00> : vector<1024x8xf32>
    %79 = tpu.matmul %78, %57, %cst_26 {dimension_numbers = #tpu.dot_dimension_numbers<[1], [0], [0], [1], [0, 0, 1, 1], [], []>} : vector<1024x8xbf16>, vector<8x8xbf16>, vector<1024x8xf32> -> vector<1024x8xf32>
    %80 = vector.shape_cast %79 : vector<1024x8xf32> to vector<32x32x8xf32>
    %81 = vector.broadcast %0 : vector<32x32x1xf32> to vector<32x32x8xf32>
    %82 = arith.addf %80, %81 : vector<32x32x8xf32>
    %cst_27 = arith.constant dense<0xFF800000> : vector<32x8xf32>
    %83 = vector.multi_reduction <maximumf>, %82, %cst_27 [1] : vector<32x32x8xf32> to vector<32x8xf32>
    %84 = vector.shape_cast %83 : vector<32x8xf32> to vector<32x1x8xf32>
    %85 = vector.broadcast %84 : vector<32x1x8xf32> to vector<32x32x8xf32>
    %86 = arith.subf %82, %85 : vector<32x32x8xf32>
    %87 = math.exp %86 : vector<32x32x8xf32>
    %cst_28 = arith.constant dense<0.000000e+00> : vector<32x8xf32>
    %88 = vector.multi_reduction <add>, %87, %cst_28 [1] : vector<32x32x8xf32> to vector<32x8xf32>
    %89 = arith.truncf %87 : vector<32x32x8xf32> to vector<32x32x8xbf16>
    %90 = vector.shape_cast %68 : vector<32x8xbf16> to vector<1x32x8xbf16>
    %91 = vector.broadcast %90 : vector<1x32x8xbf16> to vector<32x32x8xbf16>
    %92 = arith.mulf %89, %91 : vector<32x32x8xbf16>
    %93 = arith.extf %92 : vector<32x32x8xbf16> to vector<32x32x8xf32>
    %cst_29 = arith.constant dense<0.000000e+00> : vector<32x8xf32>
    %94 = vector.multi_reduction <add>, %93, %cst_29 [1] : vector<32x32x8xf32> to vector<32x8xf32>
    %95 = tpu.reciprocal %88 {approx = true} : vector<32x8xf32> -> vector<32x8xf32>
    %96 = arith.mulf %94, %95 : vector<32x8xf32>
    %97 = vector.extract_strided_slice %56 {offsets = [2, 0], sizes = [1, 8], strides = [1, 1]} : vector<3x8xf32> to vector<1x8xf32>
    %98 = vector.broadcast %97 : vector<1x8xf32> to vector<32x8xf32>
    %99 = arith.addf %96, %98 : vector<32x8xf32>
    %c0_30 = arith.constant 0 : index
    %c0_31 = arith.constant 0 : index
    %100 = vector.load %arg8[%c0_30, %c0_31] : memref<32x8xf32, #tpu.memory_space<vmem>>, vector<32x8xf32>
    tpu.vector_store %arg8[%c0_30, %c0_31], %99 {strides = array<i32>} : memref<32x8xf32, #tpu.memory_space<vmem>>, vector<32x8xf32>,
    return
  }
}

</mosaic_0001>

<llo_original>
// kernel: tpu_custom_call.1
$region0: #{tpu_custom_call.1}
  #allocation0 [shape = 'u32[]', space=smem, size = 0x4, offset = 0x4, fixed_abs, tag = 'smem constant byte address 0x4 - core index']
  #allocation1 [shape = 'u32[144,128]{1,0:T(1,128)}', space=vmem, size = 0x12000, scoped, tag = 'internal scratch']
  %s0 = inlined_call_operand.vmem [shape: f32[32,16], index: 0, kind: input, shape index: {}]
  %s1 = inlined_call_operand.vmem [shape: f32[32,32,1], index: 1, kind: input, shape index: {}]
  %s2 = inlined_call_operand.vmem [shape: bf16[16,256], index: 2, kind: input, shape index: {}]
  %s3 = inlined_call_operand.vmem [shape: f32[3,128], index: 3, kind: input, shape index: {}]
  %s4 = inlined_call_operand.vmem [shape: bf16[128,128], index: 4, kind: input, shape index: {}]
  %s5 = inlined_call_operand.vmem [shape: bf16[128,16], index: 5, kind: input, shape index: {}]
  %s6 = inlined_call_operand.vmem [shape: f32[3,8], index: 6, kind: input, shape index: {}]
  %s7 = inlined_call_operand.vmem [shape: bf16[8,8], index: 7, kind: input, shape index: {}]
  %s8 = inlined_call_operand.vmem [shape: f32[32,8], index: 8, kind: output, shape index: {}]
  %s9 = sld [smem:[#allocation0]]
  $region42: #{tpu_custom_call.1} parent=0
    _
  %s11 = ssub.s32 1, %s9
  %s12 = scalar_select 0, %s11, %s9
  // Predicated region
  $region2: #{tpu_custom_call.1} parent=0 // pred_check
    _
  $region3: #{tpu_custom_call.1} parent=0 // pred_check_branch
    %14 = sbr.rel (0) target = $region5
  $region4: #{tpu_custom_call.1} parent=0 // pred_region
    _
  $region5: #{tpu_custom_call.1} parent=0 // pred_fallthru
    _
  // Predicated region
  $region6: #{tpu_custom_call.1} parent=0 // pred_check
    _
  $region7: #{tpu_custom_call.1} parent=0 // pred_check_branch
    %16 = sbr.rel (0) target = $region9
  $region8: #{tpu_custom_call.1} parent=0 // pred_region
    _
  $region9: #{tpu_custom_call.1} parent=0 // pred_fallthru
    _
  // Predicated region
  $region10: #{tpu_custom_call.1} parent=0 // pred_check
    _
  $region11: #{tpu_custom_call.1} parent=0 // pred_check_branch
    %18 = sbr.rel (0) target = $region13
  $region12: #{tpu_custom_call.1} parent=0 // pred_region
    _
  $region13: #{tpu_custom_call.1} parent=0 // pred_fallthru
    _
  // Predicated region
  $region14: #{tpu_custom_call.1} parent=0 // pred_check
    _
  $region15: #{tpu_custom_call.1} parent=0 // pred_check_branch
    %20 = sbr.rel (0) target = $region17
  $region16: #{tpu_custom_call.1} parent=0 // pred_region
    _
  $region17: #{tpu_custom_call.1} parent=0 // pred_fallthru
    _
  // Predicated region
  $region18: #{tpu_custom_call.1} parent=0 // pred_check
    _
  $region19: #{tpu_custom_call.1} parent=0 // pred_check_branch
    %22 = sbr.rel (0) target = $region21
  $region20: #{tpu_custom_call.1} parent=0 // pred_region
    _
  $region21: #{tpu_custom_call.1} parent=0 // pred_fallthru
    _
  // Predicated region
  $region22: #{tpu_custom_call.1} parent=0 // pred_check
    _
  $region23: #{tpu_custom_call.1} parent=0 // pred_check_branch
    %24 = sbr.rel (0) target = $region25
  $region24: #{tpu_custom_call.1} parent=0 // pred_region
    _
  $region25: #{tpu_custom_call.1} parent=0 // pred_fallthru
    _
  // Predicated region
  $region26: #{tpu_custom_call.1} parent=0 // pred_check
    _
  $region27: #{tpu_custom_call.1} parent=0 // pred_check_branch
    %26 = sbr.rel (0) target = $region29
  $region28: #{tpu_custom_call.1} parent=0 // pred_region
    _
  $region29: #{tpu_custom_call.1} parent=0 // pred_fallthru
    _
  // Predicated region
  $region30: #{tpu_custom_call.1} parent=0 // pred_check
    _
  $region31: #{tpu_custom_call.1} parent=0 // pred_check_branch
    %28 = sbr.rel (0) target = $region33
  $region32: #{tpu_custom_call.1} parent=0 // pred_region
    _
  $region33: #{tpu_custom_call.1} parent=0 // pred_fallthru
    _
  %v31 = vld [vmem:[%s1] sm:$0xff]
  %v32 = vld [vmem:[%s1 + $0x8] sm:$0xff]
  %v33 = vld [vmem:[%s1 + $0x10] sm:$0xff]
  %v34 = vld [vmem:[%s1 + $0x18] sm:$0xff]
  %v35 = vld [vmem:[%s1 + $0x20] sm:$0xff]
  %v36 = vld [vmem:[%s1 + $0x28] sm:$0xff]
  %v37 = vld [vmem:[%s1 + $0x30] sm:$0xff]
  %v38 = vld [vmem:[%s1 + $0x38] sm:$0xff]
  %v39 = vld [vmem:[%s1 + $0x40] sm:$0xff]
  %v40 = vld [vmem:[%s1 + $0x48] sm:$0xff]
  %v41 = vld [vmem:[%s1 + $0x50] sm:$0xff]
  %v42 = vld [vmem:[%s1 + $0x58] sm:$0xff]
  %v43 = vld [vmem:[%s1 + $0x60] sm:$0xff]
  %v44 = vld [vmem:[%s1 + $0x68] sm:$0xff]
  %v45 = vld [vmem:[%s1 + $0x70] sm:$0xff]
  %v46 = vld [vmem:[%s1 + $0x78] sm:$0xff]
  %v47 = vld [vmem:[%s1 + $0x80] sm:$0xff]
  %v48 = vld [vmem:[%s1 + $0x88] sm:$0xff]
  %v49 = vld [vmem:[%s1 + $0x90] sm:$0xff]
  %v50 = vld [vmem:[%s1 + $0x98] sm:$0xff]
  %v51 = vld [vmem:[%s1 + $0xa0] sm:$0xff]
  %v52 = vld [vmem:[%s1 + $0xa8] sm:$0xff]
  %v53 = vld [vmem:[%s1 + $0xb0] sm:$0xff]
  %v54 = vld [vmem:[%s1 + $0xb8] sm:$0xff]
  %v55 = vld [vmem:[%s1 + $0xc0] sm:$0xff]
  %v56 = vld [vmem:[%s1 + $0xc8] sm:$0xff]
  %v57 = vld [vmem:[%s1 + $0xd0] sm:$0xff]
  %v58 = vld [vmem:[%s1 + $0xd8] sm:$0xff]
  %v59 = vld [vmem:[%s1 + $0xe0] sm:$0xff]
  %v60 = vld [vmem:[%s1 + $0xe8] sm:$0xff]
  %v61 = vld [vmem:[%s1 + $0xf0] sm:$0xff]
  %v62 = vld [vmem:[%s1 + $0xf8] sm:$0xff]
  %v63 = vld [vmem:[%s1 + $0x100] sm:$0xff]
  %v64 = vld [vmem:[%s1 + $0x108] sm:$0xff]
  %v65 = vld [vmem:[%s1 + $0x110] sm:$0xff]
  %v66 = vld [vmem:[%s1 + $0x118] sm:$0xff]
  %v67 = vld [vmem:[%s1 + $0x120] sm:$0xff]
  %v68 = vld [vmem:[%s1 + $0x128] sm:$0xff]
  %v69 = vld [vmem:[%s1 + $0x130] sm:$0xff]
  %v70 = vld [vmem:[%s1 + $0x138] sm:$0xff]
  %v71 = vld [vmem:[%s1 + $0x140] sm:$0xff]
  %v72 = vld [vmem:[%s1 + $0x148] sm:$0xff]
  %v73 = vld [vmem:[%s1 + $0x150] sm:$0xff]
  %v74 = vld [vmem:[%s1 + $0x158] sm:$0xff]
  %v75 = vld [vmem:[%s1 + $0x160] sm:$0xff]
  %v76 = vld [vmem:[%s1 + $0x168] sm:$0xff]
  %v77 = vld [vmem:[%s1 + $0x170] sm:$0xff]
  %v78 = vld [vmem:[%s1 + $0x178] sm:$0xff]
  %v79 = vld [vmem:[%s1 + $0x180] sm:$0xff]
  %v80 = vld [vmem:[%s1 + $0x188] sm:$0xff]
  %v81 = vld [vmem:[%s1 + $0x190] sm:$0xff]
  %v82 = vld [vmem:[%s1 + $0x198] sm:$0xff]
  %v83 = vld [vmem:[%s1 + $0x1a0] sm:$0xff]
  %v84 = vld [vmem:[%s1 + $0x1a8] sm:$0xff]
  %v85 = vld [vmem:[%s1 + $0x1b0] sm:$0xff]
  %v86 = vld [vmem:[%s1 + $0x1b8] sm:$0xff]
  %v87 = vld [vmem:[%s1 + $0x1c0] sm:$0xff]
  %v88 = vld [vmem:[%s1 + $0x1c8] sm:$0xff]
  %v89 = vld [vmem:[%s1 + $0x1d0] sm:$0xff]
  %v90 = vld [vmem:[%s1 + $0x1d8] sm:$0xff]
  %v91 = vld [vmem:[%s1 + $0x1e0] sm:$0xff]
  %v92 = vld [vmem:[%s1 + $0x1e8] sm:$0xff]
  %v93 = vld [vmem:[%s1 + $0x1f0] sm:$0xff]
  %v94 = vld [vmem:[%s1 + $0x1f8] sm:$0xff]
  %v95 = vld [vmem:[%s1 + $0x200] sm:$0xff]
  %v96 = vld [vmem:[%s1 + $0x208] sm:$0xff]
  %v97 = vld [vmem:[%s1 + $0x210] sm:$0xff]
  %v98 = vld [vmem:[%s1 + $0x218] sm:$0xff]
  %v99 = vld [vmem:[%s1 + $0x220] sm:$0xff]
  %v100 = vld [vmem:[%s1 + $0x228] sm:$0xff]
  %v101 = vld [vmem:[%s1 + $0x230] sm:$0xff]
  %v102 = vld [vmem:[%s1 + $0x238] sm:$0xff]
  %v103 = vld [vmem:[%s1 + $0x240] sm:$0xff]
  %v104 = vld [vmem:[%s1 + $0x248] sm:$0xff]
  %v105 = vld [vmem:[%s1 + $0x250] sm:$0xff]
  %v106 = vld [vmem:[%s1 + $0x258] sm:$0xff]
  %v107 = vld [vmem:[%s1 + $0x260] sm:$0xff]
  %v108 = vld [vmem:[%s1 + $0x268] sm:$0xff]
  %v109 = vld [vmem:[%s1 + $0x270] sm:$0xff]
  %v110 = vld [vmem:[%s1 + $0x278] sm:$0xff]
  %v111 = vld [vmem:[%s1 + $0x280] sm:$0xff]
  %v112 = vld [vmem:[%s1 + $0x288] sm:$0xff]
  %v113 = vld [vmem:[%s1 + $0x290] sm:$0xff]
  %v114 = vld [vmem:[%s1 + $0x298] sm:$0xff]
  %v115 = vld [vmem:[%s1 + $0x2a0] sm:$0xff]
  %v116 = vld [vmem:[%s1 + $0x2a8] sm:$0xff]
  %v117 = vld [vmem:[%s1 + $0x2b0] sm:$0xff]
  %v118 = vld [vmem:[%s1 + $0x2b8] sm:$0xff]
  %v119 = vld [vmem:[%s1 + $0x2c0] sm:$0xff]
  %v120 = vld [vmem:[%s1 + $0x2c8] sm:$0xff]
  %v121 = vld [vmem:[%s1 + $0x2d0] sm:$0xff]
  %v122 = vld [vmem:[%s1 + $0x2d8] sm:$0xff]
  %v123 = vld [vmem:[%s1 + $0x2e0] sm:$0xff]
  %v124 = vld [vmem:[%s1 + $0x2e8] sm:$0xff]
  %v125 = vld [vmem:[%s1 + $0x2f0] sm:$0xff]
  %v126 = vld [vmem:[%s1 + $0x2f8] sm:$0xff]
  %v127 = vld [vmem:[%s1 + $0x300] sm:$0xff]
  %v128 = vld [vmem:[%s1 + $0x308] sm:$0xff]
  %v129 = vld [vmem:[%s1 + $0x310] sm:$0xff]
  %v130 = vld [vmem:[%s1 + $0x318] sm:$0xff]
  %v131 = vld [vmem:[%s1 + $0x320] sm:$0xff]
  %v132 = vld [vmem:[%s1 + $0x328] sm:$0xff]
  %v133 = vld [vmem:[%s1 + $0x330] sm:$0xff]
  %v134 = vld [vmem:[%s1 + $0x338] sm:$0xff]
  %v135 = vld [vmem:[%s1 + $0x340] sm:$0xff]
  %v136 = vld [vmem:[%s1 + $0x348] sm:$0xff]
  %v137 = vld [vmem:[%s1 + $0x350] sm:$0xff]
  %v138 = vld [vmem:[%s1 + $0x358] sm:$0xff]
  %v139 = vld [vmem:[%s1 + $0x360] sm:$0xff]
  %v140 = vld [vmem:[%s1 + $0x368] sm:$0xff]
  %v141 = vld [vmem:[%s1 + $0x370] sm:$0xff]
  %v142 = vld [vmem:[%s1 + $0x378] sm:$0xff]
  %v143 = vld [vmem:[%s1 + $0x380] sm:$0xff]
  %v144 = vld [vmem:[%s1 + $0x388] sm:$0xff]
  %v145 = vld [vmem:[%s1 + $0x390] sm:$0xff]
  %v146 = vld [vmem:[%s1 + $0x398] sm:$0xff]
  %v147 = vld [vmem:[%s1 + $0x3a0] sm:$0xff]
  %v148 = vld [vmem:[%s1 + $0x3a8] sm:$0xff]
  %v149 = vld [vmem:[%s1 + $0x3b0] sm:$0xff]
  %v150 = vld [vmem:[%s1 + $0x3b8] sm:$0xff]
  %v151 = vld [vmem:[%s1 + $0x3c0] sm:$0xff]
  %v152 = vld [vmem:[%s1 + $0x3c8] sm:$0xff]
  %v153 = vld [vmem:[%s1 + $0x3d0] sm:$0xff]
  %v154 = vld [vmem:[%s1 + $0x3d8] sm:$0xff]
  %v155 = vld [vmem:[%s1 + $0x3e0] sm:$0xff]
  %v156 = vld [vmem:[%s1 + $0x3e8] sm:$0xff]
  %v157 = vld [vmem:[%s1 + $0x3f0] sm:$0xff]
  %v158 = vld [vmem:[%s1 + $0x3f8] sm:$0xff]
  %v159 = vld [vmem:[%s0] sm:$0xff]
  %v160 = vld [vmem:[%s0 + $0x8] sm:$0xff]
  %v161 = vld [vmem:[%s0 + $0x10] sm:$0xff]
  %v162 = vld [vmem:[%s0 + $0x18] sm:$0xff]
  %v163 = vld [vmem:[%s2] sm:$0xff]
  %v164 = vld [vmem:[%s2 + $0x8] sm:$0xff]
  %v165 = vld [vmem:[%s3] sm:$0x7]
  %v166 = vld [vmem:[%s4] sm:$0xf]
  %v167 = vld [vmem:[%s4 + $0x4] sm:$0xf]
  %v168 = vld [vmem:[%s4 + $0x8] sm:$0xf]
  %v169 = vld [vmem:[%s4 + $0xc] sm:$0xf]
  %v170 = vld [vmem:[%s4 + $0x10] sm:$0xf]
  %v171 = vld [vmem:[%s4 + $0x14] sm:$0xf]
  %v172 = vld [vmem:[%s4 + $0x18] sm:$0xf]
  %v173 = vld [vmem:[%s4 + $0x1c] sm:$0xf]
  %v174 = vld [vmem:[%s4 + $0x20] sm:$0xf]
  %v175 = vld [vmem:[%s4 + $0x24] sm:$0xf]
  %v176 = vld [vmem:[%s4 + $0x28] sm:$0xf]
  %v177 = vld [vmem:[%s4 + $0x2c] sm:$0xf]
  %v178 = vld [vmem:[%s4 + $0x30] sm:$0xf]
  %v179 = vld [vmem:[%s4 + $0x34] sm:$0xf]
  %v180 = vld [vmem:[%s4 + $0x38] sm:$0xf]
  %v181 = vld [vmem:[%s4 + $0x3c] sm:$0xf]
  %v182 = vpack.c.bf16 %v160, %v159
  %v183 = vpack.c.bf16 %v162, %v161
  %v186 = vunpack.c.l.b16 %v163
  %v187 = vunpack.c.h.b16 %v163
  %v188 = vunpack.c.l.b16 %v164
  %v189 = vunpack.c.h.b16 %v164
  %v190 = vpack.c.b16 %v188, %v186
  %v191 = vpack.c.b16 %v189, %v187
  %vm194 = vcmask 130048
  %v196 = vsel %vm194, %v182, 0
  %v199 = vsel %vm194, %v183, 0
  %201 = vmatprep.subr.bf16.mxu0 0
  %202 = vmatpush1.bf16.msra.mxu0 0
  %203 = vmatprep.subr.bf16.mxu0 0
  %204 = vmatpush1.bf16.msra.mxu0 0
  %205 = vmatprep.subr.bf16.mxu0 0
  %206 = vmatpush1.bf16.msra.mxu0 0
  %207 = vmatprep.subr.bf16.mxu0 0
  %208 = vmatpush1.bf16.msra.mxu0 0
  %209 = vmatprep.subr.bf16.mxu0 0
  %210 = vmatpush1.bf16.msra.mxu0 0
  %211 = vmatprep.subr.bf16.mxu0 0
  %212 = vmatpush1.bf16.msra.mxu0 0
  %213 = vmatprep.subr.bf16.mxu0 0
  %214 = vmatpush1.bf16.msra.mxu0 0
  %215 = vmatprep.subr.bf16.mxu0 %v191
  %216 = vmatpush1.bf16.msra.mxu0 %v190
  %217 = vmatprep.subr.bf16.mxu0 0
  %218 = vmatpush2.bf16.msra.mxu0 0
  %219 = vmatprep.subr.bf16.mxu0 0
  %220 = vmatpush2.bf16.msra.mxu0 0
  %221 = vmatprep.subr.bf16.mxu0 0
  %222 = vmatpush2.bf16.msra.mxu0 0
  %223 = vmatprep.subr.bf16.mxu0 0
  %224 = vmatpush2.bf16.msra.mxu0 0
  %225 = vmatprep.subr.bf16.mxu0 0
  %226 = vmatpush2.bf16.msra.mxu0 0
  %227 = vmatprep.subr.bf16.mxu0 0
  %228 = vmatpush2.bf16.msra.mxu0 0
  %229 = vmatprep.subr.bf16.mxu0 0
  %230 = vmatpush2.bf16.msra.mxu0 0
  %231 = vmatprep.subr.bf16.mxu0 0
  %232 = vmatpush2.bf16.msra.mxu0 0
  %233 = vmatprep.mubr.bf16.mxu0 0
  %234 = vmatmul.mubr.bf16.gmra.mxu0 %v196
  %v235 = vpop.f32.mrf.mxu0
  %v236 = vadd.f32 0.0, %v235
  %v237 = vpop.f32.mrf.mxu0
  %v238 = vadd.f32 0.0, %v237
  %v239 = vpop.f32.mrf.mxu0
  %v240 = vadd.f32 0.0, %v239
  %v241 = vpop.f32.mrf.mxu0
  %v242 = vadd.f32 0.0, %v241
  %243 = vmatprep.mubr.bf16.mxu0 0
  %244 = vmatmul.mubr.bf16.gmra.mxu0 %v199
  %v245 = vpop.f32.mrf.mxu0
  %v246 = vadd.f32 0.0, %v245
  %v247 = vpop.f32.mrf.mxu0
  %v248 = vadd.f32 0.0, %v247
  %v249 = vpop.f32.mrf.mxu0
  %v250 = vadd.f32 0.0, %v249
  %v251 = vpop.f32.mrf.mxu0
  %v252 = vadd.f32 0.0, %v251
  %253 = vdwg.mxu0
  %v254 = vlaneseq
  %v255 = vshrl.u32 %v254, 7
  %v256 = vsub.s32 0, %v255
  %v257 = vrot.slane %v165, %v256
  %v258 = vadd.f32 %v236, %v257
  %v259 = vadd.f32 %v240, %v257
  %v260 = vadd.f32 %v246, %v257
  %v261 = vadd.f32 %v250, %v257
  %v262 = vlaneseq
  %v263 = vshrl.u32 %v262, 7
  %v264 = vsub.s32 1, %v263
  %v265 = vrot.slane %v165, %v264
  %v266 = vadd.f32 %v238, %v265
  %v267 = vadd.f32 %v242, %v265
  %v268 = vadd.f32 %v248, %v265
  %v269 = vadd.f32 %v252, %v265
  %v270 = vpack.c.bf16 %v259, %v258
  %v271 = vpack.c.bf16 %v261, %v260
  %v272 = vpack.c.bf16 %v267, %v266
  %v273 = vpack.c.bf16 %v269, %v268
  %v276 = vcombine.high %v272, %v272
  %v278 = vunpack.c.l.s4 1966171168
  %v279 = vunpack.c.0.s8 %v278
  %v280 = vlaneseq
  %v281 = vshrl.u32 %v280, 7
  %v282 = vsub.s32 %v279, %v281
  %v283 = vrot.slane %v272, %v282
  %v285 = vunpack.c.l.s4 1966171168
  %v286 = vunpack.c.0.s8 %v285
  %v287 = vlaneseq
  %v288 = vshrl.u32 %v287, 7
  %v289 = vsub.s32 %v286, %v288
  %v290 = vrot.slane %v276, %v289
  %v291 = vcombine.high %v283, %v283
  %v292 = vcombine.high %v290, %v290
  %v294 = vunpack.c.l.s4 1966171168
  %v295 = vunpack.c.0.s8 %v294
  %v296 = vlaneseq
  %v297 = vshrl.u32 %v296, 7
  %v298 = vsub.s32 %v295, %v297
  %v299 = vrot.slane %v283, %v298
  %v301 = vunpack.c.l.s4 1966171168
  %v302 = vunpack.c.0.s8 %v301
  %v303 = vlaneseq
  %v304 = vshrl.u32 %v303, 7
  %v305 = vsub.s32 %v302, %v304
  %v306 = vrot.slane %v290, %v305
  %v308 = vunpack.c.l.s4 1966171168
  %v309 = vunpack.c.0.s8 %v308
  %v310 = vlaneseq
  %v311 = vshrl.u32 %v310, 7
  %v312 = vsub.s32 %v309, %v311
  %v313 = vrot.slane %v291, %v312
  %v315 = vunpack.c.l.s4 1966171168
  %v316 = vunpack.c.0.s8 %v315
  %v317 = vlaneseq
  %v318 = vshrl.u32 %v317, 7
  %v319 = vsub.s32 %v316, %v318
  %v320 = vrot.slane %v292, %v319
  %v321 = vcombine.high %v299, %v299
  %v322 = vcombine.high %v306, %v306
  %v323 = vcombine.high %v313, %v313
  %v324 = vcombine.high %v320, %v320
  %v325 = vcombine.high %v273, %v273
  %v327 = vunpack.c.l.s4 1966171168
  %v328 = vunpack.c.0.s8 %v327
  %v329 = vlaneseq
  %v330 = vshrl.u32 %v329, 7
  %v331 = vsub.s32 %v328, %v330
  %v332 = vrot.slane %v273, %v331
  %v334 = vunpack.c.l.s4 1966171168
  %v335 = vunpack.c.0.s8 %v334
  %v336 = vlaneseq
  %v337 = vshrl.u32 %v336, 7
  %v338 = vsub.s32 %v335, %v337
  %v339 = vrot.slane %v325, %v338
  %v340 = vcombine.high %v332, %v332
  %v341 = vcombine.high %v339, %v339
  %v343 = vunpack.c.l.s4 1966171168
  %v344 = vunpack.c.0.s8 %v343
  %v345 = vlaneseq
  %v346 = vshrl.u32 %v345, 7
  %v347 = vsub.s32 %v344, %v346
  %v348 = vrot.slane %v332, %v347
  %v350 = vunpack.c.l.s4 1966171168
  %v351 = vunpack.c.0.s8 %v350
  %v352 = vlaneseq
  %v353 = vshrl.u32 %v352, 7
  %v354 = vsub.s32 %v351, %v353
  %v355 = vrot.slane %v339, %v354
  %v357 = vunpack.c.l.s4 1966171168
  %v358 = vunpack.c.0.s8 %v357
  %v359 = vlaneseq
  %v360 = vshrl.u32 %v359, 7
  %v361 = vsub.s32 %v358, %v360
  %v362 = vrot.slane %v340, %v361
  %v364 = vunpack.c.l.s4 1966171168
  %v365 = vunpack.c.0.s8 %v364
  %v366 = vlaneseq
  %v367 = vshrl.u32 %v366, 7
  %v368 = vsub.s32 %v365, %v367
  %v369 = vrot.slane %v341, %v368
  %v370 = vcombine.high %v348, %v348
  %v371 = vcombine.high %v355, %v355
  %v372 = vcombine.high %v362, %v362
  %v373 = vcombine.high %v369, %v369
  %v374 = vunpack.i.l.s16 %v299
  %v375 = vunpack.i.h.s16 %v299
  %v376 = vunpack.i.l.s16 %v313
  %v377 = vunpack.i.h.s16 %v313
  %v378 = vunpack.i.l.s16 %v321
  %v379 = vunpack.i.h.s16 %v321
  %v380 = vunpack.i.l.s16 %v323
  %v381 = vunpack.i.h.s16 %v323
  %v382 = vunpack.i.l.s16 %v306
  %v383 = vunpack.i.h.s16 %v306
  %v384 = vunpack.i.l.s16 %v320
  %v385 = vunpack.i.h.s16 %v320
  %v386 = vunpack.i.l.s16 %v322
  %v387 = vunpack.i.h.s16 %v322
  %v388 = vunpack.i.l.s16 %v324
  %v389 = vunpack.i.h.s16 %v324
  %v390 = vunpack.i.l.s16 %v348
  %v391 = vunpack.i.h.s16 %v348
  %v392 = vunpack.i.l.s16 %v362
  %v393 = vunpack.i.h.s16 %v362
  %v394 = vunpack.i.l.s16 %v370
  %v395 = vunpack.i.h.s16 %v370
  %v396 = vunpack.i.l.s16 %v372
  %v397 = vunpack.i.h.s16 %v372
  %v398 = vunpack.i.l.s16 %v355
  %v399 = vunpack.i.h.s16 %v355
  %v400 = vunpack.i.l.s16 %v369
  %v401 = vunpack.i.h.s16 %v369
  %v402 = vunpack.i.l.s16 %v371
  %v403 = vunpack.i.h.s16 %v371
  %v404 = vunpack.i.l.s16 %v373
  %v405 = vunpack.i.h.s16 %v373
  %v406 = vpack.i.b16 %v374, %v374
  %v407 = vpack.i.b16 %v375, %v375
  %v408 = vpack.i.b16 %v376, %v376
  %v409 = vpack.i.b16 %v377, %v377
  %v410 = vpack.i.b16 %v378, %v378
  %v411 = vpack.i.b16 %v379, %v379
  %v412 = vpack.i.b16 %v380, %v380
  %v413 = vpack.i.b16 %v381, %v381
  %v414 = vpack.i.b16 %v382, %v382
  %v415 = vpack.i.b16 %v383, %v383
  %v416 = vpack.i.b16 %v384, %v384
  %v417 = vpack.i.b16 %v385, %v385
  %v418 = vpack.i.b16 %v386, %v386
  %v419 = vpack.i.b16 %v387, %v387
  %v420 = vpack.i.b16 %v388, %v388
  %v421 = vpack.i.b16 %v389, %v389
  %v422 = vpack.i.b16 %v390, %v390
  %v423 = vpack.i.b16 %v391, %v391
  %v424 = vpack.i.b16 %v392, %v392
  %v425 = vpack.i.b16 %v393, %v393
  %v426 = vpack.i.b16 %v394, %v394
  %v427 = vpack.i.b16 %v395, %v395
  %v428 = vpack.i.b16 %v396, %v396
  %v429 = vpack.i.b16 %v397, %v397
  %v430 = vpack.i.b16 %v398, %v398
  %v431 = vpack.i.b16 %v399, %v399
  %v432 = vpack.i.b16 %v400, %v400
  %v433 = vpack.i.b16 %v401, %v401
  %v434 = vpack.i.b16 %v402, %v402
  %v435 = vpack.i.b16 %v403, %v403
  %v436 = vpack.i.b16 %v404, %v404
  %v437 = vpack.i.b16 %v405, %v405
  %v438 = vlaneseq
  %v439 = vshrl.u32 %v438, 7
  %v440 = vsub.s32 0, %v439
  %v441 = vrot.slane %v406, %v440
  %v442 = vlaneseq
  %v443 = vshrl.u32 %v442, 7
  %v444 = vsub.s32 0, %v443
  %v445 = vrot.slane %v407, %v444
  %v446 = vlaneseq
  %v447 = vshrl.u32 %v446, 7
  %v448 = vsub.s32 0, %v447
  %v449 = vrot.slane %v408, %v448
  %v450 = vlaneseq
  %v451 = vshrl.u32 %v450, 7
  %v452 = vsub.s32 0, %v451
  %v453 = vrot.slane %v409, %v452
  %v454 = vlaneseq
  %v455 = vshrl.u32 %v454, 7
  %v456 = vsub.s32 0, %v455
  %v457 = vrot.slane %v410, %v456
  %v458 = vlaneseq
  %v459 = vshrl.u32 %v458, 7
  %v460 = vsub.s32 0, %v459
  %v461 = vrot.slane %v411, %v460
  %v462 = vlaneseq
  %v463 = vshrl.u32 %v462, 7
  %v464 = vsub.s32 0, %v463
  %v465 = vrot.slane %v412, %v464
  %v466 = vlaneseq
  %v467 = vshrl.u32 %v466, 7
  %v468 = vsub.s32 0, %v467
  %v469 = vrot.slane %v413, %v468
  %v470 = vlaneseq
  %v471 = vshrl.u32 %v470, 7
  %v472 = vsub.s32 0, %v471
  %v473 = vrot.slane %v414, %v472
  %v474 = vlaneseq
  %v475 = vshrl.u32 %v474, 7
  %v476 = vsub.s32 0, %v475
  %v477 = vrot.slane %v415, %v476
  %v478 = vlaneseq
  %v479 = vshrl.u32 %v478, 7
  %v480 = vsub.s32 0, %v479
  %v481 = vrot.slane %v416, %v480
  %v482 = vlaneseq
  %v483 = vshrl.u32 %v482, 7
  %v484 = vsub.s32 0, %v483
  %v485 = vrot.slane %v417, %v484
  %v486 = vlaneseq
  %v487 = vshrl.u32 %v486, 7
  %v488 = vsub.s32 0, %v487
  %v489 = vrot.slane %v418, %v488
  %v490 = vlaneseq
  %v491 = vshrl.u32 %v490, 7
  %v492 = vsub.s32 0, %v491
  %v493 = vrot.slane %v419, %v492
  %v494 = vlaneseq
  %v495 = vshrl.u32 %v494, 7
  %v496 = vsub.s32 0, %v495
  %v497 = vrot.slane %v420, %v496
  %v498 = vlaneseq
  %v499 = vshrl.u32 %v498, 7
  %v500 = vsub.s32 0, %v499
  %v501 = vrot.slane %v421, %v500
  %v502 = vlaneseq
  %v503 = vshrl.u32 %v502, 7
  %v504 = vsub.s32 0, %v503
  %v505 = vrot.slane %v422, %v504
  %v506 = vlaneseq
  %v507 = vshrl.u32 %v506, 7
  %v508 = vsub.s32 0, %v507
  %v509 = vrot.slane %v423, %v508
  %v510 = vlaneseq
  %v511 = vshrl.u32 %v510, 7
  %v512 = vsub.s32 0, %v511
  %v513 = vrot.slane %v424, %v512
  %v514 = vlaneseq
  %v515 = vshrl.u32 %v514, 7
  %v516 = vsub.s32 0, %v515
  %v517 = vrot.slane %v425, %v516
  %v518 = vlaneseq
  %v519 = vshrl.u32 %v518, 7
  %v520 = vsub.s32 0, %v519
  %v521 = vrot.slane %v426, %v520
  %v522 = vlaneseq
  %v523 = vshrl.u32 %v522, 7
  %v524 = vsub.s32 0, %v523
  %v525 = vrot.slane %v427, %v524
  %v526 = vlaneseq
  %v527 = vshrl.u32 %v526, 7
  %v528 = vsub.s32 0, %v527
  %v529 = vrot.slane %v428, %v528
  %v530 = vlaneseq
  %v531 = vshrl.u32 %v530, 7
  %v532 = vsub.s32 0, %v531
  %v533 = vrot.slane %v429, %v532
  %v534 = vlaneseq
  %v535 = vshrl.u32 %v534, 7
  %v536 = vsub.s32 0, %v535
  %v537 = vrot.slane %v430, %v536
  %v538 = vlaneseq
  %v539 = vshrl.u32 %v538, 7
  %v540 = vsub.s32 0, %v539
  %v541 = vrot.slane %v431, %v540
  %v542 = vlaneseq
  %v543 = vshrl.u32 %v542, 7
  %v544 = vsub.s32 0, %v543
  %v545 = vrot.slane %v432, %v544
  %v546 = vlaneseq
  %v547 = vshrl.u32 %v546, 7
  %v548 = vsub.s32 0, %v547
  %v549 = vrot.slane %v433, %v548
  %v550 = vlaneseq
  %v551 = vshrl.u32 %v550, 7
  %v552 = vsub.s32 0, %v551
  %v553 = vrot.slane %v434, %v552
  %v554 = vlaneseq
  %v555 = vshrl.u32 %v554, 7
  %v556 = vsub.s32 0, %v555
  %v557 = vrot.slane %v435, %v556
  %v558 = vlaneseq
  %v559 = vshrl.u32 %v558, 7
  %v560 = vsub.s32 0, %v559
  %v561 = vrot.slane %v436, %v560
  %v562 = vlaneseq
  %v563 = vshrl.u32 %v562, 7
  %v564 = vsub.s32 0, %v563
  %v565 = vrot.slane %v437, %v564
  %v567 = vpack.i.b16 %v441, %v441
  %v569 = vlaneseq
  %v570 = vshrl.u32 %v569, 7
  %v571 = vsub.s32 0, %v570
  %v572 = vrot.slane %v567, %v571
  %v574 = vpack.i.b16 %v445, %v445
  %v576 = vlaneseq
  %v577 = vshrl.u32 %v576, 7
  %v578 = vsub.s32 0, %v577
  %v579 = vrot.slane %v574, %v578
  %v581 = vpack.i.b16 %v449, %v449
  %v583 = vlaneseq
  %v584 = vshrl.u32 %v583, 7
  %v585 = vsub.s32 0, %v584
  %v586 = vrot.slane %v581, %v585
  %v588 = vpack.i.b16 %v453, %v453
  %v590 = vlaneseq
  %v591 = vshrl.u32 %v590, 7
  %v592 = vsub.s32 0, %v591
  %v593 = vrot.slane %v588, %v592
  %v595 = vpack.i.b16 %v457, %v457
  %v597 = vlaneseq
  %v598 = vshrl.u32 %v597, 7
  %v599 = vsub.s32 0, %v598
  %v600 = vrot.slane %v595, %v599
  %v602 = vpack.i.b16 %v461, %v461
  %v604 = vlaneseq
  %v605 = vshrl.u32 %v604, 7
  %v606 = vsub.s32 0, %v605
  %v607 = vrot.slane %v602, %v606
  %v609 = vpack.i.b16 %v465, %v465
  %v611 = vlaneseq
  %v612 = vshrl.u32 %v611, 7
  %v613 = vsub.s32 0, %v612
  %v614 = vrot.slane %v609, %v613
  %v616 = vpack.i.b16 %v469, %v469
  %v618 = vlaneseq
  %v619 = vshrl.u32 %v618, 7
  %v620 = vsub.s32 0, %v619
  %v621 = vrot.slane %v616, %v620
  %v623 = vpack.i.b16 %v473, %v473
  %v625 = vlaneseq
  %v626 = vshrl.u32 %v625, 7
  %v627 = vsub.s32 0, %v626
  %v628 = vrot.slane %v623, %v627
  %v630 = vpack.i.b16 %v477, %v477
  %v632 = vlaneseq
  %v633 = vshrl.u32 %v632, 7
  %v634 = vsub.s32 0, %v633
  %v635 = vrot.slane %v630, %v634
  %v637 = vpack.i.b16 %v481, %v481
  %v639 = vlaneseq
  %v640 = vshrl.u32 %v639, 7
  %v641 = vsub.s32 0, %v640
  %v642 = vrot.slane %v637, %v641
  %v644 = vpack.i.b16 %v485, %v485
  %v646 = vlaneseq
  %v647 = vshrl.u32 %v646, 7
  %v648 = vsub.s32 0, %v647
  %v649 = vrot.slane %v644, %v648
  %v651 = vpack.i.b16 %v489, %v489
  %v653 = vlaneseq
  %v654 = vshrl.u32 %v653, 7
  %v655 = vsub.s32 0, %v654
  %v656 = vrot.slane %v651, %v655
  %v658 = vpack.i.b16 %v493, %v493
  %v660 = vlaneseq
  %v661 = vshrl.u32 %v660, 7
  %v662 = vsub.s32 0, %v661
  %v663 = vrot.slane %v658, %v662
  %v665 = vpack.i.b16 %v497, %v497
  %v667 = vlaneseq
  %v668 = vshrl.u32 %v667, 7
  %v669 = vsub.s32 0, %v668
  %v670 = vrot.slane %v665, %v669
  %v672 = vpack.i.b16 %v501, %v501
  %v674 = vlaneseq
  %v675 = vshrl.u32 %v674, 7
  %v676 = vsub.s32 0, %v675
  %v677 = vrot.slane %v672, %v676
  %v679 = vpack.i.b16 %v505, %v505
  %v681 = vlaneseq
  %v682 = vshrl.u32 %v681, 7
  %v683 = vsub.s32 0, %v682
  %v684 = vrot.slane %v679, %v683
  %v686 = vpack.i.b16 %v509, %v509
  %v688 = vlaneseq
  %v689 = vshrl.u32 %v688, 7
  %v690 = vsub.s32 0, %v689
  %v691 = vrot.slane %v686, %v690
  %v693 = vpack.i.b16 %v513, %v513
  %v695 = vlaneseq
  %v696 = vshrl.u32 %v695, 7
  %v697 = vsub.s32 0, %v696
  %v698 = vrot.slane %v693, %v697
  %v700 = vpack.i.b16 %v517, %v517
  %v702 = vlaneseq
  %v703 = vshrl.u32 %v702, 7
  %v704 = vsub.s32 0, %v703
  %v705 = vrot.slane %v700, %v704
  %v707 = vpack.i.b16 %v521, %v521
  %v709 = vlaneseq
  %v710 = vshrl.u32 %v709, 7
  %v711 = vsub.s32 0, %v710
  %v712 = vrot.slane %v707, %v711
  %v714 = vpack.i.b16 %v525, %v525
  %v716 = vlaneseq
  %v717 = vshrl.u32 %v716, 7
  %v718 = vsub.s32 0, %v717
  %v719 = vrot.slane %v714, %v718
  %v721 = vpack.i.b16 %v529, %v529
  %v723 = vlaneseq
  %v724 = vshrl.u32 %v723, 7
  %v725 = vsub.s32 0, %v724
  %v726 = vrot.slane %v721, %v725
  %v728 = vpack.i.b16 %v533, %v533
  %v730 = vlaneseq
  %v731 = vshrl.u32 %v730, 7
  %v732 = vsub.s32 0, %v731
  %v733 = vrot.slane %v728, %v732
  %v735 = vpack.i.b16 %v537, %v537
  %v737 = vlaneseq
  %v738 = vshrl.u32 %v737, 7
  %v739 = vsub.s32 0, %v738
  %v740 = vrot.slane %v735, %v739
  %v742 = vpack.i.b16 %v541, %v541
  %v744 = vlaneseq
  %v745 = vshrl.u32 %v744, 7
  %v746 = vsub.s32 0, %v745
  %v747 = vrot.slane %v742, %v746
  %v749 = vpack.i.b16 %v545, %v545
  %v751 = vlaneseq
  %v752 = vshrl.u32 %v751, 7
  %v753 = vsub.s32 0, %v752
  %v754 = vrot.slane %v749, %v753
  %v756 = vpack.i.b16 %v549, %v549
  %v758 = vlaneseq
  %v759 = vshrl.u32 %v758, 7
  %v760 = vsub.s32 0, %v759
  %v761 = vrot.slane %v756, %v760
  %v763 = vpack.i.b16 %v553, %v553
  %v765 = vlaneseq
  %v766 = vshrl.u32 %v765, 7
  %v767 = vsub.s32 0, %v766
  %v768 = vrot.slane %v763, %v767
  %v770 = vpack.i.b16 %v557, %v557
  %v772 = vlaneseq
  %v773 = vshrl.u32 %v772, 7
  %v774 = vsub.s32 0, %v773
  %v775 = vrot.slane %v770, %v774
  %v777 = vpack.i.b16 %v561, %v561
  %v779 = vlaneseq
  %v780 = vshrl.u32 %v779, 7
  %v781 = vsub.s32 0, %v780
  %v782 = vrot.slane %v777, %v781
  %v784 = vpack.i.b16 %v565, %v565
  %v786 = vlaneseq
  %v787 = vshrl.u32 %v786, 7
  %v788 = vsub.s32 0, %v787
  %v789 = vrot.slane %v784, %v788
  %v790 = vadd.bf16 %v572, %v270
  %v791 = vadd.bf16 %v572, %v271
  %v792 = vadd.bf16 %v579, %v270
  %v793 = vadd.bf16 %v579, %v271
  %v794 = vadd.bf16 %v586, %v270
  %v795 = vadd.bf16 %v586, %v271
  %v796 = vadd.bf16 %v593, %v270
  %v797 = vadd.bf16 %v593, %v271
  %v798 = vadd.bf16 %v600, %v270
  %v799 = vadd.bf16 %v600, %v271
  %v800 = vadd.bf16 %v607, %v270
  %v801 = vadd.bf16 %v607, %v271
  %v802 = vadd.bf16 %v614, %v270
  %v803 = vadd.bf16 %v614, %v271
  %v804 = vadd.bf16 %v621, %v270
  %v805 = vadd.bf16 %v621, %v271
  %v806 = vadd.bf16 %v628, %v270
  %v807 = vadd.bf16 %v628, %v271
  %v808 = vadd.bf16 %v635, %v270
  %v809 = vadd.bf16 %v635, %v271
  %v810 = vadd.bf16 %v642, %v270
  %v811 = vadd.bf16 %v642, %v271
  %v812 = vadd.bf16 %v649, %v270
  %v813 = vadd.bf16 %v649, %v271
  %v814 = vadd.bf16 %v656, %v270
  %v815 = vadd.bf16 %v656, %v271
  %v816 = vadd.bf16 %v663, %v270
  %v817 = vadd.bf16 %v663, %v271
  %v818 = vadd.bf16 %v670, %v270
  %v819 = vadd.bf16 %v670, %v271
  %v820 = vadd.bf16 %v677, %v270
  %v821 = vadd.bf16 %v677, %v271
  %v822 = vadd.bf16 %v684, %v270
  %v823 = vadd.bf16 %v684, %v271
  %v824 = vadd.bf16 %v691, %v270
  %v825 = vadd.bf16 %v691, %v271
  %v826 = vadd.bf16 %v698, %v270
  %v827 = vadd.bf16 %v698, %v271
  %v828 = vadd.bf16 %v705, %v270
  %v829 = vadd.bf16 %v705, %v271
  %v830 = vadd.bf16 %v712, %v270
  %v831 = vadd.bf16 %v712, %v271
  %v832 = vadd.bf16 %v719, %v270
  %v833 = vadd.bf16 %v719, %v271
  %v834 = vadd.bf16 %v726, %v270
  %v835 = vadd.bf16 %v726, %v271
  %v836 = vadd.bf16 %v733, %v270
  %v837 = vadd.bf16 %v733, %v271
  %v838 = vadd.bf16 %v740, %v270
  %v839 = vadd.bf16 %v740, %v271
  %v840 = vadd.bf16 %v747, %v270
  %v841 = vadd.bf16 %v747, %v271
  %v842 = vadd.bf16 %v754, %v270
  %v843 = vadd.bf16 %v754, %v271
  %v844 = vadd.bf16 %v761, %v270
  %v845 = vadd.bf16 %v761, %v271
  %v846 = vadd.bf16 %v768, %v270
  %v847 = vadd.bf16 %v768, %v271
  %v848 = vadd.bf16 %v775, %v270
  %v849 = vadd.bf16 %v775, %v271
  %v850 = vadd.bf16 %v782, %v270
  %v851 = vadd.bf16 %v782, %v271
  %v852 = vadd.bf16 %v789, %v270
  %v853 = vadd.bf16 %v789, %v271
  %v854 = vmul.bf16 %v790, 1045249613
  %v855 = vmul.bf16 %v791, 1045249613
  %v856 = vmul.bf16 %v792, 1045249613
  %v857 = vmul.bf16 %v793, 1045249613
  %v858 = vmul.bf16 %v794, 1045249613
  %v859 = vmul.bf16 %v795, 1045249613
  %v860 = vmul.bf16 %v796, 1045249613
  %v861 = vmul.bf16 %v797, 1045249613
  %v862 = vmul.bf16 %v798, 1045249613
  %v863 = vmul.bf16 %v799, 1045249613
  %v864 = vmul.bf16 %v800, 1045249613
  %v865 = vmul.bf16 %v801, 1045249613
  %v866 = vmul.bf16 %v802, 1045249613
  %v867 = vmul.bf16 %v803, 1045249613
  %v868 = vmul.bf16 %v804, 1045249613
  %v869 = vmul.bf16 %v805, 1045249613
  %v870 = vmul.bf16 %v806, 1045249613
  %v871 = vmul.bf16 %v807, 1045249613
  %v872 = vmul.bf16 %v808, 1045249613
  %v873 = vmul.bf16 %v809, 1045249613
  %v874 = vmul.bf16 %v810, 1045249613
  %v875 = vmul.bf16 %v811, 1045249613
  %v876 = vmul.bf16 %v812, 1045249613
  %v877 = vmul.bf16 %v813, 1045249613
  %v878 = vmul.bf16 %v814, 1045249613
  %v879 = vmul.bf16 %v815, 1045249613
  %v880 = vmul.bf16 %v816, 1045249613
  %v881 = vmul.bf16 %v817, 1045249613
  %v882 = vmul.bf16 %v818, 1045249613
  %v883 = vmul.bf16 %v819, 1045249613
  %v884 = vmul.bf16 %v820, 1045249613
  %v885 = vmul.bf16 %v821, 1045249613
  %v886 = vmul.bf16 %v822, 1045249613
  %v887 = vmul.bf16 %v823, 1045249613
  %v888 = vmul.bf16 %v824, 1045249613
  %v889 = vmul.bf16 %v825, 1045249613
  %v890 = vmul.bf16 %v826, 1045249613
  %v891 = vmul.bf16 %v827, 1045249613
  %v892 = vmul.bf16 %v828, 1045249613
  %v893 = vmul.bf16 %v829, 1045249613
  %v894 = vmul.bf16 %v830, 1045249613
  %v895 = vmul.bf16 %v831, 1045249613
  %v896 = vmul.bf16 %v832, 1045249613
  %v897 = vmul.bf16 %v833, 1045249613
  %v898 = vmul.bf16 %v834, 1045249613
  %v899 = vmul.bf16 %v835, 1045249613
  %v900 = vmul.bf16 %v836, 1045249613
  %v901 = vmul.bf16 %v837, 1045249613
  %v902 = vmul.bf16 %v838, 1045249613
  %v903 = vmul.bf16 %v839, 1045249613
  %v904 = vmul.bf16 %v840, 1045249613
  %v905 = vmul.bf16 %v841, 1045249613
  %v906 = vmul.bf16 %v842, 1045249613
  %v907 = vmul.bf16 %v843, 1045249613
  %v908 = vmul.bf16 %v844, 1045249613
  %v909 = vmul.bf16 %v845, 1045249613
  %v910 = vmul.bf16 %v846, 1045249613
  %v911 = vmul.bf16 %v847, 1045249613
  %v912 = vmul.bf16 %v848, 1045249613
  %v913 = vmul.bf16 %v849, 1045249613
  %v914 = vmul.bf16 %v850, 1045249613
  %v915 = vmul.bf16 %v851, 1045249613
  %v916 = vmul.bf16 %v852, 1045249613
  %v917 = vmul.bf16 %v853, 1045249613
  %v918 = vmax.bf16 %v790, %v854
  %v919 = vmax.bf16 %v791, %v855
  %v920 = vmax.bf16 %v792, %v856
  %v921 = vmax.bf16 %v793, %v857
  %v922 = vmax.bf16 %v794, %v858
  %v923 = vmax.bf16 %v795, %v859
  %v924 = vmax.bf16 %v796, %v860
  %v925 = vmax.bf16 %v797, %v861
  %v926 = vmax.bf16 %v798, %v862
  %v927 = vmax.bf16 %v799, %v863
  %v928 = vmax.bf16 %v800, %v864
  %v929 = vmax.bf16 %v801, %v865
  %v930 = vmax.bf16 %v802, %v866
  %v931 = vmax.bf16 %v803, %v867
  %v932 = vmax.bf16 %v804, %v868
  %v933 = vmax.bf16 %v805, %v869
  %v934 = vmax.bf16 %v806, %v870
  %v935 = vmax.bf16 %v807, %v871
  %v936 = vmax.bf16 %v808, %v872
  %v937 = vmax.bf16 %v809, %v873
  %v938 = vmax.bf16 %v810, %v874
  %v939 = vmax.bf16 %v811, %v875
  %v940 = vmax.bf16 %v812, %v876
  %v941 = vmax.bf16 %v813, %v877
  %v942 = vmax.bf16 %v814, %v878
  %v943 = vmax.bf16 %v815, %v879
  %v944 = vmax.bf16 %v816, %v880
  %v945 = vmax.bf16 %v817, %v881
  %v946 = vmax.bf16 %v818, %v882
  %v947 = vmax.bf16 %v819, %v883
  %v948 = vmax.bf16 %v820, %v884
  %v949 = vmax.bf16 %v821, %v885
  %v950 = vmax.bf16 %v822, %v886
  %v951 = vmax.bf16 %v823, %v887
  %v952 = vmax.bf16 %v824, %v888
  %v953 = vmax.bf16 %v825, %v889
  %v954 = vmax.bf16 %v826, %v890
  %v955 = vmax.bf16 %v827, %v891
  %v956 = vmax.bf16 %v828, %v892
  %v957 = vmax.bf16 %v829, %v893
  %v958 = vmax.bf16 %v830, %v894
  %v959 = vmax.bf16 %v831, %v895
  %v960 = vmax.bf16 %v832, %v896
  %v961 = vmax.bf16 %v833, %v897
  %v962 = vmax.bf16 %v834, %v898
  %v963 = vmax.bf16 %v835, %v899
  %v964 = vmax.bf16 %v836, %v900
  %v965 = vmax.bf16 %v837, %v901
  %v966 = vmax.bf16 %v838, %v902
  %v967 = vmax.bf16 %v839, %v903
  %v968 = vmax.bf16 %v840, %v904
  %v969 = vmax.bf16 %v841, %v905
  %v970 = vmax.bf16 %v842, %v906
  %v971 = vmax.bf16 %v843, %v907
  %v972 = vmax.bf16 %v844, %v908
  %v973 = vmax.bf16 %v845, %v909
  %v974 = vmax.bf16 %v846, %v910
  %v975 = vmax.bf16 %v847, %v911
  %v976 = vmax.bf16 %v848, %v912
  %v977 = vmax.bf16 %v849, %v913
  %v978 = vmax.bf16 %v850, %v914
  %v979 = vmax.bf16 %v851, %v915
  %v980 = vmax.bf16 %v852, %v916
  %v981 = vmax.bf16 %v853, %v917
  %v998 = vunpack.c.l.b16 %v166
  %v999 = vunpack.c.l.b16 %v167
  %v1000 = vunpack.c.l.b16 %v168
  %v1001 = vunpack.c.l.b16 %v169
  %v1002 = vunpack.c.l.b16 %v170
  %v1003 = vunpack.c.l.b16 %v171
  %v1004 = vunpack.c.l.b16 %v172
  %v1005 = vunpack.c.l.b16 %v173
  %v1006 = vunpack.c.l.b16 %v174
  %v1007 = vunpack.c.l.b16 %v175
  %v1008 = vunpack.c.l.b16 %v176
  %v1009 = vunpack.c.l.b16 %v177
  %v1010 = vunpack.c.l.b16 %v178
  %v1011 = vunpack.c.l.b16 %v179
  %v1012 = vunpack.c.l.b16 %v180
  %v1013 = vunpack.c.l.b16 %v181
  %v1014 = vpack.c.b16 %v999, %v998
  %v1015 = vpack.c.b16 %v1001, %v1000
  %v1016 = vpack.c.b16 %v1003, %v1002
  %v1017 = vpack.c.b16 %v1005, %v1004
  %v1018 = vpack.c.b16 %v1007, %v1006
  %v1019 = vpack.c.b16 %v1009, %v1008
  %v1020 = vpack.c.b16 %v1011, %v1010
  %v1021 = vpack.c.b16 %v1013, %v1012
  %1030 = vmatprep.subr.bf16.mxu0 0
  %1031 = vmatpush1.bf16.msra.mxu0 %v1021
  %1032 = vmatprep.subr.bf16.mxu0 0
  %1033 = vmatpush1.bf16.msra.mxu0 %v1020
  %1034 = vmatprep.subr.bf16.mxu0 0
  %1035 = vmatpush1.bf16.msra.mxu0 %v1019
  %1036 = vmatprep.subr.bf16.mxu0 0
  %1037 = vmatpush1.bf16.msra.mxu0 %v1018
  %1038 = vmatprep.subr.bf16.mxu0 0
  %1039 = vmatpush1.bf16.msra.mxu0 %v1017
  %1040 = vmatprep.subr.bf16.mxu0 0
  %1041 = vmatpush1.bf16.msra.mxu0 %v1016
  %1042 = vmatprep.subr.bf16.mxu0 0
  %1043 = vmatpush1.bf16.msra.mxu0 %v1015
  %1044 = vmatprep.subr.bf16.mxu0 0
  %1045 = vmatpush1.bf16.msra.mxu0 %v1014
  %1046 = vmatprep.subr.bf16.mxu0 0
  %1047 = vmatpush2.bf16.msra.mxu0 0
  %1048 = vmatprep.subr.bf16.mxu0 0
  %1049 = vmatpush2.bf16.msra.mxu0 0
  %1050 = vmatprep.subr.bf16.mxu0 0
  %1051 = vmatpush2.bf16.msra.mxu0 0
  %1052 = vmatprep.subr.bf16.mxu0 0
  %1053 = vmatpush2.bf16.msra.mxu0 0
  %1054 = vmatprep.subr.bf16.mxu0 0
  %1055 = vmatpush2.bf16.msra.mxu0 0
  %1056 = vmatprep.subr.bf16.mxu0 0
  %1057 = vmatpush2.bf16.msra.mxu0 0
  %1058 = vmatprep.subr.bf16.mxu0 0
  %1059 = vmatpush2.bf16.msra.mxu0 0
  %1060 = vmatprep.subr.bf16.mxu0 0
  %1061 = vmatpush2.bf16.msra.mxu0 0
  %1062 = vmatprep.mubr.bf16.mxu0 0
  %1063 = vmatmul.mubr.bf16.gmra.mxu0 %v918
  %v1064 = vpop.f32.mrf.mxu0
  %v1065 = vadd.f32 0.0, %v1064
  %v1066 = vpop.f32.mrf.mxu0
  %v1067 = vpop.f32.mrf.mxu0
  %v1068 = vadd.f32 0.0, %v1067
  %v1069 = vpop.f32.mrf.mxu0
  %1070 = vmatprep.mubr.bf16.mxu0 0
  %1071 = vmatmul.mubr.bf16.gmra.mxu0 %v919
  %v1072 = vpop.f32.mrf.mxu0
  %v1073 = vadd.f32 0.0, %v1072
  %v1074 = vpop.f32.mrf.mxu0
  %v1075 = vpop.f32.mrf.mxu0
  %v1076 = vadd.f32 0.0, %v1075
  %v1077 = vpop.f32.mrf.mxu0
  %1078 = vmatprep.mubr.bf16.mxu0 0
  %1079 = vmatmul.mubr.bf16.gmra.mxu0 %v920
  %v1080 = vpop.f32.mrf.mxu0
  %v1081 = vadd.f32 0.0, %v1080
  %v1082 = vpop.f32.mrf.mxu0
  %v1083 = vpop.f32.mrf.mxu0
  %v1084 = vadd.f32 0.0, %v1083
  %v1085 = vpop.f32.mrf.mxu0
  %1086 = vmatprep.mubr.bf16.mxu0 0
  %1087 = vmatmul.mubr.bf16.gmra.mxu0 %v921
  %v1088 = vpop.f32.mrf.mxu0
  %v1089 = vadd.f32 0.0, %v1088
  %v1090 = vpop.f32.mrf.mxu0
  %v1091 = vpop.f32.mrf.mxu0
  %v1092 = vadd.f32 0.0, %v1091
  %v1093 = vpop.f32.mrf.mxu0
  %1094 = vmatprep.mubr.bf16.mxu0 0
  %1095 = vmatmul.mubr.bf16.gmra.mxu0 %v922
  %v1096 = vpop.f32.mrf.mxu0
  %v1097 = vadd.f32 0.0, %v1096
  %v1098 = vpop.f32.mrf.mxu0
  %v1099 = vpop.f32.mrf.mxu0
  %v1100 = vadd.f32 0.0, %v1099
  %v1101 = vpop.f32.mrf.mxu0
  %1102 = vmatprep.mubr.bf16.mxu0 0
  %1103 = vmatmul.mubr.bf16.gmra.mxu0 %v923
  %v1104 = vpop.f32.mrf.mxu0
  %v1105 = vadd.f32 0.0, %v1104
  %v1106 = vpop.f32.mrf.mxu0
  %v1107 = vpop.f32.mrf.mxu0
  %v1108 = vadd.f32 0.0, %v1107
  %v1109 = vpop.f32.mrf.mxu0
  %1110 = vmatprep.mubr.bf16.mxu0 0
  %1111 = vmatmul.mubr.bf16.gmra.mxu0 %v924
  %v1112 = vpop.f32.mrf.mxu0
  %v1113 = vadd.f32 0.0, %v1112
  %v1114 = vpop.f32.mrf.mxu0
  %v1115 = vpop.f32.mrf.mxu0
  %v1116 = vadd.f32 0.0, %v1115
  %v1117 = vpop.f32.mrf.mxu0
  %1118 = vmatprep.mubr.bf16.mxu0 0
  %1119 = vmatmul.mubr.bf16.gmra.mxu0 %v925
  %v1120 = vpop.f32.mrf.mxu0
  %v1121 = vadd.f32 0.0, %v1120
  %v1122 = vpop.f32.mrf.mxu0
  %v1123 = vpop.f32.mrf.mxu0
  %v1124 = vadd.f32 0.0, %v1123
  %v1125 = vpop.f32.mrf.mxu0
  %1126 = vmatprep.mubr.bf16.mxu0 0
  %1127 = vmatmul.mubr.bf16.gmra.mxu0 %v926
  %v1128 = vpop.f32.mrf.mxu0
  %v1129 = vadd.f32 0.0, %v1128
  %v1130 = vpop.f32.mrf.mxu0
  %v1131 = vpop.f32.mrf.mxu0
  %v1132 = vadd.f32 0.0, %v1131
  %v1133 = vpop.f32.mrf.mxu0
  %1134 = vmatprep.mubr.bf16.mxu0 0
  %1135 = vmatmul.mubr.bf16.gmra.mxu0 %v927
  %v1136 = vpop.f32.mrf.mxu0
  %v1137 = vadd.f32 0.0, %v1136
  %v1138 = vpop.f32.mrf.mxu0
  %v1139 = vpop.f32.mrf.mxu0
  %v1140 = vadd.f32 0.0, %v1139
  %v1141 = vpop.f32.mrf.mxu0
  %1142 = vmatprep.mubr.bf16.mxu0 0
  %1143 = vmatmul.mubr.bf16.gmra.mxu0 %v928
  %v1144 = vpop.f32.mrf.mxu0
  %v1145 = vadd.f32 0.0, %v1144
  %v1146 = vpop.f32.mrf.mxu0
  %v1147 = vpop.f32.mrf.mxu0
  %v1148 = vadd.f32 0.0, %v1147
  %v1149 = vpop.f32.mrf.mxu0
  %1150 = vmatprep.mubr.bf16.mxu0 0
  %1151 = vmatmul.mubr.bf16.gmra.mxu0 %v929
  %v1152 = vpop.f32.mrf.mxu0
  %v1153 = vadd.f32 0.0, %v1152
  %v1154 = vpop.f32.mrf.mxu0
  %v1155 = vpop.f32.mrf.mxu0
  %v1156 = vadd.f32 0.0, %v1155
  %v1157 = vpop.f32.mrf.mxu0
  %1158 = vmatprep.mubr.bf16.mxu0 0
  %1159 = vmatmul.mubr.bf16.gmra.mxu0 %v930
  %v1160 = vpop.f32.mrf.mxu0
  %v1161 = vadd.f32 0.0, %v1160
  %v1162 = vpop.f32.mrf.mxu0
  %v1163 = vpop.f32.mrf.mxu0
  %v1164 = vadd.f32 0.0, %v1163
  %v1165 = vpop.f32.mrf.mxu0
  %1166 = vmatprep.mubr.bf16.mxu0 0
  %1167 = vmatmul.mubr.bf16.gmra.mxu0 %v931
  %v1168 = vpop.f32.mrf.mxu0
  %v1169 = vadd.f32 0.0, %v1168
  %v1170 = vpop.f32.mrf.mxu0
  %v1171 = vpop.f32.mrf.mxu0
  %v1172 = vadd.f32 0.0, %v1171
  %v1173 = vpop.f32.mrf.mxu0
  %1174 = vmatprep.mubr.bf16.mxu0 0
  %1175 = vmatmul.mubr.bf16.gmra.mxu0 %v932
  %v1176 = vpop.f32.mrf.mxu0
  %v1177 = vadd.f32 0.0, %v1176
  %v1178 = vpop.f32.mrf.mxu0
  %v1179 = vpop.f32.mrf.mxu0
  %v1180 = vadd.f32 0.0, %v1179
  %v1181 = vpop.f32.mrf.mxu0
  %1182 = vmatprep.mubr.bf16.mxu0 0
  %1183 = vmatmul.mubr.bf16.gmra.mxu0 %v933
  %v1184 = vpop.f32.mrf.mxu0
  %v1185 = vadd.f32 0.0, %v1184
  %v1186 = vpop.f32.mrf.mxu0
  %v1187 = vpop.f32.mrf.mxu0
  %v1188 = vadd.f32 0.0, %v1187
  %v1189 = vpop.f32.mrf.mxu0
  %1190 = vmatprep.mubr.bf16.mxu0 0
  %1191 = vmatmul.mubr.bf16.gmra.mxu0 %v934
  %v1192 = vpop.f32.mrf.mxu0
  %v1193 = vadd.f32 0.0, %v1192
  %v1194 = vpop.f32.mrf.mxu0
  %v1195 = vpop.f32.mrf.mxu0
  %v1196 = vadd.f32 0.0, %v1195
  %v1197 = vpop.f32.mrf.mxu0
  %1198 = vmatprep.mubr.bf16.mxu0 0
  %1199 = vmatmul.mubr.bf16.gmra.mxu0 %v935
  %v1200 = vpop.f32.mrf.mxu0
  %v1201 = vadd.f32 0.0, %v1200
  %v1202 = vpop.f32.mrf.mxu0
  %v1203 = vpop.f32.mrf.mxu0
  %v1204 = vadd.f32 0.0, %v1203
  %v1205 = vpop.f32.mrf.mxu0
  %1206 = vmatprep.mubr.bf16.mxu0 0
  %1207 = vmatmul.mubr.bf16.gmra.mxu0 %v936
  %v1208 = vpop.f32.mrf.mxu0
  %v1209 = vadd.f32 0.0, %v1208
  %v1210 = vpop.f32.mrf.mxu0
  %v1211 = vpop.f32.mrf.mxu0
  %v1212 = vadd.f32 0.0, %v1211
  %v1213 = vpop.f32.mrf.mxu0
  %1214 = vmatprep.mubr.bf16.mxu0 0
  %1215 = vmatmul.mubr.bf16.gmra.mxu0 %v937
  %v1216 = vpop.f32.mrf.mxu0
  %v1217 = vadd.f32 0.0, %v1216
  %v1218 = vpop.f32.mrf.mxu0
  %v1219 = vpop.f32.mrf.mxu0
  %v1220 = vadd.f32 0.0, %v1219
  %v1221 = vpop.f32.mrf.mxu0
  %1222 = vmatprep.mubr.bf16.mxu0 0
  %1223 = vmatmul.mubr.bf16.gmra.mxu0 %v938
  %v1224 = vpop.f32.mrf.mxu0
  %v1225 = vadd.f32 0.0, %v1224
  %v1226 = vpop.f32.mrf.mxu0
  %v1227 = vpop.f32.mrf.mxu0
  %v1228 = vadd.f32 0.0, %v1227
  %v1229 = vpop.f32.mrf.mxu0
  %1230 = vmatprep.mubr.bf16.mxu0 0
  %1231 = vmatmul.mubr.bf16.gmra.mxu0 %v939
  %v1232 = vpop.f32.mrf.mxu0
  %v1233 = vadd.f32 0.0, %v1232
  %v1234 = vpop.f32.mrf.mxu0
  %v1235 = vpop.f32.mrf.mxu0
  %v1236 = vadd.f32 0.0, %v1235
  %v1237 = vpop.f32.mrf.mxu0
  %1238 = vmatprep.mubr.bf16.mxu0 0
  %1239 = vmatmul.mubr.bf16.gmra.mxu0 %v940
  %v1240 = vpop.f32.mrf.mxu0
  %v1241 = vadd.f32 0.0, %v1240
  %v1242 = vpop.f32.mrf.mxu0
  %v1243 = vpop.f32.mrf.mxu0
  %v1244 = vadd.f32 0.0, %v1243
  %v1245 = vpop.f32.mrf.mxu0
  %1246 = vmatprep.mubr.bf16.mxu0 0
  %1247 = vmatmul.mubr.bf16.gmra.mxu0 %v941
  %v1248 = vpop.f32.mrf.mxu0
  %v1249 = vadd.f32 0.0, %v1248
  %v1250 = vpop.f32.mrf.mxu0
  %v1251 = vpop.f32.mrf.mxu0
  %v1252 = vadd.f32 0.0, %v1251
  %v1253 = vpop.f32.mrf.mxu0
  %1254 = vmatprep.mubr.bf16.mxu0 0
  %1255 = vmatmul.mubr.bf16.gmra.mxu0 %v942
  %v1256 = vpop.f32.mrf.mxu0
  %v1257 = vadd.f32 0.0, %v1256
  %v1258 = vpop.f32.mrf.mxu0
  %v1259 = vpop.f32.mrf.mxu0
  %v1260 = vadd.f32 0.0, %v1259
  %v1261 = vpop.f32.mrf.mxu0
  %1262 = vmatprep.mubr.bf16.mxu0 0
  %1263 = vmatmul.mubr.bf16.gmra.mxu0 %v943
  %v1264 = vpop.f32.mrf.mxu0
  %v1265 = vadd.f32 0.0, %v1264
  %v1266 = vpop.f32.mrf.mxu0
  %v1267 = vpop.f32.mrf.mxu0
  %v1268 = vadd.f32 0.0, %v1267
  %v1269 = vpop.f32.mrf.mxu0
  %1270 = vmatprep.mubr.bf16.mxu0 0
  %1271 = vmatmul.mubr.bf16.gmra.mxu0 %v944
  %v1272 = vpop.f32.mrf.mxu0
  %v1273 = vadd.f32 0.0, %v1272
  %v1274 = vpop.f32.mrf.mxu0
  %v1275 = vpop.f32.mrf.mxu0
  %v1276 = vadd.f32 0.0, %v1275
  %v1277 = vpop.f32.mrf.mxu0
  %1278 = vmatprep.mubr.bf16.mxu0 0
  %1279 = vmatmul.mubr.bf16.gmra.mxu0 %v945
  %v1280 = vpop.f32.mrf.mxu0
  %v1281 = vadd.f32 0.0, %v1280
  %v1282 = vpop.f32.mrf.mxu0
  %v1283 = vpop.f32.mrf.mxu0
  %v1284 = vadd.f32 0.0, %v1283
  %v1285 = vpop.f32.mrf.mxu0
  %1286 = vmatprep.mubr.bf16.mxu0 0
  %1287 = vmatmul.mubr.bf16.gmra.mxu0 %v946
  %v1288 = vpop.f32.mrf.mxu0
  %v1289 = vadd.f32 0.0, %v1288
  %v1290 = vpop.f32.mrf.mxu0
  %v1291 = vpop.f32.mrf.mxu0
  %v1292 = vadd.f32 0.0, %v1291
  %v1293 = vpop.f32.mrf.mxu0
  %1294 = vmatprep.mubr.bf16.mxu0 0
  %1295 = vmatmul.mubr.bf16.gmra.mxu0 %v947
  %v1296 = vpop.f32.mrf.mxu0
  %v1297 = vadd.f32 0.0, %v1296
  %v1298 = vpop.f32.mrf.mxu0
  %v1299 = vpop.f32.mrf.mxu0
  %v1300 = vadd.f32 0.0, %v1299
  %v1301 = vpop.f32.mrf.mxu0
  %1302 = vmatprep.mubr.bf16.mxu0 0
  %1303 = vmatmul.mubr.bf16.gmra.mxu0 %v948
  %v1304 = vpop.f32.mrf.mxu0
  %v1305 = vadd.f32 0.0, %v1304
  %v1306 = vpop.f32.mrf.mxu0
  %v1307 = vpop.f32.mrf.mxu0
  %v1308 = vadd.f32 0.0, %v1307
  %v1309 = vpop.f32.mrf.mxu0
  %1310 = vmatprep.mubr.bf16.mxu0 0
  %1311 = vmatmul.mubr.bf16.gmra.mxu0 %v949
  %v1312 = vpop.f32.mrf.mxu0
  %v1313 = vadd.f32 0.0, %v1312
  %v1314 = vpop.f32.mrf.mxu0
  %v1315 = vpop.f32.mrf.mxu0
  %v1316 = vadd.f32 0.0, %v1315
  %v1317 = vpop.f32.mrf.mxu0
  %1318 = vmatprep.mubr.bf16.mxu0 0
  %1319 = vmatmul.mubr.bf16.gmra.mxu0 %v950
  %v1320 = vpop.f32.mrf.mxu0
  %v1321 = vadd.f32 0.0, %v1320
  %v1322 = vpop.f32.mrf.mxu0
  %v1323 = vpop.f32.mrf.mxu0
  %v1324 = vadd.f32 0.0, %v1323
  %v1325 = vpop.f32.mrf.mxu0
  %1326 = vmatprep.mubr.bf16.mxu0 0
  %1327 = vmatmul.mubr.bf16.gmra.mxu0 %v951
  %v1328 = vpop.f32.mrf.mxu0
  %v1329 = vadd.f32 0.0, %v1328
  %v1330 = vpop.f32.mrf.mxu0
  %v1331 = vpop.f32.mrf.mxu0
  %v1332 = vadd.f32 0.0, %v1331
  %v1333 = vpop.f32.mrf.mxu0
  %1334 = vmatprep.mubr.bf16.mxu0 0
  %1335 = vmatmul.mubr.bf16.gmra.mxu0 %v952
  %v1336 = vpop.f32.mrf.mxu0
  %v1337 = vadd.f32 0.0, %v1336
  %v1338 = vpop.f32.mrf.mxu0
  %v1339 = vpop.f32.mrf.mxu0
  %v1340 = vadd.f32 0.0, %v1339
  %v1341 = vpop.f32.mrf.mxu0
  %1342 = vmatprep.mubr.bf16.mxu0 0
  %1343 = vmatmul.mubr.bf16.gmra.mxu0 %v953
  %v1344 = vpop.f32.mrf.mxu0
  %v1345 = vadd.f32 0.0, %v1344
  %v1346 = vpop.f32.mrf.mxu0
  %v1347 = vpop.f32.mrf.mxu0
  %v1348 = vadd.f32 0.0, %v1347
  %v1349 = vpop.f32.mrf.mxu0
  %1350 = vmatprep.mubr.bf16.mxu0 0
  %1351 = vmatmul.mubr.bf16.gmra.mxu0 %v954
  %v1352 = vpop.f32.mrf.mxu0
  %v1353 = vadd.f32 0.0, %v1352
  %v1354 = vpop.f32.mrf.mxu0
  %v1355 = vpop.f32.mrf.mxu0
  %v1356 = vadd.f32 0.0, %v1355
  %v1357 = vpop.f32.mrf.mxu0
  %1358 = vmatprep.mubr.bf16.mxu0 0
  %1359 = vmatmul.mubr.bf16.gmra.mxu0 %v955
  %v1360 = vpop.f32.mrf.mxu0
  %v1361 = vadd.f32 0.0, %v1360
  %v1362 = vpop.f32.mrf.mxu0
  %v1363 = vpop.f32.mrf.mxu0
  %v1364 = vadd.f32 0.0, %v1363
  %v1365 = vpop.f32.mrf.mxu0
  %1366 = vmatprep.mubr.bf16.mxu0 0
  %1367 = vmatmul.mubr.bf16.gmra.mxu0 %v956
  %v1368 = vpop.f32.mrf.mxu0
  %v1369 = vadd.f32 0.0, %v1368
  %v1370 = vpop.f32.mrf.mxu0
  %v1371 = vpop.f32.mrf.mxu0
  %v1372 = vadd.f32 0.0, %v1371
  %v1373 = vpop.f32.mrf.mxu0
  %1374 = vmatprep.mubr.bf16.mxu0 0
  %1375 = vmatmul.mubr.bf16.gmra.mxu0 %v957
  %v1376 = vpop.f32.mrf.mxu0
  %v1377 = vadd.f32 0.0, %v1376
  %v1378 = vpop.f32.mrf.mxu0
  %v1379 = vpop.f32.mrf.mxu0
  %v1380 = vadd.f32 0.0, %v1379
  %v1381 = vpop.f32.mrf.mxu0
  %1382 = vmatprep.mubr.bf16.mxu0 0
  %1383 = vmatmul.mubr.bf16.gmra.mxu0 %v958
  %v1384 = vpop.f32.mrf.mxu0
  %v1385 = vadd.f32 0.0, %v1384
  %v1386 = vpop.f32.mrf.mxu0
  %v1387 = vpop.f32.mrf.mxu0
  %v1388 = vadd.f32 0.0, %v1387
  %v1389 = vpop.f32.mrf.mxu0
  %1390 = vmatprep.mubr.bf16.mxu0 0
  %1391 = vmatmul.mubr.bf16.gmra.mxu0 %v959
  %v1392 = vpop.f32.mrf.mxu0
  %v1393 = vadd.f32 0.0, %v1392
  %v1394 = vpop.f32.mrf.mxu0
  %v1395 = vpop.f32.mrf.mxu0
  %v1396 = vadd.f32 0.0, %v1395
  %v1397 = vpop.f32.mrf.mxu0
  %1398 = vmatprep.mubr.bf16.mxu0 0
  %1399 = vmatmul.mubr.bf16.gmra.mxu0 %v960
  %v1400 = vpop.f32.mrf.mxu0
  %v1401 = vadd.f32 0.0, %v1400
  %v1402 = vpop.f32.mrf.mxu0
  %v1403 = vpop.f32.mrf.mxu0
  %v1404 = vadd.f32 0.0, %v1403
  %v1405 = vpop.f32.mrf.mxu0
  %1406 = vmatprep.mubr.bf16.mxu0 0
  %1407 = vmatmul.mubr.bf16.gmra.mxu0 %v961
  %v1408 = vpop.f32.mrf.mxu0
  %v1409 = vadd.f32 0.0, %v1408
  %v1410 = vpop.f32.mrf.mxu0
  %v1411 = vpop.f32.mrf.mxu0
  %v1412 = vadd.f32 0.0, %v1411
  %v1413 = vpop.f32.mrf.mxu0
  %1414 = vmatprep.mubr.bf16.mxu0 0
  %1415 = vmatmul.mubr.bf16.gmra.mxu0 %v962
  %v1416 = vpop.f32.mrf.mxu0
  %v1417 = vadd.f32 0.0, %v1416
  %v1418 = vpop.f32.mrf.mxu0
  %v1419 = vpop.f32.mrf.mxu0
  %v1420 = vadd.f32 0.0, %v1419
  %v1421 = vpop.f32.mrf.mxu0
  %1422 = vmatprep.mubr.bf16.mxu0 0
  %1423 = vmatmul.mubr.bf16.gmra.mxu0 %v963
  %v1424 = vpop.f32.mrf.mxu0
  %v1425 = vadd.f32 0.0, %v1424
  %v1426 = vpop.f32.mrf.mxu0
  %v1427 = vpop.f32.mrf.mxu0
  %v1428 = vadd.f32 0.0, %v1427
  %v1429 = vpop.f32.mrf.mxu0
  %1430 = vmatprep.mubr.bf16.mxu0 0
  %1431 = vmatmul.mubr.bf16.gmra.mxu0 %v964
  %v1432 = vpop.f32.mrf.mxu0
  %v1433 = vadd.f32 0.0, %v1432
  %v1434 = vpop.f32.mrf.mxu0
  %v1435 = vpop.f32.mrf.mxu0
  %v1436 = vadd.f32 0.0, %v1435
  %v1437 = vpop.f32.mrf.mxu0
  %1438 = vmatprep.mubr.bf16.mxu0 0
  %1439 = vmatmul.mubr.bf16.gmra.mxu0 %v965
  %v1440 = vpop.f32.mrf.mxu0
  %v1441 = vadd.f32 0.0, %v1440
  %v1442 = vpop.f32.mrf.mxu0
  %v1443 = vpop.f32.mrf.mxu0
  %v1444 = vadd.f32 0.0, %v1443
  %v1445 = vpop.f32.mrf.mxu0
  %1446 = vmatprep.mubr.bf16.mxu0 0
  %1447 = vmatmul.mubr.bf16.gmra.mxu0 %v966
  %v1448 = vpop.f32.mrf.mxu0
  %v1449 = vadd.f32 0.0, %v1448
  %v1450 = vpop.f32.mrf.mxu0
  %v1451 = vpop.f32.mrf.mxu0
  %v1452 = vadd.f32 0.0, %v1451
  %v1453 = vpop.f32.mrf.mxu0
  %1454 = vmatprep.mubr.bf16.mxu0 0
  %1455 = vmatmul.mubr.bf16.gmra.mxu0 %v967
  %v1456 = vpop.f32.mrf.mxu0
  %v1457 = vadd.f32 0.0, %v1456
  %v1458 = vpop.f32.mrf.mxu0
  %v1459 = vpop.f32.mrf.mxu0
  %v1460 = vadd.f32 0.0, %v1459
  %v1461 = vpop.f32.mrf.mxu0
  %1462 = vmatprep.mubr.bf16.mxu0 0
  %1463 = vmatmul.mubr.bf16.gmra.mxu0 %v968
  %v1464 = vpop.f32.mrf.mxu0
  %v1465 = vadd.f32 0.0, %v1464
  %v1466 = vpop.f32.mrf.mxu0
  %v1467 = vpop.f32.mrf.mxu0
  %v1468 = vadd.f32 0.0, %v1467
  %v1469 = vpop.f32.mrf.mxu0
  %1470 = vmatprep.mubr.bf16.mxu0 0
  %1471 = vmatmul.mubr.bf16.gmra.mxu0 %v969
  %v1472 = vpop.f32.mrf.mxu0
  %v1473 = vadd.f32 0.0, %v1472
  %v1474 = vpop.f32.mrf.mxu0
  %v1475 = vpop.f32.mrf.mxu0
  %v1476 = vadd.f32 0.0, %v1475
  %v1477 = vpop.f32.mrf.mxu0
  %1478 = vmatprep.mubr.bf16.mxu0 0
  %1479 = vmatmul.mubr.bf16.gmra.mxu0 %v970
  %v1480 = vpop.f32.mrf.mxu0
  %v1481 = vadd.f32 0.0, %v1480
  %v1482 = vpop.f32.mrf.mxu0
  %v1483 = vpop.f32.mrf.mxu0
  %v1484 = vadd.f32 0.0, %v1483
  %v1485 = vpop.f32.mrf.mxu0
  %1486 = vmatprep.mubr.bf16.mxu0 0
  %1487 = vmatmul.mubr.bf16.gmra.mxu0 %v971
  %v1488 = vpop.f32.mrf.mxu0
  %v1489 = vadd.f32 0.0, %v1488
  %v1490 = vpop.f32.mrf.mxu0
  %v1491 = vpop.f32.mrf.mxu0
  %v1492 = vadd.f32 0.0, %v1491
  %v1493 = vpop.f32.mrf.mxu0
  %1494 = vmatprep.mubr.bf16.mxu0 0
  %1495 = vmatmul.mubr.bf16.gmra.mxu0 %v972
  %v1496 = vpop.f32.mrf.mxu0
  %v1497 = vadd.f32 0.0, %v1496
  %v1498 = vpop.f32.mrf.mxu0
  %v1499 = vpop.f32.mrf.mxu0
  %v1500 = vadd.f32 0.0, %v1499
  %v1501 = vpop.f32.mrf.mxu0
  %1502 = vmatprep.mubr.bf16.mxu0 0
  %1503 = vmatmul.mubr.bf16.gmra.mxu0 %v973
  %v1504 = vpop.f32.mrf.mxu0
  %v1505 = vadd.f32 0.0, %v1504
  %v1506 = vpop.f32.mrf.mxu0
  %v1507 = vpop.f32.mrf.mxu0
  %v1508 = vadd.f32 0.0, %v1507
  %v1509 = vpop.f32.mrf.mxu0
  %1510 = vmatprep.mubr.bf16.mxu0 0
  %1511 = vmatmul.mubr.bf16.gmra.mxu0 %v974
  %v1512 = vpop.f32.mrf.mxu0
  %v1513 = vadd.f32 0.0, %v1512
  %v1514 = vpop.f32.mrf.mxu0
  %v1515 = vpop.f32.mrf.mxu0
  %v1516 = vadd.f32 0.0, %v1515
  %v1517 = vpop.f32.mrf.mxu0
  %1518 = vmatprep.mubr.bf16.mxu0 0
  %1519 = vmatmul.mubr.bf16.gmra.mxu0 %v975
  %v1520 = vpop.f32.mrf.mxu0
  %v1521 = vadd.f32 0.0, %v1520
  %v1522 = vpop.f32.mrf.mxu0
  %v1523 = vpop.f32.mrf.mxu0
  %v1524 = vadd.f32 0.0, %v1523
  %v1525 = vpop.f32.mrf.mxu0
  %1526 = vmatprep.mubr.bf16.mxu0 0
  %1527 = vmatmul.mubr.bf16.gmra.mxu0 %v976
  %v1528 = vpop.f32.mrf.mxu0
  %v1529 = vadd.f32 0.0, %v1528
  %v1530 = vpop.f32.mrf.mxu0
  %v1531 = vpop.f32.mrf.mxu0
  %v1532 = vadd.f32 0.0, %v1531
  %v1533 = vpop.f32.mrf.mxu0
  %1534 = vmatprep.mubr.bf16.mxu0 0
  %1535 = vmatmul.mubr.bf16.gmra.mxu0 %v977
  %v1536 = vpop.f32.mrf.mxu0
  %v1537 = vadd.f32 0.0, %v1536
  %v1538 = vpop.f32.mrf.mxu0
  %v1539 = vpop.f32.mrf.mxu0
  %v1540 = vadd.f32 0.0, %v1539
  %v1541 = vpop.f32.mrf.mxu0
  %1542 = vmatprep.mubr.bf16.mxu0 0
  %1543 = vmatmul.mubr.bf16.gmra.mxu0 %v978
  %v1544 = vpop.f32.mrf.mxu0
  %v1545 = vadd.f32 0.0, %v1544
  %v1546 = vpop.f32.mrf.mxu0
  %v1547 = vpop.f32.mrf.mxu0
  %v1548 = vadd.f32 0.0, %v1547
  %v1549 = vpop.f32.mrf.mxu0
  %1550 = vmatprep.mubr.bf16.mxu0 0
  %1551 = vmatmul.mubr.bf16.gmra.mxu0 %v979
  %v1552 = vpop.f32.mrf.mxu0
  %v1553 = vadd.f32 0.0, %v1552
  %v1554 = vpop.f32.mrf.mxu0
  %v1555 = vpop.f32.mrf.mxu0
  %v1556 = vadd.f32 0.0, %v1555
  %v1557 = vpop.f32.mrf.mxu0
  %1558 = vmatprep.mubr.bf16.mxu0 0
  %1559 = vmatmul.mubr.bf16.gmra.mxu0 %v980
  %v1560 = vpop.f32.mrf.mxu0
  %v1561 = vadd.f32 0.0, %v1560
  %v1562 = vpop.f32.mrf.mxu0
  %v1563 = vpop.f32.mrf.mxu0
  %v1564 = vadd.f32 0.0, %v1563
  %v1565 = vpop.f32.mrf.mxu0
  %1566 = vmatprep.mubr.bf16.mxu0 0
  %1567 = vmatmul.mubr.bf16.gmra.mxu0 %v981
  %v1568 = vpop.f32.mrf.mxu0
  %v1569 = vadd.f32 0.0, %v1568
  %v1570 = vpop.f32.mrf.mxu0
  %v1571 = vpop.f32.mrf.mxu0
  %v1572 = vadd.f32 0.0, %v1571
  %v1573 = vpop.f32.mrf.mxu0
  %1574 = vdwg.mxu0
  %1576 = vset.pattern.permute.xlu0 0
  %1577 = vperm.xlu0 %1576, %v31
  %v1578 = vpop.permute.xlu0 %1577
  %1581 = vset.pattern.permute.xlu0 0
  %1582 = vperm.xlu0 %1581, %v32
  %v1583 = vpop.permute.xlu0 %1582
  %1586 = vset.pattern.permute.xlu0 0
  %1587 = vperm.xlu0 %1586, %v33
  %v1588 = vpop.permute.xlu0 %1587
  %1591 = vset.pattern.permute.xlu0 0
  %1592 = vperm.xlu0 %1591, %v34
  %v1593 = vpop.permute.xlu0 %1592
  %1596 = vset.pattern.permute.xlu0 0
  %1597 = vperm.xlu0 %1596, %v35
  %v1598 = vpop.permute.xlu0 %1597
  %1601 = vset.pattern.permute.xlu0 0
  %1602 = vperm.xlu0 %1601, %v36
  %v1603 = vpop.permute.xlu0 %1602
  %1606 = vset.pattern.permute.xlu0 0
  %1607 = vperm.xlu0 %1606, %v37
  %v1608 = vpop.permute.xlu0 %1607
  %1611 = vset.pattern.permute.xlu0 0
  %1612 = vperm.xlu0 %1611, %v38
  %v1613 = vpop.permute.xlu0 %1612
  %1616 = vset.pattern.permute.xlu0 0
  %1617 = vperm.xlu0 %1616, %v39
  %v1618 = vpop.permute.xlu0 %1617
  %1621 = vset.pattern.permute.xlu0 0
  %1622 = vperm.xlu0 %1621, %v40
  %v1623 = vpop.permute.xlu0 %1622
  %1626 = vset.pattern.permute.xlu0 0
  %1627 = vperm.xlu0 %1626, %v41
  %v1628 = vpop.permute.xlu0 %1627
  %1631 = vset.pattern.permute.xlu0 0
  %1632 = vperm.xlu0 %1631, %v42
  %v1633 = vpop.permute.xlu0 %1632
  %1636 = vset.pattern.permute.xlu0 0
  %1637 = vperm.xlu0 %1636, %v43
  %v1638 = vpop.permute.xlu0 %1637
  %1641 = vset.pattern.permute.xlu0 0
  %1642 = vperm.xlu0 %1641, %v44
  %v1643 = vpop.permute.xlu0 %1642
  %1646 = vset.pattern.permute.xlu0 0
  %1647 = vperm.xlu0 %1646, %v45
  %v1648 = vpop.permute.xlu0 %1647
  %1651 = vset.pattern.permute.xlu0 0
  %1652 = vperm.xlu0 %1651, %v46
  %v1653 = vpop.permute.xlu0 %1652
  %1656 = vset.pattern.permute.xlu0 0
  %1657 = vperm.xlu0 %1656, %v47
  %v1658 = vpop.permute.xlu0 %1657
  %1661 = vset.pattern.permute.xlu0 0
  %1662 = vperm.xlu0 %1661, %v48
  %v1663 = vpop.permute.xlu0 %1662
  %1666 = vset.pattern.permute.xlu0 0
  %1667 = vperm.xlu0 %1666, %v49
  %v1668 = vpop.permute.xlu0 %1667
  %1671 = vset.pattern.permute.xlu0 0
  %1672 = vperm.xlu0 %1671, %v50
  %v1673 = vpop.permute.xlu0 %1672
  %1676 = vset.pattern.permute.xlu0 0
  %1677 = vperm.xlu0 %1676, %v51
  %v1678 = vpop.permute.xlu0 %1677
  %1681 = vset.pattern.permute.xlu0 0
  %1682 = vperm.xlu0 %1681, %v52
  %v1683 = vpop.permute.xlu0 %1682
  %1686 = vset.pattern.permute.xlu0 0
  %1687 = vperm.xlu0 %1686, %v53
  %v1688 = vpop.permute.xlu0 %1687
  %1691 = vset.pattern.permute.xlu0 0
  %1692 = vperm.xlu0 %1691, %v54
  %v1693 = vpop.permute.xlu0 %1692
  %1696 = vset.pattern.permute.xlu0 0
  %1697 = vperm.xlu0 %1696, %v55
  %v1698 = vpop.permute.xlu0 %1697
  %1701 = vset.pattern.permute.xlu0 0
  %1702 = vperm.xlu0 %1701, %v56
  %v1703 = vpop.permute.xlu0 %1702
  %1706 = vset.pattern.permute.xlu0 0
  %1707 = vperm.xlu0 %1706, %v57
  %v1708 = vpop.permute.xlu0 %1707
  %1711 = vset.pattern.permute.xlu0 0
  %1712 = vperm.xlu0 %1711, %v58
  %v1713 = vpop.permute.xlu0 %1712
  %1716 = vset.pattern.permute.xlu0 0
  %1717 = vperm.xlu0 %1716, %v59
  %v1718 = vpop.permute.xlu0 %1717
  %1721 = vset.pattern.permute.xlu0 0
  %1722 = vperm.xlu0 %1721, %v60
  %v1723 = vpop.permute.xlu0 %1722
  %1726 = vset.pattern.permute.xlu0 0
  %1727 = vperm.xlu0 %1726, %v61
  %v1728 = vpop.permute.xlu0 %1727
  %1731 = vset.pattern.permute.xlu0 0
  %1732 = vperm.xlu0 %1731, %v62
  %v1733 = vpop.permute.xlu0 %1732
  %1736 = vset.pattern.permute.xlu0 0
  %1737 = vperm.xlu0 %1736, %v63
  %v1738 = vpop.permute.xlu0 %1737
  %1741 = vset.pattern.permute.xlu0 0
  %1742 = vperm.xlu0 %1741, %v64
  %v1743 = vpop.permute.xlu0 %1742
  %1746 = vset.pattern.permute.xlu0 0
  %1747 = vperm.xlu0 %1746, %v65
  %v1748 = vpop.permute.xlu0 %1747
  %1751 = vset.pattern.permute.xlu0 0
  %1752 = vperm.xlu0 %1751, %v66
  %v1753 = vpop.permute.xlu0 %1752
  %1756 = vset.pattern.permute.xlu0 0
  %1757 = vperm.xlu0 %1756, %v67
  %v1758 = vpop.permute.xlu0 %1757
  %1761 = vset.pattern.permute.xlu0 0
  %1762 = vperm.xlu0 %1761, %v68
  %v1763 = vpop.permute.xlu0 %1762
  %1766 = vset.pattern.permute.xlu0 0
  %1767 = vperm.xlu0 %1766, %v69
  %v1768 = vpop.permute.xlu0 %1767
  %1771 = vset.pattern.permute.xlu0 0
  %1772 = vperm.xlu0 %1771, %v70
  %v1773 = vpop.permute.xlu0 %1772
  %1776 = vset.pattern.permute.xlu0 0
  %1777 = vperm.xlu0 %1776, %v71
  %v1778 = vpop.permute.xlu0 %1777
  %1781 = vset.pattern.permute.xlu0 0
  %1782 = vperm.xlu0 %1781, %v72
  %v1783 = vpop.permute.xlu0 %1782
  %1786 = vset.pattern.permute.xlu0 0
  %1787 = vperm.xlu0 %1786, %v73
  %v1788 = vpop.permute.xlu0 %1787
  %1791 = vset.pattern.permute.xlu0 0
  %1792 = vperm.xlu0 %1791, %v74
  %v1793 = vpop.permute.xlu0 %1792
  %1796 = vset.pattern.permute.xlu0 0
  %1797 = vperm.xlu0 %1796, %v75
  %v1798 = vpop.permute.xlu0 %1797
  %1801 = vset.pattern.permute.xlu0 0
  %1802 = vperm.xlu0 %1801, %v76
  %v1803 = vpop.permute.xlu0 %1802
  %1806 = vset.pattern.permute.xlu0 0
  %1807 = vperm.xlu0 %1806, %v77
  %v1808 = vpop.permute.xlu0 %1807
  %1811 = vset.pattern.permute.xlu0 0
  %1812 = vperm.xlu0 %1811, %v78
  %v1813 = vpop.permute.xlu0 %1812
  %1816 = vset.pattern.permute.xlu0 0
  %1817 = vperm.xlu0 %1816, %v79
  %v1818 = vpop.permute.xlu0 %1817
  %1821 = vset.pattern.permute.xlu0 0
  %1822 = vperm.xlu0 %1821, %v80
  %v1823 = vpop.permute.xlu0 %1822
  %1826 = vset.pattern.permute.xlu0 0
  %1827 = vperm.xlu0 %1826, %v81
  %v1828 = vpop.permute.xlu0 %1827
  %1831 = vset.pattern.permute.xlu0 0
  %1832 = vperm.xlu0 %1831, %v82
  %v1833 = vpop.permute.xlu0 %1832
  %1836 = vset.pattern.permute.xlu0 0
  %1837 = vperm.xlu0 %1836, %v83
  %v1838 = vpop.permute.xlu0 %1837
  %1841 = vset.pattern.permute.xlu0 0
  %1842 = vperm.xlu0 %1841, %v84
  %v1843 = vpop.permute.xlu0 %1842
  %1846 = vset.pattern.permute.xlu0 0
  %1847 = vperm.xlu0 %1846, %v85
  %v1848 = vpop.permute.xlu0 %1847
  %1851 = vset.pattern.permute.xlu0 0
  %1852 = vperm.xlu0 %1851, %v86
  %v1853 = vpop.permute.xlu0 %1852
  %1856 = vset.pattern.permute.xlu0 0
  %1857 = vperm.xlu0 %1856, %v87
  %v1858 = vpop.permute.xlu0 %1857
  %1861 = vset.pattern.permute.xlu0 0
  %1862 = vperm.xlu0 %1861, %v88
  %v1863 = vpop.permute.xlu0 %1862
  %1866 = vset.pattern.permute.xlu0 0
  %1867 = vperm.xlu0 %1866, %v89
  %v1868 = vpop.permute.xlu0 %1867
  %1871 = vset.pattern.permute.xlu0 0
  %1872 = vperm.xlu0 %1871, %v90
  %v1873 = vpop.permute.xlu0 %1872
  %1876 = vset.pattern.permute.xlu0 0
  %1877 = vperm.xlu0 %1876, %v91
  %v1878 = vpop.permute.xlu0 %1877
  %1881 = vset.pattern.permute.xlu0 0
  %1882 = vperm.xlu0 %1881, %v92
  %v1883 = vpop.permute.xlu0 %1882
  %1886 = vset.pattern.permute.xlu0 0
  %1887 = vperm.xlu0 %1886, %v93
  %v1888 = vpop.permute.xlu0 %1887
  %1891 = vset.pattern.permute.xlu0 0
  %1892 = vperm.xlu0 %1891, %v94
  %v1893 = vpop.permute.xlu0 %1892
  %1896 = vset.pattern.permute.xlu0 0
  %1897 = vperm.xlu0 %1896, %v95
  %v1898 = vpop.permute.xlu0 %1897
  %1901 = vset.pattern.permute.xlu0 0
  %1902 = vperm.xlu0 %1901, %v96
  %v1903 = vpop.permute.xlu0 %1902
  %1906 = vset.pattern.permute.xlu0 0
  %1907 = vperm.xlu0 %1906, %v97
  %v1908 = vpop.permute.xlu0 %1907
  %1911 = vset.pattern.permute.xlu0 0
  %1912 = vperm.xlu0 %1911, %v98
  %v1913 = vpop.permute.xlu0 %1912
  %1916 = vset.pattern.permute.xlu0 0
  %1917 = vperm.xlu0 %1916, %v99
  %v1918 = vpop.permute.xlu0 %1917
  %1921 = vset.pattern.permute.xlu0 0
  %1922 = vperm.xlu0 %1921, %v100
  %v1923 = vpop.permute.xlu0 %1922
  %1926 = vset.pattern.permute.xlu0 0
  %1927 = vperm.xlu0 %1926, %v101
  %v1928 = vpop.permute.xlu0 %1927
  %1931 = vset.pattern.permute.xlu0 0
  %1932 = vperm.xlu0 %1931, %v102
  %v1933 = vpop.permute.xlu0 %1932
  %1936 = vset.pattern.permute.xlu0 0
  %1937 = vperm.xlu0 %1936, %v103
  %v1938 = vpop.permute.xlu0 %1937
  %1941 = vset.pattern.permute.xlu0 0
  %1942 = vperm.xlu0 %1941, %v104
  %v1943 = vpop.permute.xlu0 %1942
  %1946 = vset.pattern.permute.xlu0 0
  %1947 = vperm.xlu0 %1946, %v105
  %v1948 = vpop.permute.xlu0 %1947
  %1951 = vset.pattern.permute.xlu0 0
  %1952 = vperm.xlu0 %1951, %v106
  %v1953 = vpop.permute.xlu0 %1952
  %1956 = vset.pattern.permute.xlu0 0
  %1957 = vperm.xlu0 %1956, %v107
  %v1958 = vpop.permute.xlu0 %1957
  %1961 = vset.pattern.permute.xlu0 0
  %1962 = vperm.xlu0 %1961, %v108
  %v1963 = vpop.permute.xlu0 %1962
  %1966 = vset.pattern.permute.xlu0 0
  %1967 = vperm.xlu0 %1966, %v109
  %v1968 = vpop.permute.xlu0 %1967
  %1971 = vset.pattern.permute.xlu0 0
  %1972 = vperm.xlu0 %1971, %v110
  %v1973 = vpop.permute.xlu0 %1972
  %1976 = vset.pattern.permute.xlu0 0
  %1977 = vperm.xlu0 %1976, %v111
  %v1978 = vpop.permute.xlu0 %1977
  %1981 = vset.pattern.permute.xlu0 0
  %1982 = vperm.xlu0 %1981, %v112
  %v1983 = vpop.permute.xlu0 %1982
  %1986 = vset.pattern.permute.xlu0 0
  %1987 = vperm.xlu0 %1986, %v113
  %v1988 = vpop.permute.xlu0 %1987
  %1991 = vset.pattern.permute.xlu0 0
  %1992 = vperm.xlu0 %1991, %v114
  %v1993 = vpop.permute.xlu0 %1992
  %1996 = vset.pattern.permute.xlu0 0
  %1997 = vperm.xlu0 %1996, %v115
  %v1998 = vpop.permute.xlu0 %1997
  %2001 = vset.pattern.permute.xlu0 0
  %2002 = vperm.xlu0 %2001, %v116
  %v2003 = vpop.permute.xlu0 %2002
  %2006 = vset.pattern.permute.xlu0 0
  %2007 = vperm.xlu0 %2006, %v117
  %v2008 = vpop.permute.xlu0 %2007
  %2011 = vset.pattern.permute.xlu0 0
  %2012 = vperm.xlu0 %2011, %v118
  %v2013 = vpop.permute.xlu0 %2012
  %2016 = vset.pattern.permute.xlu0 0
  %2017 = vperm.xlu0 %2016, %v119
  %v2018 = vpop.permute.xlu0 %2017
  %2021 = vset.pattern.permute.xlu0 0
  %2022 = vperm.xlu0 %2021, %v120
  %v2023 = vpop.permute.xlu0 %2022
  %2026 = vset.pattern.permute.xlu0 0
  %2027 = vperm.xlu0 %2026, %v121
  %v2028 = vpop.permute.xlu0 %2027
  %2031 = vset.pattern.permute.xlu0 0
  %2032 = vperm.xlu0 %2031, %v122
  %v2033 = vpop.permute.xlu0 %2032
  %2036 = vset.pattern.permute.xlu0 0
  %2037 = vperm.xlu0 %2036, %v123
  %v2038 = vpop.permute.xlu0 %2037
  %2041 = vset.pattern.permute.xlu0 0
  %2042 = vperm.xlu0 %2041, %v124
  %v2043 = vpop.permute.xlu0 %2042
  %2046 = vset.pattern.permute.xlu0 0
  %2047 = vperm.xlu0 %2046, %v125
  %v2048 = vpop.permute.xlu0 %2047
  %2051 = vset.pattern.permute.xlu0 0
  %2052 = vperm.xlu0 %2051, %v126
  %v2053 = vpop.permute.xlu0 %2052
  %2056 = vset.pattern.permute.xlu0 0
  %2057 = vperm.xlu0 %2056, %v127
  %v2058 = vpop.permute.xlu0 %2057
  %2061 = vset.pattern.permute.xlu0 0
  %2062 = vperm.xlu0 %2061, %v128
  %v2063 = vpop.permute.xlu0 %2062
  %2066 = vset.pattern.permute.xlu0 0
  %2067 = vperm.xlu0 %2066, %v129
  %v2068 = vpop.permute.xlu0 %2067
  %2071 = vset.pattern.permute.xlu0 0
  %2072 = vperm.xlu0 %2071, %v130
  %v2073 = vpop.permute.xlu0 %2072
  %2076 = vset.pattern.permute.xlu0 0
  %2077 = vperm.xlu0 %2076, %v131
  %v2078 = vpop.permute.xlu0 %2077
  %2081 = vset.pattern.permute.xlu0 0
  %2082 = vperm.xlu0 %2081, %v132
  %v2083 = vpop.permute.xlu0 %2082
  %2086 = vset.pattern.permute.xlu0 0
  %2087 = vperm.xlu0 %2086, %v133
  %v2088 = vpop.permute.xlu0 %2087
  %2091 = vset.pattern.permute.xlu0 0
  %2092 = vperm.xlu0 %2091, %v134
  %v2093 = vpop.permute.xlu0 %2092
  %2096 = vset.pattern.permute.xlu0 0
  %2097 = vperm.xlu0 %2096, %v135
  %v2098 = vpop.permute.xlu0 %2097
  %2101 = vset.pattern.permute.xlu0 0
  %2102 = vperm.xlu0 %2101, %v136
  %v2103 = vpop.permute.xlu0 %2102
  %2106 = vset.pattern.permute.xlu0 0
  %2107 = vperm.xlu0 %2106, %v137
  %v2108 = vpop.permute.xlu0 %2107
  %2111 = vset.pattern.permute.xlu0 0
  %2112 = vperm.xlu0 %2111, %v138
  %v2113 = vpop.permute.xlu0 %2112
  %2116 = vset.pattern.permute.xlu0 0
  %2117 = vperm.xlu0 %2116, %v139
  %v2118 = vpop.permute.xlu0 %2117
  %2121 = vset.pattern.permute.xlu0 0
  %2122 = vperm.xlu0 %2121, %v140
  %v2123 = vpop.permute.xlu0 %2122
  %2126 = vset.pattern.permute.xlu0 0
  %2127 = vperm.xlu0 %2126, %v141
  %v2128 = vpop.permute.xlu0 %2127
  %2131 = vset.pattern.permute.xlu0 0
  %2132 = vperm.xlu0 %2131, %v142
  %v2133 = vpop.permute.xlu0 %2132
  %2136 = vset.pattern.permute.xlu0 0
  %2137 = vperm.xlu0 %2136, %v143
  %v2138 = vpop.permute.xlu0 %2137
  %2141 = vset.pattern.permute.xlu0 0
  %2142 = vperm.xlu0 %2141, %v144
  %v2143 = vpop.permute.xlu0 %2142
  %2146 = vset.pattern.permute.xlu0 0
  %2147 = vperm.xlu0 %2146, %v145
  %v2148 = vpop.permute.xlu0 %2147
  %2151 = vset.pattern.permute.xlu0 0
  %2152 = vperm.xlu0 %2151, %v146
  %v2153 = vpop.permute.xlu0 %2152
  %2156 = vset.pattern.permute.xlu0 0
  %2157 = vperm.xlu0 %2156, %v147
  %v2158 = vpop.permute.xlu0 %2157
  %2161 = vset.pattern.permute.xlu0 0
  %2162 = vperm.xlu0 %2161, %v148
  %v2163 = vpop.permute.xlu0 %2162
  %2166 = vset.pattern.permute.xlu0 0
  %2167 = vperm.xlu0 %2166, %v149
  %v2168 = vpop.permute.xlu0 %2167
  %2171 = vset.pattern.permute.xlu0 0
  %2172 = vperm.xlu0 %2171, %v150
  %v2173 = vpop.permute.xlu0 %2172
  %2176 = vset.pattern.permute.xlu0 0
  %2177 = vperm.xlu0 %2176, %v151
  %v2178 = vpop.permute.xlu0 %2177
  %2181 = vset.pattern.permute.xlu0 0
  %2182 = vperm.xlu0 %2181, %v152
  %v2183 = vpop.permute.xlu0 %2182
  %2186 = vset.pattern.permute.xlu0 0
  %2187 = vperm.xlu0 %2186, %v153
  %v2188 = vpop.permute.xlu0 %2187
  %2191 = vset.pattern.permute.xlu0 0
  %2192 = vperm.xlu0 %2191, %v154
  %v2193 = vpop.permute.xlu0 %2192
  %2196 = vset.pattern.permute.xlu0 0
  %2197 = vperm.xlu0 %2196, %v155
  %v2198 = vpop.permute.xlu0 %2197
  %2201 = vset.pattern.permute.xlu0 0
  %2202 = vperm.xlu0 %2201, %v156
  %v2203 = vpop.permute.xlu0 %2202
  %2206 = vset.pattern.permute.xlu0 0
  %2207 = vperm.xlu0 %2206, %v157
  %v2208 = vpop.permute.xlu0 %2207
  %2211 = vset.pattern.permute.xlu0 0
  %2212 = vperm.xlu0 %2211, %v158
  %v2213 = vpop.permute.xlu0 %2212
  %v2215 = vadd.f32 %v1065, %v1578
  %v2216 = vadd.f32 %v1068, %v1583
  %v2217 = vadd.f32 %v1073, %v1588
  %v2218 = vadd.f32 %v1076, %v1593
  %v2219 = vadd.f32 %v1081, %v1598
  %v2220 = vadd.f32 %v1084, %v1603
  %v2221 = vadd.f32 %v1089, %v1608
  %v2222 = vadd.f32 %v1092, %v1613
  %v2223 = vadd.f32 %v1097, %v1618
  %v2224 = vadd.f32 %v1100, %v1623
  %v2225 = vadd.f32 %v1105, %v1628
  %v2226 = vadd.f32 %v1108, %v1633
  %v2227 = vadd.f32 %v1113, %v1638
  %v2228 = vadd.f32 %v1116, %v1643
  %v2229 = vadd.f32 %v1121, %v1648
  %v2230 = vadd.f32 %v1124, %v1653
  %v2231 = vadd.f32 %v1129, %v1658
  %v2232 = vadd.f32 %v1132, %v1663
  %v2233 = vadd.f32 %v1137, %v1668
  %v2234 = vadd.f32 %v1140, %v1673
  %v2235 = vadd.f32 %v1145, %v1678
  %v2236 = vadd.f32 %v1148, %v1683
  %v2237 = vadd.f32 %v1153, %v1688
  %v2238 = vadd.f32 %v1156, %v1693
  %v2239 = vadd.f32 %v1161, %v1698
  %v2240 = vadd.f32 %v1164, %v1703
  %v2241 = vadd.f32 %v1169, %v1708
  %v2242 = vadd.f32 %v1172, %v1713
  %v2243 = vadd.f32 %v1177, %v1718
  %v2244 = vadd.f32 %v1180, %v1723
  %v2245 = vadd.f32 %v1185, %v1728
  %v2246 = vadd.f32 %v1188, %v1733
  %v2247 = vadd.f32 %v1193, %v1738
  %v2248 = vadd.f32 %v1196, %v1743
  %v2249 = vadd.f32 %v1201, %v1748
  %v2250 = vadd.f32 %v1204, %v1753
  %v2251 = vadd.f32 %v1209, %v1758
  %v2252 = vadd.f32 %v1212, %v1763
  %v2253 = vadd.f32 %v1217, %v1768
  %v2254 = vadd.f32 %v1220, %v1773
  %v2255 = vadd.f32 %v1225, %v1778
  %v2256 = vadd.f32 %v1228, %v1783
  %v2257 = vadd.f32 %v1233, %v1788
  %v2258 = vadd.f32 %v1236, %v1793
  %v2259 = vadd.f32 %v1241, %v1798
  %v2260 = vadd.f32 %v1244, %v1803
  %v2261 = vadd.f32 %v1249, %v1808
  %v2262 = vadd.f32 %v1252, %v1813
  %v2263 = vadd.f32 %v1257, %v1818
  %v2264 = vadd.f32 %v1260, %v1823
  %v2265 = vadd.f32 %v1265, %v1828
  %v2266 = vadd.f32 %v1268, %v1833
  %v2267 = vadd.f32 %v1273, %v1838
  %v2268 = vadd.f32 %v1276, %v1843
  %v2269 = vadd.f32 %v1281, %v1848
  %v2270 = vadd.f32 %v1284, %v1853
  %v2271 = vadd.f32 %v1289, %v1858
  %v2272 = vadd.f32 %v1292, %v1863
  %v2273 = vadd.f32 %v1297, %v1868
  %v2274 = vadd.f32 %v1300, %v1873
  %v2275 = vadd.f32 %v1305, %v1878
  %v2276 = vadd.f32 %v1308, %v1883
  %v2277 = vadd.f32 %v1313, %v1888
  %v2278 = vadd.f32 %v1316, %v1893
  %v2279 = vadd.f32 %v1321, %v1898
  %v2280 = vadd.f32 %v1324, %v1903
  %v2281 = vadd.f32 %v1329, %v1908
  %v2282 = vadd.f32 %v1332, %v1913
  %v2283 = vadd.f32 %v1337, %v1918
  %v2284 = vadd.f32 %v1340, %v1923
  %v2285 = vadd.f32 %v1345, %v1928
  %v2286 = vadd.f32 %v1348, %v1933
  %v2287 = vadd.f32 %v1353, %v1938
  %v2288 = vadd.f32 %v1356, %v1943
  %v2289 = vadd.f32 %v1361, %v1948
  %v2290 = vadd.f32 %v1364, %v1953
  %v2291 = vadd.f32 %v1369, %v1958
  %v2292 = vadd.f32 %v1372, %v1963
  %v2293 = vadd.f32 %v1377, %v1968
  %v2294 = vadd.f32 %v1380, %v1973
  %v2295 = vadd.f32 %v1385, %v1978
  %v2296 = vadd.f32 %v1388, %v1983
  %v2297 = vadd.f32 %v1393, %v1988
  %v2298 = vadd.f32 %v1396, %v1993
  %v2299 = vadd.f32 %v1401, %v1998
  %v2300 = vadd.f32 %v1404, %v2003
  %v2301 = vadd.f32 %v1409, %v2008
  %v2302 = vadd.f32 %v1412, %v2013
  %v2303 = vadd.f32 %v1417, %v2018
  %v2304 = vadd.f32 %v1420, %v2023
  %v2305 = vadd.f32 %v1425, %v2028
  %v2306 = vadd.f32 %v1428, %v2033
  %v2307 = vadd.f32 %v1433, %v2038
  %v2308 = vadd.f32 %v1436, %v2043
  %v2309 = vadd.f32 %v1441, %v2048
  %v2310 = vadd.f32 %v1444, %v2053
  %v2311 = vadd.f32 %v1449, %v2058
  %v2312 = vadd.f32 %v1452, %v2063
  %v2313 = vadd.f32 %v1457, %v2068
  %v2314 = vadd.f32 %v1460, %v2073
  %v2315 = vadd.f32 %v1465, %v2078
  %v2316 = vadd.f32 %v1468, %v2083
  %v2317 = vadd.f32 %v1473, %v2088
  %v2318 = vadd.f32 %v1476, %v2093
  %v2319 = vadd.f32 %v1481, %v2098
  %v2320 = vadd.f32 %v1484, %v2103
  %v2321 = vadd.f32 %v1489, %v2108
  %v2322 = vadd.f32 %v1492, %v2113
  %v2323 = vadd.f32 %v1497, %v2118
  %v2324 = vadd.f32 %v1500, %v2123
  %v2325 = vadd.f32 %v1505, %v2128
  %v2326 = vadd.f32 %v1508, %v2133
  %v2327 = vadd.f32 %v1513, %v2138
  %v2328 = vadd.f32 %v1516, %v2143
  %v2329 = vadd.f32 %v1521, %v2148
  %v2330 = vadd.f32 %v1524, %v2153
  %v2331 = vadd.f32 %v1529, %v2158
  %v2332 = vadd.f32 %v1532, %v2163
  %v2333 = vadd.f32 %v1537, %v2168
  %v2334 = vadd.f32 %v1540, %v2173
  %v2335 = vadd.f32 %v1545, %v2178
  %v2336 = vadd.f32 %v1548, %v2183
  %v2337 = vadd.f32 %v1553, %v2188
  %v2338 = vadd.f32 %v1556, %v2193
  %v2339 = vadd.f32 %v1561, %v2198
  %v2340 = vadd.f32 %v1564, %v2203
  %v2341 = vadd.f32 %v1569, %v2208
  %v2342 = vadd.f32 %v1572, %v2213
  %v2343 = vmax.f32 %v2215, %v2216
  %v2344 = vmax.f32 %v2343, %v2217
  %v2345 = vmax.f32 %v2344, %v2218
  %v2346 = vrot.slane %v2345, 4
  %v2347 = vmax.f32 %v2345, %v2346
  %v2348 = vrot.slane %v2347, 2
  %v2349 = vmax.f32 %v2347, %v2348
  %v2350 = vrot.slane %v2349, 1
  %v2351 = vmax.f32 %v2349, %v2350
  %v2352 = vmax.f32 %v2219, %v2220
  %v2353 = vmax.f32 %v2352, %v2221
  %v2354 = vmax.f32 %v2353, %v2222
  %v2355 = vrot.slane %v2354, 4
  %v2356 = vmax.f32 %v2354, %v2355
  %v2357 = vrot.slane %v2356, 2
  %v2358 = vmax.f32 %v2356, %v2357
  %v2359 = vrot.slane %v2358, 1
  %v2360 = vmax.f32 %v2358, %v2359
  %v2361 = vmax.f32 %v2223, %v2224
  %v2362 = vmax.f32 %v2361, %v2225
  %v2363 = vmax.f32 %v2362, %v2226
  %v2364 = vrot.slane %v2363, 4
  %v2365 = vmax.f32 %v2363, %v2364
  %v2366 = vrot.slane %v2365, 2
  %v2367 = vmax.f32 %v2365, %v2366
  %v2368 = vrot.slane %v2367, 1
  %v2369 = vmax.f32 %v2367, %v2368
  %v2370 = vmax.f32 %v2227, %v2228
  %v2371 = vmax.f32 %v2370, %v2229
  %v2372 = vmax.f32 %v2371, %v2230
  %v2373 = vrot.slane %v2372, 4
  %v2374 = vmax.f32 %v2372, %v2373
  %v2375 = vrot.slane %v2374, 2
  %v2376 = vmax.f32 %v2374, %v2375
  %v2377 = vrot.slane %v2376, 1
  %v2378 = vmax.f32 %v2376, %v2377
  %v2379 = vmax.f32 %v2231, %v2232
  %v2380 = vmax.f32 %v2379, %v2233
  %v2381 = vmax.f32 %v2380, %v2234
  %v2382 = vrot.slane %v2381, 4
  %v2383 = vmax.f32 %v2381, %v2382
  %v2384 = vrot.slane %v2383, 2
  %v2385 = vmax.f32 %v2383, %v2384
  %v2386 = vrot.slane %v2385, 1
  %v2387 = vmax.f32 %v2385, %v2386
  %v2388 = vmax.f32 %v2235, %v2236
  %v2389 = vmax.f32 %v2388, %v2237
  %v2390 = vmax.f32 %v2389, %v2238
  %v2391 = vrot.slane %v2390, 4
  %v2392 = vmax.f32 %v2390, %v2391
  %v2393 = vrot.slane %v2392, 2
  %v2394 = vmax.f32 %v2392, %v2393
  %v2395 = vrot.slane %v2394, 1
  %v2396 = vmax.f32 %v2394, %v2395
  %v2397 = vmax.f32 %v2239, %v2240
  %v2398 = vmax.f32 %v2397, %v2241
  %v2399 = vmax.f32 %v2398, %v2242
  %v2400 = vrot.slane %v2399, 4
  %v2401 = vmax.f32 %v2399, %v2400
  %v2402 = vrot.slane %v2401, 2
  %v2403 = vmax.f32 %v2401, %v2402
  %v2404 = vrot.slane %v2403, 1
  %v2405 = vmax.f32 %v2403, %v2404
  %v2406 = vmax.f32 %v2243, %v2244
  %v2407 = vmax.f32 %v2406, %v2245
  %v2408 = vmax.f32 %v2407, %v2246
  %v2409 = vrot.slane %v2408, 4
  %v2410 = vmax.f32 %v2408, %v2409
  %v2411 = vrot.slane %v2410, 2
  %v2412 = vmax.f32 %v2410, %v2411
  %v2413 = vrot.slane %v2412, 1
  %v2414 = vmax.f32 %v2412, %v2413
  %v2415 = vmax.f32 %v2247, %v2248
  %v2416 = vmax.f32 %v2415, %v2249
  %v2417 = vmax.f32 %v2416, %v2250
  %v2418 = vrot.slane %v2417, 4
  %v2419 = vmax.f32 %v2417, %v2418
  %v2420 = vrot.slane %v2419, 2
  %v2421 = vmax.f32 %v2419, %v2420
  %v2422 = vrot.slane %v2421, 1
  %v2423 = vmax.f32 %v2421, %v2422
  %v2424 = vmax.f32 %v2251, %v2252
  %v2425 = vmax.f32 %v2424, %v2253
  %v2426 = vmax.f32 %v2425, %v2254
  %v2427 = vrot.slane %v2426, 4
  %v2428 = vmax.f32 %v2426, %v2427
  %v2429 = vrot.slane %v2428, 2
  %v2430 = vmax.f32 %v2428, %v2429
  %v2431 = vrot.slane %v2430, 1
  %v2432 = vmax.f32 %v2430, %v2431
  %v2433 = vmax.f32 %v2255, %v2256
  %v2434 = vmax.f32 %v2433, %v2257
  %v2435 = vmax.f32 %v2434, %v2258
  %v2436 = vrot.slane %v2435, 4
  %v2437 = vmax.f32 %v2435, %v2436
  %v2438 = vrot.slane %v2437, 2
  %v2439 = vmax.f32 %v2437, %v2438
  %v2440 = vrot.slane %v2439, 1
  %v2441 = vmax.f32 %v2439, %v2440
  %v2442 = vmax.f32 %v2259, %v2260
  %v2443 = vmax.f32 %v2442, %v2261
  %v2444 = vmax.f32 %v2443, %v2262
  %v2445 = vrot.slane %v2444, 4
  %v2446 = vmax.f32 %v2444, %v2445
  %v2447 = vrot.slane %v2446, 2
  %v2448 = vmax.f32 %v2446, %v2447
  %v2449 = vrot.slane %v2448, 1
  %v2450 = vmax.f32 %v2448, %v2449
  %v2451 = vmax.f32 %v2263, %v2264
  %v2452 = vmax.f32 %v2451, %v2265
  %v2453 = vmax.f32 %v2452, %v2266
  %v2454 = vrot.slane %v2453, 4
  %v2455 = vmax.f32 %v2453, %v2454
  %v2456 = vrot.slane %v2455, 2
  %v2457 = vmax.f32 %v2455, %v2456
  %v2458 = vrot.slane %v2457, 1
  %v2459 = vmax.f32 %v2457, %v2458
  %v2460 = vmax.f32 %v2267, %v2268
  %v2461 = vmax.f32 %v2460, %v2269
  %v2462 = vmax.f32 %v2461, %v2270
  %v2463 = vrot.slane %v2462, 4
  %v2464 = vmax.f32 %v2462, %v2463
  %v2465 = vrot.slane %v2464, 2
  %v2466 = vmax.f32 %v2464, %v2465
  %v2467 = vrot.slane %v2466, 1
  %v2468 = vmax.f32 %v2466, %v2467
  %v2469 = vmax.f32 %v2271, %v2272
  %v2470 = vmax.f32 %v2469, %v2273
  %v2471 = vmax.f32 %v2470, %v2274
  %v2472 = vrot.slane %v2471, 4
  %v2473 = vmax.f32 %v2471, %v2472
  %v2474 = vrot.slane %v2473, 2
  %v2475 = vmax.f32 %v2473, %v2474
  %v2476 = vrot.slane %v2475, 1
  %v2477 = vmax.f32 %v2475, %v2476
  %v2478 = vmax.f32 %v2275, %v2276
  %v2479 = vmax.f32 %v2478, %v2277
  %v2480 = vmax.f32 %v2479, %v2278
  %v2481 = vrot.slane %v2480, 4
  %v2482 = vmax.f32 %v2480, %v2481
  %v2483 = vrot.slane %v2482, 2
  %v2484 = vmax.f32 %v2482, %v2483
  %v2485 = vrot.slane %v2484, 1
  %v2486 = vmax.f32 %v2484, %v2485
  %v2487 = vmax.f32 %v2279, %v2280
  %v2488 = vmax.f32 %v2487, %v2281
  %v2489 = vmax.f32 %v2488, %v2282
  %v2490 = vrot.slane %v2489, 4
  %v2491 = vmax.f32 %v2489, %v2490
  %v2492 = vrot.slane %v2491, 2
  %v2493 = vmax.f32 %v2491, %v2492
  %v2494 = vrot.slane %v2493, 1
  %v2495 = vmax.f32 %v2493, %v2494
  %v2496 = vmax.f32 %v2283, %v2284
  %v2497 = vmax.f32 %v2496, %v2285
  %v2498 = vmax.f32 %v2497, %v2286
  %v2499 = vrot.slane %v2498, 4
  %v2500 = vmax.f32 %v2498, %v2499
  %v2501 = vrot.slane %v2500, 2
  %v2502 = vmax.f32 %v2500, %v2501
  %v2503 = vrot.slane %v2502, 1
  %v2504 = vmax.f32 %v2502, %v2503
  %v2505 = vmax.f32 %v2287, %v2288
  %v2506 = vmax.f32 %v2505, %v2289
  %v2507 = vmax.f32 %v2506, %v2290
  %v2508 = vrot.slane %v2507, 4
  %v2509 = vmax.f32 %v2507, %v2508
  %v2510 = vrot.slane %v2509, 2
  %v2511 = vmax.f32 %v2509, %v2510
  %v2512 = vrot.slane %v2511, 1
  %v2513 = vmax.f32 %v2511, %v2512
  %v2514 = vmax.f32 %v2291, %v2292
  %v2515 = vmax.f32 %v2514, %v2293
  %v2516 = vmax.f32 %v2515, %v2294
  %v2517 = vrot.slane %v2516, 4
  %v2518 = vmax.f32 %v2516, %v2517
  %v2519 = vrot.slane %v2518, 2
  %v2520 = vmax.f32 %v2518, %v2519
  %v2521 = vrot.slane %v2520, 1
  %v2522 = vmax.f32 %v2520, %v2521
  %v2523 = vmax.f32 %v2295, %v2296
  %v2524 = vmax.f32 %v2523, %v2297
  %v2525 = vmax.f32 %v2524, %v2298
  %v2526 = vrot.slane %v2525, 4
  %v2527 = vmax.f32 %v2525, %v2526
  %v2528 = vrot.slane %v2527, 2
  %v2529 = vmax.f32 %v2527, %v2528
  %v2530 = vrot.slane %v2529, 1
  %v2531 = vmax.f32 %v2529, %v2530
  %v2532 = vmax.f32 %v2299, %v2300
  %v2533 = vmax.f32 %v2532, %v2301
  %v2534 = vmax.f32 %v2533, %v2302
  %v2535 = vrot.slane %v2534, 4
  %v2536 = vmax.f32 %v2534, %v2535
  %v2537 = vrot.slane %v2536, 2
  %v2538 = vmax.f32 %v2536, %v2537
  %v2539 = vrot.slane %v2538, 1
  %v2540 = vmax.f32 %v2538, %v2539
  %v2541 = vmax.f32 %v2303, %v2304
  %v2542 = vmax.f32 %v2541, %v2305
  %v2543 = vmax.f32 %v2542, %v2306
  %v2544 = vrot.slane %v2543, 4
  %v2545 = vmax.f32 %v2543, %v2544
  %v2546 = vrot.slane %v2545, 2
  %v2547 = vmax.f32 %v2545, %v2546
  %v2548 = vrot.slane %v2547, 1
  %v2549 = vmax.f32 %v2547, %v2548
  %v2550 = vmax.f32 %v2307, %v2308
  %v2551 = vmax.f32 %v2550, %v2309
  %v2552 = vmax.f32 %v2551, %v2310
  %v2553 = vrot.slane %v2552, 4
  %v2554 = vmax.f32 %v2552, %v2553
  %v2555 = vrot.slane %v2554, 2
  %v2556 = vmax.f32 %v2554, %v2555
  %v2557 = vrot.slane %v2556, 1
  %v2558 = vmax.f32 %v2556, %v2557
  %v2559 = vmax.f32 %v2311, %v2312
  %v2560 = vmax.f32 %v2559, %v2313
  %v2561 = vmax.f32 %v2560, %v2314
  %v2562 = vrot.slane %v2561, 4
  %v2563 = vmax.f32 %v2561, %v2562
  %v2564 = vrot.slane %v2563, 2
  %v2565 = vmax.f32 %v2563, %v2564
  %v2566 = vrot.slane %v2565, 1
  %v2567 = vmax.f32 %v2565, %v2566
  %v2568 = vmax.f32 %v2315, %v2316
  %v2569 = vmax.f32 %v2568, %v2317
  %v2570 = vmax.f32 %v2569, %v2318
  %v2571 = vrot.slane %v2570, 4
  %v2572 = vmax.f32 %v2570, %v2571
  %v2573 = vrot.slane %v2572, 2
  %v2574 = vmax.f32 %v2572, %v2573
  %v2575 = vrot.slane %v2574, 1
  %v2576 = vmax.f32 %v2574, %v2575
  %v2577 = vmax.f32 %v2319, %v2320
  %v2578 = vmax.f32 %v2577, %v2321
  %v2579 = vmax.f32 %v2578, %v2322
  %v2580 = vrot.slane %v2579, 4
  %v2581 = vmax.f32 %v2579, %v2580
  %v2582 = vrot.slane %v2581, 2
  %v2583 = vmax.f32 %v2581, %v2582
  %v2584 = vrot.slane %v2583, 1
  %v2585 = vmax.f32 %v2583, %v2584
  %v2586 = vmax.f32 %v2323, %v2324
  %v2587 = vmax.f32 %v2586, %v2325
  %v2588 = vmax.f32 %v2587, %v2326
  %v2589 = vrot.slane %v2588, 4
  %v2590 = vmax.f32 %v2588, %v2589
  %v2591 = vrot.slane %v2590, 2
  %v2592 = vmax.f32 %v2590, %v2591
  %v2593 = vrot.slane %v2592, 1
  %v2594 = vmax.f32 %v2592, %v2593
  %v2595 = vmax.f32 %v2327, %v2328
  %v2596 = vmax.f32 %v2595, %v2329
  %v2597 = vmax.f32 %v2596, %v2330
  %v2598 = vrot.slane %v2597, 4
  %v2599 = vmax.f32 %v2597, %v2598
  %v2600 = vrot.slane %v2599, 2
  %v2601 = vmax.f32 %v2599, %v2600
  %v2602 = vrot.slane %v2601, 1
  %v2603 = vmax.f32 %v2601, %v2602
  %v2604 = vmax.f32 %v2331, %v2332
  %v2605 = vmax.f32 %v2604, %v2333
  %v2606 = vmax.f32 %v2605, %v2334
  %v2607 = vrot.slane %v2606, 4
  %v2608 = vmax.f32 %v2606, %v2607
  %v2609 = vrot.slane %v2608, 2
  %v2610 = vmax.f32 %v2608, %v2609
  %v2611 = vrot.slane %v2610, 1
  %v2612 = vmax.f32 %v2610, %v2611
  %v2613 = vmax.f32 %v2335, %v2336
  %v2614 = vmax.f32 %v2613, %v2337
  %v2615 = vmax.f32 %v2614, %v2338
  %v2616 = vrot.slane %v2615, 4
  %v2617 = vmax.f32 %v2615, %v2616
  %v2618 = vrot.slane %v2617, 2
  %v2619 = vmax.f32 %v2617, %v2618
  %v2620 = vrot.slane %v2619, 1
  %v2621 = vmax.f32 %v2619, %v2620
  %v2622 = vmax.f32 %v2339, %v2340
  %v2623 = vmax.f32 %v2622, %v2341
  %v2624 = vmax.f32 %v2623, %v2342
  %v2625 = vrot.slane %v2624, 4
  %v2626 = vmax.f32 %v2624, %v2625
  %v2627 = vrot.slane %v2626, 2
  %v2628 = vmax.f32 %v2626, %v2627
  %v2629 = vrot.slane %v2628, 1
  %v2630 = vmax.f32 %v2628, %v2629
  %v2631 = vsub.f32 %v2215, %v2351
  %v2632 = vsub.f32 %v2216, %v2351
  %v2633 = vsub.f32 %v2217, %v2351
  %v2634 = vsub.f32 %v2218, %v2351
  %v2635 = vsub.f32 %v2219, %v2360
  %v2636 = vsub.f32 %v2220, %v2360
  %v2637 = vsub.f32 %v2221, %v2360
  %v2638 = vsub.f32 %v2222, %v2360
  %v2639 = vsub.f32 %v2223, %v2369
  %v2640 = vsub.f32 %v2224, %v2369
  %v2641 = vsub.f32 %v2225, %v2369
  %v2642 = vsub.f32 %v2226, %v2369
  %v2643 = vsub.f32 %v2227, %v2378
  %v2644 = vsub.f32 %v2228, %v2378
  %v2645 = vsub.f32 %v2229, %v2378
  %v2646 = vsub.f32 %v2230, %v2378
  %v2647 = vsub.f32 %v2231, %v2387
  %v2648 = vsub.f32 %v2232, %v2387
  %v2649 = vsub.f32 %v2233, %v2387
  %v2650 = vsub.f32 %v2234, %v2387
  %v2651 = vsub.f32 %v2235, %v2396
  %v2652 = vsub.f32 %v2236, %v2396
  %v2653 = vsub.f32 %v2237, %v2396
  %v2654 = vsub.f32 %v2238, %v2396
  %v2655 = vsub.f32 %v2239, %v2405
  %v2656 = vsub.f32 %v2240, %v2405
  %v2657 = vsub.f32 %v2241, %v2405
  %v2658 = vsub.f32 %v2242, %v2405
  %v2659 = vsub.f32 %v2243, %v2414
  %v2660 = vsub.f32 %v2244, %v2414
  %v2661 = vsub.f32 %v2245, %v2414
  %v2662 = vsub.f32 %v2246, %v2414
  %v2663 = vsub.f32 %v2247, %v2423
  %v2664 = vsub.f32 %v2248, %v2423
  %v2665 = vsub.f32 %v2249, %v2423
  %v2666 = vsub.f32 %v2250, %v2423
  %v2667 = vsub.f32 %v2251, %v2432
  %v2668 = vsub.f32 %v2252, %v2432
  %v2669 = vsub.f32 %v2253, %v2432
  %v2670 = vsub.f32 %v2254, %v2432
  %v2671 = vsub.f32 %v2255, %v2441
  %v2672 = vsub.f32 %v2256, %v2441
  %v2673 = vsub.f32 %v2257, %v2441
  %v2674 = vsub.f32 %v2258, %v2441
  %v2675 = vsub.f32 %v2259, %v2450
  %v2676 = vsub.f32 %v2260, %v2450
  %v2677 = vsub.f32 %v2261, %v2450
  %v2678 = vsub.f32 %v2262, %v2450
  %v2679 = vsub.f32 %v2263, %v2459
  %v2680 = vsub.f32 %v2264, %v2459
  %v2681 = vsub.f32 %v2265, %v2459
  %v2682 = vsub.f32 %v2266, %v2459
  %v2683 = vsub.f32 %v2267, %v2468
  %v2684 = vsub.f32 %v2268, %v2468
  %v2685 = vsub.f32 %v2269, %v2468
  %v2686 = vsub.f32 %v2270, %v2468
  %v2687 = vsub.f32 %v2271, %v2477
  %v2688 = vsub.f32 %v2272, %v2477
  %v2689 = vsub.f32 %v2273, %v2477
  %v2690 = vsub.f32 %v2274, %v2477
  %v2691 = vsub.f32 %v2275, %v2486
  %v2692 = vsub.f32 %v2276, %v2486
  %v2693 = vsub.f32 %v2277, %v2486
  %v2694 = vsub.f32 %v2278, %v2486
  %v2695 = vsub.f32 %v2279, %v2495
  %v2696 = vsub.f32 %v2280, %v2495
  %v2697 = vsub.f32 %v2281, %v2495
  %v2698 = vsub.f32 %v2282, %v2495
  %v2699 = vsub.f32 %v2283, %v2504
  %v2700 = vsub.f32 %v2284, %v2504
  %v2701 = vsub.f32 %v2285, %v2504
  %v2702 = vsub.f32 %v2286, %v2504
  %v2703 = vsub.f32 %v2287, %v2513
  %v2704 = vsub.f32 %v2288, %v2513
  %v2705 = vsub.f32 %v2289, %v2513
  %v2706 = vsub.f32 %v2290, %v2513
  %v2707 = vsub.f32 %v2291, %v2522
  %v2708 = vsub.f32 %v2292, %v2522
  %v2709 = vsub.f32 %v2293, %v2522
  %v2710 = vsub.f32 %v2294, %v2522
  %v2711 = vsub.f32 %v2295, %v2531
  %v2712 = vsub.f32 %v2296, %v2531
  %v2713 = vsub.f32 %v2297, %v2531
  %v2714 = vsub.f32 %v2298, %v2531
  %v2715 = vsub.f32 %v2299, %v2540
  %v2716 = vsub.f32 %v2300, %v2540
  %v2717 = vsub.f32 %v2301, %v2540
  %v2718 = vsub.f32 %v2302, %v2540
  %v2719 = vsub.f32 %v2303, %v2549
  %v2720 = vsub.f32 %v2304, %v2549
  %v2721 = vsub.f32 %v2305, %v2549
  %v2722 = vsub.f32 %v2306, %v2549
  %v2723 = vsub.f32 %v2307, %v2558
  %v2724 = vsub.f32 %v2308, %v2558
  %v2725 = vsub.f32 %v2309, %v2558
  %v2726 = vsub.f32 %v2310, %v2558
  %v2727 = vsub.f32 %v2311, %v2567
  %v2728 = vsub.f32 %v2312, %v2567
  %v2729 = vsub.f32 %v2313, %v2567
  %v2730 = vsub.f32 %v2314, %v2567
  %v2731 = vsub.f32 %v2315, %v2576
  %v2732 = vsub.f32 %v2316, %v2576
  %v2733 = vsub.f32 %v2317, %v2576
  %v2734 = vsub.f32 %v2318, %v2576
  %v2735 = vsub.f32 %v2319, %v2585
  %v2736 = vsub.f32 %v2320, %v2585
  %v2737 = vsub.f32 %v2321, %v2585
  %v2738 = vsub.f32 %v2322, %v2585
  %v2739 = vsub.f32 %v2323, %v2594
  %v2740 = vsub.f32 %v2324, %v2594
  %v2741 = vsub.f32 %v2325, %v2594
  %v2742 = vsub.f32 %v2326, %v2594
  %v2743 = vsub.f32 %v2327, %v2603
  %v2744 = vsub.f32 %v2328, %v2603
  %v2745 = vsub.f32 %v2329, %v2603
  %v2746 = vsub.f32 %v2330, %v2603
  %v2747 = vsub.f32 %v2331, %v2612
  %v2748 = vsub.f32 %v2332, %v2612
  %v2749 = vsub.f32 %v2333, %v2612
  %v2750 = vsub.f32 %v2334, %v2612
  %v2751 = vsub.f32 %v2335, %v2621
  %v2752 = vsub.f32 %v2336, %v2621
  %v2753 = vsub.f32 %v2337, %v2621
  %v2754 = vsub.f32 %v2338, %v2621
  %v2755 = vsub.f32 %v2339, %v2630
  %v2756 = vsub.f32 %v2340, %v2630
  %v2757 = vsub.f32 %v2341, %v2630
  %v2758 = vsub.f32 %v2342, %v2630
  %v2759 = vmul.f32 %v2631, 1.442695
  %v2760 = vpow.pop %v2759
  %v2761 = vmul.f32 %v2632, 1.442695
  %v2762 = vpow.pop %v2761
  %v2763 = vmul.f32 %v2633, 1.442695
  %v2764 = vpow.pop %v2763
  %v2765 = vmul.f32 %v2634, 1.442695
  %v2766 = vpow.pop %v2765
  %v2767 = vmul.f32 %v2635, 1.442695
  %v2768 = vpow.pop %v2767
  %v2769 = vmul.f32 %v2636, 1.442695
  %v2770 = vpow.pop %v2769
  %v2771 = vmul.f32 %v2637, 1.442695
  %v2772 = vpow.pop %v2771
  %v2773 = vmul.f32 %v2638, 1.442695
  %v2774 = vpow.pop %v2773
  %v2775 = vmul.f32 %v2639, 1.442695
  %v2776 = vpow.pop %v2775
  %v2777 = vmul.f32 %v2640, 1.442695
  %v2778 = vpow.pop %v2777
  %v2779 = vmul.f32 %v2641, 1.442695
  %v2780 = vpow.pop %v2779
  %v2781 = vmul.f32 %v2642, 1.442695
  %v2782 = vpow.pop %v2781
  %v2783 = vmul.f32 %v2643, 1.442695
  %v2784 = vpow.pop %v2783
  %v2785 = vmul.f32 %v2644, 1.442695
  %v2786 = vpow.pop %v2785
  %v2787 = vmul.f32 %v2645, 1.442695
  %v2788 = vpow.pop %v2787
  %v2789 = vmul.f32 %v2646, 1.442695
  %v2790 = vpow.pop %v2789
  %v2791 = vmul.f32 %v2647, 1.442695
  %v2792 = vpow.pop %v2791
  %v2793 = vmul.f32 %v2648, 1.442695
  %v2794 = vpow.pop %v2793
  %v2795 = vmul.f32 %v2649, 1.442695
  %v2796 = vpow.pop %v2795
  %v2797 = vmul.f32 %v2650, 1.442695
  %v2798 = vpow.pop %v2797
  %v2799 = vmul.f32 %v2651, 1.442695
  %v2800 = vpow.pop %v2799
  %v2801 = vmul.f32 %v2652, 1.442695
  %v2802 = vpow.pop %v2801
  %v2803 = vmul.f32 %v2653, 1.442695
  %v2804 = vpow.pop %v2803
  %v2805 = vmul.f32 %v2654, 1.442695
  %v2806 = vpow.pop %v2805
  %v2807 = vmul.f32 %v2655, 1.442695
  %v2808 = vpow.pop %v2807
  %v2809 = vmul.f32 %v2656, 1.442695
  %v2810 = vpow.pop %v2809
  %v2811 = vmul.f32 %v2657, 1.442695
  %v2812 = vpow.pop %v2811
  %v2813 = vmul.f32 %v2658, 1.442695
  %v2814 = vpow.pop %v2813
  %v2815 = vmul.f32 %v2659, 1.442695
  %v2816 = vpow.pop %v2815
  %v2817 = vmul.f32 %v2660, 1.442695
  %v2818 = vpow.pop %v2817
  %v2819 = vmul.f32 %v2661, 1.442695
  %v2820 = vpow.pop %v2819
  %v2821 = vmul.f32 %v2662, 1.442695
  %v2822 = vpow.pop %v2821
  %v2823 = vmul.f32 %v2663, 1.442695
  %v2824 = vpow.pop %v2823
  %v2825 = vmul.f32 %v2664, 1.442695
  %v2826 = vpow.pop %v2825
  %v2827 = vmul.f32 %v2665, 1.442695
  %v2828 = vpow.pop %v2827
  %v2829 = vmul.f32 %v2666, 1.442695
  %v2830 = vpow.pop %v2829
  %v2831 = vmul.f32 %v2667, 1.442695
  %v2832 = vpow.pop %v2831
  %v2833 = vmul.f32 %v2668, 1.442695
  %v2834 = vpow.pop %v2833
  %v2835 = vmul.f32 %v2669, 1.442695
  %v2836 = vpow.pop %v2835
  %v2837 = vmul.f32 %v2670, 1.442695
  %v2838 = vpow.pop %v2837
  %v2839 = vmul.f32 %v2671, 1.442695
  %v2840 = vpow.pop %v2839
  %v2841 = vmul.f32 %v2672, 1.442695
  %v2842 = vpow.pop %v2841
  %v2843 = vmul.f32 %v2673, 1.442695
  %v2844 = vpow.pop %v2843
  %v2845 = vmul.f32 %v2674, 1.442695
  %v2846 = vpow.pop %v2845
  %v2847 = vmul.f32 %v2675, 1.442695
  %v2848 = vpow.pop %v2847
  %v2849 = vmul.f32 %v2676, 1.442695
  %v2850 = vpow.pop %v2849
  %v2851 = vmul.f32 %v2677, 1.442695
  %v2852 = vpow.pop %v2851
  %v2853 = vmul.f32 %v2678, 1.442695
  %v2854 = vpow.pop %v2853
  %v2855 = vmul.f32 %v2679, 1.442695
  %v2856 = vpow.pop %v2855
  %v2857 = vmul.f32 %v2680, 1.442695
  %v2858 = vpow.pop %v2857
  %v2859 = vmul.f32 %v2681, 1.442695
  %v2860 = vpow.pop %v2859
  %v2861 = vmul.f32 %v2682, 1.442695
  %v2862 = vpow.pop %v2861
  %v2863 = vmul.f32 %v2683, 1.442695
  %v2864 = vpow.pop %v2863
  %v2865 = vmul.f32 %v2684, 1.442695
  %v2866 = vpow.pop %v2865
  %v2867 = vmul.f32 %v2685, 1.442695
  %v2868 = vpow.pop %v2867
  %v2869 = vmul.f32 %v2686, 1.442695
  %v2870 = vpow.pop %v2869
  %v2871 = vmul.f32 %v2687, 1.442695
  %v2872 = vpow.pop %v2871
  %v2873 = vmul.f32 %v2688, 1.442695
  %v2874 = vpow.pop %v2873
  %v2875 = vmul.f32 %v2689, 1.442695
  %v2876 = vpow.pop %v2875
  %v2877 = vmul.f32 %v2690, 1.442695
  %v2878 = vpow.pop %v2877
  %v2879 = vmul.f32 %v2691, 1.442695
  %v2880 = vpow.pop %v2879
  %v2881 = vmul.f32 %v2692, 1.442695
  %v2882 = vpow.pop %v2881
  %v2883 = vmul.f32 %v2693, 1.442695
  %v2884 = vpow.pop %v2883
  %v2885 = vmul.f32 %v2694, 1.442695
  %v2886 = vpow.pop %v2885
  %v2887 = vmul.f32 %v2695, 1.442695
  %v2888 = vpow.pop %v2887
  %v2889 = vmul.f32 %v2696, 1.442695
  %v2890 = vpow.pop %v2889
  %v2891 = vmul.f32 %v2697, 1.442695
  %v2892 = vpow.pop %v2891
  %v2893 = vmul.f32 %v2698, 1.442695
  %v2894 = vpow.pop %v2893
  %v2895 = vmul.f32 %v2699, 1.442695
  %v2896 = vpow.pop %v2895
  %v2897 = vmul.f32 %v2700, 1.442695
  %v2898 = vpow.pop %v2897
  %v2899 = vmul.f32 %v2701, 1.442695
  %v2900 = vpow.pop %v2899
  %v2901 = vmul.f32 %v2702, 1.442695
  %v2902 = vpow.pop %v2901
  %v2903 = vmul.f32 %v2703, 1.442695
  %v2904 = vpow.pop %v2903
  %v2905 = vmul.f32 %v2704, 1.442695
  %v2906 = vpow.pop %v2905
  %v2907 = vmul.f32 %v2705, 1.442695
  %v2908 = vpow.pop %v2907
  %v2909 = vmul.f32 %v2706, 1.442695
  %v2910 = vpow.pop %v2909
  %v2911 = vmul.f32 %v2707, 1.442695
  %v2912 = vpow.pop %v2911
  %v2913 = vmul.f32 %v2708, 1.442695
  %v2914 = vpow.pop %v2913
  %v2915 = vmul.f32 %v2709, 1.442695
  %v2916 = vpow.pop %v2915
  %v2917 = vmul.f32 %v2710, 1.442695
  %v2918 = vpow.pop %v2917
  %v2919 = vmul.f32 %v2711, 1.442695
  %v2920 = vpow.pop %v2919
  %v2921 = vmul.f32 %v2712, 1.442695
  %v2922 = vpow.pop %v2921
  %v2923 = vmul.f32 %v2713, 1.442695
  %v2924 = vpow.pop %v2923
  %v2925 = vmul.f32 %v2714, 1.442695
  %v2926 = vpow.pop %v2925
  %v2927 = vmul.f32 %v2715, 1.442695
  %v2928 = vpow.pop %v2927
  %v2929 = vmul.f32 %v2716, 1.442695
  %v2930 = vpow.pop %v2929
  %v2931 = vmul.f32 %v2717, 1.442695
  %v2932 = vpow.pop %v2931
  %v2933 = vmul.f32 %v2718, 1.442695
  %v2934 = vpow.pop %v2933
  %v2935 = vmul.f32 %v2719, 1.442695
  %v2936 = vpow.pop %v2935
  %v2937 = vmul.f32 %v2720, 1.442695
  %v2938 = vpow.pop %v2937
  %v2939 = vmul.f32 %v2721, 1.442695
  %v2940 = vpow.pop %v2939
  %v2941 = vmul.f32 %v2722, 1.442695
  %v2942 = vpow.pop %v2941
  %v2943 = vmul.f32 %v2723, 1.442695
  %v2944 = vpow.pop %v2943
  %v2945 = vmul.f32 %v2724, 1.442695
  %v2946 = vpow.pop %v2945
  %v2947 = vmul.f32 %v2725, 1.442695
  %v2948 = vpow.pop %v2947
  %v2949 = vmul.f32 %v2726, 1.442695
  %v2950 = vpow.pop %v2949
  %v2951 = vmul.f32 %v2727, 1.442695
  %v2952 = vpow.pop %v2951
  %v2953 = vmul.f32 %v2728, 1.442695
  %v2954 = vpow.pop %v2953
  %v2955 = vmul.f32 %v2729, 1.442695
  %v2956 = vpow.pop %v2955
  %v2957 = vmul.f32 %v2730, 1.442695
  %v2958 = vpow.pop %v2957
  %v2959 = vmul.f32 %v2731, 1.442695
  %v2960 = vpow.pop %v2959
  %v2961 = vmul.f32 %v2732, 1.442695
  %v2962 = vpow.pop %v2961
  %v2963 = vmul.f32 %v2733, 1.442695
  %v2964 = vpow.pop %v2963
  %v2965 = vmul.f32 %v2734, 1.442695
  %v2966 = vpow.pop %v2965
  %v2967 = vmul.f32 %v2735, 1.442695
  %v2968 = vpow.pop %v2967
  %v2969 = vmul.f32 %v2736, 1.442695
  %v2970 = vpow.pop %v2969
  %v2971 = vmul.f32 %v2737, 1.442695
  %v2972 = vpow.pop %v2971
  %v2973 = vmul.f32 %v2738, 1.442695
  %v2974 = vpow.pop %v2973
  %v2975 = vmul.f32 %v2739, 1.442695
  %v2976 = vpow.pop %v2975
  %v2977 = vmul.f32 %v2740, 1.442695
  %v2978 = vpow.pop %v2977
  %v2979 = vmul.f32 %v2741, 1.442695
  %v2980 = vpow.pop %v2979
  %v2981 = vmul.f32 %v2742, 1.442695
  %v2982 = vpow.pop %v2981
  %v2983 = vmul.f32 %v2743, 1.442695
  %v2984 = vpow.pop %v2983
  %v2985 = vmul.f32 %v2744, 1.442695
  %v2986 = vpow.pop %v2985
  %v2987 = vmul.f32 %v2745, 1.442695
  %v2988 = vpow.pop %v2987
  %v2989 = vmul.f32 %v2746, 1.442695
  %v2990 = vpow.pop %v2989
  %v2991 = vmul.f32 %v2747, 1.442695
  %v2992 = vpow.pop %v2991
  %v2993 = vmul.f32 %v2748, 1.442695
  %v2994 = vpow.pop %v2993
  %v2995 = vmul.f32 %v2749, 1.442695
  %v2996 = vpow.pop %v2995
  %v2997 = vmul.f32 %v2750, 1.442695
  %v2998 = vpow.pop %v2997
  %v2999 = vmul.f32 %v2751, 1.442695
  %v3000 = vpow.pop %v2999
  %v3001 = vmul.f32 %v2752, 1.442695
  %v3002 = vpow.pop %v3001
  %v3003 = vmul.f32 %v2753, 1.442695
  %v3004 = vpow.pop %v3003
  %v3005 = vmul.f32 %v2754, 1.442695
  %v3006 = vpow.pop %v3005
  %v3007 = vmul.f32 %v2755, 1.442695
  %v3008 = vpow.pop %v3007
  %v3009 = vmul.f32 %v2756, 1.442695
  %v3010 = vpow.pop %v3009
  %v3011 = vmul.f32 %v2757, 1.442695
  %v3012 = vpow.pop %v3011
  %v3013 = vmul.f32 %v2758, 1.442695
  %v3014 = vpow.pop %v3013
  %v3015 = vadd.f32 %v2760, %v2762
  %v3016 = vadd.f32 %v3015, %v2764
  %v3017 = vadd.f32 %v3016, %v2766
  %v3018 = vrot.slane %v3017, 4
  %v3019 = vadd.f32 %v3017, %v3018
  %v3020 = vrot.slane %v3019, 2
  %v3021 = vadd.f32 %v3019, %v3020
  %v3022 = vrot.slane %v3021, 1
  %v3023 = vadd.f32 %v3021, %v3022
  %v3024 = vadd.f32 %v2768, %v2770
  %v3025 = vadd.f32 %v3024, %v2772
  %v3026 = vadd.f32 %v3025, %v2774
  %v3027 = vrot.slane %v3026, 4
  %v3028 = vadd.f32 %v3026, %v3027
  %v3029 = vrot.slane %v3028, 2
  %v3030 = vadd.f32 %v3028, %v3029
  %v3031 = vrot.slane %v3030, 1
  %v3032 = vadd.f32 %v3030, %v3031
  %v3033 = vadd.f32 %v2776, %v2778
  %v3034 = vadd.f32 %v3033, %v2780
  %v3035 = vadd.f32 %v3034, %v2782
  %v3036 = vrot.slane %v3035, 4
  %v3037 = vadd.f32 %v3035, %v3036
  %v3038 = vrot.slane %v3037, 2
  %v3039 = vadd.f32 %v3037, %v3038
  %v3040 = vrot.slane %v3039, 1
  %v3041 = vadd.f32 %v3039, %v3040
  %v3042 = vadd.f32 %v2784, %v2786
  %v3043 = vadd.f32 %v3042, %v2788
  %v3044 = vadd.f32 %v3043, %v2790
  %v3045 = vrot.slane %v3044, 4
  %v3046 = vadd.f32 %v3044, %v3045
  %v3047 = vrot.slane %v3046, 2
  %v3048 = vadd.f32 %v3046, %v3047
  %v3049 = vrot.slane %v3048, 1
  %v3050 = vadd.f32 %v3048, %v3049
  %v3051 = vadd.f32 %v2792, %v2794
  %v3052 = vadd.f32 %v3051, %v2796
  %v3053 = vadd.f32 %v3052, %v2798
  %v3054 = vrot.slane %v3053, 4
  %v3055 = vadd.f32 %v3053, %v3054
  %v3056 = vrot.slane %v3055, 2
  %v3057 = vadd.f32 %v3055, %v3056
  %v3058 = vrot.slane %v3057, 1
  %v3059 = vadd.f32 %v3057, %v3058
  %v3060 = vadd.f32 %v2800, %v2802
  %v3061 = vadd.f32 %v3060, %v2804
  %v3062 = vadd.f32 %v3061, %v2806
  %v3063 = vrot.slane %v3062, 4
  %v3064 = vadd.f32 %v3062, %v3063
  %v3065 = vrot.slane %v3064, 2
  %v3066 = vadd.f32 %v3064, %v3065
  %v3067 = vrot.slane %v3066, 1
  %v3068 = vadd.f32 %v3066, %v3067
  %v3069 = vadd.f32 %v2808, %v2810
  %v3070 = vadd.f32 %v3069, %v2812
  %v3071 = vadd.f32 %v3070, %v2814
  %v3072 = vrot.slane %v3071, 4
  %v3073 = vadd.f32 %v3071, %v3072
  %v3074 = vrot.slane %v3073, 2
  %v3075 = vadd.f32 %v3073, %v3074
  %v3076 = vrot.slane %v3075, 1
  %v3077 = vadd.f32 %v3075, %v3076
  %v3078 = vadd.f32 %v2816, %v2818
  %v3079 = vadd.f32 %v3078, %v2820
  %v3080 = vadd.f32 %v3079, %v2822
  %v3081 = vrot.slane %v3080, 4
  %v3082 = vadd.f32 %v3080, %v3081
  %v3083 = vrot.slane %v3082, 2
  %v3084 = vadd.f32 %v3082, %v3083
  %v3085 = vrot.slane %v3084, 1
  %v3086 = vadd.f32 %v3084, %v3085
  %v3087 = vadd.f32 %v2824, %v2826
  %v3088 = vadd.f32 %v3087, %v2828
  %v3089 = vadd.f32 %v3088, %v2830
  %v3090 = vrot.slane %v3089, 4
  %v3091 = vadd.f32 %v3089, %v3090
  %v3092 = vrot.slane %v3091, 2
  %v3093 = vadd.f32 %v3091, %v3092
  %v3094 = vrot.slane %v3093, 1
  %v3095 = vadd.f32 %v3093, %v3094
  %v3096 = vadd.f32 %v2832, %v2834
  %v3097 = vadd.f32 %v3096, %v2836
  %v3098 = vadd.f32 %v3097, %v2838
  %v3099 = vrot.slane %v3098, 4
  %v3100 = vadd.f32 %v3098, %v3099
  %v3101 = vrot.slane %v3100, 2
  %v3102 = vadd.f32 %v3100, %v3101
  %v3103 = vrot.slane %v3102, 1
  %v3104 = vadd.f32 %v3102, %v3103
  %v3105 = vadd.f32 %v2840, %v2842
  %v3106 = vadd.f32 %v3105, %v2844
  %v3107 = vadd.f32 %v3106, %v2846
  %v3108 = vrot.slane %v3107, 4
  %v3109 = vadd.f32 %v3107, %v3108
  %v3110 = vrot.slane %v3109, 2
  %v3111 = vadd.f32 %v3109, %v3110
  %v3112 = vrot.slane %v3111, 1
  %v3113 = vadd.f32 %v3111, %v3112
  %v3114 = vadd.f32 %v2848, %v2850
  %v3115 = vadd.f32 %v3114, %v2852
  %v3116 = vadd.f32 %v3115, %v2854
  %v3117 = vrot.slane %v3116, 4
  %v3118 = vadd.f32 %v3116, %v3117
  %v3119 = vrot.slane %v3118, 2
  %v3120 = vadd.f32 %v3118, %v3119
  %v3121 = vrot.slane %v3120, 1
  %v3122 = vadd.f32 %v3120, %v3121
  %v3123 = vadd.f32 %v2856, %v2858
  %v3124 = vadd.f32 %v3123, %v2860
  %v3125 = vadd.f32 %v3124, %v2862
  %v3126 = vrot.slane %v3125, 4
  %v3127 = vadd.f32 %v3125, %v3126
  %v3128 = vrot.slane %v3127, 2
  %v3129 = vadd.f32 %v3127, %v3128
  %v3130 = vrot.slane %v3129, 1
  %v3131 = vadd.f32 %v3129, %v3130
  %v3132 = vadd.f32 %v2864, %v2866
  %v3133 = vadd.f32 %v3132, %v2868
  %v3134 = vadd.f32 %v3133, %v2870
  %v3135 = vrot.slane %v3134, 4
  %v3136 = vadd.f32 %v3134, %v3135
  %v3137 = vrot.slane %v3136, 2
  %v3138 = vadd.f32 %v3136, %v3137
  %v3139 = vrot.slane %v3138, 1
  %v3140 = vadd.f32 %v3138, %v3139
  %v3141 = vadd.f32 %v2872, %v2874
  %v3142 = vadd.f32 %v3141, %v2876
  %v3143 = vadd.f32 %v3142, %v2878
  %v3144 = vrot.slane %v3143, 4
  %v3145 = vadd.f32 %v3143, %v3144
  %v3146 = vrot.slane %v3145, 2
  %v3147 = vadd.f32 %v3145, %v3146
  %v3148 = vrot.slane %v3147, 1
  %v3149 = vadd.f32 %v3147, %v3148
  %v3150 = vadd.f32 %v2880, %v2882
  %v3151 = vadd.f32 %v3150, %v2884
  %v3152 = vadd.f32 %v3151, %v2886
  %v3153 = vrot.slane %v3152, 4
  %v3154 = vadd.f32 %v3152, %v3153
  %v3155 = vrot.slane %v3154, 2
  %v3156 = vadd.f32 %v3154, %v3155
  %v3157 = vrot.slane %v3156, 1
  %v3158 = vadd.f32 %v3156, %v3157
  %v3159 = vadd.f32 %v2888, %v2890
  %v3160 = vadd.f32 %v3159, %v2892
  %v3161 = vadd.f32 %v3160, %v2894
  %v3162 = vrot.slane %v3161, 4
  %v3163 = vadd.f32 %v3161, %v3162
  %v3164 = vrot.slane %v3163, 2
  %v3165 = vadd.f32 %v3163, %v3164
  %v3166 = vrot.slane %v3165, 1
  %v3167 = vadd.f32 %v3165, %v3166
  %v3168 = vadd.f32 %v2896, %v2898
  %v3169 = vadd.f32 %v3168, %v2900
  %v3170 = vadd.f32 %v3169, %v2902
  %v3171 = vrot.slane %v3170, 4
  %v3172 = vadd.f32 %v3170, %v3171
  %v3173 = vrot.slane %v3172, 2
  %v3174 = vadd.f32 %v3172, %v3173
  %v3175 = vrot.slane %v3174, 1
  %v3176 = vadd.f32 %v3174, %v3175
  %v3177 = vadd.f32 %v2904, %v2906
  %v3178 = vadd.f32 %v3177, %v2908
  %v3179 = vadd.f32 %v3178, %v2910
  %v3180 = vrot.slane %v3179, 4
  %v3181 = vadd.f32 %v3179, %v3180
  %v3182 = vrot.slane %v3181, 2
  %v3183 = vadd.f32 %v3181, %v3182
  %v3184 = vrot.slane %v3183, 1
  %v3185 = vadd.f32 %v3183, %v3184
  %v3186 = vadd.f32 %v2912, %v2914
  %v3187 = vadd.f32 %v3186, %v2916
  %v3188 = vadd.f32 %v3187, %v2918
  %v3189 = vrot.slane %v3188, 4
  %v3190 = vadd.f32 %v3188, %v3189
  %v3191 = vrot.slane %v3190, 2
  %v3192 = vadd.f32 %v3190, %v3191
  %v3193 = vrot.slane %v3192, 1
  %v3194 = vadd.f32 %v3192, %v3193
  %v3195 = vadd.f32 %v2920, %v2922
  %v3196 = vadd.f32 %v3195, %v2924
  %v3197 = vadd.f32 %v3196, %v2926
  %v3198 = vrot.slane %v3197, 4
  %v3199 = vadd.f32 %v3197, %v3198
  %v3200 = vrot.slane %v3199, 2
  %v3201 = vadd.f32 %v3199, %v3200
  %v3202 = vrot.slane %v3201, 1
  %v3203 = vadd.f32 %v3201, %v3202
  %v3204 = vadd.f32 %v2928, %v2930
  %v3205 = vadd.f32 %v3204, %v2932
  %v3206 = vadd.f32 %v3205, %v2934
  %v3207 = vrot.slane %v3206, 4
  %v3208 = vadd.f32 %v3206, %v3207
  %v3209 = vrot.slane %v3208, 2
  %v3210 = vadd.f32 %v3208, %v3209
  %v3211 = vrot.slane %v3210, 1
  %v3212 = vadd.f32 %v3210, %v3211
  %v3213 = vadd.f32 %v2936, %v2938
  %v3214 = vadd.f32 %v3213, %v2940
  %v3215 = vadd.f32 %v3214, %v2942
  %v3216 = vrot.slane %v3215, 4
  %v3217 = vadd.f32 %v3215, %v3216
  %v3218 = vrot.slane %v3217, 2
  %v3219 = vadd.f32 %v3217, %v3218
  %v3220 = vrot.slane %v3219, 1
  %v3221 = vadd.f32 %v3219, %v3220
  %v3222 = vadd.f32 %v2944, %v2946
  %v3223 = vadd.f32 %v3222, %v2948
  %v3224 = vadd.f32 %v3223, %v2950
  %v3225 = vrot.slane %v3224, 4
  %v3226 = vadd.f32 %v3224, %v3225
  %v3227 = vrot.slane %v3226, 2
  %v3228 = vadd.f32 %v3226, %v3227
  %v3229 = vrot.slane %v3228, 1
  %v3230 = vadd.f32 %v3228, %v3229
  %v3231 = vadd.f32 %v2952, %v2954
  %v3232 = vadd.f32 %v3231, %v2956
  %v3233 = vadd.f32 %v3232, %v2958
  %v3234 = vrot.slane %v3233, 4
  %v3235 = vadd.f32 %v3233, %v3234
  %v3236 = vrot.slane %v3235, 2
  %v3237 = vadd.f32 %v3235, %v3236
  %v3238 = vrot.slane %v3237, 1
  %v3239 = vadd.f32 %v3237, %v3238
  %v3240 = vadd.f32 %v2960, %v2962
  %v3241 = vadd.f32 %v3240, %v2964
  %v3242 = vadd.f32 %v3241, %v2966
  %v3243 = vrot.slane %v3242, 4
  %v3244 = vadd.f32 %v3242, %v3243
  %v3245 = vrot.slane %v3244, 2
  %v3246 = vadd.f32 %v3244, %v3245
  %v3247 = vrot.slane %v3246, 1
  %v3248 = vadd.f32 %v3246, %v3247
  %v3249 = vadd.f32 %v2968, %v2970
  %v3250 = vadd.f32 %v3249, %v2972
  %v3251 = vadd.f32 %v3250, %v2974
  %v3252 = vrot.slane %v3251, 4
  %v3253 = vadd.f32 %v3251, %v3252
  %v3254 = vrot.slane %v3253, 2
  %v3255 = vadd.f32 %v3253, %v3254
  %v3256 = vrot.slane %v3255, 1
  %v3257 = vadd.f32 %v3255, %v3256
  %v3258 = vadd.f32 %v2976, %v2978
  %v3259 = vadd.f32 %v3258, %v2980
  %v3260 = vadd.f32 %v3259, %v2982
  %v3261 = vrot.slane %v3260, 4
  %v3262 = vadd.f32 %v3260, %v3261
  %v3263 = vrot.slane %v3262, 2
  %v3264 = vadd.f32 %v3262, %v3263
  %v3265 = vrot.slane %v3264, 1
  %v3266 = vadd.f32 %v3264, %v3265
  %v3267 = vadd.f32 %v2984, %v2986
  %v3268 = vadd.f32 %v3267, %v2988
  %v3269 = vadd.f32 %v3268, %v2990
  %v3270 = vrot.slane %v3269, 4
  %v3271 = vadd.f32 %v3269, %v3270
  %v3272 = vrot.slane %v3271, 2
  %v3273 = vadd.f32 %v3271, %v3272
  %v3274 = vrot.slane %v3273, 1
  %v3275 = vadd.f32 %v3273, %v3274
  %v3276 = vadd.f32 %v2992, %v2994
  %v3277 = vadd.f32 %v3276, %v2996
  %v3278 = vadd.f32 %v3277, %v2998
  %v3279 = vrot.slane %v3278, 4
  %v3280 = vadd.f32 %v3278, %v3279
  %v3281 = vrot.slane %v3280, 2
  %v3282 = vadd.f32 %v3280, %v3281
  %v3283 = vrot.slane %v3282, 1
  %v3284 = vadd.f32 %v3282, %v3283
  %v3285 = vadd.f32 %v3000, %v3002
  %v3286 = vadd.f32 %v3285, %v3004
  %v3287 = vadd.f32 %v3286, %v3006
  %v3288 = vrot.slane %v3287, 4
  %v3289 = vadd.f32 %v3287, %v3288
  %v3290 = vrot.slane %v3289, 2
  %v3291 = vadd.f32 %v3289, %v3290
  %v3292 = vrot.slane %v3291, 1
  %v3293 = vadd.f32 %v3291, %v3292
  %v3294 = vadd.f32 %v3008, %v3010
  %v3295 = vadd.f32 %v3294, %v3012
  %v3296 = vadd.f32 %v3295, %v3014
  %v3297 = vrot.slane %v3296, 4
  %v3298 = vadd.f32 %v3296, %v3297
  %v3299 = vrot.slane %v3298, 2
  %v3300 = vadd.f32 %v3298, %v3299
  %v3301 = vrot.slane %v3300, 1
  %v3302 = vadd.f32 %v3300, %v3301
  %v3303 = vpack.c.bf16 %v2762, %v2760
  %v3304 = vpack.c.bf16 %v2766, %v2764
  %v3305 = vpack.c.bf16 %v2770, %v2768
  %v3306 = vpack.c.bf16 %v2774, %v2772
  %v3307 = vpack.c.bf16 %v2778, %v2776
  %v3308 = vpack.c.bf16 %v2782, %v2780
  %v3309 = vpack.c.bf16 %v2786, %v2784
  %v3310 = vpack.c.bf16 %v2790, %v2788
  %v3311 = vpack.c.bf16 %v2794, %v2792
  %v3312 = vpack.c.bf16 %v2798, %v2796
  %v3313 = vpack.c.bf16 %v2802, %v2800
  %v3314 = vpack.c.bf16 %v2806, %v2804
  %v3315 = vpack.c.bf16 %v2810, %v2808
  %v3316 = vpack.c.bf16 %v2814, %v2812
  %v3317 = vpack.c.bf16 %v2818, %v2816
  %v3318 = vpack.c.bf16 %v2822, %v2820
  %v3319 = vpack.c.bf16 %v2826, %v2824
  %v3320 = vpack.c.bf16 %v2830, %v2828
  %v3321 = vpack.c.bf16 %v2834, %v2832
  %v3322 = vpack.c.bf16 %v2838, %v2836
  %v3323 = vpack.c.bf16 %v2842, %v2840
  %v3324 = vpack.c.bf16 %v2846, %v2844
  %v3325 = vpack.c.bf16 %v2850, %v2848
  %v3326 = vpack.c.bf16 %v2854, %v2852
  %v3327 = vpack.c.bf16 %v2858, %v2856
  %v3328 = vpack.c.bf16 %v2862, %v2860
  %v3329 = vpack.c.bf16 %v2866, %v2864
  %v3330 = vpack.c.bf16 %v2870, %v2868
  %v3331 = vpack.c.bf16 %v2874, %v2872
  %v3332 = vpack.c.bf16 %v2878, %v2876
  %v3333 = vpack.c.bf16 %v2882, %v2880
  %v3334 = vpack.c.bf16 %v2886, %v2884
  %v3335 = vpack.c.bf16 %v2890, %v2888
  %v3336 = vpack.c.bf16 %v2894, %v2892
  %v3337 = vpack.c.bf16 %v2898, %v2896
  %v3338 = vpack.c.bf16 %v2902, %v2900
  %v3339 = vpack.c.bf16 %v2906, %v2904
  %v3340 = vpack.c.bf16 %v2910, %v2908
  %v3341 = vpack.c.bf16 %v2914, %v2912
  %v3342 = vpack.c.bf16 %v2918, %v2916
  %v3343 = vpack.c.bf16 %v2922, %v2920
  %v3344 = vpack.c.bf16 %v2926, %v2924
  %v3345 = vpack.c.bf16 %v2930, %v2928
  %v3346 = vpack.c.bf16 %v2934, %v2932
  %v3347 = vpack.c.bf16 %v2938, %v2936
  %v3348 = vpack.c.bf16 %v2942, %v2940
  %v3349 = vpack.c.bf16 %v2946, %v2944
  %v3350 = vpack.c.bf16 %v2950, %v2948
  %v3351 = vpack.c.bf16 %v2954, %v2952
  %v3352 = vpack.c.bf16 %v2958, %v2956
  %v3353 = vpack.c.bf16 %v2962, %v2960
  %v3354 = vpack.c.bf16 %v2966, %v2964
  %v3355 = vpack.c.bf16 %v2970, %v2968
  %v3356 = vpack.c.bf16 %v2974, %v2972
  %v3357 = vpack.c.bf16 %v2978, %v2976
  %v3358 = vpack.c.bf16 %v2982, %v2980
  %v3359 = vpack.c.bf16 %v2986, %v2984
  %v3360 = vpack.c.bf16 %v2990, %v2988
  %v3361 = vpack.c.bf16 %v2994, %v2992
  %v3362 = vpack.c.bf16 %v2998, %v2996
  %v3363 = vpack.c.bf16 %v3002, %v3000
  %v3364 = vpack.c.bf16 %v3006, %v3004
  %v3365 = vpack.c.bf16 %v3010, %v3008
  %v3366 = vpack.c.bf16 %v3014, %v3012
  %v3367 = vmul.bf16 %v3303, %v270
  %v3368 = vmul.bf16 %v3304, %v271
  %v3369 = vmul.bf16 %v3305, %v270
  %v3370 = vmul.bf16 %v3306, %v271
  %v3371 = vmul.bf16 %v3307, %v270
  %v3372 = vmul.bf16 %v3308, %v271
  %v3373 = vmul.bf16 %v3309, %v270
  %v3374 = vmul.bf16 %v3310, %v271
  %v3375 = vmul.bf16 %v3311, %v270
  %v3376 = vmul.bf16 %v3312, %v271
  %v3377 = vmul.bf16 %v3313, %v270
  %v3378 = vmul.bf16 %v3314, %v271
  %v3379 = vmul.bf16 %v3315, %v270
  %v3380 = vmul.bf16 %v3316, %v271
  %v3381 = vmul.bf16 %v3317, %v270
  %v3382 = vmul.bf16 %v3318, %v271
  %v3383 = vmul.bf16 %v3319, %v270
  %v3384 = vmul.bf16 %v3320, %v271
  %v3385 = vmul.bf16 %v3321, %v270
  %v3386 = vmul.bf16 %v3322, %v271
  %v3387 = vmul.bf16 %v3323, %v270
  %v3388 = vmul.bf16 %v3324, %v271
  %v3389 = vmul.bf16 %v3325, %v270
  %v3390 = vmul.bf16 %v3326, %v271
  %v3391 = vmul.bf16 %v3327, %v270
  %v3392 = vmul.bf16 %v3328, %v271
  %v3393 = vmul.bf16 %v3329, %v270
  %v3394 = vmul.bf16 %v3330, %v271
  %v3395 = vmul.bf16 %v3331, %v270
  %v3396 = vmul.bf16 %v3332, %v271
  %v3397 = vmul.bf16 %v3333, %v270
  %v3398 = vmul.bf16 %v3334, %v271
  %v3399 = vmul.bf16 %v3335, %v270
  %v3400 = vmul.bf16 %v3336, %v271
  %v3401 = vmul.bf16 %v3337, %v270
  %v3402 = vmul.bf16 %v3338, %v271
  %v3403 = vmul.bf16 %v3339, %v270
  %v3404 = vmul.bf16 %v3340, %v271
  %v3405 = vmul.bf16 %v3341, %v270
  %v3406 = vmul.bf16 %v3342, %v271
  %v3407 = vmul.bf16 %v3343, %v270
  %v3408 = vmul.bf16 %v3344, %v271
  %v3409 = vmul.bf16 %v3345, %v270
  %v3410 = vmul.bf16 %v3346, %v271
  %v3411 = vmul.bf16 %v3347, %v270
  %v3412 = vmul.bf16 %v3348, %v271
  %v3413 = vmul.bf16 %v3349, %v270
  %v3414 = vmul.bf16 %v3350, %v271
  %v3415 = vmul.bf16 %v3351, %v270
  %v3416 = vmul.bf16 %v3352, %v271
  %v3417 = vmul.bf16 %v3353, %v270
  %v3418 = vmul.bf16 %v3354, %v271
  %v3419 = vmul.bf16 %v3355, %v270
  %v3420 = vmul.bf16 %v3356, %v271
  %v3421 = vmul.bf16 %v3357, %v270
  %v3422 = vmul.bf16 %v3358, %v271
  %v3423 = vmul.bf16 %v3359, %v270
  %v3424 = vmul.bf16 %v3360, %v271
  %v3425 = vmul.bf16 %v3361, %v270
  %v3426 = vmul.bf16 %v3362, %v271
  %v3427 = vmul.bf16 %v3363, %v270
  %v3428 = vmul.bf16 %v3364, %v271
  %v3429 = vmul.bf16 %v3365, %v270
  %v3430 = vmul.bf16 %v3366, %v271
  %v3431 = vunpack.c.l.bf16 %v3367
  %v3432 = vunpack.c.h.bf16 %v3367
  %v3433 = vunpack.c.l.bf16 %v3368
  %v3434 = vunpack.c.h.bf16 %v3368
  %v3435 = vunpack.c.l.bf16 %v3369
  %v3436 = vunpack.c.h.bf16 %v3369
  %v3437 = vunpack.c.l.bf16 %v3370
  %v3438 = vunpack.c.h.bf16 %v3370
  %v3439 = vunpack.c.l.bf16 %v3371
  %v3440 = vunpack.c.h.bf16 %v3371
  %v3441 = vunpack.c.l.bf16 %v3372
  %v3442 = vunpack.c.h.bf16 %v3372
  %v3443 = vunpack.c.l.bf16 %v3373
  %v3444 = vunpack.c.h.bf16 %v3373
  %v3445 = vunpack.c.l.bf16 %v3374
  %v3446 = vunpack.c.h.bf16 %v3374
  %v3447 = vunpack.c.l.bf16 %v3375
  %v3448 = vunpack.c.h.bf16 %v3375
  %v3449 = vunpack.c.l.bf16 %v3376
  %v3450 = vunpack.c.h.bf16 %v3376
  %v3451 = vunpack.c.l.bf16 %v3377
  %v3452 = vunpack.c.h.bf16 %v3377
  %v3453 = vunpack.c.l.bf16 %v3378
  %v3454 = vunpack.c.h.bf16 %v3378
  %v3455 = vunpack.c.l.bf16 %v3379
  %v3456 = vunpack.c.h.bf16 %v3379
  %v3457 = vunpack.c.l.bf16 %v3380
  %v3458 = vunpack.c.h.bf16 %v3380
  %v3459 = vunpack.c.l.bf16 %v3381
  %v3460 = vunpack.c.h.bf16 %v3381
  %v3461 = vunpack.c.l.bf16 %v3382
  %v3462 = vunpack.c.h.bf16 %v3382
  %v3463 = vunpack.c.l.bf16 %v3383
  %v3464 = vunpack.c.h.bf16 %v3383
  %v3465 = vunpack.c.l.bf16 %v3384
  %v3466 = vunpack.c.h.bf16 %v3384
  %v3467 = vunpack.c.l.bf16 %v3385
  %v3468 = vunpack.c.h.bf16 %v3385
  %v3469 = vunpack.c.l.bf16 %v3386
  %v3470 = vunpack.c.h.bf16 %v3386
  %v3471 = vunpack.c.l.bf16 %v3387
  %v3472 = vunpack.c.h.bf16 %v3387
  %v3473 = vunpack.c.l.bf16 %v3388
  %v3474 = vunpack.c.h.bf16 %v3388
  %v3475 = vunpack.c.l.bf16 %v3389
  %v3476 = vunpack.c.h.bf16 %v3389
  %v3477 = vunpack.c.l.bf16 %v3390
  %v3478 = vunpack.c.h.bf16 %v3390
  %v3479 = vunpack.c.l.bf16 %v3391
  %v3480 = vunpack.c.h.bf16 %v3391
  %v3481 = vunpack.c.l.bf16 %v3392
  %v3482 = vunpack.c.h.bf16 %v3392
  %v3483 = vunpack.c.l.bf16 %v3393
  %v3484 = vunpack.c.h.bf16 %v3393
  %v3485 = vunpack.c.l.bf16 %v3394
  %v3486 = vunpack.c.h.bf16 %v3394
  %v3487 = vunpack.c.l.bf16 %v3395
  %v3488 = vunpack.c.h.bf16 %v3395
  %v3489 = vunpack.c.l.bf16 %v3396
  %v3490 = vunpack.c.h.bf16 %v3396
  %v3491 = vunpack.c.l.bf16 %v3397
  %v3492 = vunpack.c.h.bf16 %v3397
  %v3493 = vunpack.c.l.bf16 %v3398
  %v3494 = vunpack.c.h.bf16 %v3398
  %v3495 = vunpack.c.l.bf16 %v3399
  %v3496 = vunpack.c.h.bf16 %v3399
  %v3497 = vunpack.c.l.bf16 %v3400
  %v3498 = vunpack.c.h.bf16 %v3400
  %v3499 = vunpack.c.l.bf16 %v3401
  %v3500 = vunpack.c.h.bf16 %v3401
  %v3501 = vunpack.c.l.bf16 %v3402
  %v3502 = vunpack.c.h.bf16 %v3402
  %v3503 = vunpack.c.l.bf16 %v3403
  %v3504 = vunpack.c.h.bf16 %v3403
  %v3505 = vunpack.c.l.bf16 %v3404
  %v3506 = vunpack.c.h.bf16 %v3404
  %v3507 = vunpack.c.l.bf16 %v3405
  %v3508 = vunpack.c.h.bf16 %v3405
  %v3509 = vunpack.c.l.bf16 %v3406
  %v3510 = vunpack.c.h.bf16 %v3406
  %v3511 = vunpack.c.l.bf16 %v3407
  %v3512 = vunpack.c.h.bf16 %v3407
  %v3513 = vunpack.c.l.bf16 %v3408
  %v3514 = vunpack.c.h.bf16 %v3408
  %v3515 = vunpack.c.l.bf16 %v3409
  %v3516 = vunpack.c.h.bf16 %v3409
  %v3517 = vunpack.c.l.bf16 %v3410
  %v3518 = vunpack.c.h.bf16 %v3410
  %v3519 = vunpack.c.l.bf16 %v3411
  %v3520 = vunpack.c.h.bf16 %v3411
  %v3521 = vunpack.c.l.bf16 %v3412
  %v3522 = vunpack.c.h.bf16 %v3412
  %v3523 = vunpack.c.l.bf16 %v3413
  %v3524 = vunpack.c.h.bf16 %v3413
  %v3525 = vunpack.c.l.bf16 %v3414
  %v3526 = vunpack.c.h.bf16 %v3414
  %v3527 = vunpack.c.l.bf16 %v3415
  %v3528 = vunpack.c.h.bf16 %v3415
  %v3529 = vunpack.c.l.bf16 %v3416
  %v3530 = vunpack.c.h.bf16 %v3416
  %v3531 = vunpack.c.l.bf16 %v3417
  %v3532 = vunpack.c.h.bf16 %v3417
  %v3533 = vunpack.c.l.bf16 %v3418
  %v3534 = vunpack.c.h.bf16 %v3418
  %v3535 = vunpack.c.l.bf16 %v3419
  %v3536 = vunpack.c.h.bf16 %v3419
  %v3537 = vunpack.c.l.bf16 %v3420
  %v3538 = vunpack.c.h.bf16 %v3420
  %v3539 = vunpack.c.l.bf16 %v3421
  %v3540 = vunpack.c.h.bf16 %v3421
  %v3541 = vunpack.c.l.bf16 %v3422
  %v3542 = vunpack.c.h.bf16 %v3422
  %v3543 = vunpack.c.l.bf16 %v3423
  %v3544 = vunpack.c.h.bf16 %v3423
  %v3545 = vunpack.c.l.bf16 %v3424
  %v3546 = vunpack.c.h.bf16 %v3424
  %v3547 = vunpack.c.l.bf16 %v3425
  %v3548 = vunpack.c.h.bf16 %v3425
  %v3549 = vunpack.c.l.bf16 %v3426
  %v3550 = vunpack.c.h.bf16 %v3426
  %v3551 = vunpack.c.l.bf16 %v3427
  %v3552 = vunpack.c.h.bf16 %v3427
  %v3553 = vunpack.c.l.bf16 %v3428
  %v3554 = vunpack.c.h.bf16 %v3428
  %v3555 = vunpack.c.l.bf16 %v3429
  %v3556 = vunpack.c.h.bf16 %v3429
  %v3557 = vunpack.c.l.bf16 %v3430
  %v3558 = vunpack.c.h.bf16 %v3430
  %v3559 = vadd.f32 %v3431, %v3432
  %v3560 = vadd.f32 %v3559, %v3433
  %v3561 = vadd.f32 %v3560, %v3434
  %v3562 = vrot.slane %v3561, 4
  %v3563 = vadd.f32 %v3561, %v3562
  %v3564 = vrot.slane %v3563, 2
  %v3565 = vadd.f32 %v3563, %v3564
  %v3566 = vrot.slane %v3565, 1
  %v3567 = vadd.f32 %v3565, %v3566
  %v3568 = vadd.f32 %v3435, %v3436
  %v3569 = vadd.f32 %v3568, %v3437
  %v3570 = vadd.f32 %v3569, %v3438
  %v3571 = vrot.slane %v3570, 4
  %v3572 = vadd.f32 %v3570, %v3571
  %v3573 = vrot.slane %v3572, 2
  %v3574 = vadd.f32 %v3572, %v3573
  %v3575 = vrot.slane %v3574, 1
  %v3576 = vadd.f32 %v3574, %v3575
  %v3577 = vadd.f32 %v3439, %v3440
  %v3578 = vadd.f32 %v3577, %v3441
  %v3579 = vadd.f32 %v3578, %v3442
  %v3580 = vrot.slane %v3579, 4
  %v3581 = vadd.f32 %v3579, %v3580
  %v3582 = vrot.slane %v3581, 2
  %v3583 = vadd.f32 %v3581, %v3582
  %v3584 = vrot.slane %v3583, 1
  %v3585 = vadd.f32 %v3583, %v3584
  %v3586 = vadd.f32 %v3443, %v3444
  %v3587 = vadd.f32 %v3586, %v3445
  %v3588 = vadd.f32 %v3587, %v3446
  %v3589 = vrot.slane %v3588, 4
  %v3590 = vadd.f32 %v3588, %v3589
  %v3591 = vrot.slane %v3590, 2
  %v3592 = vadd.f32 %v3590, %v3591
  %v3593 = vrot.slane %v3592, 1
  %v3594 = vadd.f32 %v3592, %v3593
  %v3595 = vadd.f32 %v3447, %v3448
  %v3596 = vadd.f32 %v3595, %v3449
  %v3597 = vadd.f32 %v3596, %v3450
  %v3598 = vrot.slane %v3597, 4
  %v3599 = vadd.f32 %v3597, %v3598
  %v3600 = vrot.slane %v3599, 2
  %v3601 = vadd.f32 %v3599, %v3600
  %v3602 = vrot.slane %v3601, 1
  %v3603 = vadd.f32 %v3601, %v3602
  %v3604 = vadd.f32 %v3451, %v3452
  %v3605 = vadd.f32 %v3604, %v3453
  %v3606 = vadd.f32 %v3605, %v3454
  %v3607 = vrot.slane %v3606, 4
  %v3608 = vadd.f32 %v3606, %v3607
  %v3609 = vrot.slane %v3608, 2
  %v3610 = vadd.f32 %v3608, %v3609
  %v3611 = vrot.slane %v3610, 1
  %v3612 = vadd.f32 %v3610, %v3611
  %v3613 = vadd.f32 %v3455, %v3456
  %v3614 = vadd.f32 %v3613, %v3457
  %v3615 = vadd.f32 %v3614, %v3458
  %v3616 = vrot.slane %v3615, 4
  %v3617 = vadd.f32 %v3615, %v3616
  %v3618 = vrot.slane %v3617, 2
  %v3619 = vadd.f32 %v3617, %v3618
  %v3620 = vrot.slane %v3619, 1
  %v3621 = vadd.f32 %v3619, %v3620
  %v3622 = vadd.f32 %v3459, %v3460
  %v3623 = vadd.f32 %v3622, %v3461
  %v3624 = vadd.f32 %v3623, %v3462
  %v3625 = vrot.slane %v3624, 4
  %v3626 = vadd.f32 %v3624, %v3625
  %v3627 = vrot.slane %v3626, 2
  %v3628 = vadd.f32 %v3626, %v3627
  %v3629 = vrot.slane %v3628, 1
  %v3630 = vadd.f32 %v3628, %v3629
  %v3631 = vadd.f32 %v3463, %v3464
  %v3632 = vadd.f32 %v3631, %v3465
  %v3633 = vadd.f32 %v3632, %v3466
  %v3634 = vrot.slane %v3633, 4
  %v3635 = vadd.f32 %v3633, %v3634
  %v3636 = vrot.slane %v3635, 2
  %v3637 = vadd.f32 %v3635, %v3636
  %v3638 = vrot.slane %v3637, 1
  %v3639 = vadd.f32 %v3637, %v3638
  %v3640 = vadd.f32 %v3467, %v3468
  %v3641 = vadd.f32 %v3640, %v3469
  %v3642 = vadd.f32 %v3641, %v3470
  %v3643 = vrot.slane %v3642, 4
  %v3644 = vadd.f32 %v3642, %v3643
  %v3645 = vrot.slane %v3644, 2
  %v3646 = vadd.f32 %v3644, %v3645
  %v3647 = vrot.slane %v3646, 1
  %v3648 = vadd.f32 %v3646, %v3647
  %v3649 = vadd.f32 %v3471, %v3472
  %v3650 = vadd.f32 %v3649, %v3473
  %v3651 = vadd.f32 %v3650, %v3474
  %v3652 = vrot.slane %v3651, 4
  %v3653 = vadd.f32 %v3651, %v3652
  %v3654 = vrot.slane %v3653, 2
  %v3655 = vadd.f32 %v3653, %v3654
  %v3656 = vrot.slane %v3655, 1
  %v3657 = vadd.f32 %v3655, %v3656
  %v3658 = vadd.f32 %v3475, %v3476
  %v3659 = vadd.f32 %v3658, %v3477
  %v3660 = vadd.f32 %v3659, %v3478
  %v3661 = vrot.slane %v3660, 4
  %v3662 = vadd.f32 %v3660, %v3661
  %v3663 = vrot.slane %v3662, 2
  %v3664 = vadd.f32 %v3662, %v3663
  %v3665 = vrot.slane %v3664, 1
  %v3666 = vadd.f32 %v3664, %v3665
  %v3667 = vadd.f32 %v3479, %v3480
  %v3668 = vadd.f32 %v3667, %v3481
  %v3669 = vadd.f32 %v3668, %v3482
  %v3670 = vrot.slane %v3669, 4
  %v3671 = vadd.f32 %v3669, %v3670
  %v3672 = vrot.slane %v3671, 2
  %v3673 = vadd.f32 %v3671, %v3672
  %v3674 = vrot.slane %v3673, 1
  %v3675 = vadd.f32 %v3673, %v3674
  %v3676 = vadd.f32 %v3483, %v3484
  %v3677 = vadd.f32 %v3676, %v3485
  %v3678 = vadd.f32 %v3677, %v3486
  %v3679 = vrot.slane %v3678, 4
  %v3680 = vadd.f32 %v3678, %v3679
  %v3681 = vrot.slane %v3680, 2
  %v3682 = vadd.f32 %v3680, %v3681
  %v3683 = vrot.slane %v3682, 1
  %v3684 = vadd.f32 %v3682, %v3683
  %v3685 = vadd.f32 %v3487, %v3488
  %v3686 = vadd.f32 %v3685, %v3489
  %v3687 = vadd.f32 %v3686, %v3490
  %v3688 = vrot.slane %v3687, 4
  %v3689 = vadd.f32 %v3687, %v3688
  %v3690 = vrot.slane %v3689, 2
  %v3691 = vadd.f32 %v3689, %v3690
  %v3692 = vrot.slane %v3691, 1
  %v3693 = vadd.f32 %v3691, %v3692
  %v3694 = vadd.f32 %v3491, %v3492
  %v3695 = vadd.f32 %v3694, %v3493
  %v3696 = vadd.f32 %v3695, %v3494
  %v3697 = vrot.slane %v3696, 4
  %v3698 = vadd.f32 %v3696, %v3697
  %v3699 = vrot.slane %v3698, 2
  %v3700 = vadd.f32 %v3698, %v3699
  %v3701 = vrot.slane %v3700, 1
  %v3702 = vadd.f32 %v3700, %v3701
  %v3703 = vadd.f32 %v3495, %v3496
  %v3704 = vadd.f32 %v3703, %v3497
  %v3705 = vadd.f32 %v3704, %v3498
  %v3706 = vrot.slane %v3705, 4
  %v3707 = vadd.f32 %v3705, %v3706
  %v3708 = vrot.slane %v3707, 2
  %v3709 = vadd.f32 %v3707, %v3708
  %v3710 = vrot.slane %v3709, 1
  %v3711 = vadd.f32 %v3709, %v3710
  %v3712 = vadd.f32 %v3499, %v3500
  %v3713 = vadd.f32 %v3712, %v3501
  %v3714 = vadd.f32 %v3713, %v3502
  %v3715 = vrot.slane %v3714, 4
  %v3716 = vadd.f32 %v3714, %v3715
  %v3717 = vrot.slane %v3716, 2
  %v3718 = vadd.f32 %v3716, %v3717
  %v3719 = vrot.slane %v3718, 1
  %v3720 = vadd.f32 %v3718, %v3719
  %v3721 = vadd.f32 %v3503, %v3504
  %v3722 = vadd.f32 %v3721, %v3505
  %v3723 = vadd.f32 %v3722, %v3506
  %v3724 = vrot.slane %v3723, 4
  %v3725 = vadd.f32 %v3723, %v3724
  %v3726 = vrot.slane %v3725, 2
  %v3727 = vadd.f32 %v3725, %v3726
  %v3728 = vrot.slane %v3727, 1
  %v3729 = vadd.f32 %v3727, %v3728
  %v3730 = vadd.f32 %v3507, %v3508
  %v3731 = vadd.f32 %v3730, %v3509
  %v3732 = vadd.f32 %v3731, %v3510
  %v3733 = vrot.slane %v3732, 4
  %v3734 = vadd.f32 %v3732, %v3733
  %v3735 = vrot.slane %v3734, 2
  %v3736 = vadd.f32 %v3734, %v3735
  %v3737 = vrot.slane %v3736, 1
  %v3738 = vadd.f32 %v3736, %v3737
  %v3739 = vadd.f32 %v3511, %v3512
  %v3740 = vadd.f32 %v3739, %v3513
  %v3741 = vadd.f32 %v3740, %v3514
  %v3742 = vrot.slane %v3741, 4
  %v3743 = vadd.f32 %v3741, %v3742
  %v3744 = vrot.slane %v3743, 2
  %v3745 = vadd.f32 %v3743, %v3744
  %v3746 = vrot.slane %v3745, 1
  %v3747 = vadd.f32 %v3745, %v3746
  %v3748 = vadd.f32 %v3515, %v3516
  %v3749 = vadd.f32 %v3748, %v3517
  %v3750 = vadd.f32 %v3749, %v3518
  %v3751 = vrot.slane %v3750, 4
  %v3752 = vadd.f32 %v3750, %v3751
  %v3753 = vrot.slane %v3752, 2
  %v3754 = vadd.f32 %v3752, %v3753
  %v3755 = vrot.slane %v3754, 1
  %v3756 = vadd.f32 %v3754, %v3755
  %v3757 = vadd.f32 %v3519, %v3520
  %v3758 = vadd.f32 %v3757, %v3521
  %v3759 = vadd.f32 %v3758, %v3522
  %v3760 = vrot.slane %v3759, 4
  %v3761 = vadd.f32 %v3759, %v3760
  %v3762 = vrot.slane %v3761, 2
  %v3763 = vadd.f32 %v3761, %v3762
  %v3764 = vrot.slane %v3763, 1
  %v3765 = vadd.f32 %v3763, %v3764
  %v3766 = vadd.f32 %v3523, %v3524
  %v3767 = vadd.f32 %v3766, %v3525
  %v3768 = vadd.f32 %v3767, %v3526
  %v3769 = vrot.slane %v3768, 4
  %v3770 = vadd.f32 %v3768, %v3769
  %v3771 = vrot.slane %v3770, 2
  %v3772 = vadd.f32 %v3770, %v3771
  %v3773 = vrot.slane %v3772, 1
  %v3774 = vadd.f32 %v3772, %v3773
  %v3775 = vadd.f32 %v3527, %v3528
  %v3776 = vadd.f32 %v3775, %v3529
  %v3777 = vadd.f32 %v3776, %v3530
  %v3778 = vrot.slane %v3777, 4
  %v3779 = vadd.f32 %v3777, %v3778
  %v3780 = vrot.slane %v3779, 2
  %v3781 = vadd.f32 %v3779, %v3780
  %v3782 = vrot.slane %v3781, 1
  %v3783 = vadd.f32 %v3781, %v3782
  %v3784 = vadd.f32 %v3531, %v3532
  %v3785 = vadd.f32 %v3784, %v3533
  %v3786 = vadd.f32 %v3785, %v3534
  %v3787 = vrot.slane %v3786, 4
  %v3788 = vadd.f32 %v3786, %v3787
  %v3789 = vrot.slane %v3788, 2
  %v3790 = vadd.f32 %v3788, %v3789
  %v3791 = vrot.slane %v3790, 1
  %v3792 = vadd.f32 %v3790, %v3791
  %v3793 = vadd.f32 %v3535, %v3536
  %v3794 = vadd.f32 %v3793, %v3537
  %v3795 = vadd.f32 %v3794, %v3538
  %v3796 = vrot.slane %v3795, 4
  %v3797 = vadd.f32 %v3795, %v3796
  %v3798 = vrot.slane %v3797, 2
  %v3799 = vadd.f32 %v3797, %v3798
  %v3800 = vrot.slane %v3799, 1
  %v3801 = vadd.f32 %v3799, %v3800
  %v3802 = vadd.f32 %v3539, %v3540
  %v3803 = vadd.f32 %v3802, %v3541
  %v3804 = vadd.f32 %v3803, %v3542
  %v3805 = vrot.slane %v3804, 4
  %v3806 = vadd.f32 %v3804, %v3805
  %v3807 = vrot.slane %v3806, 2
  %v3808 = vadd.f32 %v3806, %v3807
  %v3809 = vrot.slane %v3808, 1
  %v3810 = vadd.f32 %v3808, %v3809
  %v3811 = vadd.f32 %v3543, %v3544
  %v3812 = vadd.f32 %v3811, %v3545
  %v3813 = vadd.f32 %v3812, %v3546
  %v3814 = vrot.slane %v3813, 4
  %v3815 = vadd.f32 %v3813, %v3814
  %v3816 = vrot.slane %v3815, 2
  %v3817 = vadd.f32 %v3815, %v3816
  %v3818 = vrot.slane %v3817, 1
  %v3819 = vadd.f32 %v3817, %v3818
  %v3820 = vadd.f32 %v3547, %v3548
  %v3821 = vadd.f32 %v3820, %v3549
  %v3822 = vadd.f32 %v3821, %v3550
  %v3823 = vrot.slane %v3822, 4
  %v3824 = vadd.f32 %v3822, %v3823
  %v3825 = vrot.slane %v3824, 2
  %v3826 = vadd.f32 %v3824, %v3825
  %v3827 = vrot.slane %v3826, 1
  %v3828 = vadd.f32 %v3826, %v3827
  %v3829 = vadd.f32 %v3551, %v3552
  %v3830 = vadd.f32 %v3829, %v3553
  %v3831 = vadd.f32 %v3830, %v3554
  %v3832 = vrot.slane %v3831, 4
  %v3833 = vadd.f32 %v3831, %v3832
  %v3834 = vrot.slane %v3833, 2
  %v3835 = vadd.f32 %v3833, %v3834
  %v3836 = vrot.slane %v3835, 1
  %v3837 = vadd.f32 %v3835, %v3836
  %v3838 = vadd.f32 %v3555, %v3556
  %v3839 = vadd.f32 %v3838, %v3557
  %v3840 = vadd.f32 %v3839, %v3558
  %v3841 = vrot.slane %v3840, 4
  %v3842 = vadd.f32 %v3840, %v3841
  %v3843 = vrot.slane %v3842, 2
  %v3844 = vadd.f32 %v3842, %v3843
  %v3845 = vrot.slane %v3844, 1
  %v3846 = vadd.f32 %v3844, %v3845
  %v3847 = vrcp.pop %v3023
  %v3848 = vrcp.pop %v3032
  %v3849 = vrcp.pop %v3041
  %v3850 = vrcp.pop %v3050
  %v3851 = vrcp.pop %v3059
  %v3852 = vrcp.pop %v3068
  %v3853 = vrcp.pop %v3077
  %v3854 = vrcp.pop %v3086
  %v3855 = vrcp.pop %v3095
  %v3856 = vrcp.pop %v3104
  %v3857 = vrcp.pop %v3113
  %v3858 = vrcp.pop %v3122
  %v3859 = vrcp.pop %v3131
  %v3860 = vrcp.pop %v3140
  %v3861 = vrcp.pop %v3149
  %v3862 = vrcp.pop %v3158
  %v3863 = vrcp.pop %v3167
  %v3864 = vrcp.pop %v3176
  %v3865 = vrcp.pop %v3185
  %v3866 = vrcp.pop %v3194
  %v3867 = vrcp.pop %v3203
  %v3868 = vrcp.pop %v3212
  %v3869 = vrcp.pop %v3221
  %v3870 = vrcp.pop %v3230
  %v3871 = vrcp.pop %v3239
  %v3872 = vrcp.pop %v3248
  %v3873 = vrcp.pop %v3257
  %v3874 = vrcp.pop %v3266
  %v3875 = vrcp.pop %v3275
  %v3876 = vrcp.pop %v3284
  %v3877 = vrcp.pop %v3293
  %v3878 = vrcp.pop %v3302
  %v3879 = vmul.f32 %v3567, %v3847
  %v3880 = vmul.f32 %v3576, %v3848
  %v3881 = vmul.f32 %v3585, %v3849
  %v3882 = vmul.f32 %v3594, %v3850
  %v3883 = vmul.f32 %v3603, %v3851
  %v3884 = vmul.f32 %v3612, %v3852
  %v3885 = vmul.f32 %v3621, %v3853
  %v3886 = vmul.f32 %v3630, %v3854
  %v3887 = vmul.f32 %v3639, %v3855
  %v3888 = vmul.f32 %v3648, %v3856
  %v3889 = vmul.f32 %v3657, %v3857
  %v3890 = vmul.f32 %v3666, %v3858
  %v3891 = vmul.f32 %v3675, %v3859
  %v3892 = vmul.f32 %v3684, %v3860
  %v3893 = vmul.f32 %v3693, %v3861
  %v3894 = vmul.f32 %v3702, %v3862
  %v3895 = vmul.f32 %v3711, %v3863
  %v3896 = vmul.f32 %v3720, %v3864
  %v3897 = vmul.f32 %v3729, %v3865
  %v3898 = vmul.f32 %v3738, %v3866
  %v3899 = vmul.f32 %v3747, %v3867
  %v3900 = vmul.f32 %v3756, %v3868
  %v3901 = vmul.f32 %v3765, %v3869
  %v3902 = vmul.f32 %v3774, %v3870
  %v3903 = vmul.f32 %v3783, %v3871
  %v3904 = vmul.f32 %v3792, %v3872
  %v3905 = vmul.f32 %v3801, %v3873
  %v3906 = vmul.f32 %v3810, %v3874
  %v3907 = vmul.f32 %v3819, %v3875
  %v3908 = vmul.f32 %v3828, %v3876
  %v3909 = vmul.f32 %v3837, %v3877
  %v3910 = vmul.f32 %v3846, %v3878
  %v3911 = vlaneseq
  %v3912 = vshrl.u32 %v3911, 7
  %v3913 = vsub.s32 2, %v3912
  %v3914 = vrot.slane %v165, %v3913
  %v3915 = vadd.f32 %v3879, %v3914
  %v3916 = vadd.f32 %v3880, %v3914
  %v3917 = vadd.f32 %v3881, %v3914
  %v3918 = vadd.f32 %v3882, %v3914
  %v3919 = vadd.f32 %v3883, %v3914
  %v3920 = vadd.f32 %v3884, %v3914
  %v3921 = vadd.f32 %v3885, %v3914
  %v3922 = vadd.f32 %v3886, %v3914
  %v3923 = vadd.f32 %v3887, %v3914
  %v3924 = vadd.f32 %v3888, %v3914
  %v3925 = vadd.f32 %v3889, %v3914
  %v3926 = vadd.f32 %v3890, %v3914
  %v3927 = vadd.f32 %v3891, %v3914
  %v3928 = vadd.f32 %v3892, %v3914
  %v3929 = vadd.f32 %v3893, %v3914
  %v3930 = vadd.f32 %v3894, %v3914
  %v3931 = vadd.f32 %v3895, %v3914
  %v3932 = vadd.f32 %v3896, %v3914
  %v3933 = vadd.f32 %v3897, %v3914
  %v3934 = vadd.f32 %v3898, %v3914
  %v3935 = vadd.f32 %v3899, %v3914
  %v3936 = vadd.f32 %v3900, %v3914
  %v3937 = vadd.f32 %v3901, %v3914
  %v3938 = vadd.f32 %v3902, %v3914
  %v3939 = vadd.f32 %v3903, %v3914
  %v3940 = vadd.f32 %v3904, %v3914
  %v3941 = vadd.f32 %v3905, %v3914
  %v3942 = vadd.f32 %v3906, %v3914
  %v3943 = vadd.f32 %v3907, %v3914
  %v3944 = vadd.f32 %v3908, %v3914
  %v3945 = vadd.f32 %v3909, %v3914
  %v3946 = vadd.f32 %v3910, %v3914
  %vm3947 = vcmp.gt.f32.partialorder %v3915, 0.0
  %vm3948 = vcmp.gt.f32.partialorder %v3916, 0.0
  %vm3949 = vcmp.gt.f32.partialorder %v3917, 0.0
  %vm3950 = vcmp.gt.f32.partialorder %v3918, 0.0
  %vm3951 = vcmp.gt.f32.partialorder %v3919, 0.0
  %vm3952 = vcmp.gt.f32.partialorder %v3920, 0.0
  %vm3953 = vcmp.gt.f32.partialorder %v3921, 0.0
  %vm3954 = vcmp.gt.f32.partialorder %v3922, 0.0
  %vm3955 = vcmp.gt.f32.partialorder %v3923, 0.0
  %vm3956 = vcmp.gt.f32.partialorder %v3924, 0.0
  %vm3957 = vcmp.gt.f32.partialorder %v3925, 0.0
  %vm3958 = vcmp.gt.f32.partialorder %v3926, 0.0
  %vm3959 = vcmp.gt.f32.partialorder %v3927, 0.0
  %vm3960 = vcmp.gt.f32.partialorder %v3928, 0.0
  %vm3961 = vcmp.gt.f32.partialorder %v3929, 0.0
  %vm3962 = vcmp.gt.f32.partialorder %v3930, 0.0
  %vm3963 = vcmp.gt.f32.partialorder %v3931, 0.0
  %vm3964 = vcmp.gt.f32.partialorder %v3932, 0.0
  %vm3965 = vcmp.gt.f32.partialorder %v3933, 0.0
  %vm3966 = vcmp.gt.f32.partialorder %v3934, 0.0
  %vm3967 = vcmp.gt.f32.partialorder %v3935, 0.0
  %vm3968 = vcmp.gt.f32.partialorder %v3936, 0.0
  %vm3969 = vcmp.gt.f32.partialorder %v3937, 0.0
  %vm3970 = vcmp.gt.f32.partialorder %v3938, 0.0
  %vm3971 = vcmp.gt.f32.partialorder %v3939, 0.0
  %vm3972 = vcmp.gt.f32.partialorder %v3940, 0.0
  %vm3973 = vcmp.gt.f32.partialorder %v3941, 0.0
  %vm3974 = vcmp.gt.f32.partialorder %v3942, 0.0
  %vm3975 = vcmp.gt.f32.partialorder %v3943, 0.0
  %vm3976 = vcmp.gt.f32.partialorder %v3944, 0.0
  %vm3977 = vcmp.gt.f32.partialorder %v3945, 0.0
  %vm3978 = vcmp.gt.f32.partialorder %v3946, 0.0
  %v3979 = vmin.f32 %v3915, 0.0
  %v3980 = vmin.f32 %v3916, 0.0
  %v3981 = vmin.f32 %v3917, 0.0
  %v3982 = vmin.f32 %v3918, 0.0
  %v3983 = vmin.f32 %v3919, 0.0
  %v3984 = vmin.f32 %v3920, 0.0
  %v3985 = vmin.f32 %v3921, 0.0
  %v3986 = vmin.f32 %v3922, 0.0
  %v3987 = vmin.f32 %v3923, 0.0
  %v3988 = vmin.f32 %v3924, 0.0
  %v3989 = vmin.f32 %v3925, 0.0
  %v3990 = vmin.f32 %v3926, 0.0
  %v3991 = vmin.f32 %v3927, 0.0
  %v3992 = vmin.f32 %v3928, 0.0
  %v3993 = vmin.f32 %v3929, 0.0
  %v3994 = vmin.f32 %v3930, 0.0
  %v3995 = vmin.f32 %v3931, 0.0
  %v3996 = vmin.f32 %v3932, 0.0
  %v3997 = vmin.f32 %v3933, 0.0
  %v3998 = vmin.f32 %v3934, 0.0
  %v3999 = vmin.f32 %v3935, 0.0
  %v4000 = vmin.f32 %v3936, 0.0
  %v4001 = vmin.f32 %v3937, 0.0
  %v4002 = vmin.f32 %v3938, 0.0
  %v4003 = vmin.f32 %v3939, 0.0
  %v4004 = vmin.f32 %v3940, 0.0
  %v4005 = vmin.f32 %v3941, 0.0
  %v4006 = vmin.f32 %v3942, 0.0
  %v4007 = vmin.f32 %v3943, 0.0
  %v4008 = vmin.f32 %v3944, 0.0
  %v4009 = vmin.f32 %v3945, 0.0
  %v4010 = vmin.f32 %v3946, 0.0
  %v4011 = vmul.f32 %v3979, 1.442695
  %v4012 = vpow.pop %v4011
  %v4013 = vmul.f32 %v3980, 1.442695
  %v4014 = vpow.pop %v4013
  %v4015 = vmul.f32 %v3981, 1.442695
  %v4016 = vpow.pop %v4015
  %v4017 = vmul.f32 %v3982, 1.442695
  %v4018 = vpow.pop %v4017
  %v4019 = vmul.f32 %v3983, 1.442695
  %v4020 = vpow.pop %v4019
  %v4021 = vmul.f32 %v3984, 1.442695
  %v4022 = vpow.pop %v4021
  %v4023 = vmul.f32 %v3985, 1.442695
  %v4024 = vpow.pop %v4023
  %v4025 = vmul.f32 %v3986, 1.442695
  %v4026 = vpow.pop %v4025
  %v4027 = vmul.f32 %v3987, 1.442695
  %v4028 = vpow.pop %v4027
  %v4029 = vmul.f32 %v3988, 1.442695
  %v4030 = vpow.pop %v4029
  %v4031 = vmul.f32 %v3989, 1.442695
  %v4032 = vpow.pop %v4031
  %v4033 = vmul.f32 %v3990, 1.442695
  %v4034 = vpow.pop %v4033
  %v4035 = vmul.f32 %v3991, 1.442695
  %v4036 = vpow.pop %v4035
  %v4037 = vmul.f32 %v3992, 1.442695
  %v4038 = vpow.pop %v4037
  %v4039 = vmul.f32 %v3993, 1.442695
  %v4040 = vpow.pop %v4039
  %v4041 = vmul.f32 %v3994, 1.442695
  %v4042 = vpow.pop %v4041
  %v4043 = vmul.f32 %v3995, 1.442695
  %v4044 = vpow.pop %v4043
  %v4045 = vmul.f32 %v3996, 1.442695
  %v4046 = vpow.pop %v4045
  %v4047 = vmul.f32 %v3997, 1.442695
  %v4048 = vpow.pop %v4047
  %v4049 = vmul.f32 %v3998, 1.442695
  %v4050 = vpow.pop %v4049
  %v4051 = vmul.f32 %v3999, 1.442695
  %v4052 = vpow.pop %v4051
  %v4053 = vmul.f32 %v4000, 1.442695
  %v4054 = vpow.pop %v4053
  %v4055 = vmul.f32 %v4001, 1.442695
  %v4056 = vpow.pop %v4055
  %v4057 = vmul.f32 %v4002, 1.442695
  %v4058 = vpow.pop %v4057
  %v4059 = vmul.f32 %v4003, 1.442695
  %v4060 = vpow.pop %v4059
  %v4061 = vmul.f32 %v4004, 1.442695
  %v4062 = vpow.pop %v4061
  %v4063 = vmul.f32 %v4005, 1.442695
  %v4064 = vpow.pop %v4063
  %v4065 = vmul.f32 %v4006, 1.442695
  %v4066 = vpow.pop %v4065
  %v4067 = vmul.f32 %v4007, 1.442695
  %v4068 = vpow.pop %v4067
  %v4069 = vmul.f32 %v4008, 1.442695
  %v4070 = vpow.pop %v4069
  %v4071 = vmul.f32 %v4009, 1.442695
  %v4072 = vpow.pop %v4071
  %v4073 = vmul.f32 %v4010, 1.442695
  %v4074 = vpow.pop %v4073
  %v4075 = vsub.f32 %v4012, 1.0
  %v4076 = vsub.f32 %v4014, 1.0
  %v4077 = vsub.f32 %v4016, 1.0
  %v4078 = vsub.f32 %v4018, 1.0
  %v4079 = vsub.f32 %v4020, 1.0
  %v4080 = vsub.f32 %v4022, 1.0
  %v4081 = vsub.f32 %v4024, 1.0
  %v4082 = vsub.f32 %v4026, 1.0
  %v4083 = vsub.f32 %v4028, 1.0
  %v4084 = vsub.f32 %v4030, 1.0
  %v4085 = vsub.f32 %v4032, 1.0
  %v4086 = vsub.f32 %v4034, 1.0
  %v4087 = vsub.f32 %v4036, 1.0
  %v4088 = vsub.f32 %v4038, 1.0
  %v4089 = vsub.f32 %v4040, 1.0
  %v4090 = vsub.f32 %v4042, 1.0
  %v4091 = vsub.f32 %v4044, 1.0
  %v4092 = vsub.f32 %v4046, 1.0
  %v4093 = vsub.f32 %v4048, 1.0
  %v4094 = vsub.f32 %v4050, 1.0
  %v4095 = vsub.f32 %v4052, 1.0
  %v4096 = vsub.f32 %v4054, 1.0
  %v4097 = vsub.f32 %v4056, 1.0
  %v4098 = vsub.f32 %v4058, 1.0
  %v4099 = vsub.f32 %v4060, 1.0
  %v4100 = vsub.f32 %v4062, 1.0
  %v4101 = vsub.f32 %v4064, 1.0
  %v4102 = vsub.f32 %v4066, 1.0
  %v4103 = vsub.f32 %v4068, 1.0
  %v4104 = vsub.f32 %v4070, 1.0
  %v4105 = vsub.f32 %v4072, 1.0
  %v4106 = vsub.f32 %v4074, 1.0
  %v4107 = vsel %vm3947, %v3915, %v4075
  %v4108 = vsel %vm3948, %v3916, %v4076
  %v4109 = vsel %vm3949, %v3917, %v4077
  %v4110 = vsel %vm3950, %v3918, %v4078
  %v4111 = vsel %vm3951, %v3919, %v4079
  %v4112 = vsel %vm3952, %v3920, %v4080
  %v4113 = vsel %vm3953, %v3921, %v4081
  %v4114 = vsel %vm3954, %v3922, %v4082
  %v4115 = vsel %vm3955, %v3923, %v4083
  %v4116 = vsel %vm3956, %v3924, %v4084
  %v4117 = vsel %vm3957, %v3925, %v4085
  %v4118 = vsel %vm3958, %v3926, %v4086
  %v4119 = vsel %vm3959, %v3927, %v4087
  %v4120 = vsel %vm3960, %v3928, %v4088
  %v4121 = vsel %vm3961, %v3929, %v4089
  %v4122 = vsel %vm3962, %v3930, %v4090
  %v4123 = vsel %vm3963, %v3931, %v4091
  %v4124 = vsel %vm3964, %v3932, %v4092
  %v4125 = vsel %vm3965, %v3933, %v4093
  %v4126 = vsel %vm3966, %v3934, %v4094
  %v4127 = vsel %vm3967, %v3935, %v4095
  %v4128 = vsel %vm3968, %v3936, %v4096
  %v4129 = vsel %vm3969, %v3937, %v4097
  %v4130 = vsel %vm3970, %v3938, %v4098
  %v4131 = vsel %vm3971, %v3939, %v4099
  %v4132 = vsel %vm3972, %v3940, %v4100
  %v4133 = vsel %vm3973, %v3941, %v4101
  %v4134 = vsel %vm3974, %v3942, %v4102
  %v4135 = vsel %vm3975, %v3943, %v4103
  %v4136 = vsel %vm3976, %v3944, %v4104
  %v4137 = vsel %vm3977, %v3945, %v4105
  %v4138 = vsel %vm3978, %v3946, %v4106
  %v4139 = vld [vmem:[%s5] sm:$0xf]
  %v4140 = vld [vmem:[%s5 + $0x4] sm:$0xf]
  %v4141 = vld [vmem:[%s5 + $0x8] sm:$0xf]
  %v4142 = vld [vmem:[%s5 + $0xc] sm:$0xf]
  %v4143 = vld [vmem:[%s5 + $0x10] sm:$0xf]
  %v4144 = vld [vmem:[%s5 + $0x14] sm:$0xf]
  %v4145 = vld [vmem:[%s5 + $0x18] sm:$0xf]
  %v4146 = vld [vmem:[%s5 + $0x1c] sm:$0xf]
  %v4147 = vld [vmem:[%s5 + $0x20] sm:$0xf]
  %v4148 = vld [vmem:[%s5 + $0x24] sm:$0xf]
  %v4149 = vld [vmem:[%s5 + $0x28] sm:$0xf]
  %v4150 = vld [vmem:[%s5 + $0x2c] sm:$0xf]
  %v4151 = vld [vmem:[%s5 + $0x30] sm:$0xf]
  %v4152 = vld [vmem:[%s5 + $0x34] sm:$0xf]
  %v4153 = vld [vmem:[%s5 + $0x38] sm:$0xf]
  %v4154 = vld [vmem:[%s5 + $0x3c] sm:$0xf]
  %v4155 = vld [vmem:[%s6] sm:$0x7]
  %v4156 = vld [vmem:[%s7] sm:$0xf]
  %v4157 = vpack.c.bf16 %v4107, %v4107
  %v4158 = vpack.c.bf16 %v4108, %v4108
  %v4159 = vpack.c.bf16 %v4109, %v4109
  %v4160 = vpack.c.bf16 %v4110, %v4110
  %v4161 = vpack.c.bf16 %v4111, %v4111
  %v4162 = vpack.c.bf16 %v4112, %v4112
  %v4163 = vpack.c.bf16 %v4113, %v4113
  %v4164 = vpack.c.bf16 %v4114, %v4114
  %v4165 = vpack.c.bf16 %v4115, %v4115
  %v4166 = vpack.c.bf16 %v4116, %v4116
  %v4167 = vpack.c.bf16 %v4117, %v4117
  %v4168 = vpack.c.bf16 %v4118, %v4118
  %v4169 = vpack.c.bf16 %v4119, %v4119
  %v4170 = vpack.c.bf16 %v4120, %v4120
  %v4171 = vpack.c.bf16 %v4121, %v4121
  %v4172 = vpack.c.bf16 %v4122, %v4122
  %v4173 = vpack.c.bf16 %v4123, %v4123
  %v4174 = vpack.c.bf16 %v4124, %v4124
  %v4175 = vpack.c.bf16 %v4125, %v4125
  %v4176 = vpack.c.bf16 %v4126, %v4126
  %v4177 = vpack.c.bf16 %v4127, %v4127
  %v4178 = vpack.c.bf16 %v4128, %v4128
  %v4179 = vpack.c.bf16 %v4129, %v4129
  %v4180 = vpack.c.bf16 %v4130, %v4130
  %v4181 = vpack.c.bf16 %v4131, %v4131
  %v4182 = vpack.c.bf16 %v4132, %v4132
  %v4183 = vpack.c.bf16 %v4133, %v4133
  %v4184 = vpack.c.bf16 %v4134, %v4134
  %v4185 = vpack.c.bf16 %v4135, %v4135
  %v4186 = vpack.c.bf16 %v4136, %v4136
  %v4187 = vpack.c.bf16 %v4137, %v4137
  %v4188 = vpack.c.bf16 %v4138, %v4138
  %v4221 = vunpack.c.l.b16 %v4157
  %v4222 = vunpack.c.l.b16 %v4158
  %v4223 = vunpack.c.l.b16 %v4159
  %v4224 = vunpack.c.l.b16 %v4160
  %v4225 = vunpack.c.l.b16 %v4161
  %v4226 = vunpack.c.l.b16 %v4162
  %v4227 = vunpack.c.l.b16 %v4163
  %v4228 = vunpack.c.l.b16 %v4164
  %v4229 = vunpack.c.l.b16 %v4165
  %v4230 = vunpack.c.l.b16 %v4166
  %v4231 = vunpack.c.l.b16 %v4167
  %v4232 = vunpack.c.l.b16 %v4168
  %v4233 = vunpack.c.l.b16 %v4169
  %v4234 = vunpack.c.l.b16 %v4170
  %v4235 = vunpack.c.l.b16 %v4171
  %v4236 = vunpack.c.l.b16 %v4172
  %v4237 = vunpack.c.l.b16 %v4173
  %v4238 = vunpack.c.l.b16 %v4174
  %v4239 = vunpack.c.l.b16 %v4175
  %v4240 = vunpack.c.l.b16 %v4176
  %v4241 = vunpack.c.l.b16 %v4177
  %v4242 = vunpack.c.l.b16 %v4178
  %v4243 = vunpack.c.l.b16 %v4179
  %v4244 = vunpack.c.l.b16 %v4180
  %v4245 = vunpack.c.l.b16 %v4181
  %v4246 = vunpack.c.l.b16 %v4182
  %v4247 = vunpack.c.l.b16 %v4183
  %v4248 = vunpack.c.l.b16 %v4184
  %v4249 = vunpack.c.l.b16 %v4185
  %v4250 = vunpack.c.l.b16 %v4186
  %v4251 = vunpack.c.l.b16 %v4187
  %v4252 = vunpack.c.l.b16 %v4188
  %v4253 = vrot.slane %v4222, 7
  %vm4254 = vcmask 1041409
  %v4255 = vsel %vm4254, %v4253, %v4221
  %v4256 = vrot.slane %v4223, 6
  %vm4257 = vcmask 1042434
  %v4258 = vsel %vm4257, %v4256, %v4255
  %v4259 = vrot.slane %v4224, 5
  %vm4260 = vcmask 1043459
  %v4261 = vsel %vm4260, %v4259, %v4258
  %v4262 = vrot.slane %v4225, 4
  %vm4263 = vcmask 1044484
  %v4264 = vsel %vm4263, %v4262, %v4261
  %v4265 = vrot.slane %v4226, 3
  %vm4266 = vcmask 1045509
  %v4267 = vsel %vm4266, %v4265, %v4264
  %v4268 = vrot.slane %v4227, 2
  %vm4269 = vcmask 1046534
  %v4270 = vsel %vm4269, %v4268, %v4267
  %v4271 = vrot.slane %v4228, 1
  %vm4272 = vcmask 1047559
  %v4273 = vsel %vm4272, %v4271, %v4270
  %v4274 = vrot.slane %v4230, 7
  %v4275 = vsel %vm4254, %v4274, %v4229
  %v4276 = vrot.slane %v4231, 6
  %v4277 = vsel %vm4257, %v4276, %v4275
  %v4278 = vrot.slane %v4232, 5
  %v4279 = vsel %vm4260, %v4278, %v4277
  %v4280 = vrot.slane %v4233, 4
  %v4281 = vsel %vm4263, %v4280, %v4279
  %v4282 = vrot.slane %v4234, 3
  %v4283 = vsel %vm4266, %v4282, %v4281
  %v4284 = vrot.slane %v4235, 2
  %v4285 = vsel %vm4269, %v4284, %v4283
  %v4286 = vrot.slane %v4236, 1
  %v4287 = vsel %vm4272, %v4286, %v4285
  %v4288 = vrot.slane %v4238, 7
  %v4289 = vsel %vm4254, %v4288, %v4237
  %v4290 = vrot.slane %v4239, 6
  %v4291 = vsel %vm4257, %v4290, %v4289
  %v4292 = vrot.slane %v4240, 5
  %v4293 = vsel %vm4260, %v4292, %v4291
  %v4294 = vrot.slane %v4241, 4
  %v4295 = vsel %vm4263, %v4294, %v4293
  %v4296 = vrot.slane %v4242, 3
  %v4297 = vsel %vm4266, %v4296, %v4295
  %v4298 = vrot.slane %v4243, 2
  %v4299 = vsel %vm4269, %v4298, %v4297
  %v4300 = vrot.slane %v4244, 1
  %v4301 = vsel %vm4272, %v4300, %v4299
  %v4302 = vrot.slane %v4246, 7
  %v4303 = vsel %vm4254, %v4302, %v4245
  %v4304 = vrot.slane %v4247, 6
  %v4305 = vsel %vm4257, %v4304, %v4303
  %v4306 = vrot.slane %v4248, 5
  %v4307 = vsel %vm4260, %v4306, %v4305
  %v4308 = vrot.slane %v4249, 4
  %v4309 = vsel %vm4263, %v4308, %v4307
  %v4310 = vrot.slane %v4250, 3
  %v4311 = vsel %vm4266, %v4310, %v4309
  %v4312 = vrot.slane %v4251, 2
  %v4313 = vsel %vm4269, %v4312, %v4311
  %v4314 = vrot.slane %v4252, 1
  %v4315 = vsel %vm4272, %v4314, %v4313
  %v4316 = vpack.c.b16 %v4287, %v4273
  %v4317 = vpack.c.b16 %v4315, %v4301
  %v4336 = vunpack.c.l.b16 %v4139
  %v4337 = vunpack.c.l.b16 %v4140
  %v4338 = vunpack.c.l.b16 %v4141
  %v4339 = vunpack.c.l.b16 %v4142
  %v4340 = vunpack.c.l.b16 %v4143
  %v4341 = vunpack.c.l.b16 %v4144
  %v4342 = vunpack.c.l.b16 %v4145
  %v4343 = vunpack.c.l.b16 %v4146
  %v4344 = vunpack.c.l.b16 %v4147
  %v4345 = vunpack.c.l.b16 %v4148
  %v4346 = vunpack.c.l.b16 %v4149
  %v4347 = vunpack.c.l.b16 %v4150
  %v4348 = vunpack.c.l.b16 %v4151
  %v4349 = vunpack.c.l.b16 %v4152
  %v4350 = vunpack.c.l.b16 %v4153
  %v4351 = vunpack.c.l.b16 %v4154
  %v4352 = vpack.c.b16 %v4337, %v4336
  %v4353 = vpack.c.b16 %v4339, %v4338
  %v4354 = vpack.c.b16 %v4341, %v4340
  %v4355 = vpack.c.b16 %v4343, %v4342
  %v4356 = vpack.c.b16 %v4345, %v4344
  %v4357 = vpack.c.b16 %v4347, %v4346
  %v4358 = vpack.c.b16 %v4349, %v4348
  %v4359 = vpack.c.b16 %v4351, %v4350
  %4368 = vmatprep.subr.bf16.mxu0 0
  %4369 = vmatpush1.bf16.msra.mxu0 %v4359
  %4370 = vmatprep.subr.bf16.mxu0 0
  %4371 = vmatpush1.bf16.msra.mxu0 %v4358
  %4372 = vmatprep.subr.bf16.mxu0 0
  %4373 = vmatpush1.bf16.msra.mxu0 %v4357
  %4374 = vmatprep.subr.bf16.mxu0 0
  %4375 = vmatpush1.bf16.msra.mxu0 %v4356
  %4376 = vmatprep.subr.bf16.mxu0 0
  %4377 = vmatpush1.bf16.msra.mxu0 %v4355
  %4378 = vmatprep.subr.bf16.mxu0 0
  %4379 = vmatpush1.bf16.msra.mxu0 %v4354
  %4380 = vmatprep.subr.bf16.mxu0 0
  %4381 = vmatpush1.bf16.msra.mxu0 %v4353
  %4382 = vmatprep.subr.bf16.mxu0 0
  %4383 = vmatpush1.bf16.msra.mxu0 %v4352
  %4384 = vmatprep.subr.bf16.mxu0 0
  %4385 = vmatpush2.bf16.msra.mxu0 0
  %4386 = vmatprep.subr.bf16.mxu0 0
  %4387 = vmatpush2.bf16.msra.mxu0 0
  %4388 = vmatprep.subr.bf16.mxu0 0
  %4389 = vmatpush2.bf16.msra.mxu0 0
  %4390 = vmatprep.subr.bf16.mxu0 0
  %4391 = vmatpush2.bf16.msra.mxu0 0
  %4392 = vmatprep.subr.bf16.mxu0 0
  %4393 = vmatpush2.bf16.msra.mxu0 0
  %4394 = vmatprep.subr.bf16.mxu0 0
  %4395 = vmatpush2.bf16.msra.mxu0 0
  %4396 = vmatprep.subr.bf16.mxu0 0
  %4397 = vmatpush2.bf16.msra.mxu0 0
  %4398 = vmatprep.subr.bf16.mxu0 0
  %4399 = vmatpush2.bf16.msra.mxu0 0
  %4400 = vmatprep.mubr.bf16.mxu0 0
  %4401 = vmatmul.mubr.bf16.gmra.mxu0 %v4316
  %v4402 = vpop.f32.mrf.mxu0
  %v4403 = vadd.f32 0.0, %v4402
  %v4404 = vpop.f32.mrf.mxu0
  %v4405 = vpop.f32.mrf.mxu0
  %v4406 = vadd.f32 0.0, %v4405
  %v4407 = vpop.f32.mrf.mxu0
  %4408 = vmatprep.mubr.bf16.mxu0 0
  %4409 = vmatmul.mubr.bf16.gmra.mxu0 %v4317
  %v4410 = vpop.f32.mrf.mxu0
  %v4411 = vadd.f32 0.0, %v4410
  %v4412 = vpop.f32.mrf.mxu0
  %v4413 = vpop.f32.mrf.mxu0
  %v4414 = vadd.f32 0.0, %v4413
  %v4415 = vpop.f32.mrf.mxu0
  %4416 = vdwg.mxu0
  %v4417 = vlaneseq
  %v4418 = vshrl.u32 %v4417, 7
  %v4419 = vsub.s32 0, %v4418
  %v4420 = vrot.slane %v4155, %v4419
  %v4421 = vadd.f32 %v4403, %v4420
  %v4422 = vadd.f32 %v4406, %v4420
  %v4423 = vadd.f32 %v4411, %v4420
  %v4424 = vadd.f32 %v4414, %v4420
  %v4425 = vlaneseq
  %v4426 = vshrl.u32 %v4425, 7
  %v4427 = vsub.s32 1, %v4426
  %v4428 = vrot.slane %v4155, %v4427
  %4430 = vrot.lane.b32.xlu0 %v4428, 8
  %v4431 = vpop.permute.xlu0 %4430
  %v4433 = vadd.f32 %v4403, %v4431
  %v4434 = vadd.f32 %v4406, %v4431
  %v4435 = vadd.f32 %v4411, %v4431
  %v4436 = vadd.f32 %v4414, %v4431
  %v4437 = vpack.c.bf16 %v4422, %v4421
  %v4438 = vpack.c.bf16 %v4424, %v4423
  %v4439 = vpack.c.bf16 %v4434, %v4433
  %v4440 = vpack.c.bf16 %v4436, %v4435
  %v4443 = vcombine.high %v4439, %v4439
  %v4445 = vunpack.c.l.s4 1966171168
  %v4446 = vunpack.c.0.s8 %v4445
  %v4447 = vlaneseq
  %v4448 = vshrl.u32 %v4447, 7
  %v4449 = vsub.s32 %v4446, %v4448
  %v4450 = vrot.slane %v4439, %v4449
  %v4452 = vunpack.c.l.s4 1966171168
  %v4453 = vunpack.c.0.s8 %v4452
  %v4454 = vlaneseq
  %v4455 = vshrl.u32 %v4454, 7
  %v4456 = vsub.s32 %v4453, %v4455
  %v4457 = vrot.slane %v4443, %v4456
  %v4458 = vcombine.high %v4450, %v4450
  %v4459 = vcombine.high %v4457, %v4457
  %v4461 = vunpack.c.l.s4 1966171168
  %v4462 = vunpack.c.0.s8 %v4461
  %v4463 = vlaneseq
  %v4464 = vshrl.u32 %v4463, 7
  %v4465 = vsub.s32 %v4462, %v4464
  %v4466 = vrot.slane %v4450, %v4465
  %v4468 = vunpack.c.l.s4 1966171168
  %v4469 = vunpack.c.0.s8 %v4468
  %v4470 = vlaneseq
  %v4471 = vshrl.u32 %v4470, 7
  %v4472 = vsub.s32 %v4469, %v4471
  %v4473 = vrot.slane %v4457, %v4472
  %v4475 = vunpack.c.l.s4 1966171168
  %v4476 = vunpack.c.0.s8 %v4475
  %v4477 = vlaneseq
  %v4478 = vshrl.u32 %v4477, 7
  %v4479 = vsub.s32 %v4476, %v4478
  %v4480 = vrot.slane %v4458, %v4479
  %v4482 = vunpack.c.l.s4 1966171168
  %v4483 = vunpack.c.0.s8 %v4482
  %v4484 = vlaneseq
  %v4485 = vshrl.u32 %v4484, 7
  %v4486 = vsub.s32 %v4483, %v4485
  %v4487 = vrot.slane %v4459, %v4486
  %v4488 = vcombine.high %v4466, %v4466
  %v4489 = vcombine.high %v4473, %v4473
  %v4490 = vcombine.high %v4480, %v4480
  %v4491 = vcombine.high %v4487, %v4487
  %v4492 = vcombine.high %v4440, %v4440
  %v4494 = vunpack.c.l.s4 1966171168
  %v4495 = vunpack.c.0.s8 %v4494
  %v4496 = vlaneseq
  %v4497 = vshrl.u32 %v4496, 7
  %v4498 = vsub.s32 %v4495, %v4497
  %v4499 = vrot.slane %v4440, %v4498
  %v4501 = vunpack.c.l.s4 1966171168
  %v4502 = vunpack.c.0.s8 %v4501
  %v4503 = vlaneseq
  %v4504 = vshrl.u32 %v4503, 7
  %v4505 = vsub.s32 %v4502, %v4504
  %v4506 = vrot.slane %v4492, %v4505
  %v4507 = vcombine.high %v4499, %v4499
  %v4508 = vcombine.high %v4506, %v4506
  %v4510 = vunpack.c.l.s4 1966171168
  %v4511 = vunpack.c.0.s8 %v4510
  %v4512 = vlaneseq
  %v4513 = vshrl.u32 %v4512, 7
  %v4514 = vsub.s32 %v4511, %v4513
  %v4515 = vrot.slane %v4499, %v4514
  %v4517 = vunpack.c.l.s4 1966171168
  %v4518 = vunpack.c.0.s8 %v4517
  %v4519 = vlaneseq
  %v4520 = vshrl.u32 %v4519, 7
  %v4521 = vsub.s32 %v4518, %v4520
  %v4522 = vrot.slane %v4506, %v4521
  %v4524 = vunpack.c.l.s4 1966171168
  %v4525 = vunpack.c.0.s8 %v4524
  %v4526 = vlaneseq
  %v4527 = vshrl.u32 %v4526, 7
  %v4528 = vsub.s32 %v4525, %v4527
  %v4529 = vrot.slane %v4507, %v4528
  %v4531 = vunpack.c.l.s4 1966171168
  %v4532 = vunpack.c.0.s8 %v4531
  %v4533 = vlaneseq
  %v4534 = vshrl.u32 %v4533, 7
  %v4535 = vsub.s32 %v4532, %v4534
  %v4536 = vrot.slane %v4508, %v4535
  %v4537 = vcombine.high %v4515, %v4515
  %v4538 = vcombine.high %v4522, %v4522
  %v4539 = vcombine.high %v4529, %v4529
  %v4540 = vcombine.high %v4536, %v4536
  %v4541 = vunpack.i.l.s16 %v4466
  %v4542 = vunpack.i.h.s16 %v4466
  %v4543 = vunpack.i.l.s16 %v4480
  %v4544 = vunpack.i.h.s16 %v4480
  %v4545 = vunpack.i.l.s16 %v4488
  %v4546 = vunpack.i.h.s16 %v4488
  %v4547 = vunpack.i.l.s16 %v4490
  %v4548 = vunpack.i.h.s16 %v4490
  %v4549 = vunpack.i.l.s16 %v4473
  %v4550 = vunpack.i.h.s16 %v4473
  %v4551 = vunpack.i.l.s16 %v4487
  %v4552 = vunpack.i.h.s16 %v4487
  %v4553 = vunpack.i.l.s16 %v4489
  %v4554 = vunpack.i.h.s16 %v4489
  %v4555 = vunpack.i.l.s16 %v4491
  %v4556 = vunpack.i.h.s16 %v4491
  %v4557 = vunpack.i.l.s16 %v4515
  %v4558 = vunpack.i.h.s16 %v4515
  %v4559 = vunpack.i.l.s16 %v4529
  %v4560 = vunpack.i.h.s16 %v4529
  %v4561 = vunpack.i.l.s16 %v4537
  %v4562 = vunpack.i.h.s16 %v4537
  %v4563 = vunpack.i.l.s16 %v4539
  %v4564 = vunpack.i.h.s16 %v4539
  %v4565 = vunpack.i.l.s16 %v4522
  %v4566 = vunpack.i.h.s16 %v4522
  %v4567 = vunpack.i.l.s16 %v4536
  %v4568 = vunpack.i.h.s16 %v4536
  %v4569 = vunpack.i.l.s16 %v4538
  %v4570 = vunpack.i.h.s16 %v4538
  %v4571 = vunpack.i.l.s16 %v4540
  %v4572 = vunpack.i.h.s16 %v4540
  %v4573 = vpack.i.b16 %v4541, %v4541
  %v4574 = vpack.i.b16 %v4542, %v4542
  %v4575 = vpack.i.b16 %v4543, %v4543
  %v4576 = vpack.i.b16 %v4544, %v4544
  %v4577 = vpack.i.b16 %v4545, %v4545
  %v4578 = vpack.i.b16 %v4546, %v4546
  %v4579 = vpack.i.b16 %v4547, %v4547
  %v4580 = vpack.i.b16 %v4548, %v4548
  %v4581 = vpack.i.b16 %v4549, %v4549
  %v4582 = vpack.i.b16 %v4550, %v4550
  %v4583 = vpack.i.b16 %v4551, %v4551
  %v4584 = vpack.i.b16 %v4552, %v4552
  %v4585 = vpack.i.b16 %v4553, %v4553
  %v4586 = vpack.i.b16 %v4554, %v4554
  %v4587 = vpack.i.b16 %v4555, %v4555
  %v4588 = vpack.i.b16 %v4556, %v4556
  %v4589 = vpack.i.b16 %v4557, %v4557
  %v4590 = vpack.i.b16 %v4558, %v4558
  %v4591 = vpack.i.b16 %v4559, %v4559
  %v4592 = vpack.i.b16 %v4560, %v4560
  %v4593 = vpack.i.b16 %v4561, %v4561
  %v4594 = vpack.i.b16 %v4562, %v4562
  %v4595 = vpack.i.b16 %v4563, %v4563
  %v4596 = vpack.i.b16 %v4564, %v4564
  %v4597 = vpack.i.b16 %v4565, %v4565
  %v4598 = vpack.i.b16 %v4566, %v4566
  %v4599 = vpack.i.b16 %v4567, %v4567
  %v4600 = vpack.i.b16 %v4568, %v4568
  %v4601 = vpack.i.b16 %v4569, %v4569
  %v4602 = vpack.i.b16 %v4570, %v4570
  %v4603 = vpack.i.b16 %v4571, %v4571
  %v4604 = vpack.i.b16 %v4572, %v4572
  %v4605 = vlaneseq
  %v4606 = vshrl.u32 %v4605, 7
  %v4607 = vsub.s32 0, %v4606
  %v4608 = vrot.slane %v4573, %v4607
  %v4609 = vlaneseq
  %v4610 = vshrl.u32 %v4609, 7
  %v4611 = vsub.s32 0, %v4610
  %v4612 = vrot.slane %v4574, %v4611
  %v4613 = vlaneseq
  %v4614 = vshrl.u32 %v4613, 7
  %v4615 = vsub.s32 0, %v4614
  %v4616 = vrot.slane %v4575, %v4615
  %v4617 = vlaneseq
  %v4618 = vshrl.u32 %v4617, 7
  %v4619 = vsub.s32 0, %v4618
  %v4620 = vrot.slane %v4576, %v4619
  %v4621 = vlaneseq
  %v4622 = vshrl.u32 %v4621, 7
  %v4623 = vsub.s32 0, %v4622
  %v4624 = vrot.slane %v4577, %v4623
  %v4625 = vlaneseq
  %v4626 = vshrl.u32 %v4625, 7
  %v4627 = vsub.s32 0, %v4626
  %v4628 = vrot.slane %v4578, %v4627
  %v4629 = vlaneseq
  %v4630 = vshrl.u32 %v4629, 7
  %v4631 = vsub.s32 0, %v4630
  %v4632 = vrot.slane %v4579, %v4631
  %v4633 = vlaneseq
  %v4634 = vshrl.u32 %v4633, 7
  %v4635 = vsub.s32 0, %v4634
  %v4636 = vrot.slane %v4580, %v4635
  %v4637 = vlaneseq
  %v4638 = vshrl.u32 %v4637, 7
  %v4639 = vsub.s32 0, %v4638
  %v4640 = vrot.slane %v4581, %v4639
  %v4641 = vlaneseq
  %v4642 = vshrl.u32 %v4641, 7
  %v4643 = vsub.s32 0, %v4642
  %v4644 = vrot.slane %v4582, %v4643
  %v4645 = vlaneseq
  %v4646 = vshrl.u32 %v4645, 7
  %v4647 = vsub.s32 0, %v4646
  %v4648 = vrot.slane %v4583, %v4647
  %v4649 = vlaneseq
  %v4650 = vshrl.u32 %v4649, 7
  %v4651 = vsub.s32 0, %v4650
  %v4652 = vrot.slane %v4584, %v4651
  %v4653 = vlaneseq
  %v4654 = vshrl.u32 %v4653, 7
  %v4655 = vsub.s32 0, %v4654
  %v4656 = vrot.slane %v4585, %v4655
  %v4657 = vlaneseq
  %v4658 = vshrl.u32 %v4657, 7
  %v4659 = vsub.s32 0, %v4658
  %v4660 = vrot.slane %v4586, %v4659
  %v4661 = vlaneseq
  %v4662 = vshrl.u32 %v4661, 7
  %v4663 = vsub.s32 0, %v4662
  %v4664 = vrot.slane %v4587, %v4663
  %v4665 = vlaneseq
  %v4666 = vshrl.u32 %v4665, 7
  %v4667 = vsub.s32 0, %v4666
  %v4668 = vrot.slane %v4588, %v4667
  %v4669 = vlaneseq
  %v4670 = vshrl.u32 %v4669, 7
  %v4671 = vsub.s32 0, %v4670
  %v4672 = vrot.slane %v4589, %v4671
  %v4673 = vlaneseq
  %v4674 = vshrl.u32 %v4673, 7
  %v4675 = vsub.s32 0, %v4674
  %v4676 = vrot.slane %v4590, %v4675
  %v4677 = vlaneseq
  %v4678 = vshrl.u32 %v4677, 7
  %v4679 = vsub.s32 0, %v4678
  %v4680 = vrot.slane %v4591, %v4679
  %v4681 = vlaneseq
  %v4682 = vshrl.u32 %v4681, 7
  %v4683 = vsub.s32 0, %v4682
  %v4684 = vrot.slane %v4592, %v4683
  %v4685 = vlaneseq
  %v4686 = vshrl.u32 %v4685, 7
  %v4687 = vsub.s32 0, %v4686
  %v4688 = vrot.slane %v4593, %v4687
  %v4689 = vlaneseq
  %v4690 = vshrl.u32 %v4689, 7
  %v4691 = vsub.s32 0, %v4690
  %v4692 = vrot.slane %v4594, %v4691
  %v4693 = vlaneseq
  %v4694 = vshrl.u32 %v4693, 7
  %v4695 = vsub.s32 0, %v4694
  %v4696 = vrot.slane %v4595, %v4695
  %v4697 = vlaneseq
  %v4698 = vshrl.u32 %v4697, 7
  %v4699 = vsub.s32 0, %v4698
  %v4700 = vrot.slane %v4596, %v4699
  %v4701 = vlaneseq
  %v4702 = vshrl.u32 %v4701, 7
  %v4703 = vsub.s32 0, %v4702
  %v4704 = vrot.slane %v4597, %v4703
  %v4705 = vlaneseq
  %v4706 = vshrl.u32 %v4705, 7
  %v4707 = vsub.s32 0, %v4706
  %v4708 = vrot.slane %v4598, %v4707
  %v4709 = vlaneseq
  %v4710 = vshrl.u32 %v4709, 7
  %v4711 = vsub.s32 0, %v4710
  %v4712 = vrot.slane %v4599, %v4711
  %v4713 = vlaneseq
  %v4714 = vshrl.u32 %v4713, 7
  %v4715 = vsub.s32 0, %v4714
  %v4716 = vrot.slane %v4600, %v4715
  %v4717 = vlaneseq
  %v4718 = vshrl.u32 %v4717, 7
  %v4719 = vsub.s32 0, %v4718
  %v4720 = vrot.slane %v4601, %v4719
  %v4721 = vlaneseq
  %v4722 = vshrl.u32 %v4721, 7
  %v4723 = vsub.s32 0, %v4722
  %v4724 = vrot.slane %v4602, %v4723
  %v4725 = vlaneseq
  %v4726 = vshrl.u32 %v4725, 7
  %v4727 = vsub.s32 0, %v4726
  %v4728 = vrot.slane %v4603, %v4727
  %v4729 = vlaneseq
  %v4730 = vshrl.u32 %v4729, 7
  %v4731 = vsub.s32 0, %v4730
  %v4732 = vrot.slane %v4604, %v4731
  %v4734 = vpack.i.b16 %v4608, %v4608
  %v4736 = vlaneseq
  %v4737 = vshrl.u32 %v4736, 7
  %v4738 = vsub.s32 0, %v4737
  %v4739 = vrot.slane %v4734, %v4738
  %v4741 = vpack.i.b16 %v4612, %v4612
  %v4743 = vlaneseq
  %v4744 = vshrl.u32 %v4743, 7
  %v4745 = vsub.s32 0, %v4744
  %v4746 = vrot.slane %v4741, %v4745
  %v4748 = vpack.i.b16 %v4616, %v4616
  %v4750 = vlaneseq
  %v4751 = vshrl.u32 %v4750, 7
  %v4752 = vsub.s32 0, %v4751
  %v4753 = vrot.slane %v4748, %v4752
  %v4755 = vpack.i.b16 %v4620, %v4620
  %v4757 = vlaneseq
  %v4758 = vshrl.u32 %v4757, 7
  %v4759 = vsub.s32 0, %v4758
  %v4760 = vrot.slane %v4755, %v4759
  %v4762 = vpack.i.b16 %v4624, %v4624
  %v4764 = vlaneseq
  %v4765 = vshrl.u32 %v4764, 7
  %v4766 = vsub.s32 0, %v4765
  %v4767 = vrot.slane %v4762, %v4766
  %v4769 = vpack.i.b16 %v4628, %v4628
  %v4771 = vlaneseq
  %v4772 = vshrl.u32 %v4771, 7
  %v4773 = vsub.s32 0, %v4772
  %v4774 = vrot.slane %v4769, %v4773
  %v4776 = vpack.i.b16 %v4632, %v4632
  %v4778 = vlaneseq
  %v4779 = vshrl.u32 %v4778, 7
  %v4780 = vsub.s32 0, %v4779
  %v4781 = vrot.slane %v4776, %v4780
  %v4783 = vpack.i.b16 %v4636, %v4636
  %v4785 = vlaneseq
  %v4786 = vshrl.u32 %v4785, 7
  %v4787 = vsub.s32 0, %v4786
  %v4788 = vrot.slane %v4783, %v4787
  %v4790 = vpack.i.b16 %v4640, %v4640
  %v4792 = vlaneseq
  %v4793 = vshrl.u32 %v4792, 7
  %v4794 = vsub.s32 0, %v4793
  %v4795 = vrot.slane %v4790, %v4794
  %v4797 = vpack.i.b16 %v4644, %v4644
  %v4799 = vlaneseq
  %v4800 = vshrl.u32 %v4799, 7
  %v4801 = vsub.s32 0, %v4800
  %v4802 = vrot.slane %v4797, %v4801
  %v4804 = vpack.i.b16 %v4648, %v4648
  %v4806 = vlaneseq
  %v4807 = vshrl.u32 %v4806, 7
  %v4808 = vsub.s32 0, %v4807
  %v4809 = vrot.slane %v4804, %v4808
  %v4811 = vpack.i.b16 %v4652, %v4652
  %v4813 = vlaneseq
  %v4814 = vshrl.u32 %v4813, 7
  %v4815 = vsub.s32 0, %v4814
  %v4816 = vrot.slane %v4811, %v4815
  %v4818 = vpack.i.b16 %v4656, %v4656
  %v4820 = vlaneseq
  %v4821 = vshrl.u32 %v4820, 7
  %v4822 = vsub.s32 0, %v4821
  %v4823 = vrot.slane %v4818, %v4822
  %v4825 = vpack.i.b16 %v4660, %v4660
  %v4827 = vlaneseq
  %v4828 = vshrl.u32 %v4827, 7
  %v4829 = vsub.s32 0, %v4828
  %v4830 = vrot.slane %v4825, %v4829
  %v4832 = vpack.i.b16 %v4664, %v4664
  %v4834 = vlaneseq
  %v4835 = vshrl.u32 %v4834, 7
  %v4836 = vsub.s32 0, %v4835
  %v4837 = vrot.slane %v4832, %v4836
  %v4839 = vpack.i.b16 %v4668, %v4668
  %v4841 = vlaneseq
  %v4842 = vshrl.u32 %v4841, 7
  %v4843 = vsub.s32 0, %v4842
  %v4844 = vrot.slane %v4839, %v4843
  %v4846 = vpack.i.b16 %v4672, %v4672
  %v4848 = vlaneseq
  %v4849 = vshrl.u32 %v4848, 7
  %v4850 = vsub.s32 0, %v4849
  %v4851 = vrot.slane %v4846, %v4850
  %v4853 = vpack.i.b16 %v4676, %v4676
  %v4855 = vlaneseq
  %v4856 = vshrl.u32 %v4855, 7
  %v4857 = vsub.s32 0, %v4856
  %v4858 = vrot.slane %v4853, %v4857
  %v4860 = vpack.i.b16 %v4680, %v4680
  %v4862 = vlaneseq
  %v4863 = vshrl.u32 %v4862, 7
  %v4864 = vsub.s32 0, %v4863
  %v4865 = vrot.slane %v4860, %v4864
  %v4867 = vpack.i.b16 %v4684, %v4684
  %v4869 = vlaneseq
  %v4870 = vshrl.u32 %v4869, 7
  %v4871 = vsub.s32 0, %v4870
  %v4872 = vrot.slane %v4867, %v4871
  %v4874 = vpack.i.b16 %v4688, %v4688
  %v4876 = vlaneseq
  %v4877 = vshrl.u32 %v4876, 7
  %v4878 = vsub.s32 0, %v4877
  %v4879 = vrot.slane %v4874, %v4878
  %v4881 = vpack.i.b16 %v4692, %v4692
  %v4883 = vlaneseq
  %v4884 = vshrl.u32 %v4883, 7
  %v4885 = vsub.s32 0, %v4884
  %v4886 = vrot.slane %v4881, %v4885
  %v4888 = vpack.i.b16 %v4696, %v4696
  %v4890 = vlaneseq
  %v4891 = vshrl.u32 %v4890, 7
  %v4892 = vsub.s32 0, %v4891
  %v4893 = vrot.slane %v4888, %v4892
  %v4895 = vpack.i.b16 %v4700, %v4700
  %v4897 = vlaneseq
  %v4898 = vshrl.u32 %v4897, 7
  %v4899 = vsub.s32 0, %v4898
  %v4900 = vrot.slane %v4895, %v4899
  %v4902 = vpack.i.b16 %v4704, %v4704
  %v4904 = vlaneseq
  %v4905 = vshrl.u32 %v4904, 7
  %v4906 = vsub.s32 0, %v4905
  %v4907 = vrot.slane %v4902, %v4906
  %v4909 = vpack.i.b16 %v4708, %v4708
  %v4911 = vlaneseq
  %v4912 = vshrl.u32 %v4911, 7
  %v4913 = vsub.s32 0, %v4912
  %v4914 = vrot.slane %v4909, %v4913
  %v4916 = vpack.i.b16 %v4712, %v4712
  %v4918 = vlaneseq
  %v4919 = vshrl.u32 %v4918, 7
  %v4920 = vsub.s32 0, %v4919
  %v4921 = vrot.slane %v4916, %v4920
  %v4923 = vpack.i.b16 %v4716, %v4716
  %v4925 = vlaneseq
  %v4926 = vshrl.u32 %v4925, 7
  %v4927 = vsub.s32 0, %v4926
  %v4928 = vrot.slane %v4923, %v4927
  %v4930 = vpack.i.b16 %v4720, %v4720
  %v4932 = vlaneseq
  %v4933 = vshrl.u32 %v4932, 7
  %v4934 = vsub.s32 0, %v4933
  %v4935 = vrot.slane %v4930, %v4934
  %v4937 = vpack.i.b16 %v4724, %v4724
  %v4939 = vlaneseq
  %v4940 = vshrl.u32 %v4939, 7
  %v4941 = vsub.s32 0, %v4940
  %v4942 = vrot.slane %v4937, %v4941
  %v4944 = vpack.i.b16 %v4728, %v4728
  %v4946 = vlaneseq
  %v4947 = vshrl.u32 %v4946, 7
  %v4948 = vsub.s32 0, %v4947
  %v4949 = vrot.slane %v4944, %v4948
  %v4951 = vpack.i.b16 %v4732, %v4732
  %v4953 = vlaneseq
  %v4954 = vshrl.u32 %v4953, 7
  %v4955 = vsub.s32 0, %v4954
  %v4956 = vrot.slane %v4951, %v4955
  %4959 = vrot.lane.b32.xlu0 %v4437, 8
  %v4960 = vpop.permute.xlu0 %4959
  %4961 = vrot.lane.b32.xlu0 %v4438, 8
  %v4962 = vpop.permute.xlu0 %4961
  %v4965 = vadd.bf16 %v4739, %v4960
  %v4966 = vadd.bf16 %v4739, %v4962
  %v4967 = vadd.bf16 %v4746, %v4960
  %v4968 = vadd.bf16 %v4746, %v4962
  %v4969 = vadd.bf16 %v4753, %v4960
  %v4970 = vadd.bf16 %v4753, %v4962
  %v4971 = vadd.bf16 %v4760, %v4960
  %v4972 = vadd.bf16 %v4760, %v4962
  %v4973 = vadd.bf16 %v4767, %v4960
  %v4974 = vadd.bf16 %v4767, %v4962
  %v4975 = vadd.bf16 %v4774, %v4960
  %v4976 = vadd.bf16 %v4774, %v4962
  %v4977 = vadd.bf16 %v4781, %v4960
  %v4978 = vadd.bf16 %v4781, %v4962
  %v4979 = vadd.bf16 %v4788, %v4960
  %v4980 = vadd.bf16 %v4788, %v4962
  %v4981 = vadd.bf16 %v4795, %v4960
  %v4982 = vadd.bf16 %v4795, %v4962
  %v4983 = vadd.bf16 %v4802, %v4960
  %v4984 = vadd.bf16 %v4802, %v4962
  %v4985 = vadd.bf16 %v4809, %v4960
  %v4986 = vadd.bf16 %v4809, %v4962
  %v4987 = vadd.bf16 %v4816, %v4960
  %v4988 = vadd.bf16 %v4816, %v4962
  %v4989 = vadd.bf16 %v4823, %v4960
  %v4990 = vadd.bf16 %v4823, %v4962
  %v4991 = vadd.bf16 %v4830, %v4960
  %v4992 = vadd.bf16 %v4830, %v4962
  %v4993 = vadd.bf16 %v4837, %v4960
  %v4994 = vadd.bf16 %v4837, %v4962
  %v4995 = vadd.bf16 %v4844, %v4960
  %v4996 = vadd.bf16 %v4844, %v4962
  %v4997 = vadd.bf16 %v4851, %v4960
  %v4998 = vadd.bf16 %v4851, %v4962
  %v4999 = vadd.bf16 %v4858, %v4960
  %v5000 = vadd.bf16 %v4858, %v4962
  %v5001 = vadd.bf16 %v4865, %v4960
  %v5002 = vadd.bf16 %v4865, %v4962
  %v5003 = vadd.bf16 %v4872, %v4960
  %v5004 = vadd.bf16 %v4872, %v4962
  %v5005 = vadd.bf16 %v4879, %v4960
  %v5006 = vadd.bf16 %v4879, %v4962
  %v5007 = vadd.bf16 %v4886, %v4960
  %v5008 = vadd.bf16 %v4886, %v4962
  %v5009 = vadd.bf16 %v4893, %v4960
  %v5010 = vadd.bf16 %v4893, %v4962
  %v5011 = vadd.bf16 %v4900, %v4960
  %v5012 = vadd.bf16 %v4900, %v4962
  %v5013 = vadd.bf16 %v4907, %v4960
  %v5014 = vadd.bf16 %v4907, %v4962
  %v5015 = vadd.bf16 %v4914, %v4960
  %v5016 = vadd.bf16 %v4914, %v4962
  %v5017 = vadd.bf16 %v4921, %v4960
  %v5018 = vadd.bf16 %v4921, %v4962
  %v5019 = vadd.bf16 %v4928, %v4960
  %v5020 = vadd.bf16 %v4928, %v4962
  %v5021 = vadd.bf16 %v4935, %v4960
  %v5022 = vadd.bf16 %v4935, %v4962
  %v5023 = vadd.bf16 %v4942, %v4960
  %v5024 = vadd.bf16 %v4942, %v4962
  %v5025 = vadd.bf16 %v4949, %v4960
  %v5026 = vadd.bf16 %v4949, %v4962
  %v5027 = vadd.bf16 %v4956, %v4960
  %v5028 = vadd.bf16 %v4956, %v4962
  %v5029 = vmul.bf16 %v4965, 1045249613
  %v5030 = vmul.bf16 %v4966, 1045249613
  %v5031 = vmul.bf16 %v4967, 1045249613
  %v5032 = vmul.bf16 %v4968, 1045249613
  %v5033 = vmul.bf16 %v4969, 1045249613
  %v5034 = vmul.bf16 %v4970, 1045249613
  %v5035 = vmul.bf16 %v4971, 1045249613
  %v5036 = vmul.bf16 %v4972, 1045249613
  %v5037 = vmul.bf16 %v4973, 1045249613
  %v5038 = vmul.bf16 %v4974, 1045249613
  %v5039 = vmul.bf16 %v4975, 1045249613
  %v5040 = vmul.bf16 %v4976, 1045249613
  %v5041 = vmul.bf16 %v4977, 1045249613
  %v5042 = vmul.bf16 %v4978, 1045249613
  %v5043 = vmul.bf16 %v4979, 1045249613
  %v5044 = vmul.bf16 %v4980, 1045249613
  %v5045 = vmul.bf16 %v4981, 1045249613
  %v5046 = vmul.bf16 %v4982, 1045249613
  %v5047 = vmul.bf16 %v4983, 1045249613
  %v5048 = vmul.bf16 %v4984, 1045249613
  %v5049 = vmul.bf16 %v4985, 1045249613
  %v5050 = vmul.bf16 %v4986, 1045249613
  %v5051 = vmul.bf16 %v4987, 1045249613
  %v5052 = vmul.bf16 %v4988, 1045249613
  %v5053 = vmul.bf16 %v4989, 1045249613
  %v5054 = vmul.bf16 %v4990, 1045249613
  %v5055 = vmul.bf16 %v4991, 1045249613
  %v5056 = vmul.bf16 %v4992, 1045249613
  %v5057 = vmul.bf16 %v4993, 1045249613
  %v5058 = vmul.bf16 %v4994, 1045249613
  %v5059 = vmul.bf16 %v4995, 1045249613
  %v5060 = vmul.bf16 %v4996, 1045249613
  %v5061 = vmul.bf16 %v4997, 1045249613
  %v5062 = vmul.bf16 %v4998, 1045249613
  %v5063 = vmul.bf16 %v4999, 1045249613
  %v5064 = vmul.bf16 %v5000, 1045249613
  %v5065 = vmul.bf16 %v5001, 1045249613
  %v5066 = vmul.bf16 %v5002, 1045249613
  %v5067 = vmul.bf16 %v5003, 1045249613
  %v5068 = vmul.bf16 %v5004, 1045249613
  %v5069 = vmul.bf16 %v5005, 1045249613
  %v5070 = vmul.bf16 %v5006, 1045249613
  %v5071 = vmul.bf16 %v5007, 1045249613
  %v5072 = vmul.bf16 %v5008, 1045249613
  %v5073 = vmul.bf16 %v5009, 1045249613
  %v5074 = vmul.bf16 %v5010, 1045249613
  %v5075 = vmul.bf16 %v5011, 1045249613
  %v5076 = vmul.bf16 %v5012, 1045249613
  %v5077 = vmul.bf16 %v5013, 1045249613
  %v5078 = vmul.bf16 %v5014, 1045249613
  %v5079 = vmul.bf16 %v5015, 1045249613
  %v5080 = vmul.bf16 %v5016, 1045249613
  %v5081 = vmul.bf16 %v5017, 1045249613
  %v5082 = vmul.bf16 %v5018, 1045249613
  %v5083 = vmul.bf16 %v5019, 1045249613
  %v5084 = vmul.bf16 %v5020, 1045249613
  %v5085 = vmul.bf16 %v5021, 1045249613
  %v5086 = vmul.bf16 %v5022, 1045249613
  %v5087 = vmul.bf16 %v5023, 1045249613
  %v5088 = vmul.bf16 %v5024, 1045249613
  %v5089 = vmul.bf16 %v5025, 1045249613
  %v5090 = vmul.bf16 %v5026, 1045249613
  %v5091 = vmul.bf16 %v5027, 1045249613
  %v5092 = vmul.bf16 %v5028, 1045249613
  %v5093 = vmax.bf16 %v4965, %v5029
  %v5094 = vmax.bf16 %v4966, %v5030
  %v5095 = vmax.bf16 %v4967, %v5031
  %v5096 = vmax.bf16 %v4968, %v5032
  %v5097 = vmax.bf16 %v4969, %v5033
  %v5098 = vmax.bf16 %v4970, %v5034
  %v5099 = vmax.bf16 %v4971, %v5035
  %v5100 = vmax.bf16 %v4972, %v5036
  %v5101 = vmax.bf16 %v4973, %v5037
  %v5102 = vmax.bf16 %v4974, %v5038
  %v5103 = vmax.bf16 %v4975, %v5039
  %v5104 = vmax.bf16 %v4976, %v5040
  %v5105 = vmax.bf16 %v4977, %v5041
  %v5106 = vmax.bf16 %v4978, %v5042
  %v5107 = vmax.bf16 %v4979, %v5043
  %v5108 = vmax.bf16 %v4980, %v5044
  %v5109 = vmax.bf16 %v4981, %v5045
  %v5110 = vmax.bf16 %v4982, %v5046
  %v5111 = vmax.bf16 %v4983, %v5047
  %v5112 = vmax.bf16 %v4984, %v5048
  %v5113 = vmax.bf16 %v4985, %v5049
  %v5114 = vmax.bf16 %v4986, %v5050
  %v5115 = vmax.bf16 %v4987, %v5051
  %v5116 = vmax.bf16 %v4988, %v5052
  %v5117 = vmax.bf16 %v4989, %v5053
  %v5118 = vmax.bf16 %v4990, %v5054
  %v5119 = vmax.bf16 %v4991, %v5055
  %v5120 = vmax.bf16 %v4992, %v5056
  %v5121 = vmax.bf16 %v4993, %v5057
  %v5122 = vmax.bf16 %v4994, %v5058
  %v5123 = vmax.bf16 %v4995, %v5059
  %v5124 = vmax.bf16 %v4996, %v5060
  %v5125 = vmax.bf16 %v4997, %v5061
  %v5126 = vmax.bf16 %v4998, %v5062
  %v5127 = vmax.bf16 %v4999, %v5063
  %v5128 = vmax.bf16 %v5000, %v5064
  %v5129 = vmax.bf16 %v5001, %v5065
  %v5130 = vmax.bf16 %v5002, %v5066
  %v5131 = vmax.bf16 %v5003, %v5067
  %v5132 = vmax.bf16 %v5004, %v5068
  %v5133 = vmax.bf16 %v5005, %v5069
  %v5134 = vmax.bf16 %v5006, %v5070
  %v5135 = vmax.bf16 %v5007, %v5071
  %v5136 = vmax.bf16 %v5008, %v5072
  %v5137 = vmax.bf16 %v5009, %v5073
  %v5138 = vmax.bf16 %v5010, %v5074
  %v5139 = vmax.bf16 %v5011, %v5075
  %v5140 = vmax.bf16 %v5012, %v5076
  %v5141 = vmax.bf16 %v5013, %v5077
  %v5142 = vmax.bf16 %v5014, %v5078
  %v5143 = vmax.bf16 %v5015, %v5079
  %v5144 = vmax.bf16 %v5016, %v5080
  %v5145 = vmax.bf16 %v5017, %v5081
  %v5146 = vmax.bf16 %v5018, %v5082
  %v5147 = vmax.bf16 %v5019, %v5083
  %v5148 = vmax.bf16 %v5020, %v5084
  %v5149 = vmax.bf16 %v5021, %v5085
  %v5150 = vmax.bf16 %v5022, %v5086
  %v5151 = vmax.bf16 %v5023, %v5087
  %v5152 = vmax.bf16 %v5024, %v5088
  %v5153 = vmax.bf16 %v5025, %v5089
  %v5154 = vmax.bf16 %v5026, %v5090
  %v5155 = vmax.bf16 %v5027, %v5091
  %v5156 = vmax.bf16 %v5028, %v5092
  %5221 = vrot.lane.b32.xlu0 %v5093, 120
  %v5222 = vpop.permute.xlu0 %5221
  %5223 = vrot.lane.b32.xlu0 %v5094, 120
  %v5224 = vpop.permute.xlu0 %5223
  %5225 = vrot.lane.b32.xlu0 %v5095, 120
  %v5226 = vpop.permute.xlu0 %5225
  %5227 = vrot.lane.b32.xlu0 %v5096, 120
  %v5228 = vpop.permute.xlu0 %5227
  %5229 = vrot.lane.b32.xlu0 %v5097, 120
  %v5230 = vpop.permute.xlu0 %5229
  %5231 = vrot.lane.b32.xlu0 %v5098, 120
  %v5232 = vpop.permute.xlu0 %5231
  %5233 = vrot.lane.b32.xlu0 %v5099, 120
  %v5234 = vpop.permute.xlu0 %5233
  %5235 = vrot.lane.b32.xlu0 %v5100, 120
  %v5236 = vpop.permute.xlu0 %5235
  %5237 = vrot.lane.b32.xlu0 %v5101, 120
  %v5238 = vpop.permute.xlu0 %5237
  %5239 = vrot.lane.b32.xlu0 %v5102, 120
  %v5240 = vpop.permute.xlu0 %5239
  %5241 = vrot.lane.b32.xlu0 %v5103, 120
  %v5242 = vpop.permute.xlu0 %5241
  %5243 = vrot.lane.b32.xlu0 %v5104, 120
  %v5244 = vpop.permute.xlu0 %5243
  %5245 = vrot.lane.b32.xlu0 %v5105, 120
  %v5246 = vpop.permute.xlu0 %5245
  %5247 = vrot.lane.b32.xlu0 %v5106, 120
  %v5248 = vpop.permute.xlu0 %5247
  %5249 = vrot.lane.b32.xlu0 %v5107, 120
  %v5250 = vpop.permute.xlu0 %5249
  %5251 = vrot.lane.b32.xlu0 %v5108, 120
  %v5252 = vpop.permute.xlu0 %5251
  %5253 = vrot.lane.b32.xlu0 %v5109, 120
  %v5254 = vpop.permute.xlu0 %5253
  %5255 = vrot.lane.b32.xlu0 %v5110, 120
  %v5256 = vpop.permute.xlu0 %5255
  %5257 = vrot.lane.b32.xlu0 %v5111, 120
  %v5258 = vpop.permute.xlu0 %5257
  %5259 = vrot.lane.b32.xlu0 %v5112, 120
  %v5260 = vpop.permute.xlu0 %5259
  %5261 = vrot.lane.b32.xlu0 %v5113, 120
  %v5262 = vpop.permute.xlu0 %5261
  %5263 = vrot.lane.b32.xlu0 %v5114, 120
  %v5264 = vpop.permute.xlu0 %5263
  %5265 = vrot.lane.b32.xlu0 %v5115, 120
  %v5266 = vpop.permute.xlu0 %5265
  %5267 = vrot.lane.b32.xlu0 %v5116, 120
  %v5268 = vpop.permute.xlu0 %5267
  %5269 = vrot.lane.b32.xlu0 %v5117, 120
  %v5270 = vpop.permute.xlu0 %5269
  %5271 = vrot.lane.b32.xlu0 %v5118, 120
  %v5272 = vpop.permute.xlu0 %5271
  %5273 = vrot.lane.b32.xlu0 %v5119, 120
  %v5274 = vpop.permute.xlu0 %5273
  %5275 = vrot.lane.b32.xlu0 %v5120, 120
  %v5276 = vpop.permute.xlu0 %5275
  %5277 = vrot.lane.b32.xlu0 %v5121, 120
  %v5278 = vpop.permute.xlu0 %5277
  %5279 = vrot.lane.b32.xlu0 %v5122, 120
  %v5280 = vpop.permute.xlu0 %5279
  %5281 = vrot.lane.b32.xlu0 %v5123, 120
  %v5282 = vpop.permute.xlu0 %5281
  %5283 = vrot.lane.b32.xlu0 %v5124, 120
  %v5284 = vpop.permute.xlu0 %5283
  %5285 = vrot.lane.b32.xlu0 %v5125, 120
  %v5286 = vpop.permute.xlu0 %5285
  %5287 = vrot.lane.b32.xlu0 %v5126, 120
  %v5288 = vpop.permute.xlu0 %5287
  %5289 = vrot.lane.b32.xlu0 %v5127, 120
  %v5290 = vpop.permute.xlu0 %5289
  %5291 = vrot.lane.b32.xlu0 %v5128, 120
  %v5292 = vpop.permute.xlu0 %5291
  %5293 = vrot.lane.b32.xlu0 %v5129, 120
  %v5294 = vpop.permute.xlu0 %5293
  %5295 = vrot.lane.b32.xlu0 %v5130, 120
  %v5296 = vpop.permute.xlu0 %5295
  %5297 = vrot.lane.b32.xlu0 %v5131, 120
  %v5298 = vpop.permute.xlu0 %5297
  %5299 = vrot.lane.b32.xlu0 %v5132, 120
  %v5300 = vpop.permute.xlu0 %5299
  %5301 = vrot.lane.b32.xlu0 %v5133, 120
  %v5302 = vpop.permute.xlu0 %5301
  %5303 = vrot.lane.b32.xlu0 %v5134, 120
  %v5304 = vpop.permute.xlu0 %5303
  %5305 = vrot.lane.b32.xlu0 %v5135, 120
  %v5306 = vpop.permute.xlu0 %5305
  %5307 = vrot.lane.b32.xlu0 %v5136, 120
  %v5308 = vpop.permute.xlu0 %5307
  %5309 = vrot.lane.b32.xlu0 %v5137, 120
  %v5310 = vpop.permute.xlu0 %5309
  %5311 = vrot.lane.b32.xlu0 %v5138, 120
  %v5312 = vpop.permute.xlu0 %5311
  %5313 = vrot.lane.b32.xlu0 %v5139, 120
  %v5314 = vpop.permute.xlu0 %5313
  %5315 = vrot.lane.b32.xlu0 %v5140, 120
  %v5316 = vpop.permute.xlu0 %5315
  %5317 = vrot.lane.b32.xlu0 %v5141, 120
  %v5318 = vpop.permute.xlu0 %5317
  %5319 = vrot.lane.b32.xlu0 %v5142, 120
  %v5320 = vpop.permute.xlu0 %5319
  %5321 = vrot.lane.b32.xlu0 %v5143, 120
  %v5322 = vpop.permute.xlu0 %5321
  %5323 = vrot.lane.b32.xlu0 %v5144, 120
  %v5324 = vpop.permute.xlu0 %5323
  %5325 = vrot.lane.b32.xlu0 %v5145, 120
  %v5326 = vpop.permute.xlu0 %5325
  %5327 = vrot.lane.b32.xlu0 %v5146, 120
  %v5328 = vpop.permute.xlu0 %5327
  %5329 = vrot.lane.b32.xlu0 %v5147, 120
  %v5330 = vpop.permute.xlu0 %5329
  %5331 = vrot.lane.b32.xlu0 %v5148, 120
  %v5332 = vpop.permute.xlu0 %5331
  %5333 = vrot.lane.b32.xlu0 %v5149, 120
  %v5334 = vpop.permute.xlu0 %5333
  %5335 = vrot.lane.b32.xlu0 %v5150, 120
  %v5336 = vpop.permute.xlu0 %5335
  %5337 = vrot.lane.b32.xlu0 %v5151, 120
  %v5338 = vpop.permute.xlu0 %5337
  %5339 = vrot.lane.b32.xlu0 %v5152, 120
  %v5340 = vpop.permute.xlu0 %5339
  %5341 = vrot.lane.b32.xlu0 %v5153, 120
  %v5342 = vpop.permute.xlu0 %5341
  %5343 = vrot.lane.b32.xlu0 %v5154, 120
  %v5344 = vpop.permute.xlu0 %5343
  %5345 = vrot.lane.b32.xlu0 %v5155, 120
  %v5346 = vpop.permute.xlu0 %5345
  %5347 = vrot.lane.b32.xlu0 %v5156, 120
  %v5348 = vpop.permute.xlu0 %5347
  %vm5349 = vcmask 64512
  %v5351 = vsel %vm5349, %v5222, 0
  %v5354 = vsel %vm5349, %v5224, 0
  %v5357 = vsel %vm5349, %v5226, 0
  %v5360 = vsel %vm5349, %v5228, 0
  %v5363 = vsel %vm5349, %v5230, 0
  %v5366 = vsel %vm5349, %v5232, 0
  %v5369 = vsel %vm5349, %v5234, 0
  %v5372 = vsel %vm5349, %v5236, 0
  %v5375 = vsel %vm5349, %v5238, 0
  %v5378 = vsel %vm5349, %v5240, 0
  %v5381 = vsel %vm5349, %v5242, 0
  %v5384 = vsel %vm5349, %v5244, 0
  %v5387 = vsel %vm5349, %v5246, 0
  %v5390 = vsel %vm5349, %v5248, 0
  %v5393 = vsel %vm5349, %v5250, 0
  %v5396 = vsel %vm5349, %v5252, 0
  %v5399 = vsel %vm5349, %v5254, 0
  %v5402 = vsel %vm5349, %v5256, 0
  %v5405 = vsel %vm5349, %v5258, 0
  %v5408 = vsel %vm5349, %v5260, 0
  %v5411 = vsel %vm5349, %v5262, 0
  %v5414 = vsel %vm5349, %v5264, 0
  %v5417 = vsel %vm5349, %v5266, 0
  %v5420 = vsel %vm5349, %v5268, 0
  %v5423 = vsel %vm5349, %v5270, 0
  %v5426 = vsel %vm5349, %v5272, 0
  %v5429 = vsel %vm5349, %v5274, 0
  %v5432 = vsel %vm5349, %v5276, 0
  %v5435 = vsel %vm5349, %v5278, 0
  %v5438 = vsel %vm5349, %v5280, 0
  %v5441 = vsel %vm5349, %v5282, 0
  %v5444 = vsel %vm5349, %v5284, 0
  %v5447 = vsel %vm5349, %v5286, 0
  %v5450 = vsel %vm5349, %v5288, 0
  %v5453 = vsel %vm5349, %v5290, 0
  %v5456 = vsel %vm5349, %v5292, 0
  %v5459 = vsel %vm5349, %v5294, 0
  %v5462 = vsel %vm5349, %v5296, 0
  %v5465 = vsel %vm5349, %v5298, 0
  %v5468 = vsel %vm5349, %v5300, 0
  %v5471 = vsel %vm5349, %v5302, 0
  %v5474 = vsel %vm5349, %v5304, 0
  %v5477 = vsel %vm5349, %v5306, 0
  %v5480 = vsel %vm5349, %v5308, 0
  %v5483 = vsel %vm5349, %v5310, 0
  %v5486 = vsel %vm5349, %v5312, 0
  %v5489 = vsel %vm5349, %v5314, 0
  %v5492 = vsel %vm5349, %v5316, 0
  %v5495 = vsel %vm5349, %v5318, 0
  %v5498 = vsel %vm5349, %v5320, 0
  %v5501 = vsel %vm5349, %v5322, 0
  %v5504 = vsel %vm5349, %v5324, 0
  %v5507 = vsel %vm5349, %v5326, 0
  %v5510 = vsel %vm5349, %v5328, 0
  %v5513 = vsel %vm5349, %v5330, 0
  %v5516 = vsel %vm5349, %v5332, 0
  %v5519 = vsel %vm5349, %v5334, 0
  %v5522 = vsel %vm5349, %v5336, 0
  %v5525 = vsel %vm5349, %v5338, 0
  %v5528 = vsel %vm5349, %v5340, 0
  %v5531 = vsel %vm5349, %v5342, 0
  %v5534 = vsel %vm5349, %v5344, 0
  %v5537 = vsel %vm5349, %v5346, 0
  %v5540 = vsel %vm5349, %v5348, 0
  %vm5542 = vcmask 1043456
  %v5544 = vsel %vm5542, %v4156, 0
  %5546 = vmatprep.subr.bf16.mxu0 0
  %5547 = vmatpush1.bf16.msra.mxu0 0
  %5548 = vmatprep.subr.bf16.mxu0 0
  %5549 = vmatpush1.bf16.msra.mxu0 0
  %5550 = vmatprep.subr.bf16.mxu0 0
  %5551 = vmatpush1.bf16.msra.mxu0 0
  %5552 = vmatprep.subr.bf16.mxu0 0
  %5553 = vmatpush1.bf16.msra.mxu0 0
  %5554 = vmatprep.subr.bf16.mxu0 0
  %5555 = vmatpush1.bf16.msra.mxu0 0
  %5556 = vmatprep.subr.bf16.mxu0 0
  %5557 = vmatpush1.bf16.msra.mxu0 0
  %5558 = vmatprep.subr.bf16.mxu0 0
  %5559 = vmatpush1.bf16.msra.mxu0 0
  %5560 = vmatprep.subr.bf16.mxu0 0
  %5561 = vmatpush1.bf16.msra.mxu0 %v5544
  %5562 = vmatprep.subr.bf16.mxu0 0
  %5563 = vmatpush2.bf16.msra.mxu0 0
  %5564 = vmatprep.subr.bf16.mxu0 0
  %5565 = vmatpush2.bf16.msra.mxu0 0
  %5566 = vmatprep.subr.bf16.mxu0 0
  %5567 = vmatpush2.bf16.msra.mxu0 0
  %5568 = vmatprep.subr.bf16.mxu0 0
  %5569 = vmatpush2.bf16.msra.mxu0 0
  %5570 = vmatprep.subr.bf16.mxu0 0
  %5571 = vmatpush2.bf16.msra.mxu0 0
  %5572 = vmatprep.subr.bf16.mxu0 0
  %5573 = vmatpush2.bf16.msra.mxu0 0
  %5574 = vmatprep.subr.bf16.mxu0 0
  %5575 = vmatpush2.bf16.msra.mxu0 0
  %5576 = vmatprep.subr.bf16.mxu0 0
  %5577 = vmatpush2.bf16.msra.mxu0 0
  %5578 = vmatprep.mubr.bf16.mxu0 0
  %5579 = vmatmul.mubr.bf16.gmra.mxu0 %v5351
  %v5580 = vpop.f32.mrf.mxu0
  %v5581 = vadd.f32 0.0, %v5580
  %v5582 = vpop.f32.mrf.mxu0
  %v5583 = vpop.f32.mrf.mxu0
  %v5584 = vadd.f32 0.0, %v5583
  %v5585 = vpop.f32.mrf.mxu0
  %5586 = vmatprep.mubr.bf16.mxu0 0
  %5587 = vmatmul.mubr.bf16.gmra.mxu0 %v5354
  %v5588 = vpop.f32.mrf.mxu0
  %v5589 = vadd.f32 0.0, %v5588
  %v5590 = vpop.f32.mrf.mxu0
  %v5591 = vpop.f32.mrf.mxu0
  %v5592 = vadd.f32 0.0, %v5591
  %v5593 = vpop.f32.mrf.mxu0
  %5594 = vmatprep.mubr.bf16.mxu0 0
  %5595 = vmatmul.mubr.bf16.gmra.mxu0 %v5357
  %v5596 = vpop.f32.mrf.mxu0
  %v5597 = vadd.f32 0.0, %v5596
  %v5598 = vpop.f32.mrf.mxu0
  %v5599 = vpop.f32.mrf.mxu0
  %v5600 = vadd.f32 0.0, %v5599
  %v5601 = vpop.f32.mrf.mxu0
  %5602 = vmatprep.mubr.bf16.mxu0 0
  %5603 = vmatmul.mubr.bf16.gmra.mxu0 %v5360
  %v5604 = vpop.f32.mrf.mxu0
  %v5605 = vadd.f32 0.0, %v5604
  %v5606 = vpop.f32.mrf.mxu0
  %v5607 = vpop.f32.mrf.mxu0
  %v5608 = vadd.f32 0.0, %v5607
  %v5609 = vpop.f32.mrf.mxu0
  %5610 = vmatprep.mubr.bf16.mxu0 0
  %5611 = vmatmul.mubr.bf16.gmra.mxu0 %v5363
  %v5612 = vpop.f32.mrf.mxu0
  %v5613 = vadd.f32 0.0, %v5612
  %v5614 = vpop.f32.mrf.mxu0
  %v5615 = vpop.f32.mrf.mxu0
  %v5616 = vadd.f32 0.0, %v5615
  %v5617 = vpop.f32.mrf.mxu0
  %5618 = vmatprep.mubr.bf16.mxu0 0
  %5619 = vmatmul.mubr.bf16.gmra.mxu0 %v5366
  %v5620 = vpop.f32.mrf.mxu0
  %v5621 = vadd.f32 0.0, %v5620
  %v5622 = vpop.f32.mrf.mxu0
  %v5623 = vpop.f32.mrf.mxu0
  %v5624 = vadd.f32 0.0, %v5623
  %v5625 = vpop.f32.mrf.mxu0
  %5626 = vmatprep.mubr.bf16.mxu0 0
  %5627 = vmatmul.mubr.bf16.gmra.mxu0 %v5369
  %v5628 = vpop.f32.mrf.mxu0
  %v5629 = vadd.f32 0.0, %v5628
  %v5630 = vpop.f32.mrf.mxu0
  %v5631 = vpop.f32.mrf.mxu0
  %v5632 = vadd.f32 0.0, %v5631
  %v5633 = vpop.f32.mrf.mxu0
  %5634 = vmatprep.mubr.bf16.mxu0 0
  %5635 = vmatmul.mubr.bf16.gmra.mxu0 %v5372
  %v5636 = vpop.f32.mrf.mxu0
  %v5637 = vadd.f32 0.0, %v5636
  %v5638 = vpop.f32.mrf.mxu0
  %v5639 = vpop.f32.mrf.mxu0
  %v5640 = vadd.f32 0.0, %v5639
  %v5641 = vpop.f32.mrf.mxu0
  %5642 = vmatprep.mubr.bf16.mxu0 0
  %5643 = vmatmul.mubr.bf16.gmra.mxu0 %v5375
  %v5644 = vpop.f32.mrf.mxu0
  %v5645 = vadd.f32 0.0, %v5644
  %v5646 = vpop.f32.mrf.mxu0
  %v5647 = vpop.f32.mrf.mxu0
  %v5648 = vadd.f32 0.0, %v5647
  %v5649 = vpop.f32.mrf.mxu0
  %5650 = vmatprep.mubr.bf16.mxu0 0
  %5651 = vmatmul.mubr.bf16.gmra.mxu0 %v5378
  %v5652 = vpop.f32.mrf.mxu0
  %v5653 = vadd.f32 0.0, %v5652
  %v5654 = vpop.f32.mrf.mxu0
  %v5655 = vpop.f32.mrf.mxu0
  %v5656 = vadd.f32 0.0, %v5655
  %v5657 = vpop.f32.mrf.mxu0
  %5658 = vmatprep.mubr.bf16.mxu0 0
  %5659 = vmatmul.mubr.bf16.gmra.mxu0 %v5381
  %v5660 = vpop.f32.mrf.mxu0
  %v5661 = vadd.f32 0.0, %v5660
  %v5662 = vpop.f32.mrf.mxu0
  %v5663 = vpop.f32.mrf.mxu0
  %v5664 = vadd.f32 0.0, %v5663
  %v5665 = vpop.f32.mrf.mxu0
  %5666 = vmatprep.mubr.bf16.mxu0 0
  %5667 = vmatmul.mubr.bf16.gmra.mxu0 %v5384
  %v5668 = vpop.f32.mrf.mxu0
  %v5669 = vadd.f32 0.0, %v5668
  %v5670 = vpop.f32.mrf.mxu0
  %v5671 = vpop.f32.mrf.mxu0
  %v5672 = vadd.f32 0.0, %v5671
  %v5673 = vpop.f32.mrf.mxu0
  %5674 = vmatprep.mubr.bf16.mxu0 0
  %5675 = vmatmul.mubr.bf16.gmra.mxu0 %v5387
  %v5676 = vpop.f32.mrf.mxu0
  %v5677 = vadd.f32 0.0, %v5676
  %v5678 = vpop.f32.mrf.mxu0
  %v5679 = vpop.f32.mrf.mxu0
  %v5680 = vadd.f32 0.0, %v5679
  %v5681 = vpop.f32.mrf.mxu0
  %5682 = vmatprep.mubr.bf16.mxu0 0
  %5683 = vmatmul.mubr.bf16.gmra.mxu0 %v5390
  %v5684 = vpop.f32.mrf.mxu0
  %v5685 = vadd.f32 0.0, %v5684
  %v5686 = vpop.f32.mrf.mxu0
  %v5687 = vpop.f32.mrf.mxu0
  %v5688 = vadd.f32 0.0, %v5687
  %v5689 = vpop.f32.mrf.mxu0
  %5690 = vmatprep.mubr.bf16.mxu0 0
  %5691 = vmatmul.mubr.bf16.gmra.mxu0 %v5393
  %v5692 = vpop.f32.mrf.mxu0
  %v5693 = vadd.f32 0.0, %v5692
  %v5694 = vpop.f32.mrf.mxu0
  %v5695 = vpop.f32.mrf.mxu0
  %v5696 = vadd.f32 0.0, %v5695
  %v5697 = vpop.f32.mrf.mxu0
  %5698 = vmatprep.mubr.bf16.mxu0 0
  %5699 = vmatmul.mubr.bf16.gmra.mxu0 %v5396
  %v5700 = vpop.f32.mrf.mxu0
  %v5701 = vadd.f32 0.0, %v5700
  %v5702 = vpop.f32.mrf.mxu0
  %v5703 = vpop.f32.mrf.mxu0
  %v5704 = vadd.f32 0.0, %v5703
  %v5705 = vpop.f32.mrf.mxu0
  %5706 = vmatprep.mubr.bf16.mxu0 0
  %5707 = vmatmul.mubr.bf16.gmra.mxu0 %v5399
  %v5708 = vpop.f32.mrf.mxu0
  %v5709 = vadd.f32 0.0, %v5708
  %v5710 = vpop.f32.mrf.mxu0
  %v5711 = vpop.f32.mrf.mxu0
  %v5712 = vadd.f32 0.0, %v5711
  %v5713 = vpop.f32.mrf.mxu0
  %5714 = vmatprep.mubr.bf16.mxu0 0
  %5715 = vmatmul.mubr.bf16.gmra.mxu0 %v5402
  %v5716 = vpop.f32.mrf.mxu0
  %v5717 = vadd.f32 0.0, %v5716
  %v5718 = vpop.f32.mrf.mxu0
  %v5719 = vpop.f32.mrf.mxu0
  %v5720 = vadd.f32 0.0, %v5719
  %v5721 = vpop.f32.mrf.mxu0
  %5722 = vmatprep.mubr.bf16.mxu0 0
  %5723 = vmatmul.mubr.bf16.gmra.mxu0 %v5405
  %v5724 = vpop.f32.mrf.mxu0
  %v5725 = vadd.f32 0.0, %v5724
  %v5726 = vpop.f32.mrf.mxu0
  %v5727 = vpop.f32.mrf.mxu0
  %v5728 = vadd.f32 0.0, %v5727
  %v5729 = vpop.f32.mrf.mxu0
  %5730 = vmatprep.mubr.bf16.mxu0 0
  %5731 = vmatmul.mubr.bf16.gmra.mxu0 %v5408
  %v5732 = vpop.f32.mrf.mxu0
  %v5733 = vadd.f32 0.0, %v5732
  %v5734 = vpop.f32.mrf.mxu0
  %v5735 = vpop.f32.mrf.mxu0
  %v5736 = vadd.f32 0.0, %v5735
  %v5737 = vpop.f32.mrf.mxu0
  %5738 = vmatprep.mubr.bf16.mxu0 0
  %5739 = vmatmul.mubr.bf16.gmra.mxu0 %v5411
  %v5740 = vpop.f32.mrf.mxu0
  %v5741 = vadd.f32 0.0, %v5740
  %v5742 = vpop.f32.mrf.mxu0
  %v5743 = vpop.f32.mrf.mxu0
  %v5744 = vadd.f32 0.0, %v5743
  %v5745 = vpop.f32.mrf.mxu0
  %5746 = vmatprep.mubr.bf16.mxu0 0
  %5747 = vmatmul.mubr.bf16.gmra.mxu0 %v5414
  %v5748 = vpop.f32.mrf.mxu0
  %v5749 = vadd.f32 0.0, %v5748
  %v5750 = vpop.f32.mrf.mxu0
  %v5751 = vpop.f32.mrf.mxu0
  %v5752 = vadd.f32 0.0, %v5751
  %v5753 = vpop.f32.mrf.mxu0
  %5754 = vmatprep.mubr.bf16.mxu0 0
  %5755 = vmatmul.mubr.bf16.gmra.mxu0 %v5417
  %v5756 = vpop.f32.mrf.mxu0
  %v5757 = vadd.f32 0.0, %v5756
  %v5758 = vpop.f32.mrf.mxu0
  %v5759 = vpop.f32.mrf.mxu0
  %v5760 = vadd.f32 0.0, %v5759
  %v5761 = vpop.f32.mrf.mxu0
  %5762 = vmatprep.mubr.bf16.mxu0 0
  %5763 = vmatmul.mubr.bf16.gmra.mxu0 %v5420
  %v5764 = vpop.f32.mrf.mxu0
  %v5765 = vadd.f32 0.0, %v5764
  %v5766 = vpop.f32.mrf.mxu0
  %v5767 = vpop.f32.mrf.mxu0
  %v5768 = vadd.f32 0.0, %v5767
  %v5769 = vpop.f32.mrf.mxu0
  %5770 = vmatprep.mubr.bf16.mxu0 0
  %5771 = vmatmul.mubr.bf16.gmra.mxu0 %v5423
  %v5772 = vpop.f32.mrf.mxu0
  %v5773 = vadd.f32 0.0, %v5772
  %v5774 = vpop.f32.mrf.mxu0
  %v5775 = vpop.f32.mrf.mxu0
  %v5776 = vadd.f32 0.0, %v5775
  %v5777 = vpop.f32.mrf.mxu0
  %5778 = vmatprep.mubr.bf16.mxu0 0
  %5779 = vmatmul.mubr.bf16.gmra.mxu0 %v5426
  %v5780 = vpop.f32.mrf.mxu0
  %v5781 = vadd.f32 0.0, %v5780
  %v5782 = vpop.f32.mrf.mxu0
  %v5783 = vpop.f32.mrf.mxu0
  %v5784 = vadd.f32 0.0, %v5783
  %v5785 = vpop.f32.mrf.mxu0
  %5786 = vmatprep.mubr.bf16.mxu0 0
  %5787 = vmatmul.mubr.bf16.gmra.mxu0 %v5429
  %v5788 = vpop.f32.mrf.mxu0
  %v5789 = vadd.f32 0.0, %v5788
  %v5790 = vpop.f32.mrf.mxu0
  %v5791 = vpop.f32.mrf.mxu0
  %v5792 = vadd.f32 0.0, %v5791
  %v5793 = vpop.f32.mrf.mxu0
  %5794 = vmatprep.mubr.bf16.mxu0 0
  %5795 = vmatmul.mubr.bf16.gmra.mxu0 %v5432
  %v5796 = vpop.f32.mrf.mxu0
  %v5797 = vadd.f32 0.0, %v5796
  %v5798 = vpop.f32.mrf.mxu0
  %v5799 = vpop.f32.mrf.mxu0
  %v5800 = vadd.f32 0.0, %v5799
  %v5801 = vpop.f32.mrf.mxu0
  %5802 = vmatprep.mubr.bf16.mxu0 0
  %5803 = vmatmul.mubr.bf16.gmra.mxu0 %v5435
  %v5804 = vpop.f32.mrf.mxu0
  %v5805 = vadd.f32 0.0, %v5804
  %v5806 = vpop.f32.mrf.mxu0
  %v5807 = vpop.f32.mrf.mxu0
  %v5808 = vadd.f32 0.0, %v5807
  %v5809 = vpop.f32.mrf.mxu0
  %5810 = vmatprep.mubr.bf16.mxu0 0
  %5811 = vmatmul.mubr.bf16.gmra.mxu0 %v5438
  %v5812 = vpop.f32.mrf.mxu0
  %v5813 = vadd.f32 0.0, %v5812
  %v5814 = vpop.f32.mrf.mxu0
  %v5815 = vpop.f32.mrf.mxu0
  %v5816 = vadd.f32 0.0, %v5815
  %v5817 = vpop.f32.mrf.mxu0
  %5818 = vmatprep.mubr.bf16.mxu0 0
  %5819 = vmatmul.mubr.bf16.gmra.mxu0 %v5441
  %v5820 = vpop.f32.mrf.mxu0
  %v5821 = vadd.f32 0.0, %v5820
  %v5822 = vpop.f32.mrf.mxu0
  %v5823 = vpop.f32.mrf.mxu0
  %v5824 = vadd.f32 0.0, %v5823
  %v5825 = vpop.f32.mrf.mxu0
  %5826 = vmatprep.mubr.bf16.mxu0 0
  %5827 = vmatmul.mubr.bf16.gmra.mxu0 %v5444
  %v5828 = vpop.f32.mrf.mxu0
  %v5829 = vadd.f32 0.0, %v5828
  %v5830 = vpop.f32.mrf.mxu0
  %v5831 = vpop.f32.mrf.mxu0
  %v5832 = vadd.f32 0.0, %v5831
  %v5833 = vpop.f32.mrf.mxu0
  %5834 = vmatprep.mubr.bf16.mxu0 0
  %5835 = vmatmul.mubr.bf16.gmra.mxu0 %v5447
  %v5836 = vpop.f32.mrf.mxu0
  %v5837 = vadd.f32 0.0, %v5836
  %v5838 = vpop.f32.mrf.mxu0
  %v5839 = vpop.f32.mrf.mxu0
  %v5840 = vadd.f32 0.0, %v5839
  %v5841 = vpop.f32.mrf.mxu0
  %5842 = vmatprep.mubr.bf16.mxu0 0
  %5843 = vmatmul.mubr.bf16.gmra.mxu0 %v5450
  %v5844 = vpop.f32.mrf.mxu0
  %v5845 = vadd.f32 0.0, %v5844
  %v5846 = vpop.f32.mrf.mxu0
  %v5847 = vpop.f32.mrf.mxu0
  %v5848 = vadd.f32 0.0, %v5847
  %v5849 = vpop.f32.mrf.mxu0
  %5850 = vmatprep.mubr.bf16.mxu0 0
  %5851 = vmatmul.mubr.bf16.gmra.mxu0 %v5453
  %v5852 = vpop.f32.mrf.mxu0
  %v5853 = vadd.f32 0.0, %v5852
  %v5854 = vpop.f32.mrf.mxu0
  %v5855 = vpop.f32.mrf.mxu0
  %v5856 = vadd.f32 0.0, %v5855
  %v5857 = vpop.f32.mrf.mxu0
  %5858 = vmatprep.mubr.bf16.mxu0 0
  %5859 = vmatmul.mubr.bf16.gmra.mxu0 %v5456
  %v5860 = vpop.f32.mrf.mxu0
  %v5861 = vadd.f32 0.0, %v5860
  %v5862 = vpop.f32.mrf.mxu0
  %v5863 = vpop.f32.mrf.mxu0
  %v5864 = vadd.f32 0.0, %v5863
  %v5865 = vpop.f32.mrf.mxu0
  %5866 = vmatprep.mubr.bf16.mxu0 0
  %5867 = vmatmul.mubr.bf16.gmra.mxu0 %v5459
  %v5868 = vpop.f32.mrf.mxu0
  %v5869 = vadd.f32 0.0, %v5868
  %v5870 = vpop.f32.mrf.mxu0
  %v5871 = vpop.f32.mrf.mxu0
  %v5872 = vadd.f32 0.0, %v5871
  %v5873 = vpop.f32.mrf.mxu0
  %5874 = vmatprep.mubr.bf16.mxu0 0
  %5875 = vmatmul.mubr.bf16.gmra.mxu0 %v5462
  %v5876 = vpop.f32.mrf.mxu0
  %v5877 = vadd.f32 0.0, %v5876
  %v5878 = vpop.f32.mrf.mxu0
  %v5879 = vpop.f32.mrf.mxu0
  %v5880 = vadd.f32 0.0, %v5879
  %v5881 = vpop.f32.mrf.mxu0
  %5882 = vmatprep.mubr.bf16.mxu0 0
  %5883 = vmatmul.mubr.bf16.gmra.mxu0 %v5465
  %v5884 = vpop.f32.mrf.mxu0
  %v5885 = vadd.f32 0.0, %v5884
  %v5886 = vpop.f32.mrf.mxu0
  %v5887 = vpop.f32.mrf.mxu0
  %v5888 = vadd.f32 0.0, %v5887
  %v5889 = vpop.f32.mrf.mxu0
  %5890 = vmatprep.mubr.bf16.mxu0 0
  %5891 = vmatmul.mubr.bf16.gmra.mxu0 %v5468
  %v5892 = vpop.f32.mrf.mxu0
  %v5893 = vadd.f32 0.0, %v5892
  %v5894 = vpop.f32.mrf.mxu0
  %v5895 = vpop.f32.mrf.mxu0
  %v5896 = vadd.f32 0.0, %v5895
  %v5897 = vpop.f32.mrf.mxu0
  %5898 = vmatprep.mubr.bf16.mxu0 0
  %5899 = vmatmul.mubr.bf16.gmra.mxu0 %v5471
  %v5900 = vpop.f32.mrf.mxu0
  %v5901 = vadd.f32 0.0, %v5900
  %v5902 = vpop.f32.mrf.mxu0
  %v5903 = vpop.f32.mrf.mxu0
  %v5904 = vadd.f32 0.0, %v5903
  %v5905 = vpop.f32.mrf.mxu0
  %5906 = vmatprep.mubr.bf16.mxu0 0
  %5907 = vmatmul.mubr.bf16.gmra.mxu0 %v5474
  %v5908 = vpop.f32.mrf.mxu0
  %v5909 = vadd.f32 0.0, %v5908
  %v5910 = vpop.f32.mrf.mxu0
  %v5911 = vpop.f32.mrf.mxu0
  %v5912 = vadd.f32 0.0, %v5911
  %v5913 = vpop.f32.mrf.mxu0
  %5914 = vmatprep.mubr.bf16.mxu0 0
  %5915 = vmatmul.mubr.bf16.gmra.mxu0 %v5477
  %v5916 = vpop.f32.mrf.mxu0
  %v5917 = vadd.f32 0.0, %v5916
  %v5918 = vpop.f32.mrf.mxu0
  %v5919 = vpop.f32.mrf.mxu0
  %v5920 = vadd.f32 0.0, %v5919
  %v5921 = vpop.f32.mrf.mxu0
  %5922 = vmatprep.mubr.bf16.mxu0 0
  %5923 = vmatmul.mubr.bf16.gmra.mxu0 %v5480
  %v5924 = vpop.f32.mrf.mxu0
  %v5925 = vadd.f32 0.0, %v5924
  %v5926 = vpop.f32.mrf.mxu0
  %v5927 = vpop.f32.mrf.mxu0
  %v5928 = vadd.f32 0.0, %v5927
  %v5929 = vpop.f32.mrf.mxu0
  %5930 = vmatprep.mubr.bf16.mxu0 0
  %5931 = vmatmul.mubr.bf16.gmra.mxu0 %v5483
  %v5932 = vpop.f32.mrf.mxu0
  %v5933 = vadd.f32 0.0, %v5932
  %v5934 = vpop.f32.mrf.mxu0
  %v5935 = vpop.f32.mrf.mxu0
  %v5936 = vadd.f32 0.0, %v5935
  %v5937 = vpop.f32.mrf.mxu0
  %5938 = vmatprep.mubr.bf16.mxu0 0
  %5939 = vmatmul.mubr.bf16.gmra.mxu0 %v5486
  %v5940 = vpop.f32.mrf.mxu0
  %v5941 = vadd.f32 0.0, %v5940
  %v5942 = vpop.f32.mrf.mxu0
  %v5943 = vpop.f32.mrf.mxu0
  %v5944 = vadd.f32 0.0, %v5943
  %v5945 = vpop.f32.mrf.mxu0
  %5946 = vmatprep.mubr.bf16.mxu0 0
  %5947 = vmatmul.mubr.bf16.gmra.mxu0 %v5489
  %v5948 = vpop.f32.mrf.mxu0
  %v5949 = vadd.f32 0.0, %v5948
  %v5950 = vpop.f32.mrf.mxu0
  %v5951 = vpop.f32.mrf.mxu0
  %v5952 = vadd.f32 0.0, %v5951
  %v5953 = vpop.f32.mrf.mxu0
  %5954 = vmatprep.mubr.bf16.mxu0 0
  %5955 = vmatmul.mubr.bf16.gmra.mxu0 %v5492
  %v5956 = vpop.f32.mrf.mxu0
  %v5957 = vadd.f32 0.0, %v5956
  %v5958 = vpop.f32.mrf.mxu0
  %v5959 = vpop.f32.mrf.mxu0
  %v5960 = vadd.f32 0.0, %v5959
  %v5961 = vpop.f32.mrf.mxu0
  %5962 = vmatprep.mubr.bf16.mxu0 0
  %5963 = vmatmul.mubr.bf16.gmra.mxu0 %v5495
  %v5964 = vpop.f32.mrf.mxu0
  %v5965 = vadd.f32 0.0, %v5964
  %v5966 = vpop.f32.mrf.mxu0
  %v5967 = vpop.f32.mrf.mxu0
  %v5968 = vadd.f32 0.0, %v5967
  %v5969 = vpop.f32.mrf.mxu0
  %5970 = vmatprep.mubr.bf16.mxu0 0
  %5971 = vmatmul.mubr.bf16.gmra.mxu0 %v5498
  %v5972 = vpop.f32.mrf.mxu0
  %v5973 = vadd.f32 0.0, %v5972
  %v5974 = vpop.f32.mrf.mxu0
  %v5975 = vpop.f32.mrf.mxu0
  %v5976 = vadd.f32 0.0, %v5975
  %v5977 = vpop.f32.mrf.mxu0
  %5978 = vmatprep.mubr.bf16.mxu0 0
  %5979 = vmatmul.mubr.bf16.gmra.mxu0 %v5501
  %v5980 = vpop.f32.mrf.mxu0
  %v5981 = vadd.f32 0.0, %v5980
  %v5982 = vpop.f32.mrf.mxu0
  %v5983 = vpop.f32.mrf.mxu0
  %v5984 = vadd.f32 0.0, %v5983
  %v5985 = vpop.f32.mrf.mxu0
  %5986 = vmatprep.mubr.bf16.mxu0 0
  %5987 = vmatmul.mubr.bf16.gmra.mxu0 %v5504
  %v5988 = vpop.f32.mrf.mxu0
  %v5989 = vadd.f32 0.0, %v5988
  %v5990 = vpop.f32.mrf.mxu0
  %v5991 = vpop.f32.mrf.mxu0
  %v5992 = vadd.f32 0.0, %v5991
  %v5993 = vpop.f32.mrf.mxu0
  %5994 = vmatprep.mubr.bf16.mxu0 0
  %5995 = vmatmul.mubr.bf16.gmra.mxu0 %v5507
  %v5996 = vpop.f32.mrf.mxu0
  %v5997 = vadd.f32 0.0, %v5996
  %v5998 = vpop.f32.mrf.mxu0
  %v5999 = vpop.f32.mrf.mxu0
  %v6000 = vadd.f32 0.0, %v5999
  %v6001 = vpop.f32.mrf.mxu0
  %6002 = vmatprep.mubr.bf16.mxu0 0
  %6003 = vmatmul.mubr.bf16.gmra.mxu0 %v5510
  %v6004 = vpop.f32.mrf.mxu0
  %v6005 = vadd.f32 0.0, %v6004
  %v6006 = vpop.f32.mrf.mxu0
  %v6007 = vpop.f32.mrf.mxu0
  %v6008 = vadd.f32 0.0, %v6007
  %v6009 = vpop.f32.mrf.mxu0
  %6010 = vmatprep.mubr.bf16.mxu0 0
  %6011 = vmatmul.mubr.bf16.gmra.mxu0 %v5513
  %v6012 = vpop.f32.mrf.mxu0
  %v6013 = vadd.f32 0.0, %v6012
  %v6014 = vpop.f32.mrf.mxu0
  %v6015 = vpop.f32.mrf.mxu0
  %v6016 = vadd.f32 0.0, %v6015
  %v6017 = vpop.f32.mrf.mxu0
  %6018 = vmatprep.mubr.bf16.mxu0 0
  %6019 = vmatmul.mubr.bf16.gmra.mxu0 %v5516
  %v6020 = vpop.f32.mrf.mxu0
  %v6021 = vadd.f32 0.0, %v6020
  %v6022 = vpop.f32.mrf.mxu0
  %v6023 = vpop.f32.mrf.mxu0
  %v6024 = vadd.f32 0.0, %v6023
  %v6025 = vpop.f32.mrf.mxu0
  %6026 = vmatprep.mubr.bf16.mxu0 0
  %6027 = vmatmul.mubr.bf16.gmra.mxu0 %v5519
  %v6028 = vpop.f32.mrf.mxu0
  %v6029 = vadd.f32 0.0, %v6028
  %v6030 = vpop.f32.mrf.mxu0
  %v6031 = vpop.f32.mrf.mxu0
  %v6032 = vadd.f32 0.0, %v6031
  %v6033 = vpop.f32.mrf.mxu0
  %6034 = vmatprep.mubr.bf16.mxu0 0
  %6035 = vmatmul.mubr.bf16.gmra.mxu0 %v5522
  %v6036 = vpop.f32.mrf.mxu0
  %v6037 = vadd.f32 0.0, %v6036
  %v6038 = vpop.f32.mrf.mxu0
  %v6039 = vpop.f32.mrf.mxu0
  %v6040 = vadd.f32 0.0, %v6039
  %v6041 = vpop.f32.mrf.mxu0
  %6042 = vmatprep.mubr.bf16.mxu0 0
  %6043 = vmatmul.mubr.bf16.gmra.mxu0 %v5525
  %v6044 = vpop.f32.mrf.mxu0
  %v6045 = vadd.f32 0.0, %v6044
  %v6046 = vpop.f32.mrf.mxu0
  %v6047 = vpop.f32.mrf.mxu0
  %v6048 = vadd.f32 0.0, %v6047
  %v6049 = vpop.f32.mrf.mxu0
  %6050 = vmatprep.mubr.bf16.mxu0 0
  %6051 = vmatmul.mubr.bf16.gmra.mxu0 %v5528
  %v6052 = vpop.f32.mrf.mxu0
  %v6053 = vadd.f32 0.0, %v6052
  %v6054 = vpop.f32.mrf.mxu0
  %v6055 = vpop.f32.mrf.mxu0
  %v6056 = vadd.f32 0.0, %v6055
  %v6057 = vpop.f32.mrf.mxu0
  %6058 = vmatprep.mubr.bf16.mxu0 0
  %6059 = vmatmul.mubr.bf16.gmra.mxu0 %v5531
  %v6060 = vpop.f32.mrf.mxu0
  %v6061 = vadd.f32 0.0, %v6060
  %v6062 = vpop.f32.mrf.mxu0
  %v6063 = vpop.f32.mrf.mxu0
  %v6064 = vadd.f32 0.0, %v6063
  %v6065 = vpop.f32.mrf.mxu0
  %6066 = vmatprep.mubr.bf16.mxu0 0
  %6067 = vmatmul.mubr.bf16.gmra.mxu0 %v5534
  %v6068 = vpop.f32.mrf.mxu0
  %v6069 = vadd.f32 0.0, %v6068
  %v6070 = vpop.f32.mrf.mxu0
  %v6071 = vpop.f32.mrf.mxu0
  %v6072 = vadd.f32 0.0, %v6071
  %v6073 = vpop.f32.mrf.mxu0
  %6074 = vmatprep.mubr.bf16.mxu0 0
  %6075 = vmatmul.mubr.bf16.gmra.mxu0 %v5537
  %v6076 = vpop.f32.mrf.mxu0
  %v6077 = vadd.f32 0.0, %v6076
  %v6078 = vpop.f32.mrf.mxu0
  %v6079 = vpop.f32.mrf.mxu0
  %v6080 = vadd.f32 0.0, %v6079
  %v6081 = vpop.f32.mrf.mxu0
  %6082 = vmatprep.mubr.bf16.mxu0 0
  %6083 = vmatmul.mubr.bf16.gmra.mxu0 %v5540
  %v6084 = vpop.f32.mrf.mxu0
  %v6085 = vadd.f32 0.0, %v6084
  %v6086 = vpop.f32.mrf.mxu0
  %v6087 = vpop.f32.mrf.mxu0
  %v6088 = vadd.f32 0.0, %v6087
  %v6089 = vpop.f32.mrf.mxu0
  %6090 = vdwg.mxu0
  %v6091 = vadd.f32 %v5581, %v1578
  %v6092 = vadd.f32 %v5584, %v1583
  %v6093 = vadd.f32 %v5589, %v1588
  %v6094 = vadd.f32 %v5592, %v1593
  %v6095 = vadd.f32 %v5597, %v1598
  %v6096 = vadd.f32 %v5600, %v1603
  %v6097 = vadd.f32 %v5605, %v1608
  %v6098 = vadd.f32 %v5608, %v1613
  %v6099 = vadd.f32 %v5613, %v1618
  %v6100 = vadd.f32 %v5616, %v1623
  %v6101 = vadd.f32 %v5621, %v1628
  %v6102 = vadd.f32 %v5624, %v1633
  %v6103 = vadd.f32 %v5629, %v1638
  %v6104 = vadd.f32 %v5632, %v1643
  %v6105 = vadd.f32 %v5637, %v1648
  %v6106 = vadd.f32 %v5640, %v1653
  %v6107 = vadd.f32 %v5645, %v1658
  %v6108 = vadd.f32 %v5648, %v1663
  %v6109 = vadd.f32 %v5653, %v1668
  %v6110 = vadd.f32 %v5656, %v1673
  %v6111 = vadd.f32 %v5661, %v1678
  %v6112 = vadd.f32 %v5664, %v1683
  %v6113 = vadd.f32 %v5669, %v1688
  %v6114 = vadd.f32 %v5672, %v1693
  %v6115 = vadd.f32 %v5677, %v1698
  %v6116 = vadd.f32 %v5680, %v1703
  %v6117 = vadd.f32 %v5685, %v1708
  %v6118 = vadd.f32 %v5688, %v1713
  %v6119 = vadd.f32 %v5693, %v1718
  %v6120 = vadd.f32 %v5696, %v1723
  %v6121 = vadd.f32 %v5701, %v1728
  %v6122 = vadd.f32 %v5704, %v1733
  %v6123 = vadd.f32 %v5709, %v1738
  %v6124 = vadd.f32 %v5712, %v1743
  %v6125 = vadd.f32 %v5717, %v1748
  %v6126 = vadd.f32 %v5720, %v1753
  %v6127 = vadd.f32 %v5725, %v1758
  %v6128 = vadd.f32 %v5728, %v1763
  %v6129 = vadd.f32 %v5733, %v1768
  %v6130 = vadd.f32 %v5736, %v1773
  %v6131 = vadd.f32 %v5741, %v1778
  %v6132 = vadd.f32 %v5744, %v1783
  %v6133 = vadd.f32 %v5749, %v1788
  %v6134 = vadd.f32 %v5752, %v1793
  %v6135 = vadd.f32 %v5757, %v1798
  %v6136 = vadd.f32 %v5760, %v1803
  %v6137 = vadd.f32 %v5765, %v1808
  %v6138 = vadd.f32 %v5768, %v1813
  %v6139 = vadd.f32 %v5773, %v1818
  %v6140 = vadd.f32 %v5776, %v1823
  %v6141 = vadd.f32 %v5781, %v1828
  %v6142 = vadd.f32 %v5784, %v1833
  %v6143 = vadd.f32 %v5789, %v1838
  %v6144 = vadd.f32 %v5792, %v1843
  %v6145 = vadd.f32 %v5797, %v1848
  %v6146 = vadd.f32 %v5800, %v1853
  %v6147 = vadd.f32 %v5805, %v1858
  %v6148 = vadd.f32 %v5808, %v1863
  %v6149 = vadd.f32 %v5813, %v1868
  %v6150 = vadd.f32 %v5816, %v1873
  %v6151 = vadd.f32 %v5821, %v1878
  %v6152 = vadd.f32 %v5824, %v1883
  %v6153 = vadd.f32 %v5829, %v1888
  %v6154 = vadd.f32 %v5832, %v1893
  %v6155 = vadd.f32 %v5837, %v1898
  %v6156 = vadd.f32 %v5840, %v1903
  %v6157 = vadd.f32 %v5845, %v1908
  %v6158 = vadd.f32 %v5848, %v1913
  %v6159 = vadd.f32 %v5853, %v1918
  %v6160 = vadd.f32 %v5856, %v1923
  %v6161 = vadd.f32 %v5861, %v1928
  %v6162 = vadd.f32 %v5864, %v1933
  %v6163 = vadd.f32 %v5869, %v1938
  %v6164 = vadd.f32 %v5872, %v1943
  %v6165 = vadd.f32 %v5877, %v1948
  %v6166 = vadd.f32 %v5880, %v1953
  %v6167 = vadd.f32 %v5885, %v1958
  %v6168 = vadd.f32 %v5888, %v1963
  %v6169 = vadd.f32 %v5893, %v1968
  %v6170 = vadd.f32 %v5896, %v1973
  %v6171 = vadd.f32 %v5901, %v1978
  %v6172 = vadd.f32 %v5904, %v1983
  %v6173 = vadd.f32 %v5909, %v1988
  %v6174 = vadd.f32 %v5912, %v1993
  %v6175 = vadd.f32 %v5917, %v1998
  %v6176 = vadd.f32 %v5920, %v2003
  %v6177 = vadd.f32 %v5925, %v2008
  %v6178 = vadd.f32 %v5928, %v2013
  %v6179 = vadd.f32 %v5933, %v2018
  %v6180 = vadd.f32 %v5936, %v2023
  %v6181 = vadd.f32 %v5941, %v2028
  %v6182 = vadd.f32 %v5944, %v2033
  %v6183 = vadd.f32 %v5949, %v2038
  %v6184 = vadd.f32 %v5952, %v2043
  %v6185 = vadd.f32 %v5957, %v2048
  %v6186 = vadd.f32 %v5960, %v2053
  %v6187 = vadd.f32 %v5965, %v2058
  %v6188 = vadd.f32 %v5968, %v2063
  %v6189 = vadd.f32 %v5973, %v2068
  %v6190 = vadd.f32 %v5976, %v2073
  %v6191 = vadd.f32 %v5981, %v2078
  %v6192 = vadd.f32 %v5984, %v2083
  %v6193 = vadd.f32 %v5989, %v2088
  %v6194 = vadd.f32 %v5992, %v2093
  %v6195 = vadd.f32 %v5997, %v2098
  %v6196 = vadd.f32 %v6000, %v2103
  %v6197 = vadd.f32 %v6005, %v2108
  %v6198 = vadd.f32 %v6008, %v2113
  %v6199 = vadd.f32 %v6013, %v2118
  %v6200 = vadd.f32 %v6016, %v2123
  %v6201 = vadd.f32 %v6021, %v2128
  %v6202 = vadd.f32 %v6024, %v2133
  %v6203 = vadd.f32 %v6029, %v2138
  %v6204 = vadd.f32 %v6032, %v2143
  %v6205 = vadd.f32 %v6037, %v2148
  %v6206 = vadd.f32 %v6040, %v2153
  %v6207 = vadd.f32 %v6045, %v2158
  %v6208 = vadd.f32 %v6048, %v2163
  %v6209 = vadd.f32 %v6053, %v2168
  %v6210 = vadd.f32 %v6056, %v2173
  %v6211 = vadd.f32 %v6061, %v2178
  %v6212 = vadd.f32 %v6064, %v2183
  %v6213 = vadd.f32 %v6069, %v2188
  %v6214 = vadd.f32 %v6072, %v2193
  %v6215 = vadd.f32 %v6077, %v2198
  %v6216 = vadd.f32 %v6080, %v2203
  %v6217 = vadd.f32 %v6085, %v2208
  %v6218 = vadd.f32 %v6088, %v2213
  %v6219 = vsel %vm5349, %v6091, -inf
  %v6220 = vsel %vm5349, %v6092, -inf
  %v6221 = vmax.f32 %v6219, %v6220
  %v6222 = vsel %vm5349, %v6093, -inf
  %v6223 = vmax.f32 %v6221, %v6222
  %v6224 = vsel %vm5349, %v6094, -inf
  %v6225 = vmax.f32 %v6223, %v6224
  %v6226 = vrot.slane %v6225, 4
  %v6227 = vmax.f32 %v6225, %v6226
  %v6228 = vrot.slane %v6227, 2
  %v6229 = vmax.f32 %v6227, %v6228
  %v6230 = vrot.slane %v6229, 1
  %v6231 = vmax.f32 %v6229, %v6230
  %v6232 = vsel %vm5349, %v6095, -inf
  %v6233 = vsel %vm5349, %v6096, -inf
  %v6234 = vmax.f32 %v6232, %v6233
  %v6235 = vsel %vm5349, %v6097, -inf
  %v6236 = vmax.f32 %v6234, %v6235
  %v6237 = vsel %vm5349, %v6098, -inf
  %v6238 = vmax.f32 %v6236, %v6237
  %v6239 = vrot.slane %v6238, 4
  %v6240 = vmax.f32 %v6238, %v6239
  %v6241 = vrot.slane %v6240, 2
  %v6242 = vmax.f32 %v6240, %v6241
  %v6243 = vrot.slane %v6242, 1
  %v6244 = vmax.f32 %v6242, %v6243
  %v6245 = vsel %vm5349, %v6099, -inf
  %v6246 = vsel %vm5349, %v6100, -inf
  %v6247 = vmax.f32 %v6245, %v6246
  %v6248 = vsel %vm5349, %v6101, -inf
  %v6249 = vmax.f32 %v6247, %v6248
  %v6250 = vsel %vm5349, %v6102, -inf
  %v6251 = vmax.f32 %v6249, %v6250
  %v6252 = vrot.slane %v6251, 4
  %v6253 = vmax.f32 %v6251, %v6252
  %v6254 = vrot.slane %v6253, 2
  %v6255 = vmax.f32 %v6253, %v6254
  %v6256 = vrot.slane %v6255, 1
  %v6257 = vmax.f32 %v6255, %v6256
  %v6258 = vsel %vm5349, %v6103, -inf
  %v6259 = vsel %vm5349, %v6104, -inf
  %v6260 = vmax.f32 %v6258, %v6259
  %v6261 = vsel %vm5349, %v6105, -inf
  %v6262 = vmax.f32 %v6260, %v6261
  %v6263 = vsel %vm5349, %v6106, -inf
  %v6264 = vmax.f32 %v6262, %v6263
  %v6265 = vrot.slane %v6264, 4
  %v6266 = vmax.f32 %v6264, %v6265
  %v6267 = vrot.slane %v6266, 2
  %v6268 = vmax.f32 %v6266, %v6267
  %v6269 = vrot.slane %v6268, 1
  %v6270 = vmax.f32 %v6268, %v6269
  %v6271 = vsel %vm5349, %v6107, -inf
  %v6272 = vsel %vm5349, %v6108, -inf
  %v6273 = vmax.f32 %v6271, %v6272
  %v6274 = vsel %vm5349, %v6109, -inf
  %v6275 = vmax.f32 %v6273, %v6274
  %v6276 = vsel %vm5349, %v6110, -inf
  %v6277 = vmax.f32 %v6275, %v6276
  %v6278 = vrot.slane %v6277, 4
  %v6279 = vmax.f32 %v6277, %v6278
  %v6280 = vrot.slane %v6279, 2
  %v6281 = vmax.f32 %v6279, %v6280
  %v6282 = vrot.slane %v6281, 1
  %v6283 = vmax.f32 %v6281, %v6282
  %v6284 = vsel %vm5349, %v6111, -inf
  %v6285 = vsel %vm5349, %v6112, -inf
  %v6286 = vmax.f32 %v6284, %v6285
  %v6287 = vsel %vm5349, %v6113, -inf
  %v6288 = vmax.f32 %v6286, %v6287
  %v6289 = vsel %vm5349, %v6114, -inf
  %v6290 = vmax.f32 %v6288, %v6289
  %v6291 = vrot.slane %v6290, 4
  %v6292 = vmax.f32 %v6290, %v6291
  %v6293 = vrot.slane %v6292, 2
  %v6294 = vmax.f32 %v6292, %v6293
  %v6295 = vrot.slane %v6294, 1
  %v6296 = vmax.f32 %v6294, %v6295
  %v6297 = vsel %vm5349, %v6115, -inf
  %v6298 = vsel %vm5349, %v6116, -inf
  %v6299 = vmax.f32 %v6297, %v6298
  %v6300 = vsel %vm5349, %v6117, -inf
  %v6301 = vmax.f32 %v6299, %v6300
  %v6302 = vsel %vm5349, %v6118, -inf
  %v6303 = vmax.f32 %v6301, %v6302
  %v6304 = vrot.slane %v6303, 4
  %v6305 = vmax.f32 %v6303, %v6304
  %v6306 = vrot.slane %v6305, 2
  %v6307 = vmax.f32 %v6305, %v6306
  %v6308 = vrot.slane %v6307, 1
  %v6309 = vmax.f32 %v6307, %v6308
  %v6310 = vsel %vm5349, %v6119, -inf
  %v6311 = vsel %vm5349, %v6120, -inf
  %v6312 = vmax.f32 %v6310, %v6311
  %v6313 = vsel %vm5349, %v6121, -inf
  %v6314 = vmax.f32 %v6312, %v6313
  %v6315 = vsel %vm5349, %v6122, -inf
  %v6316 = vmax.f32 %v6314, %v6315
  %v6317 = vrot.slane %v6316, 4
  %v6318 = vmax.f32 %v6316, %v6317
  %v6319 = vrot.slane %v6318, 2
  %v6320 = vmax.f32 %v6318, %v6319
  %v6321 = vrot.slane %v6320, 1
  %v6322 = vmax.f32 %v6320, %v6321
  %v6323 = vsel %vm5349, %v6123, -inf
  %v6324 = vsel %vm5349, %v6124, -inf
  %v6325 = vmax.f32 %v6323, %v6324
  %v6326 = vsel %vm5349, %v6125, -inf
  %v6327 = vmax.f32 %v6325, %v6326
  %v6328 = vsel %vm5349, %v6126, -inf
  %v6329 = vmax.f32 %v6327, %v6328
  %v6330 = vrot.slane %v6329, 4
  %v6331 = vmax.f32 %v6329, %v6330
  %v6332 = vrot.slane %v6331, 2
  %v6333 = vmax.f32 %v6331, %v6332
  %v6334 = vrot.slane %v6333, 1
  %v6335 = vmax.f32 %v6333, %v6334
  %v6336 = vsel %vm5349, %v6127, -inf
  %v6337 = vsel %vm5349, %v6128, -inf
  %v6338 = vmax.f32 %v6336, %v6337
  %v6339 = vsel %vm5349, %v6129, -inf
  %v6340 = vmax.f32 %v6338, %v6339
  %v6341 = vsel %vm5349, %v6130, -inf
  %v6342 = vmax.f32 %v6340, %v6341
  %v6343 = vrot.slane %v6342, 4
  %v6344 = vmax.f32 %v6342, %v6343
  %v6345 = vrot.slane %v6344, 2
  %v6346 = vmax.f32 %v6344, %v6345
  %v6347 = vrot.slane %v6346, 1
  %v6348 = vmax.f32 %v6346, %v6347
  %v6349 = vsel %vm5349, %v6131, -inf
  %v6350 = vsel %vm5349, %v6132, -inf
  %v6351 = vmax.f32 %v6349, %v6350
  %v6352 = vsel %vm5349, %v6133, -inf
  %v6353 = vmax.f32 %v6351, %v6352
  %v6354 = vsel %vm5349, %v6134, -inf
  %v6355 = vmax.f32 %v6353, %v6354
  %v6356 = vrot.slane %v6355, 4
  %v6357 = vmax.f32 %v6355, %v6356
  %v6358 = vrot.slane %v6357, 2
  %v6359 = vmax.f32 %v6357, %v6358
  %v6360 = vrot.slane %v6359, 1
  %v6361 = vmax.f32 %v6359, %v6360
  %v6362 = vsel %vm5349, %v6135, -inf
  %v6363 = vsel %vm5349, %v6136, -inf
  %v6364 = vmax.f32 %v6362, %v6363
  %v6365 = vsel %vm5349, %v6137, -inf
  %v6366 = vmax.f32 %v6364, %v6365
  %v6367 = vsel %vm5349, %v6138, -inf
  %v6368 = vmax.f32 %v6366, %v6367
  %v6369 = vrot.slane %v6368, 4
  %v6370 = vmax.f32 %v6368, %v6369
  %v6371 = vrot.slane %v6370, 2
  %v6372 = vmax.f32 %v6370, %v6371
  %v6373 = vrot.slane %v6372, 1
  %v6374 = vmax.f32 %v6372, %v6373
  %v6375 = vsel %vm5349, %v6139, -inf
  %v6376 = vsel %vm5349, %v6140, -inf
  %v6377 = vmax.f32 %v6375, %v6376
  %v6378 = vsel %vm5349, %v6141, -inf
  %v6379 = vmax.f32 %v6377, %v6378
  %v6380 = vsel %vm5349, %v6142, -inf
  %v6381 = vmax.f32 %v6379, %v6380
  %v6382 = vrot.slane %v6381, 4
  %v6383 = vmax.f32 %v6381, %v6382
  %v6384 = vrot.slane %v6383, 2
  %v6385 = vmax.f32 %v6383, %v6384
  %v6386 = vrot.slane %v6385, 1
  %v6387 = vmax.f32 %v6385, %v6386
  %v6388 = vsel %vm5349, %v6143, -inf
  %v6389 = vsel %vm5349, %v6144, -inf
  %v6390 = vmax.f32 %v6388, %v6389
  %v6391 = vsel %vm5349, %v6145, -inf
  %v6392 = vmax.f32 %v6390, %v6391
  %v6393 = vsel %vm5349, %v6146, -inf
  %v6394 = vmax.f32 %v6392, %v6393
  %v6395 = vrot.slane %v6394, 4
  %v6396 = vmax.f32 %v6394, %v6395
  %v6397 = vrot.slane %v6396, 2
  %v6398 = vmax.f32 %v6396, %v6397
  %v6399 = vrot.slane %v6398, 1
  %v6400 = vmax.f32 %v6398, %v6399
  %v6401 = vsel %vm5349, %v6147, -inf
  %v6402 = vsel %vm5349, %v6148, -inf
  %v6403 = vmax.f32 %v6401, %v6402
  %v6404 = vsel %vm5349, %v6149, -inf
  %v6405 = vmax.f32 %v6403, %v6404
  %v6406 = vsel %vm5349, %v6150, -inf
  %v6407 = vmax.f32 %v6405, %v6406
  %v6408 = vrot.slane %v6407, 4
  %v6409 = vmax.f32 %v6407, %v6408
  %v6410 = vrot.slane %v6409, 2
  %v6411 = vmax.f32 %v6409, %v6410
  %v6412 = vrot.slane %v6411, 1
  %v6413 = vmax.f32 %v6411, %v6412
  %v6414 = vsel %vm5349, %v6151, -inf
  %v6415 = vsel %vm5349, %v6152, -inf
  %v6416 = vmax.f32 %v6414, %v6415
  %v6417 = vsel %vm5349, %v6153, -inf
  %v6418 = vmax.f32 %v6416, %v6417
  %v6419 = vsel %vm5349, %v6154, -inf
  %v6420 = vmax.f32 %v6418, %v6419
  %v6421 = vrot.slane %v6420, 4
  %v6422 = vmax.f32 %v6420, %v6421
  %v6423 = vrot.slane %v6422, 2
  %v6424 = vmax.f32 %v6422, %v6423
  %v6425 = vrot.slane %v6424, 1
  %v6426 = vmax.f32 %v6424, %v6425
  %v6427 = vsel %vm5349, %v6155, -inf
  %v6428 = vsel %vm5349, %v6156, -inf
  %v6429 = vmax.f32 %v6427, %v6428
  %v6430 = vsel %vm5349, %v6157, -inf
  %v6431 = vmax.f32 %v6429, %v6430
  %v6432 = vsel %vm5349, %v6158, -inf
  %v6433 = vmax.f32 %v6431, %v6432
  %v6434 = vrot.slane %v6433, 4
  %v6435 = vmax.f32 %v6433, %v6434
  %v6436 = vrot.slane %v6435, 2
  %v6437 = vmax.f32 %v6435, %v6436
  %v6438 = vrot.slane %v6437, 1
  %v6439 = vmax.f32 %v6437, %v6438
  %v6440 = vsel %vm5349, %v6159, -inf
  %v6441 = vsel %vm5349, %v6160, -inf
  %v6442 = vmax.f32 %v6440, %v6441
  %v6443 = vsel %vm5349, %v6161, -inf
  %v6444 = vmax.f32 %v6442, %v6443
  %v6445 = vsel %vm5349, %v6162, -inf
  %v6446 = vmax.f32 %v6444, %v6445
  %v6447 = vrot.slane %v6446, 4
  %v6448 = vmax.f32 %v6446, %v6447
  %v6449 = vrot.slane %v6448, 2
  %v6450 = vmax.f32 %v6448, %v6449
  %v6451 = vrot.slane %v6450, 1
  %v6452 = vmax.f32 %v6450, %v6451
  %v6453 = vsel %vm5349, %v6163, -inf
  %v6454 = vsel %vm5349, %v6164, -inf
  %v6455 = vmax.f32 %v6453, %v6454
  %v6456 = vsel %vm5349, %v6165, -inf
  %v6457 = vmax.f32 %v6455, %v6456
  %v6458 = vsel %vm5349, %v6166, -inf
  %v6459 = vmax.f32 %v6457, %v6458
  %v6460 = vrot.slane %v6459, 4
  %v6461 = vmax.f32 %v6459, %v6460
  %v6462 = vrot.slane %v6461, 2
  %v6463 = vmax.f32 %v6461, %v6462
  %v6464 = vrot.slane %v6463, 1
  %v6465 = vmax.f32 %v6463, %v6464
  %v6466 = vsel %vm5349, %v6167, -inf
  %v6467 = vsel %vm5349, %v6168, -inf
  %v6468 = vmax.f32 %v6466, %v6467
  %v6469 = vsel %vm5349, %v6169, -inf
  %v6470 = vmax.f32 %v6468, %v6469
  %v6471 = vsel %vm5349, %v6170, -inf
  %v6472 = vmax.f32 %v6470, %v6471
  %v6473 = vrot.slane %v6472, 4
  %v6474 = vmax.f32 %v6472, %v6473
  %v6475 = vrot.slane %v6474, 2
  %v6476 = vmax.f32 %v6474, %v6475
  %v6477 = vrot.slane %v6476, 1
  %v6478 = vmax.f32 %v6476, %v6477
  %v6479 = vsel %vm5349, %v6171, -inf
  %v6480 = vsel %vm5349, %v6172, -inf
  %v6481 = vmax.f32 %v6479, %v6480
  %v6482 = vsel %vm5349, %v6173, -inf
  %v6483 = vmax.f32 %v6481, %v6482
  %v6484 = vsel %vm5349, %v6174, -inf
  %v6485 = vmax.f32 %v6483, %v6484
  %v6486 = vrot.slane %v6485, 4
  %v6487 = vmax.f32 %v6485, %v6486
  %v6488 = vrot.slane %v6487, 2
  %v6489 = vmax.f32 %v6487, %v6488
  %v6490 = vrot.slane %v6489, 1
  %v6491 = vmax.f32 %v6489, %v6490
  %v6492 = vsel %vm5349, %v6175, -inf
  %v6493 = vsel %vm5349, %v6176, -inf
  %v6494 = vmax.f32 %v6492, %v6493
  %v6495 = vsel %vm5349, %v6177, -inf
  %v6496 = vmax.f32 %v6494, %v6495
  %v6497 = vsel %vm5349, %v6178, -inf
  %v6498 = vmax.f32 %v6496, %v6497
  %v6499 = vrot.slane %v6498, 4
  %v6500 = vmax.f32 %v6498, %v6499
  %v6501 = vrot.slane %v6500, 2
  %v6502 = vmax.f32 %v6500, %v6501
  %v6503 = vrot.slane %v6502, 1
  %v6504 = vmax.f32 %v6502, %v6503
  %v6505 = vsel %vm5349, %v6179, -inf
  %v6506 = vsel %vm5349, %v6180, -inf
  %v6507 = vmax.f32 %v6505, %v6506
  %v6508 = vsel %vm5349, %v6181, -inf
  %v6509 = vmax.f32 %v6507, %v6508
  %v6510 = vsel %vm5349, %v6182, -inf
  %v6511 = vmax.f32 %v6509, %v6510
  %v6512 = vrot.slane %v6511, 4
  %v6513 = vmax.f32 %v6511, %v6512
  %v6514 = vrot.slane %v6513, 2
  %v6515 = vmax.f32 %v6513, %v6514
  %v6516 = vrot.slane %v6515, 1
  %v6517 = vmax.f32 %v6515, %v6516
  %v6518 = vsel %vm5349, %v6183, -inf
  %v6519 = vsel %vm5349, %v6184, -inf
  %v6520 = vmax.f32 %v6518, %v6519
  %v6521 = vsel %vm5349, %v6185, -inf
  %v6522 = vmax.f32 %v6520, %v6521
  %v6523 = vsel %vm5349, %v6186, -inf
  %v6524 = vmax.f32 %v6522, %v6523
  %v6525 = vrot.slane %v6524, 4
  %v6526 = vmax.f32 %v6524, %v6525
  %v6527 = vrot.slane %v6526, 2
  %v6528 = vmax.f32 %v6526, %v6527
  %v6529 = vrot.slane %v6528, 1
  %v6530 = vmax.f32 %v6528, %v6529
  %v6531 = vsel %vm5349, %v6187, -inf
  %v6532 = vsel %vm5349, %v6188, -inf
  %v6533 = vmax.f32 %v6531, %v6532
  %v6534 = vsel %vm5349, %v6189, -inf
  %v6535 = vmax.f32 %v6533, %v6534
  %v6536 = vsel %vm5349, %v6190, -inf
  %v6537 = vmax.f32 %v6535, %v6536
  %v6538 = vrot.slane %v6537, 4
  %v6539 = vmax.f32 %v6537, %v6538
  %v6540 = vrot.slane %v6539, 2
  %v6541 = vmax.f32 %v6539, %v6540
  %v6542 = vrot.slane %v6541, 1
  %v6543 = vmax.f32 %v6541, %v6542
  %v6544 = vsel %vm5349, %v6191, -inf
  %v6545 = vsel %vm5349, %v6192, -inf
  %v6546 = vmax.f32 %v6544, %v6545
  %v6547 = vsel %vm5349, %v6193, -inf
  %v6548 = vmax.f32 %v6546, %v6547
  %v6549 = vsel %vm5349, %v6194, -inf
  %v6550 = vmax.f32 %v6548, %v6549
  %v6551 = vrot.slane %v6550, 4
  %v6552 = vmax.f32 %v6550, %v6551
  %v6553 = vrot.slane %v6552, 2
  %v6554 = vmax.f32 %v6552, %v6553
  %v6555 = vrot.slane %v6554, 1
  %v6556 = vmax.f32 %v6554, %v6555
  %v6557 = vsel %vm5349, %v6195, -inf
  %v6558 = vsel %vm5349, %v6196, -inf
  %v6559 = vmax.f32 %v6557, %v6558
  %v6560 = vsel %vm5349, %v6197, -inf
  %v6561 = vmax.f32 %v6559, %v6560
  %v6562 = vsel %vm5349, %v6198, -inf
  %v6563 = vmax.f32 %v6561, %v6562
  %v6564 = vrot.slane %v6563, 4
  %v6565 = vmax.f32 %v6563, %v6564
  %v6566 = vrot.slane %v6565, 2
  %v6567 = vmax.f32 %v6565, %v6566
  %v6568 = vrot.slane %v6567, 1
  %v6569 = vmax.f32 %v6567, %v6568
  %v6570 = vsel %vm5349, %v6199, -inf
  %v6571 = vsel %vm5349, %v6200, -inf
  %v6572 = vmax.f32 %v6570, %v6571
  %v6573 = vsel %vm5349, %v6201, -inf
  %v6574 = vmax.f32 %v6572, %v6573
  %v6575 = vsel %vm5349, %v6202, -inf
  %v6576 = vmax.f32 %v6574, %v6575
  %v6577 = vrot.slane %v6576, 4
  %v6578 = vmax.f32 %v6576, %v6577
  %v6579 = vrot.slane %v6578, 2
  %v6580 = vmax.f32 %v6578, %v6579
  %v6581 = vrot.slane %v6580, 1
  %v6582 = vmax.f32 %v6580, %v6581
  %v6583 = vsel %vm5349, %v6203, -inf
  %v6584 = vsel %vm5349, %v6204, -inf
  %v6585 = vmax.f32 %v6583, %v6584
  %v6586 = vsel %vm5349, %v6205, -inf
  %v6587 = vmax.f32 %v6585, %v6586
  %v6588 = vsel %vm5349, %v6206, -inf
  %v6589 = vmax.f32 %v6587, %v6588
  %v6590 = vrot.slane %v6589, 4
  %v6591 = vmax.f32 %v6589, %v6590
  %v6592 = vrot.slane %v6591, 2
  %v6593 = vmax.f32 %v6591, %v6592
  %v6594 = vrot.slane %v6593, 1
  %v6595 = vmax.f32 %v6593, %v6594
  %v6596 = vsel %vm5349, %v6207, -inf
  %v6597 = vsel %vm5349, %v6208, -inf
  %v6598 = vmax.f32 %v6596, %v6597
  %v6599 = vsel %vm5349, %v6209, -inf
  %v6600 = vmax.f32 %v6598, %v6599
  %v6601 = vsel %vm5349, %v6210, -inf
  %v6602 = vmax.f32 %v6600, %v6601
  %v6603 = vrot.slane %v6602, 4
  %v6604 = vmax.f32 %v6602, %v6603
  %v6605 = vrot.slane %v6604, 2
  %v6606 = vmax.f32 %v6604, %v6605
  %v6607 = vrot.slane %v6606, 1
  %v6608 = vmax.f32 %v6606, %v6607
  %v6609 = vsel %vm5349, %v6211, -inf
  %v6610 = vsel %vm5349, %v6212, -inf
  %v6611 = vmax.f32 %v6609, %v6610
  %v6612 = vsel %vm5349, %v6213, -inf
  %v6613 = vmax.f32 %v6611, %v6612
  %v6614 = vsel %vm5349, %v6214, -inf
  %v6615 = vmax.f32 %v6613, %v6614
  %v6616 = vrot.slane %v6615, 4
  %v6617 = vmax.f32 %v6615, %v6616
  %v6618 = vrot.slane %v6617, 2
  %v6619 = vmax.f32 %v6617, %v6618
  %v6620 = vrot.slane %v6619, 1
  %v6621 = vmax.f32 %v6619, %v6620
  %v6622 = vsel %vm5349, %v6215, -inf
  %v6623 = vsel %vm5349, %v6216, -inf
  %v6624 = vmax.f32 %v6622, %v6623
  %v6625 = vsel %vm5349, %v6217, -inf
  %v6626 = vmax.f32 %v6624, %v6625
  %v6627 = vsel %vm5349, %v6218, -inf
  %v6628 = vmax.f32 %v6626, %v6627
  %v6629 = vrot.slane %v6628, 4
  %v6630 = vmax.f32 %v6628, %v6629
  %v6631 = vrot.slane %v6630, 2
  %v6632 = vmax.f32 %v6630, %v6631
  %v6633 = vrot.slane %v6632, 1
  %v6634 = vmax.f32 %v6632, %v6633
  %v6635 = vsub.f32 %v6091, %v6231
  %v6636 = vsub.f32 %v6092, %v6231
  %v6637 = vsub.f32 %v6093, %v6231
  %v6638 = vsub.f32 %v6094, %v6231
  %v6639 = vsub.f32 %v6095, %v6244
  %v6640 = vsub.f32 %v6096, %v6244
  %v6641 = vsub.f32 %v6097, %v6244
  %v6642 = vsub.f32 %v6098, %v6244
  %v6643 = vsub.f32 %v6099, %v6257
  %v6644 = vsub.f32 %v6100, %v6257
  %v6645 = vsub.f32 %v6101, %v6257
  %v6646 = vsub.f32 %v6102, %v6257
  %v6647 = vsub.f32 %v6103, %v6270
  %v6648 = vsub.f32 %v6104, %v6270
  %v6649 = vsub.f32 %v6105, %v6270
  %v6650 = vsub.f32 %v6106, %v6270
  %v6651 = vsub.f32 %v6107, %v6283
  %v6652 = vsub.f32 %v6108, %v6283
  %v6653 = vsub.f32 %v6109, %v6283
  %v6654 = vsub.f32 %v6110, %v6283
  %v6655 = vsub.f32 %v6111, %v6296
  %v6656 = vsub.f32 %v6112, %v6296
  %v6657 = vsub.f32 %v6113, %v6296
  %v6658 = vsub.f32 %v6114, %v6296
  %v6659 = vsub.f32 %v6115, %v6309
  %v6660 = vsub.f32 %v6116, %v6309
  %v6661 = vsub.f32 %v6117, %v6309
  %v6662 = vsub.f32 %v6118, %v6309
  %v6663 = vsub.f32 %v6119, %v6322
  %v6664 = vsub.f32 %v6120, %v6322
  %v6665 = vsub.f32 %v6121, %v6322
  %v6666 = vsub.f32 %v6122, %v6322
  %v6667 = vsub.f32 %v6123, %v6335
  %v6668 = vsub.f32 %v6124, %v6335
  %v6669 = vsub.f32 %v6125, %v6335
  %v6670 = vsub.f32 %v6126, %v6335
  %v6671 = vsub.f32 %v6127, %v6348
  %v6672 = vsub.f32 %v6128, %v6348
  %v6673 = vsub.f32 %v6129, %v6348
  %v6674 = vsub.f32 %v6130, %v6348
  %v6675 = vsub.f32 %v6131, %v6361
  %v6676 = vsub.f32 %v6132, %v6361
  %v6677 = vsub.f32 %v6133, %v6361
  %v6678 = vsub.f32 %v6134, %v6361
  %v6679 = vsub.f32 %v6135, %v6374
  %v6680 = vsub.f32 %v6136, %v6374
  %v6681 = vsub.f32 %v6137, %v6374
  %v6682 = vsub.f32 %v6138, %v6374
  %v6683 = vsub.f32 %v6139, %v6387
  %v6684 = vsub.f32 %v6140, %v6387
  %v6685 = vsub.f32 %v6141, %v6387
  %v6686 = vsub.f32 %v6142, %v6387
  %v6687 = vsub.f32 %v6143, %v6400
  %v6688 = vsub.f32 %v6144, %v6400
  %v6689 = vsub.f32 %v6145, %v6400
  %v6690 = vsub.f32 %v6146, %v6400
  %v6691 = vsub.f32 %v6147, %v6413
  %v6692 = vsub.f32 %v6148, %v6413
  %v6693 = vsub.f32 %v6149, %v6413
  %v6694 = vsub.f32 %v6150, %v6413
  %v6695 = vsub.f32 %v6151, %v6426
  %v6696 = vsub.f32 %v6152, %v6426
  %v6697 = vsub.f32 %v6153, %v6426
  %v6698 = vsub.f32 %v6154, %v6426
  %v6699 = vsub.f32 %v6155, %v6439
  %v6700 = vsub.f32 %v6156, %v6439
  %v6701 = vsub.f32 %v6157, %v6439
  %v6702 = vsub.f32 %v6158, %v6439
  %v6703 = vsub.f32 %v6159, %v6452
  %v6704 = vsub.f32 %v6160, %v6452
  %v6705 = vsub.f32 %v6161, %v6452
  %v6706 = vsub.f32 %v6162, %v6452
  %v6707 = vsub.f32 %v6163, %v6465
  %v6708 = vsub.f32 %v6164, %v6465
  %v6709 = vsub.f32 %v6165, %v6465
  %v6710 = vsub.f32 %v6166, %v6465
  %v6711 = vsub.f32 %v6167, %v6478
  %v6712 = vsub.f32 %v6168, %v6478
  %v6713 = vsub.f32 %v6169, %v6478
  %v6714 = vsub.f32 %v6170, %v6478
  %v6715 = vsub.f32 %v6171, %v6491
  %v6716 = vsub.f32 %v6172, %v6491
  %v6717 = vsub.f32 %v6173, %v6491
  %v6718 = vsub.f32 %v6174, %v6491
  %v6719 = vsub.f32 %v6175, %v6504
  %v6720 = vsub.f32 %v6176, %v6504
  %v6721 = vsub.f32 %v6177, %v6504
  %v6722 = vsub.f32 %v6178, %v6504
  %v6723 = vsub.f32 %v6179, %v6517
  %v6724 = vsub.f32 %v6180, %v6517
  %v6725 = vsub.f32 %v6181, %v6517
  %v6726 = vsub.f32 %v6182, %v6517
  %v6727 = vsub.f32 %v6183, %v6530
  %v6728 = vsub.f32 %v6184, %v6530
  %v6729 = vsub.f32 %v6185, %v6530
  %v6730 = vsub.f32 %v6186, %v6530
  %v6731 = vsub.f32 %v6187, %v6543
  %v6732 = vsub.f32 %v6188, %v6543
  %v6733 = vsub.f32 %v6189, %v6543
  %v6734 = vsub.f32 %v6190, %v6543
  %v6735 = vsub.f32 %v6191, %v6556
  %v6736 = vsub.f32 %v6192, %v6556
  %v6737 = vsub.f32 %v6193, %v6556
  %v6738 = vsub.f32 %v6194, %v6556
  %v6739 = vsub.f32 %v6195, %v6569
  %v6740 = vsub.f32 %v6196, %v6569
  %v6741 = vsub.f32 %v6197, %v6569
  %v6742 = vsub.f32 %v6198, %v6569
  %v6743 = vsub.f32 %v6199, %v6582
  %v6744 = vsub.f32 %v6200, %v6582
  %v6745 = vsub.f32 %v6201, %v6582
  %v6746 = vsub.f32 %v6202, %v6582
  %v6747 = vsub.f32 %v6203, %v6595
  %v6748 = vsub.f32 %v6204, %v6595
  %v6749 = vsub.f32 %v6205, %v6595
  %v6750 = vsub.f32 %v6206, %v6595
  %v6751 = vsub.f32 %v6207, %v6608
  %v6752 = vsub.f32 %v6208, %v6608
  %v6753 = vsub.f32 %v6209, %v6608
  %v6754 = vsub.f32 %v6210, %v6608
  %v6755 = vsub.f32 %v6211, %v6621
  %v6756 = vsub.f32 %v6212, %v6621
  %v6757 = vsub.f32 %v6213, %v6621
  %v6758 = vsub.f32 %v6214, %v6621
  %v6759 = vsub.f32 %v6215, %v6634
  %v6760 = vsub.f32 %v6216, %v6634
  %v6761 = vsub.f32 %v6217, %v6634
  %v6762 = vsub.f32 %v6218, %v6634
  %v6763 = vmul.f32 %v6635, 1.442695
  %v6764 = vpow.pop %v6763
  %v6765 = vmul.f32 %v6636, 1.442695
  %v6766 = vpow.pop %v6765
  %v6767 = vmul.f32 %v6637, 1.442695
  %v6768 = vpow.pop %v6767
  %v6769 = vmul.f32 %v6638, 1.442695
  %v6770 = vpow.pop %v6769
  %v6771 = vmul.f32 %v6639, 1.442695
  %v6772 = vpow.pop %v6771
  %v6773 = vmul.f32 %v6640, 1.442695
  %v6774 = vpow.pop %v6773
  %v6775 = vmul.f32 %v6641, 1.442695
  %v6776 = vpow.pop %v6775
  %v6777 = vmul.f32 %v6642, 1.442695
  %v6778 = vpow.pop %v6777
  %v6779 = vmul.f32 %v6643, 1.442695
  %v6780 = vpow.pop %v6779
  %v6781 = vmul.f32 %v6644, 1.442695
  %v6782 = vpow.pop %v6781
  %v6783 = vmul.f32 %v6645, 1.442695
  %v6784 = vpow.pop %v6783
  %v6785 = vmul.f32 %v6646, 1.442695
  %v6786 = vpow.pop %v6785
  %v6787 = vmul.f32 %v6647, 1.442695
  %v6788 = vpow.pop %v6787
  %v6789 = vmul.f32 %v6648, 1.442695
  %v6790 = vpow.pop %v6789
  %v6791 = vmul.f32 %v6649, 1.442695
  %v6792 = vpow.pop %v6791
  %v6793 = vmul.f32 %v6650, 1.442695
  %v6794 = vpow.pop %v6793
  %v6795 = vmul.f32 %v6651, 1.442695
  %v6796 = vpow.pop %v6795
  %v6797 = vmul.f32 %v6652, 1.442695
  %v6798 = vpow.pop %v6797
  %v6799 = vmul.f32 %v6653, 1.442695
  %v6800 = vpow.pop %v6799
  %v6801 = vmul.f32 %v6654, 1.442695
  %v6802 = vpow.pop %v6801
  %v6803 = vmul.f32 %v6655, 1.442695
  %v6804 = vpow.pop %v6803
  %v6805 = vmul.f32 %v6656, 1.442695
  %v6806 = vpow.pop %v6805
  %v6807 = vmul.f32 %v6657, 1.442695
  %v6808 = vpow.pop %v6807
  %v6809 = vmul.f32 %v6658, 1.442695
  %v6810 = vpow.pop %v6809
  %v6811 = vmul.f32 %v6659, 1.442695
  %v6812 = vpow.pop %v6811
  %v6813 = vmul.f32 %v6660, 1.442695
  %v6814 = vpow.pop %v6813
  %v6815 = vmul.f32 %v6661, 1.442695
  %v6816 = vpow.pop %v6815
  %v6817 = vmul.f32 %v6662, 1.442695
  %v6818 = vpow.pop %v6817
  %v6819 = vmul.f32 %v6663, 1.442695
  %v6820 = vpow.pop %v6819
  %v6821 = vmul.f32 %v6664, 1.442695
  %v6822 = vpow.pop %v6821
  %v6823 = vmul.f32 %v6665, 1.442695
  %v6824 = vpow.pop %v6823
  %v6825 = vmul.f32 %v6666, 1.442695
  %v6826 = vpow.pop %v6825
  %v6827 = vmul.f32 %v6667, 1.442695
  %v6828 = vpow.pop %v6827
  %v6829 = vmul.f32 %v6668, 1.442695
  %v6830 = vpow.pop %v6829
  %v6831 = vmul.f32 %v6669, 1.442695
  %v6832 = vpow.pop %v6831
  %v6833 = vmul.f32 %v6670, 1.442695
  %v6834 = vpow.pop %v6833
  %v6835 = vmul.f32 %v6671, 1.442695
  %v6836 = vpow.pop %v6835
  %v6837 = vmul.f32 %v6672, 1.442695
  %v6838 = vpow.pop %v6837
  %v6839 = vmul.f32 %v6673, 1.442695
  %v6840 = vpow.pop %v6839
  %v6841 = vmul.f32 %v6674, 1.442695
  %v6842 = vpow.pop %v6841
  %v6843 = vmul.f32 %v6675, 1.442695
  %v6844 = vpow.pop %v6843
  %v6845 = vmul.f32 %v6676, 1.442695
  %v6846 = vpow.pop %v6845
  %v6847 = vmul.f32 %v6677, 1.442695
  %v6848 = vpow.pop %v6847
  %v6849 = vmul.f32 %v6678, 1.442695
  %v6850 = vpow.pop %v6849
  %v6851 = vmul.f32 %v6679, 1.442695
  %v6852 = vpow.pop %v6851
  %v6853 = vmul.f32 %v6680, 1.442695
  %v6854 = vpow.pop %v6853
  %v6855 = vmul.f32 %v6681, 1.442695
  %v6856 = vpow.pop %v6855
  %v6857 = vmul.f32 %v6682, 1.442695
  %v6858 = vpow.pop %v6857
  %v6859 = vmul.f32 %v6683, 1.442695
  %v6860 = vpow.pop %v6859
  %v6861 = vmul.f32 %v6684, 1.442695
  %v6862 = vpow.pop %v6861
  %v6863 = vmul.f32 %v6685, 1.442695
  %v6864 = vpow.pop %v6863
  %v6865 = vmul.f32 %v6686, 1.442695
  %v6866 = vpow.pop %v6865
  %v6867 = vmul.f32 %v6687, 1.442695
  %v6868 = vpow.pop %v6867
  %v6869 = vmul.f32 %v6688, 1.442695
  %v6870 = vpow.pop %v6869
  %v6871 = vmul.f32 %v6689, 1.442695
  %v6872 = vpow.pop %v6871
  %v6873 = vmul.f32 %v6690, 1.442695
  %v6874 = vpow.pop %v6873
  %v6875 = vmul.f32 %v6691, 1.442695
  %v6876 = vpow.pop %v6875
  %v6877 = vmul.f32 %v6692, 1.442695
  %v6878 = vpow.pop %v6877
  %v6879 = vmul.f32 %v6693, 1.442695
  %v6880 = vpow.pop %v6879
  %v6881 = vmul.f32 %v6694, 1.442695
  %v6882 = vpow.pop %v6881
  %v6883 = vmul.f32 %v6695, 1.442695
  %v6884 = vpow.pop %v6883
  %v6885 = vmul.f32 %v6696, 1.442695
  %v6886 = vpow.pop %v6885
  %v6887 = vmul.f32 %v6697, 1.442695
  %v6888 = vpow.pop %v6887
  %v6889 = vmul.f32 %v6698, 1.442695
  %v6890 = vpow.pop %v6889
  %v6891 = vmul.f32 %v6699, 1.442695
  %v6892 = vpow.pop %v6891
  %v6893 = vmul.f32 %v6700, 1.442695
  %v6894 = vpow.pop %v6893
  %v6895 = vmul.f32 %v6701, 1.442695
  %v6896 = vpow.pop %v6895
  %v6897 = vmul.f32 %v6702, 1.442695
  %v6898 = vpow.pop %v6897
  %v6899 = vmul.f32 %v6703, 1.442695
  %v6900 = vpow.pop %v6899
  %v6901 = vmul.f32 %v6704, 1.442695
  %v6902 = vpow.pop %v6901
  %v6903 = vmul.f32 %v6705, 1.442695
  %v6904 = vpow.pop %v6903
  %v6905 = vmul.f32 %v6706, 1.442695
  %v6906 = vpow.pop %v6905
  %v6907 = vmul.f32 %v6707, 1.442695
  %v6908 = vpow.pop %v6907
  %v6909 = vmul.f32 %v6708, 1.442695
  %v6910 = vpow.pop %v6909
  %v6911 = vmul.f32 %v6709, 1.442695
  %v6912 = vpow.pop %v6911
  %v6913 = vmul.f32 %v6710, 1.442695
  %v6914 = vpow.pop %v6913
  %v6915 = vmul.f32 %v6711, 1.442695
  %v6916 = vpow.pop %v6915
  %v6917 = vmul.f32 %v6712, 1.442695
  %v6918 = vpow.pop %v6917
  %v6919 = vmul.f32 %v6713, 1.442695
  %v6920 = vpow.pop %v6919
  %v6921 = vmul.f32 %v6714, 1.442695
  %v6922 = vpow.pop %v6921
  %v6923 = vmul.f32 %v6715, 1.442695
  %v6924 = vpow.pop %v6923
  %v6925 = vmul.f32 %v6716, 1.442695
  %v6926 = vpow.pop %v6925
  %v6927 = vmul.f32 %v6717, 1.442695
  %v6928 = vpow.pop %v6927
  %v6929 = vmul.f32 %v6718, 1.442695
  %v6930 = vpow.pop %v6929
  %v6931 = vmul.f32 %v6719, 1.442695
  %v6932 = vpow.pop %v6931
  %v6933 = vmul.f32 %v6720, 1.442695
  %v6934 = vpow.pop %v6933
  %v6935 = vmul.f32 %v6721, 1.442695
  %v6936 = vpow.pop %v6935
  %v6937 = vmul.f32 %v6722, 1.442695
  %v6938 = vpow.pop %v6937
  %v6939 = vmul.f32 %v6723, 1.442695
  %v6940 = vpow.pop %v6939
  %v6941 = vmul.f32 %v6724, 1.442695
  %v6942 = vpow.pop %v6941
  %v6943 = vmul.f32 %v6725, 1.442695
  %v6944 = vpow.pop %v6943
  %v6945 = vmul.f32 %v6726, 1.442695
  %v6946 = vpow.pop %v6945
  %v6947 = vmul.f32 %v6727, 1.442695
  %v6948 = vpow.pop %v6947
  %v6949 = vmul.f32 %v6728, 1.442695
  %v6950 = vpow.pop %v6949
  %v6951 = vmul.f32 %v6729, 1.442695
  %v6952 = vpow.pop %v6951
  %v6953 = vmul.f32 %v6730, 1.442695
  %v6954 = vpow.pop %v6953
  %v6955 = vmul.f32 %v6731, 1.442695
  %v6956 = vpow.pop %v6955
  %v6957 = vmul.f32 %v6732, 1.442695
  %v6958 = vpow.pop %v6957
  %v6959 = vmul.f32 %v6733, 1.442695
  %v6960 = vpow.pop %v6959
  %v6961 = vmul.f32 %v6734, 1.442695
  %v6962 = vpow.pop %v6961
  %v6963 = vmul.f32 %v6735, 1.442695
  %v6964 = vpow.pop %v6963
  %v6965 = vmul.f32 %v6736, 1.442695
  %v6966 = vpow.pop %v6965
  %v6967 = vmul.f32 %v6737, 1.442695
  %v6968 = vpow.pop %v6967
  %v6969 = vmul.f32 %v6738, 1.442695
  %v6970 = vpow.pop %v6969
  %v6971 = vmul.f32 %v6739, 1.442695
  %v6972 = vpow.pop %v6971
  %v6973 = vmul.f32 %v6740, 1.442695
  %v6974 = vpow.pop %v6973
  %v6975 = vmul.f32 %v6741, 1.442695
  %v6976 = vpow.pop %v6975
  %v6977 = vmul.f32 %v6742, 1.442695
  %v6978 = vpow.pop %v6977
  %v6979 = vmul.f32 %v6743, 1.442695
  %v6980 = vpow.pop %v6979
  %v6981 = vmul.f32 %v6744, 1.442695
  %v6982 = vpow.pop %v6981
  %v6983 = vmul.f32 %v6745, 1.442695
  %v6984 = vpow.pop %v6983
  %v6985 = vmul.f32 %v6746, 1.442695
  %v6986 = vpow.pop %v6985
  %v6987 = vmul.f32 %v6747, 1.442695
  %v6988 = vpow.pop %v6987
  %v6989 = vmul.f32 %v6748, 1.442695
  %v6990 = vpow.pop %v6989
  %v6991 = vmul.f32 %v6749, 1.442695
  %v6992 = vpow.pop %v6991
  %v6993 = vmul.f32 %v6750, 1.442695
  %v6994 = vpow.pop %v6993
  %v6995 = vmul.f32 %v6751, 1.442695
  %v6996 = vpow.pop %v6995
  %v6997 = vmul.f32 %v6752, 1.442695
  %v6998 = vpow.pop %v6997
  %v6999 = vmul.f32 %v6753, 1.442695
  %v7000 = vpow.pop %v6999
  %v7001 = vmul.f32 %v6754, 1.442695
  %v7002 = vpow.pop %v7001
  %v7003 = vmul.f32 %v6755, 1.442695
  %v7004 = vpow.pop %v7003
  %v7005 = vmul.f32 %v6756, 1.442695
  %v7006 = vpow.pop %v7005
  %v7007 = vmul.f32 %v6757, 1.442695
  %v7008 = vpow.pop %v7007
  %v7009 = vmul.f32 %v6758, 1.442695
  %v7010 = vpow.pop %v7009
  %v7011 = vmul.f32 %v6759, 1.442695
  %v7012 = vpow.pop %v7011
  %v7013 = vmul.f32 %v6760, 1.442695
  %v7014 = vpow.pop %v7013
  %v7015 = vmul.f32 %v6761, 1.442695
  %v7016 = vpow.pop %v7015
  %v7017 = vmul.f32 %v6762, 1.442695
  %v7018 = vpow.pop %v7017
  %v7019 = vsel %vm5349, %v6764, 0.0
  %v7020 = vsel %vm5349, %v6766, 0.0
  %v7021 = vadd.f32 %v7019, %v7020
  %v7022 = vsel %vm5349, %v6768, 0.0
  %v7023 = vadd.f32 %v7021, %v7022
  %v7024 = vsel %vm5349, %v6770, 0.0
  %v7025 = vadd.f32 %v7023, %v7024
  %v7026 = vrot.slane %v7025, 4
  %v7027 = vadd.f32 %v7025, %v7026
  %v7028 = vrot.slane %v7027, 2
  %v7029 = vadd.f32 %v7027, %v7028
  %v7030 = vrot.slane %v7029, 1
  %v7031 = vadd.f32 %v7029, %v7030
  %v7032 = vsel %vm5349, %v6772, 0.0
  %v7033 = vsel %vm5349, %v6774, 0.0
  %v7034 = vadd.f32 %v7032, %v7033
  %v7035 = vsel %vm5349, %v6776, 0.0
  %v7036 = vadd.f32 %v7034, %v7035
  %v7037 = vsel %vm5349, %v6778, 0.0
  %v7038 = vadd.f32 %v7036, %v7037
  %v7039 = vrot.slane %v7038, 4
  %v7040 = vadd.f32 %v7038, %v7039
  %v7041 = vrot.slane %v7040, 2
  %v7042 = vadd.f32 %v7040, %v7041
  %v7043 = vrot.slane %v7042, 1
  %v7044 = vadd.f32 %v7042, %v7043
  %v7045 = vsel %vm5349, %v6780, 0.0
  %v7046 = vsel %vm5349, %v6782, 0.0
  %v7047 = vadd.f32 %v7045, %v7046
  %v7048 = vsel %vm5349, %v6784, 0.0
  %v7049 = vadd.f32 %v7047, %v7048
  %v7050 = vsel %vm5349, %v6786, 0.0
  %v7051 = vadd.f32 %v7049, %v7050
  %v7052 = vrot.slane %v7051, 4
  %v7053 = vadd.f32 %v7051, %v7052
  %v7054 = vrot.slane %v7053, 2
  %v7055 = vadd.f32 %v7053, %v7054
  %v7056 = vrot.slane %v7055, 1
  %v7057 = vadd.f32 %v7055, %v7056
  %v7058 = vsel %vm5349, %v6788, 0.0
  %v7059 = vsel %vm5349, %v6790, 0.0
  %v7060 = vadd.f32 %v7058, %v7059
  %v7061 = vsel %vm5349, %v6792, 0.0
  %v7062 = vadd.f32 %v7060, %v7061
  %v7063 = vsel %vm5349, %v6794, 0.0
  %v7064 = vadd.f32 %v7062, %v7063
  %v7065 = vrot.slane %v7064, 4
  %v7066 = vadd.f32 %v7064, %v7065
  %v7067 = vrot.slane %v7066, 2
  %v7068 = vadd.f32 %v7066, %v7067
  %v7069 = vrot.slane %v7068, 1
  %v7070 = vadd.f32 %v7068, %v7069
  %v7071 = vsel %vm5349, %v6796, 0.0
  %v7072 = vsel %vm5349, %v6798, 0.0
  %v7073 = vadd.f32 %v7071, %v7072
  %v7074 = vsel %vm5349, %v6800, 0.0
  %v7075 = vadd.f32 %v7073, %v7074
  %v7076 = vsel %vm5349, %v6802, 0.0
  %v7077 = vadd.f32 %v7075, %v7076
  %v7078 = vrot.slane %v7077, 4
  %v7079 = vadd.f32 %v7077, %v7078
  %v7080 = vrot.slane %v7079, 2
  %v7081 = vadd.f32 %v7079, %v7080
  %v7082 = vrot.slane %v7081, 1
  %v7083 = vadd.f32 %v7081, %v7082
  %v7084 = vsel %vm5349, %v6804, 0.0
  %v7085 = vsel %vm5349, %v6806, 0.0
  %v7086 = vadd.f32 %v7084, %v7085
  %v7087 = vsel %vm5349, %v6808, 0.0
  %v7088 = vadd.f32 %v7086, %v7087
  %v7089 = vsel %vm5349, %v6810, 0.0
  %v7090 = vadd.f32 %v7088, %v7089
  %v7091 = vrot.slane %v7090, 4
  %v7092 = vadd.f32 %v7090, %v7091
  %v7093 = vrot.slane %v7092, 2
  %v7094 = vadd.f32 %v7092, %v7093
  %v7095 = vrot.slane %v7094, 1
  %v7096 = vadd.f32 %v7094, %v7095
  %v7097 = vsel %vm5349, %v6812, 0.0
  %v7098 = vsel %vm5349, %v6814, 0.0
  %v7099 = vadd.f32 %v7097, %v7098
  %v7100 = vsel %vm5349, %v6816, 0.0
  %v7101 = vadd.f32 %v7099, %v7100
  %v7102 = vsel %vm5349, %v6818, 0.0
  %v7103 = vadd.f32 %v7101, %v7102
  %v7104 = vrot.slane %v7103, 4
  %v7105 = vadd.f32 %v7103, %v7104
  %v7106 = vrot.slane %v7105, 2
  %v7107 = vadd.f32 %v7105, %v7106
  %v7108 = vrot.slane %v7107, 1
  %v7109 = vadd.f32 %v7107, %v7108
  %v7110 = vsel %vm5349, %v6820, 0.0
  %v7111 = vsel %vm5349, %v6822, 0.0
  %v7112 = vadd.f32 %v7110, %v7111
  %v7113 = vsel %vm5349, %v6824, 0.0
  %v7114 = vadd.f32 %v7112, %v7113
  %v7115 = vsel %vm5349, %v6826, 0.0
  %v7116 = vadd.f32 %v7114, %v7115
  %v7117 = vrot.slane %v7116, 4
  %v7118 = vadd.f32 %v7116, %v7117
  %v7119 = vrot.slane %v7118, 2
  %v7120 = vadd.f32 %v7118, %v7119
  %v7121 = vrot.slane %v7120, 1
  %v7122 = vadd.f32 %v7120, %v7121
  %v7123 = vsel %vm5349, %v6828, 0.0
  %v7124 = vsel %vm5349, %v6830, 0.0
  %v7125 = vadd.f32 %v7123, %v7124
  %v7126 = vsel %vm5349, %v6832, 0.0
  %v7127 = vadd.f32 %v7125, %v7126
  %v7128 = vsel %vm5349, %v6834, 0.0
  %v7129 = vadd.f32 %v7127, %v7128
  %v7130 = vrot.slane %v7129, 4
  %v7131 = vadd.f32 %v7129, %v7130
  %v7132 = vrot.slane %v7131, 2
  %v7133 = vadd.f32 %v7131, %v7132
  %v7134 = vrot.slane %v7133, 1
  %v7135 = vadd.f32 %v7133, %v7134
  %v7136 = vsel %vm5349, %v6836, 0.0
  %v7137 = vsel %vm5349, %v6838, 0.0
  %v7138 = vadd.f32 %v7136, %v7137
  %v7139 = vsel %vm5349, %v6840, 0.0
  %v7140 = vadd.f32 %v7138, %v7139
  %v7141 = vsel %vm5349, %v6842, 0.0
  %v7142 = vadd.f32 %v7140, %v7141
  %v7143 = vrot.slane %v7142, 4
  %v7144 = vadd.f32 %v7142, %v7143
  %v7145 = vrot.slane %v7144, 2
  %v7146 = vadd.f32 %v7144, %v7145
  %v7147 = vrot.slane %v7146, 1
  %v7148 = vadd.f32 %v7146, %v7147
  %v7149 = vsel %vm5349, %v6844, 0.0
  %v7150 = vsel %vm5349, %v6846, 0.0
  %v7151 = vadd.f32 %v7149, %v7150
  %v7152 = vsel %vm5349, %v6848, 0.0
  %v7153 = vadd.f32 %v7151, %v7152
  %v7154 = vsel %vm5349, %v6850, 0.0
  %v7155 = vadd.f32 %v7153, %v7154
  %v7156 = vrot.slane %v7155, 4
  %v7157 = vadd.f32 %v7155, %v7156
  %v7158 = vrot.slane %v7157, 2
  %v7159 = vadd.f32 %v7157, %v7158
  %v7160 = vrot.slane %v7159, 1
  %v7161 = vadd.f32 %v7159, %v7160
  %v7162 = vsel %vm5349, %v6852, 0.0
  %v7163 = vsel %vm5349, %v6854, 0.0
  %v7164 = vadd.f32 %v7162, %v7163
  %v7165 = vsel %vm5349, %v6856, 0.0
  %v7166 = vadd.f32 %v7164, %v7165
  %v7167 = vsel %vm5349, %v6858, 0.0
  %v7168 = vadd.f32 %v7166, %v7167
  %v7169 = vrot.slane %v7168, 4
  %v7170 = vadd.f32 %v7168, %v7169
  %v7171 = vrot.slane %v7170, 2
  %v7172 = vadd.f32 %v7170, %v7171
  %v7173 = vrot.slane %v7172, 1
  %v7174 = vadd.f32 %v7172, %v7173
  %v7175 = vsel %vm5349, %v6860, 0.0
  %v7176 = vsel %vm5349, %v6862, 0.0
  %v7177 = vadd.f32 %v7175, %v7176
  %v7178 = vsel %vm5349, %v6864, 0.0
  %v7179 = vadd.f32 %v7177, %v7178
  %v7180 = vsel %vm5349, %v6866, 0.0
  %v7181 = vadd.f32 %v7179, %v7180
  %v7182 = vrot.slane %v7181, 4
  %v7183 = vadd.f32 %v7181, %v7182
  %v7184 = vrot.slane %v7183, 2
  %v7185 = vadd.f32 %v7183, %v7184
  %v7186 = vrot.slane %v7185, 1
  %v7187 = vadd.f32 %v7185, %v7186
  %v7188 = vsel %vm5349, %v6868, 0.0
  %v7189 = vsel %vm5349, %v6870, 0.0
  %v7190 = vadd.f32 %v7188, %v7189
  %v7191 = vsel %vm5349, %v6872, 0.0
  %v7192 = vadd.f32 %v7190, %v7191
  %v7193 = vsel %vm5349, %v6874, 0.0
  %v7194 = vadd.f32 %v7192, %v7193
  %v7195 = vrot.slane %v7194, 4
  %v7196 = vadd.f32 %v7194, %v7195
  %v7197 = vrot.slane %v7196, 2
  %v7198 = vadd.f32 %v7196, %v7197
  %v7199 = vrot.slane %v7198, 1
  %v7200 = vadd.f32 %v7198, %v7199
  %v7201 = vsel %vm5349, %v6876, 0.0
  %v7202 = vsel %vm5349, %v6878, 0.0
  %v7203 = vadd.f32 %v7201, %v7202
  %v7204 = vsel %vm5349, %v6880, 0.0
  %v7205 = vadd.f32 %v7203, %v7204
  %v7206 = vsel %vm5349, %v6882, 0.0
  %v7207 = vadd.f32 %v7205, %v7206
  %v7208 = vrot.slane %v7207, 4
  %v7209 = vadd.f32 %v7207, %v7208
  %v7210 = vrot.slane %v7209, 2
  %v7211 = vadd.f32 %v7209, %v7210
  %v7212 = vrot.slane %v7211, 1
  %v7213 = vadd.f32 %v7211, %v7212
  %v7214 = vsel %vm5349, %v6884, 0.0
  %v7215 = vsel %vm5349, %v6886, 0.0
  %v7216 = vadd.f32 %v7214, %v7215
  %v7217 = vsel %vm5349, %v6888, 0.0
  %v7218 = vadd.f32 %v7216, %v7217
  %v7219 = vsel %vm5349, %v6890, 0.0
  %v7220 = vadd.f32 %v7218, %v7219
  %v7221 = vrot.slane %v7220, 4
  %v7222 = vadd.f32 %v7220, %v7221
  %v7223 = vrot.slane %v7222, 2
  %v7224 = vadd.f32 %v7222, %v7223
  %v7225 = vrot.slane %v7224, 1
  %v7226 = vadd.f32 %v7224, %v7225
  %v7227 = vsel %vm5349, %v6892, 0.0
  %v7228 = vsel %vm5349, %v6894, 0.0
  %v7229 = vadd.f32 %v7227, %v7228
  %v7230 = vsel %vm5349, %v6896, 0.0
  %v7231 = vadd.f32 %v7229, %v7230
  %v7232 = vsel %vm5349, %v6898, 0.0
  %v7233 = vadd.f32 %v7231, %v7232
  %v7234 = vrot.slane %v7233, 4
  %v7235 = vadd.f32 %v7233, %v7234
  %v7236 = vrot.slane %v7235, 2
  %v7237 = vadd.f32 %v7235, %v7236
  %v7238 = vrot.slane %v7237, 1
  %v7239 = vadd.f32 %v7237, %v7238
  %v7240 = vsel %vm5349, %v6900, 0.0
  %v7241 = vsel %vm5349, %v6902, 0.0
  %v7242 = vadd.f32 %v7240, %v7241
  %v7243 = vsel %vm5349, %v6904, 0.0
  %v7244 = vadd.f32 %v7242, %v7243
  %v7245 = vsel %vm5349, %v6906, 0.0
  %v7246 = vadd.f32 %v7244, %v7245
  %v7247 = vrot.slane %v7246, 4
  %v7248 = vadd.f32 %v7246, %v7247
  %v7249 = vrot.slane %v7248, 2
  %v7250 = vadd.f32 %v7248, %v7249
  %v7251 = vrot.slane %v7250, 1
  %v7252 = vadd.f32 %v7250, %v7251
  %v7253 = vsel %vm5349, %v6908, 0.0
  %v7254 = vsel %vm5349, %v6910, 0.0
  %v7255 = vadd.f32 %v7253, %v7254
  %v7256 = vsel %vm5349, %v6912, 0.0
  %v7257 = vadd.f32 %v7255, %v7256
  %v7258 = vsel %vm5349, %v6914, 0.0
  %v7259 = vadd.f32 %v7257, %v7258
  %v7260 = vrot.slane %v7259, 4
  %v7261 = vadd.f32 %v7259, %v7260
  %v7262 = vrot.slane %v7261, 2
  %v7263 = vadd.f32 %v7261, %v7262
  %v7264 = vrot.slane %v7263, 1
  %v7265 = vadd.f32 %v7263, %v7264
  %v7266 = vsel %vm5349, %v6916, 0.0
  %v7267 = vsel %vm5349, %v6918, 0.0
  %v7268 = vadd.f32 %v7266, %v7267
  %v7269 = vsel %vm5349, %v6920, 0.0
  %v7270 = vadd.f32 %v7268, %v7269
  %v7271 = vsel %vm5349, %v6922, 0.0
  %v7272 = vadd.f32 %v7270, %v7271
  %v7273 = vrot.slane %v7272, 4
  %v7274 = vadd.f32 %v7272, %v7273
  %v7275 = vrot.slane %v7274, 2
  %v7276 = vadd.f32 %v7274, %v7275
  %v7277 = vrot.slane %v7276, 1
  %v7278 = vadd.f32 %v7276, %v7277
  %v7279 = vsel %vm5349, %v6924, 0.0
  %v7280 = vsel %vm5349, %v6926, 0.0
  %v7281 = vadd.f32 %v7279, %v7280
  %v7282 = vsel %vm5349, %v6928, 0.0
  %v7283 = vadd.f32 %v7281, %v7282
  %v7284 = vsel %vm5349, %v6930, 0.0
  %v7285 = vadd.f32 %v7283, %v7284
  %v7286 = vrot.slane %v7285, 4
  %v7287 = vadd.f32 %v7285, %v7286
  %v7288 = vrot.slane %v7287, 2
  %v7289 = vadd.f32 %v7287, %v7288
  %v7290 = vrot.slane %v7289, 1
  %v7291 = vadd.f32 %v7289, %v7290
  %v7292 = vsel %vm5349, %v6932, 0.0
  %v7293 = vsel %vm5349, %v6934, 0.0
  %v7294 = vadd.f32 %v7292, %v7293
  %v7295 = vsel %vm5349, %v6936, 0.0
  %v7296 = vadd.f32 %v7294, %v7295
  %v7297 = vsel %vm5349, %v6938, 0.0
  %v7298 = vadd.f32 %v7296, %v7297
  %v7299 = vrot.slane %v7298, 4
  %v7300 = vadd.f32 %v7298, %v7299
  %v7301 = vrot.slane %v7300, 2
  %v7302 = vadd.f32 %v7300, %v7301
  %v7303 = vrot.slane %v7302, 1
  %v7304 = vadd.f32 %v7302, %v7303
  %v7305 = vsel %vm5349, %v6940, 0.0
  %v7306 = vsel %vm5349, %v6942, 0.0
  %v7307 = vadd.f32 %v7305, %v7306
  %v7308 = vsel %vm5349, %v6944, 0.0
  %v7309 = vadd.f32 %v7307, %v7308
  %v7310 = vsel %vm5349, %v6946, 0.0
  %v7311 = vadd.f32 %v7309, %v7310
  %v7312 = vrot.slane %v7311, 4
  %v7313 = vadd.f32 %v7311, %v7312
  %v7314 = vrot.slane %v7313, 2
  %v7315 = vadd.f32 %v7313, %v7314
  %v7316 = vrot.slane %v7315, 1
  %v7317 = vadd.f32 %v7315, %v7316
  %v7318 = vsel %vm5349, %v6948, 0.0
  %v7319 = vsel %vm5349, %v6950, 0.0
  %v7320 = vadd.f32 %v7318, %v7319
  %v7321 = vsel %vm5349, %v6952, 0.0
  %v7322 = vadd.f32 %v7320, %v7321
  %v7323 = vsel %vm5349, %v6954, 0.0
  %v7324 = vadd.f32 %v7322, %v7323
  %v7325 = vrot.slane %v7324, 4
  %v7326 = vadd.f32 %v7324, %v7325
  %v7327 = vrot.slane %v7326, 2
  %v7328 = vadd.f32 %v7326, %v7327
  %v7329 = vrot.slane %v7328, 1
  %v7330 = vadd.f32 %v7328, %v7329
  %v7331 = vsel %vm5349, %v6956, 0.0
  %v7332 = vsel %vm5349, %v6958, 0.0
  %v7333 = vadd.f32 %v7331, %v7332
  %v7334 = vsel %vm5349, %v6960, 0.0
  %v7335 = vadd.f32 %v7333, %v7334
  %v7336 = vsel %vm5349, %v6962, 0.0
  %v7337 = vadd.f32 %v7335, %v7336
  %v7338 = vrot.slane %v7337, 4
  %v7339 = vadd.f32 %v7337, %v7338
  %v7340 = vrot.slane %v7339, 2
  %v7341 = vadd.f32 %v7339, %v7340
  %v7342 = vrot.slane %v7341, 1
  %v7343 = vadd.f32 %v7341, %v7342
  %v7344 = vsel %vm5349, %v6964, 0.0
  %v7345 = vsel %vm5349, %v6966, 0.0
  %v7346 = vadd.f32 %v7344, %v7345
  %v7347 = vsel %vm5349, %v6968, 0.0
  %v7348 = vadd.f32 %v7346, %v7347
  %v7349 = vsel %vm5349, %v6970, 0.0
  %v7350 = vadd.f32 %v7348, %v7349
  %v7351 = vrot.slane %v7350, 4
  %v7352 = vadd.f32 %v7350, %v7351
  %v7353 = vrot.slane %v7352, 2
  %v7354 = vadd.f32 %v7352, %v7353
  %v7355 = vrot.slane %v7354, 1
  %v7356 = vadd.f32 %v7354, %v7355
  %v7357 = vsel %vm5349, %v6972, 0.0
  %v7358 = vsel %vm5349, %v6974, 0.0
  %v7359 = vadd.f32 %v7357, %v7358
  %v7360 = vsel %vm5349, %v6976, 0.0
  %v7361 = vadd.f32 %v7359, %v7360
  %v7362 = vsel %vm5349, %v6978, 0.0
  %v7363 = vadd.f32 %v7361, %v7362
  %v7364 = vrot.slane %v7363, 4
  %v7365 = vadd.f32 %v7363, %v7364
  %v7366 = vrot.slane %v7365, 2
  %v7367 = vadd.f32 %v7365, %v7366
  %v7368 = vrot.slane %v7367, 1
  %v7369 = vadd.f32 %v7367, %v7368
  %v7370 = vsel %vm5349, %v6980, 0.0
  %v7371 = vsel %vm5349, %v6982, 0.0
  %v7372 = vadd.f32 %v7370, %v7371
  %v7373 = vsel %vm5349, %v6984, 0.0
  %v7374 = vadd.f32 %v7372, %v7373
  %v7375 = vsel %vm5349, %v6986, 0.0
  %v7376 = vadd.f32 %v7374, %v7375
  %v7377 = vrot.slane %v7376, 4
  %v7378 = vadd.f32 %v7376, %v7377
  %v7379 = vrot.slane %v7378, 2
  %v7380 = vadd.f32 %v7378, %v7379
  %v7381 = vrot.slane %v7380, 1
  %v7382 = vadd.f32 %v7380, %v7381
  %v7383 = vsel %vm5349, %v6988, 0.0
  %v7384 = vsel %vm5349, %v6990, 0.0
  %v7385 = vadd.f32 %v7383, %v7384
  %v7386 = vsel %vm5349, %v6992, 0.0
  %v7387 = vadd.f32 %v7385, %v7386
  %v7388 = vsel %vm5349, %v6994, 0.0
  %v7389 = vadd.f32 %v7387, %v7388
  %v7390 = vrot.slane %v7389, 4
  %v7391 = vadd.f32 %v7389, %v7390
  %v7392 = vrot.slane %v7391, 2
  %v7393 = vadd.f32 %v7391, %v7392
  %v7394 = vrot.slane %v7393, 1
  %v7395 = vadd.f32 %v7393, %v7394
  %v7396 = vsel %vm5349, %v6996, 0.0
  %v7397 = vsel %vm5349, %v6998, 0.0
  %v7398 = vadd.f32 %v7396, %v7397
  %v7399 = vsel %vm5349, %v7000, 0.0
  %v7400 = vadd.f32 %v7398, %v7399
  %v7401 = vsel %vm5349, %v7002, 0.0
  %v7402 = vadd.f32 %v7400, %v7401
  %v7403 = vrot.slane %v7402, 4
  %v7404 = vadd.f32 %v7402, %v7403
  %v7405 = vrot.slane %v7404, 2
  %v7406 = vadd.f32 %v7404, %v7405
  %v7407 = vrot.slane %v7406, 1
  %v7408 = vadd.f32 %v7406, %v7407
  %v7409 = vsel %vm5349, %v7004, 0.0
  %v7410 = vsel %vm5349, %v7006, 0.0
  %v7411 = vadd.f32 %v7409, %v7410
  %v7412 = vsel %vm5349, %v7008, 0.0
  %v7413 = vadd.f32 %v7411, %v7412
  %v7414 = vsel %vm5349, %v7010, 0.0
  %v7415 = vadd.f32 %v7413, %v7414
  %v7416 = vrot.slane %v7415, 4
  %v7417 = vadd.f32 %v7415, %v7416
  %v7418 = vrot.slane %v7417, 2
  %v7419 = vadd.f32 %v7417, %v7418
  %v7420 = vrot.slane %v7419, 1
  %v7421 = vadd.f32 %v7419, %v7420
  %v7422 = vsel %vm5349, %v7012, 0.0
  %v7423 = vsel %vm5349, %v7014, 0.0
  %v7424 = vadd.f32 %v7422, %v7423
  %v7425 = vsel %vm5349, %v7016, 0.0
  %v7426 = vadd.f32 %v7424, %v7425
  %v7427 = vsel %vm5349, %v7018, 0.0
  %v7428 = vadd.f32 %v7426, %v7427
  %v7429 = vrot.slane %v7428, 4
  %v7430 = vadd.f32 %v7428, %v7429
  %v7431 = vrot.slane %v7430, 2
  %v7432 = vadd.f32 %v7430, %v7431
  %v7433 = vrot.slane %v7432, 1
  %v7434 = vadd.f32 %v7432, %v7433
  %v7435 = vpack.c.bf16 %v6766, %v6764
  %v7436 = vpack.c.bf16 %v6770, %v6768
  %v7437 = vpack.c.bf16 %v6774, %v6772
  %v7438 = vpack.c.bf16 %v6778, %v6776
  %v7439 = vpack.c.bf16 %v6782, %v6780
  %v7440 = vpack.c.bf16 %v6786, %v6784
  %v7441 = vpack.c.bf16 %v6790, %v6788
  %v7442 = vpack.c.bf16 %v6794, %v6792
  %v7443 = vpack.c.bf16 %v6798, %v6796
  %v7444 = vpack.c.bf16 %v6802, %v6800
  %v7445 = vpack.c.bf16 %v6806, %v6804
  %v7446 = vpack.c.bf16 %v6810, %v6808
  %v7447 = vpack.c.bf16 %v6814, %v6812
  %v7448 = vpack.c.bf16 %v6818, %v6816
  %v7449 = vpack.c.bf16 %v6822, %v6820
  %v7450 = vpack.c.bf16 %v6826, %v6824
  %v7451 = vpack.c.bf16 %v6830, %v6828
  %v7452 = vpack.c.bf16 %v6834, %v6832
  %v7453 = vpack.c.bf16 %v6838, %v6836
  %v7454 = vpack.c.bf16 %v6842, %v6840
  %v7455 = vpack.c.bf16 %v6846, %v6844
  %v7456 = vpack.c.bf16 %v6850, %v6848
  %v7457 = vpack.c.bf16 %v6854, %v6852
  %v7458 = vpack.c.bf16 %v6858, %v6856
  %v7459 = vpack.c.bf16 %v6862, %v6860
  %v7460 = vpack.c.bf16 %v6866, %v6864
  %v7461 = vpack.c.bf16 %v6870, %v6868
  %v7462 = vpack.c.bf16 %v6874, %v6872
  %v7463 = vpack.c.bf16 %v6878, %v6876
  %v7464 = vpack.c.bf16 %v6882, %v6880
  %v7465 = vpack.c.bf16 %v6886, %v6884
  %v7466 = vpack.c.bf16 %v6890, %v6888
  %v7467 = vpack.c.bf16 %v6894, %v6892
  %v7468 = vpack.c.bf16 %v6898, %v6896
  %v7469 = vpack.c.bf16 %v6902, %v6900
  %v7470 = vpack.c.bf16 %v6906, %v6904
  %v7471 = vpack.c.bf16 %v6910, %v6908
  %v7472 = vpack.c.bf16 %v6914, %v6912
  %v7473 = vpack.c.bf16 %v6918, %v6916
  %v7474 = vpack.c.bf16 %v6922, %v6920
  %v7475 = vpack.c.bf16 %v6926, %v6924
  %v7476 = vpack.c.bf16 %v6930, %v6928
  %v7477 = vpack.c.bf16 %v6934, %v6932
  %v7478 = vpack.c.bf16 %v6938, %v6936
  %v7479 = vpack.c.bf16 %v6942, %v6940
  %v7480 = vpack.c.bf16 %v6946, %v6944
  %v7481 = vpack.c.bf16 %v6950, %v6948
  %v7482 = vpack.c.bf16 %v6954, %v6952
  %v7483 = vpack.c.bf16 %v6958, %v6956
  %v7484 = vpack.c.bf16 %v6962, %v6960
  %v7485 = vpack.c.bf16 %v6966, %v6964
  %v7486 = vpack.c.bf16 %v6970, %v6968
  %v7487 = vpack.c.bf16 %v6974, %v6972
  %v7488 = vpack.c.bf16 %v6978, %v6976
  %v7489 = vpack.c.bf16 %v6982, %v6980
  %v7490 = vpack.c.bf16 %v6986, %v6984
  %v7491 = vpack.c.bf16 %v6990, %v6988
  %v7492 = vpack.c.bf16 %v6994, %v6992
  %v7493 = vpack.c.bf16 %v6998, %v6996
  %v7494 = vpack.c.bf16 %v7002, %v7000
  %v7495 = vpack.c.bf16 %v7006, %v7004
  %v7496 = vpack.c.bf16 %v7010, %v7008
  %v7497 = vpack.c.bf16 %v7014, %v7012
  %v7498 = vpack.c.bf16 %v7018, %v7016
  %v7499 = vmul.bf16 %v7435, %v4437
  %v7500 = vmul.bf16 %v7436, %v4438
  %v7501 = vmul.bf16 %v7437, %v4437
  %v7502 = vmul.bf16 %v7438, %v4438
  %v7503 = vmul.bf16 %v7439, %v4437
  %v7504 = vmul.bf16 %v7440, %v4438
  %v7505 = vmul.bf16 %v7441, %v4437
  %v7506 = vmul.bf16 %v7442, %v4438
  %v7507 = vmul.bf16 %v7443, %v4437
  %v7508 = vmul.bf16 %v7444, %v4438
  %v7509 = vmul.bf16 %v7445, %v4437
  %v7510 = vmul.bf16 %v7446, %v4438
  %v7511 = vmul.bf16 %v7447, %v4437
  %v7512 = vmul.bf16 %v7448, %v4438
  %v7513 = vmul.bf16 %v7449, %v4437
  %v7514 = vmul.bf16 %v7450, %v4438
  %v7515 = vmul.bf16 %v7451, %v4437
  %v7516 = vmul.bf16 %v7452, %v4438
  %v7517 = vmul.bf16 %v7453, %v4437
  %v7518 = vmul.bf16 %v7454, %v4438
  %v7519 = vmul.bf16 %v7455, %v4437
  %v7520 = vmul.bf16 %v7456, %v4438
  %v7521 = vmul.bf16 %v7457, %v4437
  %v7522 = vmul.bf16 %v7458, %v4438
  %v7523 = vmul.bf16 %v7459, %v4437
  %v7524 = vmul.bf16 %v7460, %v4438
  %v7525 = vmul.bf16 %v7461, %v4437
  %v7526 = vmul.bf16 %v7462, %v4438
  %v7527 = vmul.bf16 %v7463, %v4437
  %v7528 = vmul.bf16 %v7464, %v4438
  %v7529 = vmul.bf16 %v7465, %v4437
  %v7530 = vmul.bf16 %v7466, %v4438
  %v7531 = vmul.bf16 %v7467, %v4437
  %v7532 = vmul.bf16 %v7468, %v4438
  %v7533 = vmul.bf16 %v7469, %v4437
  %v7534 = vmul.bf16 %v7470, %v4438
  %v7535 = vmul.bf16 %v7471, %v4437
  %v7536 = vmul.bf16 %v7472, %v4438
  %v7537 = vmul.bf16 %v7473, %v4437
  %v7538 = vmul.bf16 %v7474, %v4438
  %v7539 = vmul.bf16 %v7475, %v4437
  %v7540 = vmul.bf16 %v7476, %v4438
  %v7541 = vmul.bf16 %v7477, %v4437
  %v7542 = vmul.bf16 %v7478, %v4438
  %v7543 = vmul.bf16 %v7479, %v4437
  %v7544 = vmul.bf16 %v7480, %v4438
  %v7545 = vmul.bf16 %v7481, %v4437
  %v7546 = vmul.bf16 %v7482, %v4438
  %v7547 = vmul.bf16 %v7483, %v4437
  %v7548 = vmul.bf16 %v7484, %v4438
  %v7549 = vmul.bf16 %v7485, %v4437
  %v7550 = vmul.bf16 %v7486, %v4438
  %v7551 = vmul.bf16 %v7487, %v4437
  %v7552 = vmul.bf16 %v7488, %v4438
  %v7553 = vmul.bf16 %v7489, %v4437
  %v7554 = vmul.bf16 %v7490, %v4438
  %v7555 = vmul.bf16 %v7491, %v4437
  %v7556 = vmul.bf16 %v7492, %v4438
  %v7557 = vmul.bf16 %v7493, %v4437
  %v7558 = vmul.bf16 %v7494, %v4438
  %v7559 = vmul.bf16 %v7495, %v4437
  %v7560 = vmul.bf16 %v7496, %v4438
  %v7561 = vmul.bf16 %v7497, %v4437
  %v7562 = vmul.bf16 %v7498, %v4438
  %v7563 = vunpack.c.l.bf16 %v7499
  %v7564 = vunpack.c.h.bf16 %v7499
  %v7565 = vunpack.c.l.bf16 %v7500
  %v7566 = vunpack.c.h.bf16 %v7500
  %v7567 = vunpack.c.l.bf16 %v7501
  %v7568 = vunpack.c.h.bf16 %v7501
  %v7569 = vunpack.c.l.bf16 %v7502
  %v7570 = vunpack.c.h.bf16 %v7502
  %v7571 = vunpack.c.l.bf16 %v7503
  %v7572 = vunpack.c.h.bf16 %v7503
  %v7573 = vunpack.c.l.bf16 %v7504
  %v7574 = vunpack.c.h.bf16 %v7504
  %v7575 = vunpack.c.l.bf16 %v7505
  %v7576 = vunpack.c.h.bf16 %v7505
  %v7577 = vunpack.c.l.bf16 %v7506
  %v7578 = vunpack.c.h.bf16 %v7506
  %v7579 = vunpack.c.l.bf16 %v7507
  %v7580 = vunpack.c.h.bf16 %v7507
  %v7581 = vunpack.c.l.bf16 %v7508
  %v7582 = vunpack.c.h.bf16 %v7508
  %v7583 = vunpack.c.l.bf16 %v7509
  %v7584 = vunpack.c.h.bf16 %v7509
  %v7585 = vunpack.c.l.bf16 %v7510
  %v7586 = vunpack.c.h.bf16 %v7510
  %v7587 = vunpack.c.l.bf16 %v7511
  %v7588 = vunpack.c.h.bf16 %v7511
  %v7589 = vunpack.c.l.bf16 %v7512
  %v7590 = vunpack.c.h.bf16 %v7512
  %v7591 = vunpack.c.l.bf16 %v7513
  %v7592 = vunpack.c.h.bf16 %v7513
  %v7593 = vunpack.c.l.bf16 %v7514
  %v7594 = vunpack.c.h.bf16 %v7514
  %v7595 = vunpack.c.l.bf16 %v7515
  %v7596 = vunpack.c.h.bf16 %v7515
  %v7597 = vunpack.c.l.bf16 %v7516
  %v7598 = vunpack.c.h.bf16 %v7516
  %v7599 = vunpack.c.l.bf16 %v7517
  %v7600 = vunpack.c.h.bf16 %v7517
  %v7601 = vunpack.c.l.bf16 %v7518
  %v7602 = vunpack.c.h.bf16 %v7518
  %v7603 = vunpack.c.l.bf16 %v7519
  %v7604 = vunpack.c.h.bf16 %v7519
  %v7605 = vunpack.c.l.bf16 %v7520
  %v7606 = vunpack.c.h.bf16 %v7520
  %v7607 = vunpack.c.l.bf16 %v7521
  %v7608 = vunpack.c.h.bf16 %v7521
  %v7609 = vunpack.c.l.bf16 %v7522
  %v7610 = vunpack.c.h.bf16 %v7522
  %v7611 = vunpack.c.l.bf16 %v7523
  %v7612 = vunpack.c.h.bf16 %v7523
  %v7613 = vunpack.c.l.bf16 %v7524
  %v7614 = vunpack.c.h.bf16 %v7524
  %v7615 = vunpack.c.l.bf16 %v7525
  %v7616 = vunpack.c.h.bf16 %v7525
  %v7617 = vunpack.c.l.bf16 %v7526
  %v7618 = vunpack.c.h.bf16 %v7526
  %v7619 = vunpack.c.l.bf16 %v7527
  %v7620 = vunpack.c.h.bf16 %v7527
  %v7621 = vunpack.c.l.bf16 %v7528
  %v7622 = vunpack.c.h.bf16 %v7528
  %v7623 = vunpack.c.l.bf16 %v7529
  %v7624 = vunpack.c.h.bf16 %v7529
  %v7625 = vunpack.c.l.bf16 %v7530
  %v7626 = vunpack.c.h.bf16 %v7530
  %v7627 = vunpack.c.l.bf16 %v7531
  %v7628 = vunpack.c.h.bf16 %v7531
  %v7629 = vunpack.c.l.bf16 %v7532
  %v7630 = vunpack.c.h.bf16 %v7532
  %v7631 = vunpack.c.l.bf16 %v7533
  %v7632 = vunpack.c.h.bf16 %v7533
  %v7633 = vunpack.c.l.bf16 %v7534
  %v7634 = vunpack.c.h.bf16 %v7534
  %v7635 = vunpack.c.l.bf16 %v7535
  %v7636 = vunpack.c.h.bf16 %v7535
  %v7637 = vunpack.c.l.bf16 %v7536
  %v7638 = vunpack.c.h.bf16 %v7536
  %v7639 = vunpack.c.l.bf16 %v7537
  %v7640 = vunpack.c.h.bf16 %v7537
  %v7641 = vunpack.c.l.bf16 %v7538
  %v7642 = vunpack.c.h.bf16 %v7538
  %v7643 = vunpack.c.l.bf16 %v7539
  %v7644 = vunpack.c.h.bf16 %v7539
  %v7645 = vunpack.c.l.bf16 %v7540
  %v7646 = vunpack.c.h.bf16 %v7540
  %v7647 = vunpack.c.l.bf16 %v7541
  %v7648 = vunpack.c.h.bf16 %v7541
  %v7649 = vunpack.c.l.bf16 %v7542
  %v7650 = vunpack.c.h.bf16 %v7542
  %v7651 = vunpack.c.l.bf16 %v7543
  %v7652 = vunpack.c.h.bf16 %v7543
  %v7653 = vunpack.c.l.bf16 %v7544
  %v7654 = vunpack.c.h.bf16 %v7544
  %v7655 = vunpack.c.l.bf16 %v7545
  %v7656 = vunpack.c.h.bf16 %v7545
  %v7657 = vunpack.c.l.bf16 %v7546
  %v7658 = vunpack.c.h.bf16 %v7546
  %v7659 = vunpack.c.l.bf16 %v7547
  %v7660 = vunpack.c.h.bf16 %v7547
  %v7661 = vunpack.c.l.bf16 %v7548
  %v7662 = vunpack.c.h.bf16 %v7548
  %v7663 = vunpack.c.l.bf16 %v7549
  %v7664 = vunpack.c.h.bf16 %v7549
  %v7665 = vunpack.c.l.bf16 %v7550
  %v7666 = vunpack.c.h.bf16 %v7550
  %v7667 = vunpack.c.l.bf16 %v7551
  %v7668 = vunpack.c.h.bf16 %v7551
  %v7669 = vunpack.c.l.bf16 %v7552
  %v7670 = vunpack.c.h.bf16 %v7552
  %v7671 = vunpack.c.l.bf16 %v7553
  %v7672 = vunpack.c.h.bf16 %v7553
  %v7673 = vunpack.c.l.bf16 %v7554
  %v7674 = vunpack.c.h.bf16 %v7554
  %v7675 = vunpack.c.l.bf16 %v7555
  %v7676 = vunpack.c.h.bf16 %v7555
  %v7677 = vunpack.c.l.bf16 %v7556
  %v7678 = vunpack.c.h.bf16 %v7556
  %v7679 = vunpack.c.l.bf16 %v7557
  %v7680 = vunpack.c.h.bf16 %v7557
  %v7681 = vunpack.c.l.bf16 %v7558
  %v7682 = vunpack.c.h.bf16 %v7558
  %v7683 = vunpack.c.l.bf16 %v7559
  %v7684 = vunpack.c.h.bf16 %v7559
  %v7685 = vunpack.c.l.bf16 %v7560
  %v7686 = vunpack.c.h.bf16 %v7560
  %v7687 = vunpack.c.l.bf16 %v7561
  %v7688 = vunpack.c.h.bf16 %v7561
  %v7689 = vunpack.c.l.bf16 %v7562
  %v7690 = vunpack.c.h.bf16 %v7562
  %v7691 = vsel %vm5349, %v7563, 0.0
  %v7692 = vsel %vm5349, %v7564, 0.0
  %v7693 = vadd.f32 %v7691, %v7692
  %v7694 = vsel %vm5349, %v7565, 0.0
  %v7695 = vadd.f32 %v7693, %v7694
  %v7696 = vsel %vm5349, %v7566, 0.0
  %v7697 = vadd.f32 %v7695, %v7696
  %v7698 = vrot.slane %v7697, 4
  %v7699 = vadd.f32 %v7697, %v7698
  %v7700 = vrot.slane %v7699, 2
  %v7701 = vadd.f32 %v7699, %v7700
  %v7702 = vrot.slane %v7701, 1
  %v7703 = vadd.f32 %v7701, %v7702
  %v7704 = vsel %vm5349, %v7567, 0.0
  %v7705 = vsel %vm5349, %v7568, 0.0
  %v7706 = vadd.f32 %v7704, %v7705
  %v7707 = vsel %vm5349, %v7569, 0.0
  %v7708 = vadd.f32 %v7706, %v7707
  %v7709 = vsel %vm5349, %v7570, 0.0
  %v7710 = vadd.f32 %v7708, %v7709
  %v7711 = vrot.slane %v7710, 4
  %v7712 = vadd.f32 %v7710, %v7711
  %v7713 = vrot.slane %v7712, 2
  %v7714 = vadd.f32 %v7712, %v7713
  %v7715 = vrot.slane %v7714, 1
  %v7716 = vadd.f32 %v7714, %v7715
  %v7717 = vsel %vm5349, %v7571, 0.0
  %v7718 = vsel %vm5349, %v7572, 0.0
  %v7719 = vadd.f32 %v7717, %v7718
  %v7720 = vsel %vm5349, %v7573, 0.0
  %v7721 = vadd.f32 %v7719, %v7720
  %v7722 = vsel %vm5349, %v7574, 0.0
  %v7723 = vadd.f32 %v7721, %v7722
  %v7724 = vrot.slane %v7723, 4
  %v7725 = vadd.f32 %v7723, %v7724
  %v7726 = vrot.slane %v7725, 2
  %v7727 = vadd.f32 %v7725, %v7726
  %v7728 = vrot.slane %v7727, 1
  %v7729 = vadd.f32 %v7727, %v7728
  %v7730 = vsel %vm5349, %v7575, 0.0
  %v7731 = vsel %vm5349, %v7576, 0.0
  %v7732 = vadd.f32 %v7730, %v7731
  %v7733 = vsel %vm5349, %v7577, 0.0
  %v7734 = vadd.f32 %v7732, %v7733
  %v7735 = vsel %vm5349, %v7578, 0.0
  %v7736 = vadd.f32 %v7734, %v7735
  %v7737 = vrot.slane %v7736, 4
  %v7738 = vadd.f32 %v7736, %v7737
  %v7739 = vrot.slane %v7738, 2
  %v7740 = vadd.f32 %v7738, %v7739
  %v7741 = vrot.slane %v7740, 1
  %v7742 = vadd.f32 %v7740, %v7741
  %v7743 = vsel %vm5349, %v7579, 0.0
  %v7744 = vsel %vm5349, %v7580, 0.0
  %v7745 = vadd.f32 %v7743, %v7744
  %v7746 = vsel %vm5349, %v7581, 0.0
  %v7747 = vadd.f32 %v7745, %v7746
  %v7748 = vsel %vm5349, %v7582, 0.0
  %v7749 = vadd.f32 %v7747, %v7748
  %v7750 = vrot.slane %v7749, 4
  %v7751 = vadd.f32 %v7749, %v7750
  %v7752 = vrot.slane %v7751, 2
  %v7753 = vadd.f32 %v7751, %v7752
  %v7754 = vrot.slane %v7753, 1
  %v7755 = vadd.f32 %v7753, %v7754
  %v7756 = vsel %vm5349, %v7583, 0.0
  %v7757 = vsel %vm5349, %v7584, 0.0
  %v7758 = vadd.f32 %v7756, %v7757
  %v7759 = vsel %vm5349, %v7585, 0.0
  %v7760 = vadd.f32 %v7758, %v7759
  %v7761 = vsel %vm5349, %v7586, 0.0
  %v7762 = vadd.f32 %v7760, %v7761
  %v7763 = vrot.slane %v7762, 4
  %v7764 = vadd.f32 %v7762, %v7763
  %v7765 = vrot.slane %v7764, 2
  %v7766 = vadd.f32 %v7764, %v7765
  %v7767 = vrot.slane %v7766, 1
  %v7768 = vadd.f32 %v7766, %v7767
  %v7769 = vsel %vm5349, %v7587, 0.0
  %v7770 = vsel %vm5349, %v7588, 0.0
  %v7771 = vadd.f32 %v7769, %v7770
  %v7772 = vsel %vm5349, %v7589, 0.0
  %v7773 = vadd.f32 %v7771, %v7772
  %v7774 = vsel %vm5349, %v7590, 0.0
  %v7775 = vadd.f32 %v7773, %v7774
  %v7776 = vrot.slane %v7775, 4
  %v7777 = vadd.f32 %v7775, %v7776
  %v7778 = vrot.slane %v7777, 2
  %v7779 = vadd.f32 %v7777, %v7778
  %v7780 = vrot.slane %v7779, 1
  %v7781 = vadd.f32 %v7779, %v7780
  %v7782 = vsel %vm5349, %v7591, 0.0
  %v7783 = vsel %vm5349, %v7592, 0.0
  %v7784 = vadd.f32 %v7782, %v7783
  %v7785 = vsel %vm5349, %v7593, 0.0
  %v7786 = vadd.f32 %v7784, %v7785
  %v7787 = vsel %vm5349, %v7594, 0.0
  %v7788 = vadd.f32 %v7786, %v7787
  %v7789 = vrot.slane %v7788, 4
  %v7790 = vadd.f32 %v7788, %v7789
  %v7791 = vrot.slane %v7790, 2
  %v7792 = vadd.f32 %v7790, %v7791
  %v7793 = vrot.slane %v7792, 1
  %v7794 = vadd.f32 %v7792, %v7793
  %v7795 = vsel %vm5349, %v7595, 0.0
  %v7796 = vsel %vm5349, %v7596, 0.0
  %v7797 = vadd.f32 %v7795, %v7796
  %v7798 = vsel %vm5349, %v7597, 0.0
  %v7799 = vadd.f32 %v7797, %v7798
  %v7800 = vsel %vm5349, %v7598, 0.0
  %v7801 = vadd.f32 %v7799, %v7800
  %v7802 = vrot.slane %v7801, 4
  %v7803 = vadd.f32 %v7801, %v7802
  %v7804 = vrot.slane %v7803, 2
  %v7805 = vadd.f32 %v7803, %v7804
  %v7806 = vrot.slane %v7805, 1
  %v7807 = vadd.f32 %v7805, %v7806
  %v7808 = vsel %vm5349, %v7599, 0.0
  %v7809 = vsel %vm5349, %v7600, 0.0
  %v7810 = vadd.f32 %v7808, %v7809
  %v7811 = vsel %vm5349, %v7601, 0.0
  %v7812 = vadd.f32 %v7810, %v7811
  %v7813 = vsel %vm5349, %v7602, 0.0
  %v7814 = vadd.f32 %v7812, %v7813
  %v7815 = vrot.slane %v7814, 4
  %v7816 = vadd.f32 %v7814, %v7815
  %v7817 = vrot.slane %v7816, 2
  %v7818 = vadd.f32 %v7816, %v7817
  %v7819 = vrot.slane %v7818, 1
  %v7820 = vadd.f32 %v7818, %v7819
  %v7821 = vsel %vm5349, %v7603, 0.0
  %v7822 = vsel %vm5349, %v7604, 0.0
  %v7823 = vadd.f32 %v7821, %v7822
  %v7824 = vsel %vm5349, %v7605, 0.0
  %v7825 = vadd.f32 %v7823, %v7824
  %v7826 = vsel %vm5349, %v7606, 0.0
  %v7827 = vadd.f32 %v7825, %v7826
  %v7828 = vrot.slane %v7827, 4
  %v7829 = vadd.f32 %v7827, %v7828
  %v7830 = vrot.slane %v7829, 2
  %v7831 = vadd.f32 %v7829, %v7830
  %v7832 = vrot.slane %v7831, 1
  %v7833 = vadd.f32 %v7831, %v7832
  %v7834 = vsel %vm5349, %v7607, 0.0
  %v7835 = vsel %vm5349, %v7608, 0.0
  %v7836 = vadd.f32 %v7834, %v7835
  %v7837 = vsel %vm5349, %v7609, 0.0
  %v7838 = vadd.f32 %v7836, %v7837
  %v7839 = vsel %vm5349, %v7610, 0.0
  %v7840 = vadd.f32 %v7838, %v7839
  %v7841 = vrot.slane %v7840, 4
  %v7842 = vadd.f32 %v7840, %v7841
  %v7843 = vrot.slane %v7842, 2
  %v7844 = vadd.f32 %v7842, %v7843
  %v7845 = vrot.slane %v7844, 1
  %v7846 = vadd.f32 %v7844, %v7845
  %v7847 = vsel %vm5349, %v7611, 0.0
  %v7848 = vsel %vm5349, %v7612, 0.0
  %v7849 = vadd.f32 %v7847, %v7848
  %v7850 = vsel %vm5349, %v7613, 0.0
  %v7851 = vadd.f32 %v7849, %v7850
  %v7852 = vsel %vm5349, %v7614, 0.0
  %v7853 = vadd.f32 %v7851, %v7852
  %v7854 = vrot.slane %v7853, 4
  %v7855 = vadd.f32 %v7853, %v7854
  %v7856 = vrot.slane %v7855, 2
  %v7857 = vadd.f32 %v7855, %v7856
  %v7858 = vrot.slane %v7857, 1
  %v7859 = vadd.f32 %v7857, %v7858
  %v7860 = vsel %vm5349, %v7615, 0.0
  %v7861 = vsel %vm5349, %v7616, 0.0
  %v7862 = vadd.f32 %v7860, %v7861
  %v7863 = vsel %vm5349, %v7617, 0.0
  %v7864 = vadd.f32 %v7862, %v7863
  %v7865 = vsel %vm5349, %v7618, 0.0
  %v7866 = vadd.f32 %v7864, %v7865
  %v7867 = vrot.slane %v7866, 4
  %v7868 = vadd.f32 %v7866, %v7867
  %v7869 = vrot.slane %v7868, 2
  %v7870 = vadd.f32 %v7868, %v7869
  %v7871 = vrot.slane %v7870, 1
  %v7872 = vadd.f32 %v7870, %v7871
  %v7873 = vsel %vm5349, %v7619, 0.0
  %v7874 = vsel %vm5349, %v7620, 0.0
  %v7875 = vadd.f32 %v7873, %v7874
  %v7876 = vsel %vm5349, %v7621, 0.0
  %v7877 = vadd.f32 %v7875, %v7876
  %v7878 = vsel %vm5349, %v7622, 0.0
  %v7879 = vadd.f32 %v7877, %v7878
  %v7880 = vrot.slane %v7879, 4
  %v7881 = vadd.f32 %v7879, %v7880
  %v7882 = vrot.slane %v7881, 2
  %v7883 = vadd.f32 %v7881, %v7882
  %v7884 = vrot.slane %v7883, 1
  %v7885 = vadd.f32 %v7883, %v7884
  %v7886 = vsel %vm5349, %v7623, 0.0
  %v7887 = vsel %vm5349, %v7624, 0.0
  %v7888 = vadd.f32 %v7886, %v7887
  %v7889 = vsel %vm5349, %v7625, 0.0
  %v7890 = vadd.f32 %v7888, %v7889
  %v7891 = vsel %vm5349, %v7626, 0.0
  %v7892 = vadd.f32 %v7890, %v7891
  %v7893 = vrot.slane %v7892, 4
  %v7894 = vadd.f32 %v7892, %v7893
  %v7895 = vrot.slane %v7894, 2
  %v7896 = vadd.f32 %v7894, %v7895
  %v7897 = vrot.slane %v7896, 1
  %v7898 = vadd.f32 %v7896, %v7897
  %v7899 = vsel %vm5349, %v7627, 0.0
  %v7900 = vsel %vm5349, %v7628, 0.0
  %v7901 = vadd.f32 %v7899, %v7900
  %v7902 = vsel %vm5349, %v7629, 0.0
  %v7903 = vadd.f32 %v7901, %v7902
  %v7904 = vsel %vm5349, %v7630, 0.0
  %v7905 = vadd.f32 %v7903, %v7904
  %v7906 = vrot.slane %v7905, 4
  %v7907 = vadd.f32 %v7905, %v7906
  %v7908 = vrot.slane %v7907, 2
  %v7909 = vadd.f32 %v7907, %v7908
  %v7910 = vrot.slane %v7909, 1
  %v7911 = vadd.f32 %v7909, %v7910
  %v7912 = vsel %vm5349, %v7631, 0.0
  %v7913 = vsel %vm5349, %v7632, 0.0
  %v7914 = vadd.f32 %v7912, %v7913
  %v7915 = vsel %vm5349, %v7633, 0.0
  %v7916 = vadd.f32 %v7914, %v7915
  %v7917 = vsel %vm5349, %v7634, 0.0
  %v7918 = vadd.f32 %v7916, %v7917
  %v7919 = vrot.slane %v7918, 4
  %v7920 = vadd.f32 %v7918, %v7919
  %v7921 = vrot.slane %v7920, 2
  %v7922 = vadd.f32 %v7920, %v7921
  %v7923 = vrot.slane %v7922, 1
  %v7924 = vadd.f32 %v7922, %v7923
  %v7925 = vsel %vm5349, %v7635, 0.0
  %v7926 = vsel %vm5349, %v7636, 0.0
  %v7927 = vadd.f32 %v7925, %v7926
  %v7928 = vsel %vm5349, %v7637, 0.0
  %v7929 = vadd.f32 %v7927, %v7928
  %v7930 = vsel %vm5349, %v7638, 0.0
  %v7931 = vadd.f32 %v7929, %v7930
  %v7932 = vrot.slane %v7931, 4
  %v7933 = vadd.f32 %v7931, %v7932
  %v7934 = vrot.slane %v7933, 2
  %v7935 = vadd.f32 %v7933, %v7934
  %v7936 = vrot.slane %v7935, 1
  %v7937 = vadd.f32 %v7935, %v7936
  %v7938 = vsel %vm5349, %v7639, 0.0
  %v7939 = vsel %vm5349, %v7640, 0.0
  %v7940 = vadd.f32 %v7938, %v7939
  %v7941 = vsel %vm5349, %v7641, 0.0
  %v7942 = vadd.f32 %v7940, %v7941
  %v7943 = vsel %vm5349, %v7642, 0.0
  %v7944 = vadd.f32 %v7942, %v7943
  %v7945 = vrot.slane %v7944, 4
  %v7946 = vadd.f32 %v7944, %v7945
  %v7947 = vrot.slane %v7946, 2
  %v7948 = vadd.f32 %v7946, %v7947
  %v7949 = vrot.slane %v7948, 1
  %v7950 = vadd.f32 %v7948, %v7949
  %v7951 = vsel %vm5349, %v7643, 0.0
  %v7952 = vsel %vm5349, %v7644, 0.0
  %v7953 = vadd.f32 %v7951, %v7952
  %v7954 = vsel %vm5349, %v7645, 0.0
  %v7955 = vadd.f32 %v7953, %v7954
  %v7956 = vsel %vm5349, %v7646, 0.0
  %v7957 = vadd.f32 %v7955, %v7956
  %v7958 = vrot.slane %v7957, 4
  %v7959 = vadd.f32 %v7957, %v7958
  %v7960 = vrot.slane %v7959, 2
  %v7961 = vadd.f32 %v7959, %v7960
  %v7962 = vrot.slane %v7961, 1
  %v7963 = vadd.f32 %v7961, %v7962
  %v7964 = vsel %vm5349, %v7647, 0.0
  %v7965 = vsel %vm5349, %v7648, 0.0
  %v7966 = vadd.f32 %v7964, %v7965
  %v7967 = vsel %vm5349, %v7649, 0.0
  %v7968 = vadd.f32 %v7966, %v7967
  %v7969 = vsel %vm5349, %v7650, 0.0
  %v7970 = vadd.f32 %v7968, %v7969
  %v7971 = vrot.slane %v7970, 4
  %v7972 = vadd.f32 %v7970, %v7971
  %v7973 = vrot.slane %v7972, 2
  %v7974 = vadd.f32 %v7972, %v7973
  %v7975 = vrot.slane %v7974, 1
  %v7976 = vadd.f32 %v7974, %v7975
  %v7977 = vsel %vm5349, %v7651, 0.0
  %v7978 = vsel %vm5349, %v7652, 0.0
  %v7979 = vadd.f32 %v7977, %v7978
  %v7980 = vsel %vm5349, %v7653, 0.0
  %v7981 = vadd.f32 %v7979, %v7980
  %v7982 = vsel %vm5349, %v7654, 0.0
  %v7983 = vadd.f32 %v7981, %v7982
  %v7984 = vrot.slane %v7983, 4
  %v7985 = vadd.f32 %v7983, %v7984
  %v7986 = vrot.slane %v7985, 2
  %v7987 = vadd.f32 %v7985, %v7986
  %v7988 = vrot.slane %v7987, 1
  %v7989 = vadd.f32 %v7987, %v7988
  %v7990 = vsel %vm5349, %v7655, 0.0
  %v7991 = vsel %vm5349, %v7656, 0.0
  %v7992 = vadd.f32 %v7990, %v7991
  %v7993 = vsel %vm5349, %v7657, 0.0
  %v7994 = vadd.f32 %v7992, %v7993
  %v7995 = vsel %vm5349, %v7658, 0.0
  %v7996 = vadd.f32 %v7994, %v7995
  %v7997 = vrot.slane %v7996, 4
  %v7998 = vadd.f32 %v7996, %v7997
  %v7999 = vrot.slane %v7998, 2
  %v8000 = vadd.f32 %v7998, %v7999
  %v8001 = vrot.slane %v8000, 1
  %v8002 = vadd.f32 %v8000, %v8001
  %v8003 = vsel %vm5349, %v7659, 0.0
  %v8004 = vsel %vm5349, %v7660, 0.0
  %v8005 = vadd.f32 %v8003, %v8004
  %v8006 = vsel %vm5349, %v7661, 0.0
  %v8007 = vadd.f32 %v8005, %v8006
  %v8008 = vsel %vm5349, %v7662, 0.0
  %v8009 = vadd.f32 %v8007, %v8008
  %v8010 = vrot.slane %v8009, 4
  %v8011 = vadd.f32 %v8009, %v8010
  %v8012 = vrot.slane %v8011, 2
  %v8013 = vadd.f32 %v8011, %v8012
  %v8014 = vrot.slane %v8013, 1
  %v8015 = vadd.f32 %v8013, %v8014
  %v8016 = vsel %vm5349, %v7663, 0.0
  %v8017 = vsel %vm5349, %v7664, 0.0
  %v8018 = vadd.f32 %v8016, %v8017
  %v8019 = vsel %vm5349, %v7665, 0.0
  %v8020 = vadd.f32 %v8018, %v8019
  %v8021 = vsel %vm5349, %v7666, 0.0
  %v8022 = vadd.f32 %v8020, %v8021
  %v8023 = vrot.slane %v8022, 4
  %v8024 = vadd.f32 %v8022, %v8023
  %v8025 = vrot.slane %v8024, 2
  %v8026 = vadd.f32 %v8024, %v8025
  %v8027 = vrot.slane %v8026, 1
  %v8028 = vadd.f32 %v8026, %v8027
  %v8029 = vsel %vm5349, %v7667, 0.0
  %v8030 = vsel %vm5349, %v7668, 0.0
  %v8031 = vadd.f32 %v8029, %v8030
  %v8032 = vsel %vm5349, %v7669, 0.0
  %v8033 = vadd.f32 %v8031, %v8032
  %v8034 = vsel %vm5349, %v7670, 0.0
  %v8035 = vadd.f32 %v8033, %v8034
  %v8036 = vrot.slane %v8035, 4
  %v8037 = vadd.f32 %v8035, %v8036
  %v8038 = vrot.slane %v8037, 2
  %v8039 = vadd.f32 %v8037, %v8038
  %v8040 = vrot.slane %v8039, 1
  %v8041 = vadd.f32 %v8039, %v8040
  %v8042 = vsel %vm5349, %v7671, 0.0
  %v8043 = vsel %vm5349, %v7672, 0.0
  %v8044 = vadd.f32 %v8042, %v8043
  %v8045 = vsel %vm5349, %v7673, 0.0
  %v8046 = vadd.f32 %v8044, %v8045
  %v8047 = vsel %vm5349, %v7674, 0.0
  %v8048 = vadd.f32 %v8046, %v8047
  %v8049 = vrot.slane %v8048, 4
  %v8050 = vadd.f32 %v8048, %v8049
  %v8051 = vrot.slane %v8050, 2
  %v8052 = vadd.f32 %v8050, %v8051
  %v8053 = vrot.slane %v8052, 1
  %v8054 = vadd.f32 %v8052, %v8053
  %v8055 = vsel %vm5349, %v7675, 0.0
  %v8056 = vsel %vm5349, %v7676, 0.0
  %v8057 = vadd.f32 %v8055, %v8056
  %v8058 = vsel %vm5349, %v7677, 0.0
  %v8059 = vadd.f32 %v8057, %v8058
  %v8060 = vsel %vm5349, %v7678, 0.0
  %v8061 = vadd.f32 %v8059, %v8060
  %v8062 = vrot.slane %v8061, 4
  %v8063 = vadd.f32 %v8061, %v8062
  %v8064 = vrot.slane %v8063, 2
  %v8065 = vadd.f32 %v8063, %v8064
  %v8066 = vrot.slane %v8065, 1
  %v8067 = vadd.f32 %v8065, %v8066
  %v8068 = vsel %vm5349, %v7679, 0.0
  %v8069 = vsel %vm5349, %v7680, 0.0
  %v8070 = vadd.f32 %v8068, %v8069
  %v8071 = vsel %vm5349, %v7681, 0.0
  %v8072 = vadd.f32 %v8070, %v8071
  %v8073 = vsel %vm5349, %v7682, 0.0
  %v8074 = vadd.f32 %v8072, %v8073
  %v8075 = vrot.slane %v8074, 4
  %v8076 = vadd.f32 %v8074, %v8075
  %v8077 = vrot.slane %v8076, 2
  %v8078 = vadd.f32 %v8076, %v8077
  %v8079 = vrot.slane %v8078, 1
  %v8080 = vadd.f32 %v8078, %v8079
  %v8081 = vsel %vm5349, %v7683, 0.0
  %v8082 = vsel %vm5349, %v7684, 0.0
  %v8083 = vadd.f32 %v8081, %v8082
  %v8084 = vsel %vm5349, %v7685, 0.0
  %v8085 = vadd.f32 %v8083, %v8084
  %v8086 = vsel %vm5349, %v7686, 0.0
  %v8087 = vadd.f32 %v8085, %v8086
  %v8088 = vrot.slane %v8087, 4
  %v8089 = vadd.f32 %v8087, %v8088
  %v8090 = vrot.slane %v8089, 2
  %v8091 = vadd.f32 %v8089, %v8090
  %v8092 = vrot.slane %v8091, 1
  %v8093 = vadd.f32 %v8091, %v8092
  %v8094 = vsel %vm5349, %v7687, 0.0
  %v8095 = vsel %vm5349, %v7688, 0.0
  %v8096 = vadd.f32 %v8094, %v8095
  %v8097 = vsel %vm5349, %v7689, 0.0
  %v8098 = vadd.f32 %v8096, %v8097
  %v8099 = vsel %vm5349, %v7690, 0.0
  %v8100 = vadd.f32 %v8098, %v8099
  %v8101 = vrot.slane %v8100, 4
  %v8102 = vadd.f32 %v8100, %v8101
  %v8103 = vrot.slane %v8102, 2
  %v8104 = vadd.f32 %v8102, %v8103
  %v8105 = vrot.slane %v8104, 1
  %v8106 = vadd.f32 %v8104, %v8105
  %v8107 = vrcp.pop %v7031
  %v8108 = vrcp.pop %v7044
  %v8109 = vrcp.pop %v7057
  %v8110 = vrcp.pop %v7070
  %v8111 = vrcp.pop %v7083
  %v8112 = vrcp.pop %v7096
  %v8113 = vrcp.pop %v7109
  %v8114 = vrcp.pop %v7122
  %v8115 = vrcp.pop %v7135
  %v8116 = vrcp.pop %v7148
  %v8117 = vrcp.pop %v7161
  %v8118 = vrcp.pop %v7174
  %v8119 = vrcp.pop %v7187
  %v8120 = vrcp.pop %v7200
  %v8121 = vrcp.pop %v7213
  %v8122 = vrcp.pop %v7226
  %v8123 = vrcp.pop %v7239
  %v8124 = vrcp.pop %v7252
  %v8125 = vrcp.pop %v7265
  %v8126 = vrcp.pop %v7278
  %v8127 = vrcp.pop %v7291
  %v8128 = vrcp.pop %v7304
  %v8129 = vrcp.pop %v7317
  %v8130 = vrcp.pop %v7330
  %v8131 = vrcp.pop %v7343
  %v8132 = vrcp.pop %v7356
  %v8133 = vrcp.pop %v7369
  %v8134 = vrcp.pop %v7382
  %v8135 = vrcp.pop %v7395
  %v8136 = vrcp.pop %v7408
  %v8137 = vrcp.pop %v7421
  %v8138 = vrcp.pop %v7434
  %v8139 = vmul.f32 %v7703, %v8107
  %v8140 = vmul.f32 %v7716, %v8108
  %v8141 = vmul.f32 %v7729, %v8109
  %v8142 = vmul.f32 %v7742, %v8110
  %v8143 = vmul.f32 %v7755, %v8111
  %v8144 = vmul.f32 %v7768, %v8112
  %v8145 = vmul.f32 %v7781, %v8113
  %v8146 = vmul.f32 %v7794, %v8114
  %v8147 = vmul.f32 %v7807, %v8115
  %v8148 = vmul.f32 %v7820, %v8116
  %v8149 = vmul.f32 %v7833, %v8117
  %v8150 = vmul.f32 %v7846, %v8118
  %v8151 = vmul.f32 %v7859, %v8119
  %v8152 = vmul.f32 %v7872, %v8120
  %v8153 = vmul.f32 %v7885, %v8121
  %v8154 = vmul.f32 %v7898, %v8122
  %v8155 = vmul.f32 %v7911, %v8123
  %v8156 = vmul.f32 %v7924, %v8124
  %v8157 = vmul.f32 %v7937, %v8125
  %v8158 = vmul.f32 %v7950, %v8126
  %v8159 = vmul.f32 %v7963, %v8127
  %v8160 = vmul.f32 %v7976, %v8128
  %v8161 = vmul.f32 %v7989, %v8129
  %v8162 = vmul.f32 %v8002, %v8130
  %v8163 = vmul.f32 %v8015, %v8131
  %v8164 = vmul.f32 %v8028, %v8132
  %v8165 = vmul.f32 %v8041, %v8133
  %v8166 = vmul.f32 %v8054, %v8134
  %v8167 = vmul.f32 %v8067, %v8135
  %v8168 = vmul.f32 %v8080, %v8136
  %v8169 = vmul.f32 %v8093, %v8137
  %v8170 = vmul.f32 %v8106, %v8138
  %v8171 = vlaneseq
  %v8172 = vshrl.u32 %v8171, 7
  %v8173 = vsub.s32 2, %v8172
  %v8174 = vrot.slane %v4155, %v8173
  %v8175 = vadd.f32 %v8139, %v8174
  %v8176 = vadd.f32 %v8140, %v8174
  %v8177 = vadd.f32 %v8141, %v8174
  %v8178 = vadd.f32 %v8142, %v8174
  %v8179 = vadd.f32 %v8143, %v8174
  %v8180 = vadd.f32 %v8144, %v8174
  %v8181 = vadd.f32 %v8145, %v8174
  %v8182 = vadd.f32 %v8146, %v8174
  %v8183 = vadd.f32 %v8147, %v8174
  %v8184 = vadd.f32 %v8148, %v8174
  %v8185 = vadd.f32 %v8149, %v8174
  %v8186 = vadd.f32 %v8150, %v8174
  %v8187 = vadd.f32 %v8151, %v8174
  %v8188 = vadd.f32 %v8152, %v8174
  %v8189 = vadd.f32 %v8153, %v8174
  %v8190 = vadd.f32 %v8154, %v8174
  %v8191 = vadd.f32 %v8155, %v8174
  %v8192 = vadd.f32 %v8156, %v8174
  %v8193 = vadd.f32 %v8157, %v8174
  %v8194 = vadd.f32 %v8158, %v8174
  %v8195 = vadd.f32 %v8159, %v8174
  %v8196 = vadd.f32 %v8160, %v8174
  %v8197 = vadd.f32 %v8161, %v8174
  %v8198 = vadd.f32 %v8162, %v8174
  %v8199 = vadd.f32 %v8163, %v8174
  %v8200 = vadd.f32 %v8164, %v8174
  %v8201 = vadd.f32 %v8165, %v8174
  %v8202 = vadd.f32 %v8166, %v8174
  %v8203 = vadd.f32 %v8167, %v8174
  %v8204 = vadd.f32 %v8168, %v8174
  %v8205 = vadd.f32 %v8169, %v8174
  %v8206 = vadd.f32 %v8170, %v8174
  %v8239 = vrot.slane %v8176, 7
  %v8240 = vsel %vm4254, %v8239, %v8175
  %v8241 = vrot.slane %v8177, 6
  %v8242 = vsel %vm4257, %v8241, %v8240
  %v8243 = vrot.slane %v8178, 5
  %v8244 = vsel %vm4260, %v8243, %v8242
  %v8245 = vrot.slane %v8179, 4
  %v8246 = vsel %vm4263, %v8245, %v8244
  %v8247 = vrot.slane %v8180, 3
  %v8248 = vsel %vm4266, %v8247, %v8246
  %v8249 = vrot.slane %v8181, 2
  %v8250 = vsel %vm4269, %v8249, %v8248
  %v8251 = vrot.slane %v8182, 1
  %v8252 = vsel %vm4272, %v8251, %v8250
  %v8253 = vrot.slane %v8184, 7
  %v8254 = vsel %vm4254, %v8253, %v8183
  %v8255 = vrot.slane %v8185, 6
  %v8256 = vsel %vm4257, %v8255, %v8254
  %v8257 = vrot.slane %v8186, 5
  %v8258 = vsel %vm4260, %v8257, %v8256
  %v8259 = vrot.slane %v8187, 4
  %v8260 = vsel %vm4263, %v8259, %v8258
  %v8261 = vrot.slane %v8188, 3
  %v8262 = vsel %vm4266, %v8261, %v8260
  %v8263 = vrot.slane %v8189, 2
  %v8264 = vsel %vm4269, %v8263, %v8262
  %v8265 = vrot.slane %v8190, 1
  %v8266 = vsel %vm4272, %v8265, %v8264
  %v8267 = vrot.slane %v8192, 7
  %v8268 = vsel %vm4254, %v8267, %v8191
  %v8269 = vrot.slane %v8193, 6
  %v8270 = vsel %vm4257, %v8269, %v8268
  %v8271 = vrot.slane %v8194, 5
  %v8272 = vsel %vm4260, %v8271, %v8270
  %v8273 = vrot.slane %v8195, 4
  %v8274 = vsel %vm4263, %v8273, %v8272
  %v8275 = vrot.slane %v8196, 3
  %v8276 = vsel %vm4266, %v8275, %v8274
  %v8277 = vrot.slane %v8197, 2
  %v8278 = vsel %vm4269, %v8277, %v8276
  %v8279 = vrot.slane %v8198, 1
  %v8280 = vsel %vm4272, %v8279, %v8278
  %v8281 = vrot.slane %v8200, 7
  %v8282 = vsel %vm4254, %v8281, %v8199
  %v8283 = vrot.slane %v8201, 6
  %v8284 = vsel %vm4257, %v8283, %v8282
  %v8285 = vrot.slane %v8202, 5
  %v8286 = vsel %vm4260, %v8285, %v8284
  %v8287 = vrot.slane %v8203, 4
  %v8288 = vsel %vm4263, %v8287, %v8286
  %v8289 = vrot.slane %v8204, 3
  %v8290 = vsel %vm4266, %v8289, %v8288
  %v8291 = vrot.slane %v8205, 2
  %v8292 = vsel %vm4269, %v8291, %v8290
  %v8293 = vrot.slane %v8206, 1
  %v8294 = vsel %vm4272, %v8293, %v8292
  %8299 = vst.msk [vmem:[%s8] sm:$0xff] %vm5349, %v8252
  %8300 = vst.msk [vmem:[%s8 + $0x8] sm:$0xff] %vm5349, %v8266
  %8301 = vst.msk [vmem:[%s8 + $0x10] sm:$0xff] %vm5349, %v8280
  %8302 = vst.msk [vmem:[%s8 + $0x18] sm:$0xff] %vm5349, %v8294
  // Predicated region
  $region34: #{tpu_custom_call.1} parent=0 // pred_check
    _
  $region35: #{tpu_custom_call.1} parent=0 // pred_check_branch
    %8304 = sbr.rel (0) target = $region37
  $region36: #{tpu_custom_call.1} parent=0 // pred_region
    _
  $region37: #{tpu_custom_call.1} parent=0 // pred_fallthru
    _
  // Predicated region
  $region38: #{tpu_custom_call.1} parent=0 // pred_check
    _
  $region39: #{tpu_custom_call.1} parent=0 // pred_check_branch
    %8306 = sbr.rel (0) target = $region41
  $region40: #{tpu_custom_call.1} parent=0 // pred_region
    _
  $region41: #{tpu_custom_call.1} parent=0 // pred_fallthru
    _

</llo_original>
